<compile_context>
chip_gen: v5e
topology: v5e:2x2
jax: 0.10.0
libtpu: 0.0.40
codegen_flags: <defaults>
</compile_context>

<pallas_src>
import functools

import jax
import jax.numpy as jnp
from jax.experimental import pallas as pl
from jax.experimental.pallas import tpu as pltpu


# ----------------------------------------------------------------------------
# Fused forward kernel (one batch tile per grid step)
# ----------------------------------------------------------------------------
def _mynet_kernel(p1_ref, w1_ref, b1_ref, w2_ref, b2_ref,
                  wf1_ref, bf1_ref, wf2_ref, bf2_ref,
                  out_ref, h1s_ref, c2s_ref, *, bn):
    f32 = jnp.float32
    bf16 = jnp.bfloat16

    # --- conv1: ONE K=128 matmul; the 4 pool quadrants live in 32-lane groups
    # of the block-diagonal packed weight, so the 2x2 maxpool is a 4-way max
    # across lane groups done with two XLU rolls.
    q = jnp.dot(p1_ref[...], w1_ref[...], preferred_element_type=f32)  # (bn*144,128)
    q = jnp.maximum(q, pltpu.roll(q, shift=64, axis=1))
    q = jnp.maximum(q, pltpu.roll(q, shift=32, axis=1))
    h1 = jnp.maximum(q + b1_ref[...], 0.0)                   # bias + ReLU
    # Lanes >= 10 hold junk partial maxes; harmless because the conv2 weight
    # rows for those input lanes are zero.  Stored bf16 (halves scratch + BW).
    h1s_ref[...] = h1.astype(bf16).reshape(bn, 12, 12, 128)

    # --- conv2 (10 -> 20, k=5): 13 K=256 matmuls (taps paired along K) with
    # f32 accumulation.  (Dropout2d: eval-mode identity.)
    acc = jnp.zeros((bn * 64, 128), f32)
    for p in range(13):
        ta, tb = 2 * p, 2 * p + 1
        kia, kja = divmod(ta, 5)
        win_a = h1s_ref[:, kia:kia + 8, kja:kja + 8, :]       # (bn,8,8,128) bf16
        if tb < 25:
            kib, kjb = divmod(tb, 5)
            win_b = h1s_ref[:, kib:kib + 8, kjb:kjb + 8, :]
        else:
            win_b = win_a                                     # weight half is zero
        win = jnp.concatenate([win_a, win_b], axis=-1).reshape(bn * 64, 256)
        acc = acc + jnp.dot(win, w2_ref[p], preferred_element_type=f32)
    c2s_ref[...] = (acc + b2_ref[...]).reshape(bn, 8, 8, 128)

    # --- 2x2 maxpool + ReLU; flatten in (hp, wp, c) order -- the NCHW
    # x.view(-1, 320) permutation is folded into the packed fc1 weight.
    pieces = []
    for hp in range(4):
        for wp in range(4):
            p00 = c2s_ref[:, 2 * hp,     2 * wp,     :]
            p01 = c2s_ref[:, 2 * hp,     2 * wp + 1, :]
            p10 = c2s_ref[:, 2 * hp + 1, 2 * wp,     :]
            p11 = c2s_ref[:, 2 * hp + 1, 2 * wp + 1, :]
            pieces.append(jnp.maximum(
                jnp.maximum(jnp.maximum(p00, p01), jnp.maximum(p10, p11)), 0.0))
    flat = jnp.concatenate(pieces, axis=-1)                   # (bn, 2048)

    # --- fc1 + ReLU  (F.dropout: eval-mode identity), fc2 + log_softmax.
    z1 = jnp.dot(flat.astype(bf16), wf1_ref[...],
                 preferred_element_type=f32) + bf1_ref[...]
    z1 = jnp.maximum(z1, 0.0)                                 # (bn, 128)
    z2 = jnp.dot(z1.astype(bf16), wf2_ref[...],
                 preferred_element_type=f32) + bf2_ref[...]   # (bn, 10)
    mx = jnp.max(z2, axis=1, keepdims=True)
    lse = jnp.log(jnp.sum(jnp.exp(z2 - mx), axis=1, keepdims=True)) + mx
    out_ref[...] = (z2 - lse).astype(out_ref.dtype)


# ----------------------------------------------------------------------------
# Host-side glue: weight packing + conv1 patch gather (a handful of tiny XLA ops)
# ----------------------------------------------------------------------------
def _pack_params(params):
    """Zero-pad / permute PyTorch-layout weights into MXU / lane friendly blocks."""
    w1, b1, w2, b2, wf1, bf1, wf2, bf2 = params
    f32, bf16 = jnp.float32, jnp.bfloat16

    # conv1: block-diagonal over the 4 pooling quadrants -> single K=128 pass.
    w1_block = w1.reshape(10, 25).T                              # (25 taps, 10 out)
    w1p = jnp.zeros((128, 128), f32)
    for q in range(4):
        w1p = w1p.at[32 * q:32 * q + 25, 32 * q:32 * q + 10].set(w1_block)
    w1p = w1p.astype(bf16)
    b1p = jnp.zeros((1, 128), f32).at[0, :10].set(b1)

    # conv2: taps paired along K (fills the 256-deep MXU on v6e/v7x);
    # tap 24 is unpaired -> its partner half stays zero.
    w2t = jnp.transpose(w2, (2, 3, 1, 0)).reshape(25, 10, 20)    # (tap, cin, cout)
    w2p = jnp.zeros((13, 256, 128), f32)
    w2p = w2p.at[:, :10, :20].set(w2t[0::2])
    w2p = w2p.at[:12, 128:138, :20].set(w2t[1::2])
    w2p = w2p.astype(bf16)
    b2p = jnp.zeros((1, 128), f32).at[0, :20].set(b2)

    # fc1: fold the NCHW flatten (k = c*16 + h*4 + w) into a (hp, wp, c)-ordered,
    # 128-channel-padded weight of shape (2048, 128).
    wf1p = jnp.zeros((4, 4, 128, 128), f32).at[:, :, :20, :50].set(
        jnp.transpose(wf1.reshape(50, 20, 4, 4), (2, 3, 1, 0)))
    wf1p = wf1p.reshape(2048, 128).astype(bf16)
    bf1p = jnp.zeros((1, 128), f32).at[0, :50].set(bf1)

    wf2p = jnp.zeros((128, 10), f32).at[:50, :].set(wf2.T).astype(bf16)
    bf2p = bf2.reshape(1, 10).astype(f32)
    return w1p, b1p, w2p, b2p, wf1p, bf1p, wf2p, bf2p


def _conv1_patches(x, n):
    """(n,1,28,28) -> (n*144, 128) bf16 conv1 im2col patches.
    Rows = (b, ho, wo) pooled-output positions (no wo padding);
    lanes = 4 pool quadrants x 32 (25 real taps + 7 zero pad)."""
    pat = jax.lax.conv_general_dilated_patches(
        x.astype(jnp.float32), (5, 5), (1, 1), 'VALID',
        dimension_numbers=('NCHW', 'OIHW', 'NCHW'))             # (n, 25, 24, 24)
    pat = jnp.transpose(pat, (0, 2, 3, 1))                      # (n, 24, 24, 25)
    pat = pat.reshape(n, 12, 2, 12, 2, 25)                      # (b, ho, hi, wo, wi, t)
    pat = jnp.transpose(pat, (0, 1, 3, 2, 4, 5))                # (b, ho, wo, hi, wi, t)
    pat = jnp.pad(pat, ((0, 0),) * 5 + ((0, 7),))               # taps 25 -> 32
    return pat.reshape(n * 144, 128).astype(jnp.bfloat16)


def mynetwork_forward(x, params, *, block_n=32):
    """Forward pass of MyNetwork (eval mode), fused into one Pallas kernel.

    block_n: batch tile per grid step. 32 is a good default (sweep 16-64);
    keep n/block_n >= 2 on v7x so both TensorCores get work.
    """
    n = x.shape[0]
    bn = block_n if n >= block_n else n
    n_pad = ((n + bn - 1) // bn) * bn
    if n_pad != n:
        x = jnp.pad(x, ((0, n_pad - n), (0, 0), (0, 0), (0, 0)))

    p1 = _conv1_patches(x, n_pad)
    w1p, b1p, w2p, b2p, wf1p, bf1p, wf2p, bf2p = _pack_params(params)

    # Advisory cost estimate: real MXU work + the (small) HBM traffic.
    flops = n_pad * (2 * 144 * 128 * 128          # conv1 (fused quadrants)
                     + 13 * 2 * 64 * 256 * 128    # conv2 (13 paired taps)
                     + 2 * 2048 * 128             # fc1
                     + 2 * 128 * 10)              # fc2
    weight_bytes = sum(int(w.size) * w.dtype.itemsize
                       for w in (w1p, b1p, w2p, b2p, wf1p, bf1p, wf2p, bf2p))
    cost = pl.CostEstimate(
        flops=flops,
        transcendentals=n_pad * 11,
        bytes_accessed=int(p1.size) * 2 + weight_bytes + n_pad * 10 * 4)

    # NOTE: grid-invariant weights are double-buffered by default (~1.3 MiB of
    # waste); with bn<=64 total VMEM stays well under the 48 MiB limit below,
    # so pipeline_mode=pl.Buffered(1) is not needed here.
    out = pl.pallas_call(
        functools.partial(_mynet_kernel, bn=bn),
        out_shape=jax.ShapeDtypeStruct((n_pad, 10), jnp.float32),
        grid=(n_pad // bn,),
        in_specs=[
            pl.BlockSpec((bn * 144, 128), lambda i: (i, 0)),     # conv1 patches
            pl.BlockSpec((128, 128), lambda i: (0, 0)),          # w1 (block-diag)
            pl.BlockSpec((1, 128), lambda i: (0, 0)),            # b1
            pl.BlockSpec((13, 256, 128), lambda i: (0, 0, 0)),   # w2 (paired taps)
            pl.BlockSpec((1, 128), lambda i: (0, 0)),            # b2
            pl.BlockSpec((2048, 128), lambda i: (0, 0)),         # fc1 (permuted)
            pl.BlockSpec((1, 128), lambda i: (0, 0)),            # bf1
            pl.BlockSpec((128, 10), lambda i: (0, 0)),           # fc2
            pl.BlockSpec((1, 10), lambda i: (0, 0)),             # bf2
        ],
        out_specs=pl.BlockSpec((bn, 10), lambda i: (i, 0)),
        scratch_shapes=[
            pltpu.VMEM((bn, 12, 12, 128), jnp.bfloat16),  # pooled conv1 activation
            pltpu.VMEM((bn, 8, 8, 128), jnp.float32),     # conv2 pre-pool output
        ],
        compiler_params=pltpu.CompilerParams(
            dimension_semantics=("parallel",),
            vmem_limit_bytes=48 * 1024 * 1024),
        cost_estimate=cost,
    )(p1, w1p, b1p, w2p, b2p, wf1p, bf1p, wf2p, bf2p)
    return out[:n]


# ----------------------------------------------------------------------------
# Parameter init + pure-JAX reference (correctness check)
# ----------------------------------------------------------------------------
def init_params(key):
    def u(k, shape, fan_in):
        bound = 1.0 / jnp.sqrt(float(fan_in))
        return jax.random.uniform(k, shape, jnp.float32, -bound, bound)

    ks = jax.random.split(key, 8)
    w1 = u(ks[0], (10, 1, 5, 5), 1 * 5 * 5)
    b1 = u(ks[1], (10,), 1 * 5 * 5)
    w2 = u(ks[2], (20, 10, 5, 5), 10 * 5 * 5)
    b2 = u(ks[3], (20,), 10 * 5 * 5)
    wf1 = u(ks[4], (50, 320), 320)
    bf1 = u(ks[5], (50,), 320)
    wf2 = u(ks[6], (10, 50), 50)
    bf2 = u(ks[7], (10,), 50)
    return (w1, b1, w2, b2, wf1, bf1, wf2, bf2)


def reference_forward(x, params):
    w1, b1, w2, b2, wf1, bf1, wf2, bf2 = params
    dn = ("NCHW", "OIHW", "NCHW")

    def conv(x_, w_, b_):
        y = jax.lax.conv_general_dilated(x_, w_, (1, 1), "VALID", dimension_numbers=dn)
        return y + b_.reshape(1, -1, 1, 1)

    def pool(x_):
        return jax.lax.reduce_window(x_, -jnp.inf, jax.lax.max,
                                     (1, 1, 2, 2), (1, 1, 2, 2), "VALID")

    h = jax.nn.relu(pool(conv(x, w1, b1)))
    h = jax.nn.relu(pool(conv(h, w2, b2)))
    h = h.reshape(x.shape[0], 320)
    h = jax.nn.relu(h @ wf1.T + bf1)
    z = h @ wf2.T + bf2
    return jax.nn.log_softmax(z, axis=1)


if __name__ == "__main__":
    key = jax.random.PRNGKey(0)
    k_x, k_p = jax.random.split(key)

    # MNIST-shaped input (28x28 -> 320 flat features), small batch.
    x = jax.random.normal(k_x, (2, 1, 28, 28), dtype=jnp.float32)
    params = init_params(k_p)

    out = jax.block_until_ready(mynetwork_forward(x, params))
    ref = jax.block_until_ready(reference_forward(x, params))

    assert out.shape == (2, 10), out.shape
    max_err = float(jnp.max(jnp.abs(out - ref)))
    # bf16 matmul inputs (incl. conv1 patches) with f32 accumulation -> loose tol.
    assert jnp.allclose(out, ref, atol=5e-2, rtol=5e-2), max_err

    print("KERNEL_OK")
</pallas_src>

<mosaic_0001>
module attributes {stable_mosaic.version = 11 : i64} {
  func.func @_mynet_kernel(%arg0: i32, %arg1: memref<288x128xbf16, #tpu.memory_space<vmem>>, %arg2: memref<128x128xbf16, #tpu.memory_space<vmem>>, %arg3: memref<1x128xf32, #tpu.memory_space<vmem>>, %arg4: memref<13x256x128xbf16, #tpu.memory_space<vmem>>, %arg5: memref<1x128xf32, #tpu.memory_space<vmem>>, %arg6: memref<2048x128xbf16, #tpu.memory_space<vmem>>, %arg7: memref<1x128xf32, #tpu.memory_space<vmem>>, %arg8: memref<128x10xbf16, #tpu.memory_space<vmem>>, %arg9: memref<1x10xf32, #tpu.memory_space<vmem>>, %arg10: memref<2x10xf32, #tpu.memory_space<vmem>>, %arg11: memref<2x12x12x128xbf16, #tpu.memory_space<vmem>>, %arg12: memref<2x8x8x128xf32, #tpu.memory_space<vmem>>) attributes {dimension_semantics = [#tpu.dimension_semantics<parallel>], iteration_bounds = array<i64: 1>, scalar_prefetch = 0 : i64, scratch_operands = 2 : i64, tpu.core_type = #tpu.core_type<tc>, window_params = [{transform_indices = @transform_0, window_bounds = array<i64: 288, 128>}, {pipeline_mode = #tpu.pipeline_mode<synchronous>, transform_indices = @transform_1, window_bounds = array<i64: 128, 128>}, {pipeline_mode = #tpu.pipeline_mode<synchronous>, transform_indices = @transform_2, window_bounds = array<i64: 1, 128>}, {pipeline_mode = #tpu.pipeline_mode<synchronous>, transform_indices = @transform_3, window_bounds = array<i64: 13, 256, 128>}, {pipeline_mode = #tpu.pipeline_mode<synchronous>, transform_indices = @transform_4, window_bounds = array<i64: 1, 128>}, {pipeline_mode = #tpu.pipeline_mode<synchronous>, transform_indices = @transform_5, window_bounds = array<i64: 2048, 128>}, {pipeline_mode = #tpu.pipeline_mode<synchronous>, transform_indices = @transform_6, window_bounds = array<i64: 1, 128>}, {pipeline_mode = #tpu.pipeline_mode<synchronous>, transform_indices = @transform_7, window_bounds = array<i64: 128, 10>}, {pipeline_mode = #tpu.pipeline_mode<synchronous>, transform_indices = @transform_8, window_bounds = array<i64: 1, 10>}, {transform_indices = @transform_9, window_bounds = array<i64: 2, 10>}]} {
    %c0 = arith.constant 0 : index
    %c0_0 = arith.constant 0 : index
    %0 = vector.load %arg1[%c0, %c0_0] : memref<288x128xbf16, #tpu.memory_space<vmem>>, vector<288x128xbf16>
    %c0_1 = arith.constant 0 : index
    %c0_2 = arith.constant 0 : index
    %1 = vector.load %arg2[%c0_1, %c0_2] : memref<128x128xbf16, #tpu.memory_space<vmem>>, vector<128x128xbf16>
    %cst = arith.constant dense<0.000000e+00> : vector<288x128xf32>
    %2 = tpu.matmul %0, %1, %cst {dimension_numbers = #tpu.dot_dimension_numbers<[1], [0], [0], [1], [0, 0, 1, 1], [], []>} : vector<288x128xbf16>, vector<128x128xbf16>, vector<288x128xf32> -> vector<288x128xf32>
    %c64_i32 = arith.constant 64 : i32
    %3 = tpu.dynamic_rotate %2 by %c64_i32 dim 1 : vector<288x128xf32>, i32 -> vector<288x128xf32>
    %4 = arith.maximumf %2, %3 : vector<288x128xf32>
    %c32_i32 = arith.constant 32 : i32
    %5 = tpu.dynamic_rotate %4 by %c32_i32 dim 1 : vector<288x128xf32>, i32 -> vector<288x128xf32>
    %6 = arith.maximumf %4, %5 : vector<288x128xf32>
    %c0_3 = arith.constant 0 : index
    %c0_4 = arith.constant 0 : index
    %7 = vector.load %arg3[%c0_3, %c0_4] : memref<1x128xf32, #tpu.memory_space<vmem>>, vector<1x128xf32>
    %8 = vector.broadcast %7 : vector<1x128xf32> to vector<288x128xf32>
    %9 = arith.addf %6, %8 : vector<288x128xf32>
    %cst_5 = arith.constant 0.000000e+00 : f32
    %10 = vector.broadcast %cst_5 : f32 to vector<288x128xf32>
    %11 = arith.maximumf %9, %10 : vector<288x128xf32>
    %12 = arith.truncf %11 : vector<288x128xf32> to vector<288x128xbf16>
    %13 = vector.shape_cast %12 : vector<288x128xbf16> to vector<2x12x12x128xbf16>
    %c0_6 = arith.constant 0 : index
    %c0_7 = arith.constant 0 : index
    %c0_8 = arith.constant 0 : index
    %c0_9 = arith.constant 0 : index
    %14 = vector.load %arg11[%c0_6, %c0_7, %c0_8, %c0_9] : memref<2x12x12x128xbf16, #tpu.memory_space<vmem>>, vector<2x12x12x128xbf16>
    tpu.vector_store %arg11[%c0_6, %c0_7, %c0_8, %c0_9], %13 {strides = array<i32>} : memref<2x12x12x128xbf16, #tpu.memory_space<vmem>>, vector<2x12x12x128xbf16>,
    %cst_10 = arith.constant 0.000000e+00 : f32
    %15 = vector.broadcast %cst_10 : f32 to vector<128x128xf32>
    %c0_11 = arith.constant 0 : index
    %c0_12 = arith.constant 0 : index
    %c0_13 = arith.constant 0 : index
    %c0_14 = arith.constant 0 : index
    %16 = vector.load %arg11[%c0_11, %c0_12, %c0_13, %c0_14] : memref<2x12x12x128xbf16, #tpu.memory_space<vmem>>, vector<2x8x8x128xbf16>
    %c0_15 = arith.constant 0 : index
    %c0_16 = arith.constant 0 : index
    %c1 = arith.constant 1 : index
    %c0_17 = arith.constant 0 : index
    %17 = vector.load %arg11[%c0_15, %c0_16, %c1, %c0_17] : memref<2x12x12x128xbf16, #tpu.memory_space<vmem>>, vector<2x8x8x128xbf16>
    %18 = tpu.concatenate %16, %17 in 3 : vector<2x8x8x128xbf16>, vector<2x8x8x128xbf16> -> vector<2x8x8x256xbf16>
    %19 = vector.shape_cast %18 : vector<2x8x8x256xbf16> to vector<128x256xbf16>
    %c0_18 = arith.constant 0 : index
    %c0_19 = arith.constant 0 : index
    %c0_20 = arith.constant 0 : index
    %20 = vector.load %arg4[%c0_18, %c0_19, %c0_20] : memref<13x256x128xbf16, #tpu.memory_space<vmem>>, vector<1x256x128xbf16>
    %21 = vector.shape_cast %20 : vector<1x256x128xbf16> to vector<256x128xbf16>
    %cst_21 = arith.constant dense<0.000000e+00> : vector<128x128xf32>
    %22 = tpu.matmul %19, %21, %cst_21 {dimension_numbers = #tpu.dot_dimension_numbers<[1], [0], [0], [1], [0, 0, 1, 1], [], []>} : vector<128x256xbf16>, vector<256x128xbf16>, vector<128x128xf32> -> vector<128x128xf32>
    %23 = arith.addf %15, %22 : vector<128x128xf32>
    %c0_22 = arith.constant 0 : index
    %c0_23 = arith.constant 0 : index
    %c2 = arith.constant 2 : index
    %c0_24 = arith.constant 0 : index
    %24 = vector.load %arg11[%c0_22, %c0_23, %c2, %c0_24] : memref<2x12x12x128xbf16, #tpu.memory_space<vmem>>, vector<2x8x8x128xbf16>
    %c0_25 = arith.constant 0 : index
    %c0_26 = arith.constant 0 : index
    %c3 = arith.constant 3 : index
    %c0_27 = arith.constant 0 : index
    %25 = vector.load %arg11[%c0_25, %c0_26, %c3, %c0_27] : memref<2x12x12x128xbf16, #tpu.memory_space<vmem>>, vector<2x8x8x128xbf16>
    %26 = tpu.concatenate %24, %25 in 3 : vector<2x8x8x128xbf16>, vector<2x8x8x128xbf16> -> vector<2x8x8x256xbf16>
    %27 = vector.shape_cast %26 : vector<2x8x8x256xbf16> to vector<128x256xbf16>
    %c1_28 = arith.constant 1 : index
    %c0_29 = arith.constant 0 : index
    %c0_30 = arith.constant 0 : index
    %28 = vector.load %arg4[%c1_28, %c0_29, %c0_30] : memref<13x256x128xbf16, #tpu.memory_space<vmem>>, vector<1x256x128xbf16>
    %29 = vector.shape_cast %28 : vector<1x256x128xbf16> to vector<256x128xbf16>
    %cst_31 = arith.constant dense<0.000000e+00> : vector<128x128xf32>
    %30 = tpu.matmul %27, %29, %cst_31 {dimension_numbers = #tpu.dot_dimension_numbers<[1], [0], [0], [1], [0, 0, 1, 1], [], []>} : vector<128x256xbf16>, vector<256x128xbf16>, vector<128x128xf32> -> vector<128x128xf32>
    %31 = arith.addf %23, %30 : vector<128x128xf32>
    %c0_32 = arith.constant 0 : index
    %c0_33 = arith.constant 0 : index
    %c4 = arith.constant 4 : index
    %c0_34 = arith.constant 0 : index
    %32 = vector.load %arg11[%c0_32, %c0_33, %c4, %c0_34] : memref<2x12x12x128xbf16, #tpu.memory_space<vmem>>, vector<2x8x8x128xbf16>
    %c0_35 = arith.constant 0 : index
    %c1_36 = arith.constant 1 : index
    %c0_37 = arith.constant 0 : index
    %c0_38 = arith.constant 0 : index
    %33 = vector.load %arg11[%c0_35, %c1_36, %c0_37, %c0_38] : memref<2x12x12x128xbf16, #tpu.memory_space<vmem>>, vector<2x8x8x128xbf16>
    %34 = tpu.concatenate %32, %33 in 3 : vector<2x8x8x128xbf16>, vector<2x8x8x128xbf16> -> vector<2x8x8x256xbf16>
    %35 = vector.shape_cast %34 : vector<2x8x8x256xbf16> to vector<128x256xbf16>
    %c2_39 = arith.constant 2 : index
    %c0_40 = arith.constant 0 : index
    %c0_41 = arith.constant 0 : index
    %36 = vector.load %arg4[%c2_39, %c0_40, %c0_41] : memref<13x256x128xbf16, #tpu.memory_space<vmem>>, vector<1x256x128xbf16>
    %37 = vector.shape_cast %36 : vector<1x256x128xbf16> to vector<256x128xbf16>
    %cst_42 = arith.constant dense<0.000000e+00> : vector<128x128xf32>
    %38 = tpu.matmul %35, %37, %cst_42 {dimension_numbers = #tpu.dot_dimension_numbers<[1], [0], [0], [1], [0, 0, 1, 1], [], []>} : vector<128x256xbf16>, vector<256x128xbf16>, vector<128x128xf32> -> vector<128x128xf32>
    %39 = arith.addf %31, %38 : vector<128x128xf32>
    %c0_43 = arith.constant 0 : index
    %c1_44 = arith.constant 1 : index
    %c1_45 = arith.constant 1 : index
    %c0_46 = arith.constant 0 : index
    %40 = vector.load %arg11[%c0_43, %c1_44, %c1_45, %c0_46] : memref<2x12x12x128xbf16, #tpu.memory_space<vmem>>, vector<2x8x8x128xbf16>
    %c0_47 = arith.constant 0 : index
    %c1_48 = arith.constant 1 : index
    %c2_49 = arith.constant 2 : index
    %c0_50 = arith.constant 0 : index
    %41 = vector.load %arg11[%c0_47, %c1_48, %c2_49, %c0_50] : memref<2x12x12x128xbf16, #tpu.memory_space<vmem>>, vector<2x8x8x128xbf16>
    %42 = tpu.concatenate %40, %41 in 3 : vector<2x8x8x128xbf16>, vector<2x8x8x128xbf16> -> vector<2x8x8x256xbf16>
    %43 = vector.shape_cast %42 : vector<2x8x8x256xbf16> to vector<128x256xbf16>
    %c3_51 = arith.constant 3 : index
    %c0_52 = arith.constant 0 : index
    %c0_53 = arith.constant 0 : index
    %44 = vector.load %arg4[%c3_51, %c0_52, %c0_53] : memref<13x256x128xbf16, #tpu.memory_space<vmem>>, vector<1x256x128xbf16>
    %45 = vector.shape_cast %44 : vector<1x256x128xbf16> to vector<256x128xbf16>
    %cst_54 = arith.constant dense<0.000000e+00> : vector<128x128xf32>
    %46 = tpu.matmul %43, %45, %cst_54 {dimension_numbers = #tpu.dot_dimension_numbers<[1], [0], [0], [1], [0, 0, 1, 1], [], []>} : vector<128x256xbf16>, vector<256x128xbf16>, vector<128x128xf32> -> vector<128x128xf32>
    %47 = arith.addf %39, %46 : vector<128x128xf32>
    %c0_55 = arith.constant 0 : index
    %c1_56 = arith.constant 1 : index
    %c3_57 = arith.constant 3 : index
    %c0_58 = arith.constant 0 : index
    %48 = vector.load %arg11[%c0_55, %c1_56, %c3_57, %c0_58] : memref<2x12x12x128xbf16, #tpu.memory_space<vmem>>, vector<2x8x8x128xbf16>
    %c0_59 = arith.constant 0 : index
    %c1_60 = arith.constant 1 : index
    %c4_61 = arith.constant 4 : index
    %c0_62 = arith.constant 0 : index
    %49 = vector.load %arg11[%c0_59, %c1_60, %c4_61, %c0_62] : memref<2x12x12x128xbf16, #tpu.memory_space<vmem>>, vector<2x8x8x128xbf16>
    %50 = tpu.concatenate %48, %49 in 3 : vector<2x8x8x128xbf16>, vector<2x8x8x128xbf16> -> vector<2x8x8x256xbf16>
    %51 = vector.shape_cast %50 : vector<2x8x8x256xbf16> to vector<128x256xbf16>
    %c4_63 = arith.constant 4 : index
    %c0_64 = arith.constant 0 : index
    %c0_65 = arith.constant 0 : index
    %52 = vector.load %arg4[%c4_63, %c0_64, %c0_65] : memref<13x256x128xbf16, #tpu.memory_space<vmem>>, vector<1x256x128xbf16>
    %53 = vector.shape_cast %52 : vector<1x256x128xbf16> to vector<256x128xbf16>
    %cst_66 = arith.constant dense<0.000000e+00> : vector<128x128xf32>
    %54 = tpu.matmul %51, %53, %cst_66 {dimension_numbers = #tpu.dot_dimension_numbers<[1], [0], [0], [1], [0, 0, 1, 1], [], []>} : vector<128x256xbf16>, vector<256x128xbf16>, vector<128x128xf32> -> vector<128x128xf32>
    %55 = arith.addf %47, %54 : vector<128x128xf32>
    %c0_67 = arith.constant 0 : index
    %c2_68 = arith.constant 2 : index
    %c0_69 = arith.constant 0 : index
    %c0_70 = arith.constant 0 : index
    %56 = vector.load %arg11[%c0_67, %c2_68, %c0_69, %c0_70] : memref<2x12x12x128xbf16, #tpu.memory_space<vmem>>, vector<2x8x8x128xbf16>
    %c0_71 = arith.constant 0 : index
    %c2_72 = arith.constant 2 : index
    %c1_73 = arith.constant 1 : index
    %c0_74 = arith.constant 0 : index
    %57 = vector.load %arg11[%c0_71, %c2_72, %c1_73, %c0_74] : memref<2x12x12x128xbf16, #tpu.memory_space<vmem>>, vector<2x8x8x128xbf16>
    %58 = tpu.concatenate %56, %57 in 3 : vector<2x8x8x128xbf16>, vector<2x8x8x128xbf16> -> vector<2x8x8x256xbf16>
    %59 = vector.shape_cast %58 : vector<2x8x8x256xbf16> to vector<128x256xbf16>
    %c5 = arith.constant 5 : index
    %c0_75 = arith.constant 0 : index
    %c0_76 = arith.constant 0 : index
    %60 = vector.load %arg4[%c5, %c0_75, %c0_76] : memref<13x256x128xbf16, #tpu.memory_space<vmem>>, vector<1x256x128xbf16>
    %61 = vector.shape_cast %60 : vector<1x256x128xbf16> to vector<256x128xbf16>
    %cst_77 = arith.constant dense<0.000000e+00> : vector<128x128xf32>
    %62 = tpu.matmul %59, %61, %cst_77 {dimension_numbers = #tpu.dot_dimension_numbers<[1], [0], [0], [1], [0, 0, 1, 1], [], []>} : vector<128x256xbf16>, vector<256x128xbf16>, vector<128x128xf32> -> vector<128x128xf32>
    %63 = arith.addf %55, %62 : vector<128x128xf32>
    %c0_78 = arith.constant 0 : index
    %c2_79 = arith.constant 2 : index
    %c2_80 = arith.constant 2 : index
    %c0_81 = arith.constant 0 : index
    %64 = vector.load %arg11[%c0_78, %c2_79, %c2_80, %c0_81] : memref<2x12x12x128xbf16, #tpu.memory_space<vmem>>, vector<2x8x8x128xbf16>
    %c0_82 = arith.constant 0 : index
    %c2_83 = arith.constant 2 : index
    %c3_84 = arith.constant 3 : index
    %c0_85 = arith.constant 0 : index
    %65 = vector.load %arg11[%c0_82, %c2_83, %c3_84, %c0_85] : memref<2x12x12x128xbf16, #tpu.memory_space<vmem>>, vector<2x8x8x128xbf16>
    %66 = tpu.concatenate %64, %65 in 3 : vector<2x8x8x128xbf16>, vector<2x8x8x128xbf16> -> vector<2x8x8x256xbf16>
    %67 = vector.shape_cast %66 : vector<2x8x8x256xbf16> to vector<128x256xbf16>
    %c6 = arith.constant 6 : index
    %c0_86 = arith.constant 0 : index
    %c0_87 = arith.constant 0 : index
    %68 = vector.load %arg4[%c6, %c0_86, %c0_87] : memref<13x256x128xbf16, #tpu.memory_space<vmem>>, vector<1x256x128xbf16>
    %69 = vector.shape_cast %68 : vector<1x256x128xbf16> to vector<256x128xbf16>
    %cst_88 = arith.constant dense<0.000000e+00> : vector<128x128xf32>
    %70 = tpu.matmul %67, %69, %cst_88 {dimension_numbers = #tpu.dot_dimension_numbers<[1], [0], [0], [1], [0, 0, 1, 1], [], []>} : vector<128x256xbf16>, vector<256x128xbf16>, vector<128x128xf32> -> vector<128x128xf32>
    %71 = arith.addf %63, %70 : vector<128x128xf32>
    %c0_89 = arith.constant 0 : index
    %c2_90 = arith.constant 2 : index
    %c4_91 = arith.constant 4 : index
    %c0_92 = arith.constant 0 : index
    %72 = vector.load %arg11[%c0_89, %c2_90, %c4_91, %c0_92] : memref<2x12x12x128xbf16, #tpu.memory_space<vmem>>, vector<2x8x8x128xbf16>
    %c0_93 = arith.constant 0 : index
    %c3_94 = arith.constant 3 : index
    %c0_95 = arith.constant 0 : index
    %c0_96 = arith.constant 0 : index
    %73 = vector.load %arg11[%c0_93, %c3_94, %c0_95, %c0_96] : memref<2x12x12x128xbf16, #tpu.memory_space<vmem>>, vector<2x8x8x128xbf16>
    %74 = tpu.concatenate %72, %73 in 3 : vector<2x8x8x128xbf16>, vector<2x8x8x128xbf16> -> vector<2x8x8x256xbf16>
    %75 = vector.shape_cast %74 : vector<2x8x8x256xbf16> to vector<128x256xbf16>
    %c7 = arith.constant 7 : index
    %c0_97 = arith.constant 0 : index
    %c0_98 = arith.constant 0 : index
    %76 = vector.load %arg4[%c7, %c0_97, %c0_98] : memref<13x256x128xbf16, #tpu.memory_space<vmem>>, vector<1x256x128xbf16>
    %77 = vector.shape_cast %76 : vector<1x256x128xbf16> to vector<256x128xbf16>
    %cst_99 = arith.constant dense<0.000000e+00> : vector<128x128xf32>
    %78 = tpu.matmul %75, %77, %cst_99 {dimension_numbers = #tpu.dot_dimension_numbers<[1], [0], [0], [1], [0, 0, 1, 1], [], []>} : vector<128x256xbf16>, vector<256x128xbf16>, vector<128x128xf32> -> vector<128x128xf32>
    %79 = arith.addf %71, %78 : vector<128x128xf32>
    %c0_100 = arith.constant 0 : index
    %c3_101 = arith.constant 3 : index
    %c1_102 = arith.constant 1 : index
    %c0_103 = arith.constant 0 : index
    %80 = vector.load %arg11[%c0_100, %c3_101, %c1_102, %c0_103] : memref<2x12x12x128xbf16, #tpu.memory_space<vmem>>, vector<2x8x8x128xbf16>
    %c0_104 = arith.constant 0 : index
    %c3_105 = arith.constant 3 : index
    %c2_106 = arith.constant 2 : index
    %c0_107 = arith.constant 0 : index
    %81 = vector.load %arg11[%c0_104, %c3_105, %c2_106, %c0_107] : memref<2x12x12x128xbf16, #tpu.memory_space<vmem>>, vector<2x8x8x128xbf16>
    %82 = tpu.concatenate %80, %81 in 3 : vector<2x8x8x128xbf16>, vector<2x8x8x128xbf16> -> vector<2x8x8x256xbf16>
    %83 = vector.shape_cast %82 : vector<2x8x8x256xbf16> to vector<128x256xbf16>
    %c8 = arith.constant 8 : index
    %c0_108 = arith.constant 0 : index
    %c0_109 = arith.constant 0 : index
    %84 = vector.load %arg4[%c8, %c0_108, %c0_109] : memref<13x256x128xbf16, #tpu.memory_space<vmem>>, vector<1x256x128xbf16>
    %85 = vector.shape_cast %84 : vector<1x256x128xbf16> to vector<256x128xbf16>
    %cst_110 = arith.constant dense<0.000000e+00> : vector<128x128xf32>
    %86 = tpu.matmul %83, %85, %cst_110 {dimension_numbers = #tpu.dot_dimension_numbers<[1], [0], [0], [1], [0, 0, 1, 1], [], []>} : vector<128x256xbf16>, vector<256x128xbf16>, vector<128x128xf32> -> vector<128x128xf32>
    %87 = arith.addf %79, %86 : vector<128x128xf32>
    %c0_111 = arith.constant 0 : index
    %c3_112 = arith.constant 3 : index
    %c3_113 = arith.constant 3 : index
    %c0_114 = arith.constant 0 : index
    %88 = vector.load %arg11[%c0_111, %c3_112, %c3_113, %c0_114] : memref<2x12x12x128xbf16, #tpu.memory_space<vmem>>, vector<2x8x8x128xbf16>
    %c0_115 = arith.constant 0 : index
    %c3_116 = arith.constant 3 : index
    %c4_117 = arith.constant 4 : index
    %c0_118 = arith.constant 0 : index
    %89 = vector.load %arg11[%c0_115, %c3_116, %c4_117, %c0_118] : memref<2x12x12x128xbf16, #tpu.memory_space<vmem>>, vector<2x8x8x128xbf16>
    %90 = tpu.concatenate %88, %89 in 3 : vector<2x8x8x128xbf16>, vector<2x8x8x128xbf16> -> vector<2x8x8x256xbf16>
    %91 = vector.shape_cast %90 : vector<2x8x8x256xbf16> to vector<128x256xbf16>
    %c9 = arith.constant 9 : index
    %c0_119 = arith.constant 0 : index
    %c0_120 = arith.constant 0 : index
    %92 = vector.load %arg4[%c9, %c0_119, %c0_120] : memref<13x256x128xbf16, #tpu.memory_space<vmem>>, vector<1x256x128xbf16>
    %93 = vector.shape_cast %92 : vector<1x256x128xbf16> to vector<256x128xbf16>
    %cst_121 = arith.constant dense<0.000000e+00> : vector<128x128xf32>
    %94 = tpu.matmul %91, %93, %cst_121 {dimension_numbers = #tpu.dot_dimension_numbers<[1], [0], [0], [1], [0, 0, 1, 1], [], []>} : vector<128x256xbf16>, vector<256x128xbf16>, vector<128x128xf32> -> vector<128x128xf32>
    %95 = arith.addf %87, %94 : vector<128x128xf32>
    %c0_122 = arith.constant 0 : index
    %c4_123 = arith.constant 4 : index
    %c0_124 = arith.constant 0 : index
    %c0_125 = arith.constant 0 : index
    %96 = vector.load %arg11[%c0_122, %c4_123, %c0_124, %c0_125] : memref<2x12x12x128xbf16, #tpu.memory_space<vmem>>, vector<2x8x8x128xbf16>
    %c0_126 = arith.constant 0 : index
    %c4_127 = arith.constant 4 : index
    %c1_128 = arith.constant 1 : index
    %c0_129 = arith.constant 0 : index
    %97 = vector.load %arg11[%c0_126, %c4_127, %c1_128, %c0_129] : memref<2x12x12x128xbf16, #tpu.memory_space<vmem>>, vector<2x8x8x128xbf16>
    %98 = tpu.concatenate %96, %97 in 3 : vector<2x8x8x128xbf16>, vector<2x8x8x128xbf16> -> vector<2x8x8x256xbf16>
    %99 = vector.shape_cast %98 : vector<2x8x8x256xbf16> to vector<128x256xbf16>
    %c10 = arith.constant 10 : index
    %c0_130 = arith.constant 0 : index
    %c0_131 = arith.constant 0 : index
    %100 = vector.load %arg4[%c10, %c0_130, %c0_131] : memref<13x256x128xbf16, #tpu.memory_space<vmem>>, vector<1x256x128xbf16>
    %101 = vector.shape_cast %100 : vector<1x256x128xbf16> to vector<256x128xbf16>
    %cst_132 = arith.constant dense<0.000000e+00> : vector<128x128xf32>
    %102 = tpu.matmul %99, %101, %cst_132 {dimension_numbers = #tpu.dot_dimension_numbers<[1], [0], [0], [1], [0, 0, 1, 1], [], []>} : vector<128x256xbf16>, vector<256x128xbf16>, vector<128x128xf32> -> vector<128x128xf32>
    %103 = arith.addf %95, %102 : vector<128x128xf32>
    %c0_133 = arith.constant 0 : index
    %c4_134 = arith.constant 4 : index
    %c2_135 = arith.constant 2 : index
    %c0_136 = arith.constant 0 : index
    %104 = vector.load %arg11[%c0_133, %c4_134, %c2_135, %c0_136] : memref<2x12x12x128xbf16, #tpu.memory_space<vmem>>, vector<2x8x8x128xbf16>
    %c0_137 = arith.constant 0 : index
    %c4_138 = arith.constant 4 : index
    %c3_139 = arith.constant 3 : index
    %c0_140 = arith.constant 0 : index
    %105 = vector.load %arg11[%c0_137, %c4_138, %c3_139, %c0_140] : memref<2x12x12x128xbf16, #tpu.memory_space<vmem>>, vector<2x8x8x128xbf16>
    %106 = tpu.concatenate %104, %105 in 3 : vector<2x8x8x128xbf16>, vector<2x8x8x128xbf16> -> vector<2x8x8x256xbf16>
    %107 = vector.shape_cast %106 : vector<2x8x8x256xbf16> to vector<128x256xbf16>
    %c11 = arith.constant 11 : index
    %c0_141 = arith.constant 0 : index
    %c0_142 = arith.constant 0 : index
    %108 = vector.load %arg4[%c11, %c0_141, %c0_142] : memref<13x256x128xbf16, #tpu.memory_space<vmem>>, vector<1x256x128xbf16>
    %109 = vector.shape_cast %108 : vector<1x256x128xbf16> to vector<256x128xbf16>
    %cst_143 = arith.constant dense<0.000000e+00> : vector<128x128xf32>
    %110 = tpu.matmul %107, %109, %cst_143 {dimension_numbers = #tpu.dot_dimension_numbers<[1], [0], [0], [1], [0, 0, 1, 1], [], []>} : vector<128x256xbf16>, vector<256x128xbf16>, vector<128x128xf32> -> vector<128x128xf32>
    %111 = arith.addf %103, %110 : vector<128x128xf32>
    %c0_144 = arith.constant 0 : index
    %c4_145 = arith.constant 4 : index
    %c4_146 = arith.constant 4 : index
    %c0_147 = arith.constant 0 : index
    %112 = vector.load %arg11[%c0_144, %c4_145, %c4_146, %c0_147] : memref<2x12x12x128xbf16, #tpu.memory_space<vmem>>, vector<2x8x8x128xbf16>
    %113 = tpu.concatenate %112, %112 in 3 : vector<2x8x8x128xbf16>, vector<2x8x8x128xbf16> -> vector<2x8x8x256xbf16>
    %114 = vector.shape_cast %113 : vector<2x8x8x256xbf16> to vector<128x256xbf16>
    %c12 = arith.constant 12 : index
    %c0_148 = arith.constant 0 : index
    %c0_149 = arith.constant 0 : index
    %115 = vector.load %arg4[%c12, %c0_148, %c0_149] : memref<13x256x128xbf16, #tpu.memory_space<vmem>>, vector<1x256x128xbf16>
    %116 = vector.shape_cast %115 : vector<1x256x128xbf16> to vector<256x128xbf16>
    %cst_150 = arith.constant dense<0.000000e+00> : vector<128x128xf32>
    %117 = tpu.matmul %114, %116, %cst_150 {dimension_numbers = #tpu.dot_dimension_numbers<[1], [0], [0], [1], [0, 0, 1, 1], [], []>} : vector<128x256xbf16>, vector<256x128xbf16>, vector<128x128xf32> -> vector<128x128xf32>
    %118 = arith.addf %111, %117 : vector<128x128xf32>
    %c0_151 = arith.constant 0 : index
    %c0_152 = arith.constant 0 : index
    %119 = vector.load %arg5[%c0_151, %c0_152] : memref<1x128xf32, #tpu.memory_space<vmem>>, vector<1x128xf32>
    %120 = vector.broadcast %119 : vector<1x128xf32> to vector<128x128xf32>
    %121 = arith.addf %118, %120 : vector<128x128xf32>
    %122 = vector.shape_cast %121 : vector<128x128xf32> to vector<2x8x8x128xf32>
    %c0_153 = arith.constant 0 : index
    %c0_154 = arith.constant 0 : index
    %c0_155 = arith.constant 0 : index
    %c0_156 = arith.constant 0 : index
    %123 = vector.load %arg12[%c0_153, %c0_154, %c0_155, %c0_156] : memref<2x8x8x128xf32, #tpu.memory_space<vmem>>, vector<2x8x8x128xf32>
    tpu.vector_store %arg12[%c0_153, %c0_154, %c0_155, %c0_156], %122 {strides = array<i32>} : memref<2x8x8x128xf32, #tpu.memory_space<vmem>>, vector<2x8x8x128xf32>,
    %c0_157 = arith.constant 0 : index
    %c0_158 = arith.constant 0 : index
    %c0_159 = arith.constant 0 : index
    %c0_160 = arith.constant 0 : index
    %124 = vector.load %arg12[%c0_157, %c0_158, %c0_159, %c0_160] : memref<2x8x8x128xf32, #tpu.memory_space<vmem>>, vector<2x1x1x128xf32>
    %125 = vector.shape_cast %124 : vector<2x1x1x128xf32> to vector<2x128xf32>
    %c0_161 = arith.constant 0 : index
    %c0_162 = arith.constant 0 : index
    %c1_163 = arith.constant 1 : index
    %c0_164 = arith.constant 0 : index
    %126 = vector.load %arg12[%c0_161, %c0_162, %c1_163, %c0_164] : memref<2x8x8x128xf32, #tpu.memory_space<vmem>>, vector<2x1x1x128xf32>
    %127 = vector.shape_cast %126 : vector<2x1x1x128xf32> to vector<2x128xf32>
    %c0_165 = arith.constant 0 : index
    %c1_166 = arith.constant 1 : index
    %c0_167 = arith.constant 0 : index
    %c0_168 = arith.constant 0 : index
    %128 = vector.load %arg12[%c0_165, %c1_166, %c0_167, %c0_168] : memref<2x8x8x128xf32, #tpu.memory_space<vmem>>, vector<2x1x1x128xf32>
    %129 = vector.shape_cast %128 : vector<2x1x1x128xf32> to vector<2x128xf32>
    %c0_169 = arith.constant 0 : index
    %c1_170 = arith.constant 1 : index
    %c1_171 = arith.constant 1 : index
    %c0_172 = arith.constant 0 : index
    %130 = vector.load %arg12[%c0_169, %c1_170, %c1_171, %c0_172] : memref<2x8x8x128xf32, #tpu.memory_space<vmem>>, vector<2x1x1x128xf32>
    %131 = vector.shape_cast %130 : vector<2x1x1x128xf32> to vector<2x128xf32>
    %132 = arith.maximumf %125, %127 : vector<2x128xf32>
    %133 = arith.maximumf %129, %131 : vector<2x128xf32>
    %134 = arith.maximumf %132, %133 : vector<2x128xf32>
    %cst_173 = arith.constant 0.000000e+00 : f32
    %135 = vector.broadcast %cst_173 : f32 to vector<2x128xf32>
    %136 = arith.maximumf %134, %135 : vector<2x128xf32>
    %c0_174 = arith.constant 0 : index
    %c0_175 = arith.constant 0 : index
    %c2_176 = arith.constant 2 : index
    %c0_177 = arith.constant 0 : index
    %137 = vector.load %arg12[%c0_174, %c0_175, %c2_176, %c0_177] : memref<2x8x8x128xf32, #tpu.memory_space<vmem>>, vector<2x1x1x128xf32>
    %138 = vector.shape_cast %137 : vector<2x1x1x128xf32> to vector<2x128xf32>
    %c0_178 = arith.constant 0 : index
    %c0_179 = arith.constant 0 : index
    %c3_180 = arith.constant 3 : index
    %c0_181 = arith.constant 0 : index
    %139 = vector.load %arg12[%c0_178, %c0_179, %c3_180, %c0_181] : memref<2x8x8x128xf32, #tpu.memory_space<vmem>>, vector<2x1x1x128xf32>
    %140 = vector.shape_cast %139 : vector<2x1x1x128xf32> to vector<2x128xf32>
    %c0_182 = arith.constant 0 : index
    %c1_183 = arith.constant 1 : index
    %c2_184 = arith.constant 2 : index
    %c0_185 = arith.constant 0 : index
    %141 = vector.load %arg12[%c0_182, %c1_183, %c2_184, %c0_185] : memref<2x8x8x128xf32, #tpu.memory_space<vmem>>, vector<2x1x1x128xf32>
    %142 = vector.shape_cast %141 : vector<2x1x1x128xf32> to vector<2x128xf32>
    %c0_186 = arith.constant 0 : index
    %c1_187 = arith.constant 1 : index
    %c3_188 = arith.constant 3 : index
    %c0_189 = arith.constant 0 : index
    %143 = vector.load %arg12[%c0_186, %c1_187, %c3_188, %c0_189] : memref<2x8x8x128xf32, #tpu.memory_space<vmem>>, vector<2x1x1x128xf32>
    %144 = vector.shape_cast %143 : vector<2x1x1x128xf32> to vector<2x128xf32>
    %145 = arith.maximumf %138, %140 : vector<2x128xf32>
    %146 = arith.maximumf %142, %144 : vector<2x128xf32>
    %147 = arith.maximumf %145, %146 : vector<2x128xf32>
    %cst_190 = arith.constant 0.000000e+00 : f32
    %148 = vector.broadcast %cst_190 : f32 to vector<2x128xf32>
    %149 = arith.maximumf %147, %148 : vector<2x128xf32>
    %c0_191 = arith.constant 0 : index
    %c0_192 = arith.constant 0 : index
    %c4_193 = arith.constant 4 : index
    %c0_194 = arith.constant 0 : index
    %150 = vector.load %arg12[%c0_191, %c0_192, %c4_193, %c0_194] : memref<2x8x8x128xf32, #tpu.memory_space<vmem>>, vector<2x1x1x128xf32>
    %151 = vector.shape_cast %150 : vector<2x1x1x128xf32> to vector<2x128xf32>
    %c0_195 = arith.constant 0 : index
    %c0_196 = arith.constant 0 : index
    %c5_197 = arith.constant 5 : index
    %c0_198 = arith.constant 0 : index
    %152 = vector.load %arg12[%c0_195, %c0_196, %c5_197, %c0_198] : memref<2x8x8x128xf32, #tpu.memory_space<vmem>>, vector<2x1x1x128xf32>
    %153 = vector.shape_cast %152 : vector<2x1x1x128xf32> to vector<2x128xf32>
    %c0_199 = arith.constant 0 : index
    %c1_200 = arith.constant 1 : index
    %c4_201 = arith.constant 4 : index
    %c0_202 = arith.constant 0 : index
    %154 = vector.load %arg12[%c0_199, %c1_200, %c4_201, %c0_202] : memref<2x8x8x128xf32, #tpu.memory_space<vmem>>, vector<2x1x1x128xf32>
    %155 = vector.shape_cast %154 : vector<2x1x1x128xf32> to vector<2x128xf32>
    %c0_203 = arith.constant 0 : index
    %c1_204 = arith.constant 1 : index
    %c5_205 = arith.constant 5 : index
    %c0_206 = arith.constant 0 : index
    %156 = vector.load %arg12[%c0_203, %c1_204, %c5_205, %c0_206] : memref<2x8x8x128xf32, #tpu.memory_space<vmem>>, vector<2x1x1x128xf32>
    %157 = vector.shape_cast %156 : vector<2x1x1x128xf32> to vector<2x128xf32>
    %158 = arith.maximumf %151, %153 : vector<2x128xf32>
    %159 = arith.maximumf %155, %157 : vector<2x128xf32>
    %160 = arith.maximumf %158, %159 : vector<2x128xf32>
    %cst_207 = arith.constant 0.000000e+00 : f32
    %161 = vector.broadcast %cst_207 : f32 to vector<2x128xf32>
    %162 = arith.maximumf %160, %161 : vector<2x128xf32>
    %c0_208 = arith.constant 0 : index
    %c0_209 = arith.constant 0 : index
    %c6_210 = arith.constant 6 : index
    %c0_211 = arith.constant 0 : index
    %163 = vector.load %arg12[%c0_208, %c0_209, %c6_210, %c0_211] : memref<2x8x8x128xf32, #tpu.memory_space<vmem>>, vector<2x1x1x128xf32>
    %164 = vector.shape_cast %163 : vector<2x1x1x128xf32> to vector<2x128xf32>
    %c0_212 = arith.constant 0 : index
    %c0_213 = arith.constant 0 : index
    %c7_214 = arith.constant 7 : index
    %c0_215 = arith.constant 0 : index
    %165 = vector.load %arg12[%c0_212, %c0_213, %c7_214, %c0_215] : memref<2x8x8x128xf32, #tpu.memory_space<vmem>>, vector<2x1x1x128xf32>
    %166 = vector.shape_cast %165 : vector<2x1x1x128xf32> to vector<2x128xf32>
    %c0_216 = arith.constant 0 : index
    %c1_217 = arith.constant 1 : index
    %c6_218 = arith.constant 6 : index
    %c0_219 = arith.constant 0 : index
    %167 = vector.load %arg12[%c0_216, %c1_217, %c6_218, %c0_219] : memref<2x8x8x128xf32, #tpu.memory_space<vmem>>, vector<2x1x1x128xf32>
    %168 = vector.shape_cast %167 : vector<2x1x1x128xf32> to vector<2x128xf32>
    %c0_220 = arith.constant 0 : index
    %c1_221 = arith.constant 1 : index
    %c7_222 = arith.constant 7 : index
    %c0_223 = arith.constant 0 : index
    %169 = vector.load %arg12[%c0_220, %c1_221, %c7_222, %c0_223] : memref<2x8x8x128xf32, #tpu.memory_space<vmem>>, vector<2x1x1x128xf32>
    %170 = vector.shape_cast %169 : vector<2x1x1x128xf32> to vector<2x128xf32>
    %171 = arith.maximumf %164, %166 : vector<2x128xf32>
    %172 = arith.maximumf %168, %170 : vector<2x128xf32>
    %173 = arith.maximumf %171, %172 : vector<2x128xf32>
    %cst_224 = arith.constant 0.000000e+00 : f32
    %174 = vector.broadcast %cst_224 : f32 to vector<2x128xf32>
    %175 = arith.maximumf %173, %174 : vector<2x128xf32>
    %c0_225 = arith.constant 0 : index
    %c2_226 = arith.constant 2 : index
    %c0_227 = arith.constant 0 : index
    %c0_228 = arith.constant 0 : index
    %176 = vector.load %arg12[%c0_225, %c2_226, %c0_227, %c0_228] : memref<2x8x8x128xf32, #tpu.memory_space<vmem>>, vector<2x1x1x128xf32>
    %177 = vector.shape_cast %176 : vector<2x1x1x128xf32> to vector<2x128xf32>
    %c0_229 = arith.constant 0 : index
    %c2_230 = arith.constant 2 : index
    %c1_231 = arith.constant 1 : index
    %c0_232 = arith.constant 0 : index
    %178 = vector.load %arg12[%c0_229, %c2_230, %c1_231, %c0_232] : memref<2x8x8x128xf32, #tpu.memory_space<vmem>>, vector<2x1x1x128xf32>
    %179 = vector.shape_cast %178 : vector<2x1x1x128xf32> to vector<2x128xf32>
    %c0_233 = arith.constant 0 : index
    %c3_234 = arith.constant 3 : index
    %c0_235 = arith.constant 0 : index
    %c0_236 = arith.constant 0 : index
    %180 = vector.load %arg12[%c0_233, %c3_234, %c0_235, %c0_236] : memref<2x8x8x128xf32, #tpu.memory_space<vmem>>, vector<2x1x1x128xf32>
    %181 = vector.shape_cast %180 : vector<2x1x1x128xf32> to vector<2x128xf32>
    %c0_237 = arith.constant 0 : index
    %c3_238 = arith.constant 3 : index
    %c1_239 = arith.constant 1 : index
    %c0_240 = arith.constant 0 : index
    %182 = vector.load %arg12[%c0_237, %c3_238, %c1_239, %c0_240] : memref<2x8x8x128xf32, #tpu.memory_space<vmem>>, vector<2x1x1x128xf32>
    %183 = vector.shape_cast %182 : vector<2x1x1x128xf32> to vector<2x128xf32>
    %184 = arith.maximumf %177, %179 : vector<2x128xf32>
    %185 = arith.maximumf %181, %183 : vector<2x128xf32>
    %186 = arith.maximumf %184, %185 : vector<2x128xf32>
    %cst_241 = arith.constant 0.000000e+00 : f32
    %187 = vector.broadcast %cst_241 : f32 to vector<2x128xf32>
    %188 = arith.maximumf %186, %187 : vector<2x128xf32>
    %c0_242 = arith.constant 0 : index
    %c2_243 = arith.constant 2 : index
    %c2_244 = arith.constant 2 : index
    %c0_245 = arith.constant 0 : index
    %189 = vector.load %arg12[%c0_242, %c2_243, %c2_244, %c0_245] : memref<2x8x8x128xf32, #tpu.memory_space<vmem>>, vector<2x1x1x128xf32>
    %190 = vector.shape_cast %189 : vector<2x1x1x128xf32> to vector<2x128xf32>
    %c0_246 = arith.constant 0 : index
    %c2_247 = arith.constant 2 : index
    %c3_248 = arith.constant 3 : index
    %c0_249 = arith.constant 0 : index
    %191 = vector.load %arg12[%c0_246, %c2_247, %c3_248, %c0_249] : memref<2x8x8x128xf32, #tpu.memory_space<vmem>>, vector<2x1x1x128xf32>
    %192 = vector.shape_cast %191 : vector<2x1x1x128xf32> to vector<2x128xf32>
    %c0_250 = arith.constant 0 : index
    %c3_251 = arith.constant 3 : index
    %c2_252 = arith.constant 2 : index
    %c0_253 = arith.constant 0 : index
    %193 = vector.load %arg12[%c0_250, %c3_251, %c2_252, %c0_253] : memref<2x8x8x128xf32, #tpu.memory_space<vmem>>, vector<2x1x1x128xf32>
    %194 = vector.shape_cast %193 : vector<2x1x1x128xf32> to vector<2x128xf32>
    %c0_254 = arith.constant 0 : index
    %c3_255 = arith.constant 3 : index
    %c3_256 = arith.constant 3 : index
    %c0_257 = arith.constant 0 : index
    %195 = vector.load %arg12[%c0_254, %c3_255, %c3_256, %c0_257] : memref<2x8x8x128xf32, #tpu.memory_space<vmem>>, vector<2x1x1x128xf32>
    %196 = vector.shape_cast %195 : vector<2x1x1x128xf32> to vector<2x128xf32>
    %197 = arith.maximumf %190, %192 : vector<2x128xf32>
    %198 = arith.maximumf %194, %196 : vector<2x128xf32>
    %199 = arith.maximumf %197, %198 : vector<2x128xf32>
    %cst_258 = arith.constant 0.000000e+00 : f32
    %200 = vector.broadcast %cst_258 : f32 to vector<2x128xf32>
    %201 = arith.maximumf %199, %200 : vector<2x128xf32>
    %c0_259 = arith.constant 0 : index
    %c2_260 = arith.constant 2 : index
    %c4_261 = arith.constant 4 : index
    %c0_262 = arith.constant 0 : index
    %202 = vector.load %arg12[%c0_259, %c2_260, %c4_261, %c0_262] : memref<2x8x8x128xf32, #tpu.memory_space<vmem>>, vector<2x1x1x128xf32>
    %203 = vector.shape_cast %202 : vector<2x1x1x128xf32> to vector<2x128xf32>
    %c0_263 = arith.constant 0 : index
    %c2_264 = arith.constant 2 : index
    %c5_265 = arith.constant 5 : index
    %c0_266 = arith.constant 0 : index
    %204 = vector.load %arg12[%c0_263, %c2_264, %c5_265, %c0_266] : memref<2x8x8x128xf32, #tpu.memory_space<vmem>>, vector<2x1x1x128xf32>
    %205 = vector.shape_cast %204 : vector<2x1x1x128xf32> to vector<2x128xf32>
    %c0_267 = arith.constant 0 : index
    %c3_268 = arith.constant 3 : index
    %c4_269 = arith.constant 4 : index
    %c0_270 = arith.constant 0 : index
    %206 = vector.load %arg12[%c0_267, %c3_268, %c4_269, %c0_270] : memref<2x8x8x128xf32, #tpu.memory_space<vmem>>, vector<2x1x1x128xf32>
    %207 = vector.shape_cast %206 : vector<2x1x1x128xf32> to vector<2x128xf32>
    %c0_271 = arith.constant 0 : index
    %c3_272 = arith.constant 3 : index
    %c5_273 = arith.constant 5 : index
    %c0_274 = arith.constant 0 : index
    %208 = vector.load %arg12[%c0_271, %c3_272, %c5_273, %c0_274] : memref<2x8x8x128xf32, #tpu.memory_space<vmem>>, vector<2x1x1x128xf32>
    %209 = vector.shape_cast %208 : vector<2x1x1x128xf32> to vector<2x128xf32>
    %210 = arith.maximumf %203, %205 : vector<2x128xf32>
    %211 = arith.maximumf %207, %209 : vector<2x128xf32>
    %212 = arith.maximumf %210, %211 : vector<2x128xf32>
    %cst_275 = arith.constant 0.000000e+00 : f32
    %213 = vector.broadcast %cst_275 : f32 to vector<2x128xf32>
    %214 = arith.maximumf %212, %213 : vector<2x128xf32>
    %c0_276 = arith.constant 0 : index
    %c2_277 = arith.constant 2 : index
    %c6_278 = arith.constant 6 : index
    %c0_279 = arith.constant 0 : index
    %215 = vector.load %arg12[%c0_276, %c2_277, %c6_278, %c0_279] : memref<2x8x8x128xf32, #tpu.memory_space<vmem>>, vector<2x1x1x128xf32>
    %216 = vector.shape_cast %215 : vector<2x1x1x128xf32> to vector<2x128xf32>
    %c0_280 = arith.constant 0 : index
    %c2_281 = arith.constant 2 : index
    %c7_282 = arith.constant 7 : index
    %c0_283 = arith.constant 0 : index
    %217 = vector.load %arg12[%c0_280, %c2_281, %c7_282, %c0_283] : memref<2x8x8x128xf32, #tpu.memory_space<vmem>>, vector<2x1x1x128xf32>
    %218 = vector.shape_cast %217 : vector<2x1x1x128xf32> to vector<2x128xf32>
    %c0_284 = arith.constant 0 : index
    %c3_285 = arith.constant 3 : index
    %c6_286 = arith.constant 6 : index
    %c0_287 = arith.constant 0 : index
    %219 = vector.load %arg12[%c0_284, %c3_285, %c6_286, %c0_287] : memref<2x8x8x128xf32, #tpu.memory_space<vmem>>, vector<2x1x1x128xf32>
    %220 = vector.shape_cast %219 : vector<2x1x1x128xf32> to vector<2x128xf32>
    %c0_288 = arith.constant 0 : index
    %c3_289 = arith.constant 3 : index
    %c7_290 = arith.constant 7 : index
    %c0_291 = arith.constant 0 : index
    %221 = vector.load %arg12[%c0_288, %c3_289, %c7_290, %c0_291] : memref<2x8x8x128xf32, #tpu.memory_space<vmem>>, vector<2x1x1x128xf32>
    %222 = vector.shape_cast %221 : vector<2x1x1x128xf32> to vector<2x128xf32>
    %223 = arith.maximumf %216, %218 : vector<2x128xf32>
    %224 = arith.maximumf %220, %222 : vector<2x128xf32>
    %225 = arith.maximumf %223, %224 : vector<2x128xf32>
    %cst_292 = arith.constant 0.000000e+00 : f32
    %226 = vector.broadcast %cst_292 : f32 to vector<2x128xf32>
    %227 = arith.maximumf %225, %226 : vector<2x128xf32>
    %c0_293 = arith.constant 0 : index
    %c4_294 = arith.constant 4 : index
    %c0_295 = arith.constant 0 : index
    %c0_296 = arith.constant 0 : index
    %228 = vector.load %arg12[%c0_293, %c4_294, %c0_295, %c0_296] : memref<2x8x8x128xf32, #tpu.memory_space<vmem>>, vector<2x1x1x128xf32>
    %229 = vector.shape_cast %228 : vector<2x1x1x128xf32> to vector<2x128xf32>
    %c0_297 = arith.constant 0 : index
    %c4_298 = arith.constant 4 : index
    %c1_299 = arith.constant 1 : index
    %c0_300 = arith.constant 0 : index
    %230 = vector.load %arg12[%c0_297, %c4_298, %c1_299, %c0_300] : memref<2x8x8x128xf32, #tpu.memory_space<vmem>>, vector<2x1x1x128xf32>
    %231 = vector.shape_cast %230 : vector<2x1x1x128xf32> to vector<2x128xf32>
    %c0_301 = arith.constant 0 : index
    %c5_302 = arith.constant 5 : index
    %c0_303 = arith.constant 0 : index
    %c0_304 = arith.constant 0 : index
    %232 = vector.load %arg12[%c0_301, %c5_302, %c0_303, %c0_304] : memref<2x8x8x128xf32, #tpu.memory_space<vmem>>, vector<2x1x1x128xf32>
    %233 = vector.shape_cast %232 : vector<2x1x1x128xf32> to vector<2x128xf32>
    %c0_305 = arith.constant 0 : index
    %c5_306 = arith.constant 5 : index
    %c1_307 = arith.constant 1 : index
    %c0_308 = arith.constant 0 : index
    %234 = vector.load %arg12[%c0_305, %c5_306, %c1_307, %c0_308] : memref<2x8x8x128xf32, #tpu.memory_space<vmem>>, vector<2x1x1x128xf32>
    %235 = vector.shape_cast %234 : vector<2x1x1x128xf32> to vector<2x128xf32>
    %236 = arith.maximumf %229, %231 : vector<2x128xf32>
    %237 = arith.maximumf %233, %235 : vector<2x128xf32>
    %238 = arith.maximumf %236, %237 : vector<2x128xf32>
    %cst_309 = arith.constant 0.000000e+00 : f32
    %239 = vector.broadcast %cst_309 : f32 to vector<2x128xf32>
    %240 = arith.maximumf %238, %239 : vector<2x128xf32>
    %c0_310 = arith.constant 0 : index
    %c4_311 = arith.constant 4 : index
    %c2_312 = arith.constant 2 : index
    %c0_313 = arith.constant 0 : index
    %241 = vector.load %arg12[%c0_310, %c4_311, %c2_312, %c0_313] : memref<2x8x8x128xf32, #tpu.memory_space<vmem>>, vector<2x1x1x128xf32>
    %242 = vector.shape_cast %241 : vector<2x1x1x128xf32> to vector<2x128xf32>
    %c0_314 = arith.constant 0 : index
    %c4_315 = arith.constant 4 : index
    %c3_316 = arith.constant 3 : index
    %c0_317 = arith.constant 0 : index
    %243 = vector.load %arg12[%c0_314, %c4_315, %c3_316, %c0_317] : memref<2x8x8x128xf32, #tpu.memory_space<vmem>>, vector<2x1x1x128xf32>
    %244 = vector.shape_cast %243 : vector<2x1x1x128xf32> to vector<2x128xf32>
    %c0_318 = arith.constant 0 : index
    %c5_319 = arith.constant 5 : index
    %c2_320 = arith.constant 2 : index
    %c0_321 = arith.constant 0 : index
    %245 = vector.load %arg12[%c0_318, %c5_319, %c2_320, %c0_321] : memref<2x8x8x128xf32, #tpu.memory_space<vmem>>, vector<2x1x1x128xf32>
    %246 = vector.shape_cast %245 : vector<2x1x1x128xf32> to vector<2x128xf32>
    %c0_322 = arith.constant 0 : index
    %c5_323 = arith.constant 5 : index
    %c3_324 = arith.constant 3 : index
    %c0_325 = arith.constant 0 : index
    %247 = vector.load %arg12[%c0_322, %c5_323, %c3_324, %c0_325] : memref<2x8x8x128xf32, #tpu.memory_space<vmem>>, vector<2x1x1x128xf32>
    %248 = vector.shape_cast %247 : vector<2x1x1x128xf32> to vector<2x128xf32>
    %249 = arith.maximumf %242, %244 : vector<2x128xf32>
    %250 = arith.maximumf %246, %248 : vector<2x128xf32>
    %251 = arith.maximumf %249, %250 : vector<2x128xf32>
    %cst_326 = arith.constant 0.000000e+00 : f32
    %252 = vector.broadcast %cst_326 : f32 to vector<2x128xf32>
    %253 = arith.maximumf %251, %252 : vector<2x128xf32>
    %c0_327 = arith.constant 0 : index
    %c4_328 = arith.constant 4 : index
    %c4_329 = arith.constant 4 : index
    %c0_330 = arith.constant 0 : index
    %254 = vector.load %arg12[%c0_327, %c4_328, %c4_329, %c0_330] : memref<2x8x8x128xf32, #tpu.memory_space<vmem>>, vector<2x1x1x128xf32>
    %255 = vector.shape_cast %254 : vector<2x1x1x128xf32> to vector<2x128xf32>
    %c0_331 = arith.constant 0 : index
    %c4_332 = arith.constant 4 : index
    %c5_333 = arith.constant 5 : index
    %c0_334 = arith.constant 0 : index
    %256 = vector.load %arg12[%c0_331, %c4_332, %c5_333, %c0_334] : memref<2x8x8x128xf32, #tpu.memory_space<vmem>>, vector<2x1x1x128xf32>
    %257 = vector.shape_cast %256 : vector<2x1x1x128xf32> to vector<2x128xf32>
    %c0_335 = arith.constant 0 : index
    %c5_336 = arith.constant 5 : index
    %c4_337 = arith.constant 4 : index
    %c0_338 = arith.constant 0 : index
    %258 = vector.load %arg12[%c0_335, %c5_336, %c4_337, %c0_338] : memref<2x8x8x128xf32, #tpu.memory_space<vmem>>, vector<2x1x1x128xf32>
    %259 = vector.shape_cast %258 : vector<2x1x1x128xf32> to vector<2x128xf32>
    %c0_339 = arith.constant 0 : index
    %c5_340 = arith.constant 5 : index
    %c5_341 = arith.constant 5 : index
    %c0_342 = arith.constant 0 : index
    %260 = vector.load %arg12[%c0_339, %c5_340, %c5_341, %c0_342] : memref<2x8x8x128xf32, #tpu.memory_space<vmem>>, vector<2x1x1x128xf32>
    %261 = vector.shape_cast %260 : vector<2x1x1x128xf32> to vector<2x128xf32>
    %262 = arith.maximumf %255, %257 : vector<2x128xf32>
    %263 = arith.maximumf %259, %261 : vector<2x128xf32>
    %264 = arith.maximumf %262, %263 : vector<2x128xf32>
    %cst_343 = arith.constant 0.000000e+00 : f32
    %265 = vector.broadcast %cst_343 : f32 to vector<2x128xf32>
    %266 = arith.maximumf %264, %265 : vector<2x128xf32>
    %c0_344 = arith.constant 0 : index
    %c4_345 = arith.constant 4 : index
    %c6_346 = arith.constant 6 : index
    %c0_347 = arith.constant 0 : index
    %267 = vector.load %arg12[%c0_344, %c4_345, %c6_346, %c0_347] : memref<2x8x8x128xf32, #tpu.memory_space<vmem>>, vector<2x1x1x128xf32>
    %268 = vector.shape_cast %267 : vector<2x1x1x128xf32> to vector<2x128xf32>
    %c0_348 = arith.constant 0 : index
    %c4_349 = arith.constant 4 : index
    %c7_350 = arith.constant 7 : index
    %c0_351 = arith.constant 0 : index
    %269 = vector.load %arg12[%c0_348, %c4_349, %c7_350, %c0_351] : memref<2x8x8x128xf32, #tpu.memory_space<vmem>>, vector<2x1x1x128xf32>
    %270 = vector.shape_cast %269 : vector<2x1x1x128xf32> to vector<2x128xf32>
    %c0_352 = arith.constant 0 : index
    %c5_353 = arith.constant 5 : index
    %c6_354 = arith.constant 6 : index
    %c0_355 = arith.constant 0 : index
    %271 = vector.load %arg12[%c0_352, %c5_353, %c6_354, %c0_355] : memref<2x8x8x128xf32, #tpu.memory_space<vmem>>, vector<2x1x1x128xf32>
    %272 = vector.shape_cast %271 : vector<2x1x1x128xf32> to vector<2x128xf32>
    %c0_356 = arith.constant 0 : index
    %c5_357 = arith.constant 5 : index
    %c7_358 = arith.constant 7 : index
    %c0_359 = arith.constant 0 : index
    %273 = vector.load %arg12[%c0_356, %c5_357, %c7_358, %c0_359] : memref<2x8x8x128xf32, #tpu.memory_space<vmem>>, vector<2x1x1x128xf32>
    %274 = vector.shape_cast %273 : vector<2x1x1x128xf32> to vector<2x128xf32>
    %275 = arith.maximumf %268, %270 : vector<2x128xf32>
    %276 = arith.maximumf %272, %274 : vector<2x128xf32>
    %277 = arith.maximumf %275, %276 : vector<2x128xf32>
    %cst_360 = arith.constant 0.000000e+00 : f32
    %278 = vector.broadcast %cst_360 : f32 to vector<2x128xf32>
    %279 = arith.maximumf %277, %278 : vector<2x128xf32>
    %c0_361 = arith.constant 0 : index
    %c6_362 = arith.constant 6 : index
    %c0_363 = arith.constant 0 : index
    %c0_364 = arith.constant 0 : index
    %280 = vector.load %arg12[%c0_361, %c6_362, %c0_363, %c0_364] : memref<2x8x8x128xf32, #tpu.memory_space<vmem>>, vector<2x1x1x128xf32>
    %281 = vector.shape_cast %280 : vector<2x1x1x128xf32> to vector<2x128xf32>
    %c0_365 = arith.constant 0 : index
    %c6_366 = arith.constant 6 : index
    %c1_367 = arith.constant 1 : index
    %c0_368 = arith.constant 0 : index
    %282 = vector.load %arg12[%c0_365, %c6_366, %c1_367, %c0_368] : memref<2x8x8x128xf32, #tpu.memory_space<vmem>>, vector<2x1x1x128xf32>
    %283 = vector.shape_cast %282 : vector<2x1x1x128xf32> to vector<2x128xf32>
    %c0_369 = arith.constant 0 : index
    %c7_370 = arith.constant 7 : index
    %c0_371 = arith.constant 0 : index
    %c0_372 = arith.constant 0 : index
    %284 = vector.load %arg12[%c0_369, %c7_370, %c0_371, %c0_372] : memref<2x8x8x128xf32, #tpu.memory_space<vmem>>, vector<2x1x1x128xf32>
    %285 = vector.shape_cast %284 : vector<2x1x1x128xf32> to vector<2x128xf32>
    %c0_373 = arith.constant 0 : index
    %c7_374 = arith.constant 7 : index
    %c1_375 = arith.constant 1 : index
    %c0_376 = arith.constant 0 : index
    %286 = vector.load %arg12[%c0_373, %c7_374, %c1_375, %c0_376] : memref<2x8x8x128xf32, #tpu.memory_space<vmem>>, vector<2x1x1x128xf32>
    %287 = vector.shape_cast %286 : vector<2x1x1x128xf32> to vector<2x128xf32>
    %288 = arith.maximumf %281, %283 : vector<2x128xf32>
    %289 = arith.maximumf %285, %287 : vector<2x128xf32>
    %290 = arith.maximumf %288, %289 : vector<2x128xf32>
    %cst_377 = arith.constant 0.000000e+00 : f32
    %291 = vector.broadcast %cst_377 : f32 to vector<2x128xf32>
    %292 = arith.maximumf %290, %291 : vector<2x128xf32>
    %c0_378 = arith.constant 0 : index
    %c6_379 = arith.constant 6 : index
    %c2_380 = arith.constant 2 : index
    %c0_381 = arith.constant 0 : index
    %293 = vector.load %arg12[%c0_378, %c6_379, %c2_380, %c0_381] : memref<2x8x8x128xf32, #tpu.memory_space<vmem>>, vector<2x1x1x128xf32>
    %294 = vector.shape_cast %293 : vector<2x1x1x128xf32> to vector<2x128xf32>
    %c0_382 = arith.constant 0 : index
    %c6_383 = arith.constant 6 : index
    %c3_384 = arith.constant 3 : index
    %c0_385 = arith.constant 0 : index
    %295 = vector.load %arg12[%c0_382, %c6_383, %c3_384, %c0_385] : memref<2x8x8x128xf32, #tpu.memory_space<vmem>>, vector<2x1x1x128xf32>
    %296 = vector.shape_cast %295 : vector<2x1x1x128xf32> to vector<2x128xf32>
    %c0_386 = arith.constant 0 : index
    %c7_387 = arith.constant 7 : index
    %c2_388 = arith.constant 2 : index
    %c0_389 = arith.constant 0 : index
    %297 = vector.load %arg12[%c0_386, %c7_387, %c2_388, %c0_389] : memref<2x8x8x128xf32, #tpu.memory_space<vmem>>, vector<2x1x1x128xf32>
    %298 = vector.shape_cast %297 : vector<2x1x1x128xf32> to vector<2x128xf32>
    %c0_390 = arith.constant 0 : index
    %c7_391 = arith.constant 7 : index
    %c3_392 = arith.constant 3 : index
    %c0_393 = arith.constant 0 : index
    %299 = vector.load %arg12[%c0_390, %c7_391, %c3_392, %c0_393] : memref<2x8x8x128xf32, #tpu.memory_space<vmem>>, vector<2x1x1x128xf32>
    %300 = vector.shape_cast %299 : vector<2x1x1x128xf32> to vector<2x128xf32>
    %301 = arith.maximumf %294, %296 : vector<2x128xf32>
    %302 = arith.maximumf %298, %300 : vector<2x128xf32>
    %303 = arith.maximumf %301, %302 : vector<2x128xf32>
    %cst_394 = arith.constant 0.000000e+00 : f32
    %304 = vector.broadcast %cst_394 : f32 to vector<2x128xf32>
    %305 = arith.maximumf %303, %304 : vector<2x128xf32>
    %c0_395 = arith.constant 0 : index
    %c6_396 = arith.constant 6 : index
    %c4_397 = arith.constant 4 : index
    %c0_398 = arith.constant 0 : index
    %306 = vector.load %arg12[%c0_395, %c6_396, %c4_397, %c0_398] : memref<2x8x8x128xf32, #tpu.memory_space<vmem>>, vector<2x1x1x128xf32>
    %307 = vector.shape_cast %306 : vector<2x1x1x128xf32> to vector<2x128xf32>
    %c0_399 = arith.constant 0 : index
    %c6_400 = arith.constant 6 : index
    %c5_401 = arith.constant 5 : index
    %c0_402 = arith.constant 0 : index
    %308 = vector.load %arg12[%c0_399, %c6_400, %c5_401, %c0_402] : memref<2x8x8x128xf32, #tpu.memory_space<vmem>>, vector<2x1x1x128xf32>
    %309 = vector.shape_cast %308 : vector<2x1x1x128xf32> to vector<2x128xf32>
    %c0_403 = arith.constant 0 : index
    %c7_404 = arith.constant 7 : index
    %c4_405 = arith.constant 4 : index
    %c0_406 = arith.constant 0 : index
    %310 = vector.load %arg12[%c0_403, %c7_404, %c4_405, %c0_406] : memref<2x8x8x128xf32, #tpu.memory_space<vmem>>, vector<2x1x1x128xf32>
    %311 = vector.shape_cast %310 : vector<2x1x1x128xf32> to vector<2x128xf32>
    %c0_407 = arith.constant 0 : index
    %c7_408 = arith.constant 7 : index
    %c5_409 = arith.constant 5 : index
    %c0_410 = arith.constant 0 : index
    %312 = vector.load %arg12[%c0_407, %c7_408, %c5_409, %c0_410] : memref<2x8x8x128xf32, #tpu.memory_space<vmem>>, vector<2x1x1x128xf32>
    %313 = vector.shape_cast %312 : vector<2x1x1x128xf32> to vector<2x128xf32>
    %314 = arith.maximumf %307, %309 : vector<2x128xf32>
    %315 = arith.maximumf %311, %313 : vector<2x128xf32>
    %316 = arith.maximumf %314, %315 : vector<2x128xf32>
    %cst_411 = arith.constant 0.000000e+00 : f32
    %317 = vector.broadcast %cst_411 : f32 to vector<2x128xf32>
    %318 = arith.maximumf %316, %317 : vector<2x128xf32>
    %c0_412 = arith.constant 0 : index
    %c6_413 = arith.constant 6 : index
    %c6_414 = arith.constant 6 : index
    %c0_415 = arith.constant 0 : index
    %319 = vector.load %arg12[%c0_412, %c6_413, %c6_414, %c0_415] : memref<2x8x8x128xf32, #tpu.memory_space<vmem>>, vector<2x1x1x128xf32>
    %320 = vector.shape_cast %319 : vector<2x1x1x128xf32> to vector<2x128xf32>
    %c0_416 = arith.constant 0 : index
    %c6_417 = arith.constant 6 : index
    %c7_418 = arith.constant 7 : index
    %c0_419 = arith.constant 0 : index
    %321 = vector.load %arg12[%c0_416, %c6_417, %c7_418, %c0_419] : memref<2x8x8x128xf32, #tpu.memory_space<vmem>>, vector<2x1x1x128xf32>
    %322 = vector.shape_cast %321 : vector<2x1x1x128xf32> to vector<2x128xf32>
    %c0_420 = arith.constant 0 : index
    %c7_421 = arith.constant 7 : index
    %c6_422 = arith.constant 6 : index
    %c0_423 = arith.constant 0 : index
    %323 = vector.load %arg12[%c0_420, %c7_421, %c6_422, %c0_423] : memref<2x8x8x128xf32, #tpu.memory_space<vmem>>, vector<2x1x1x128xf32>
    %324 = vector.shape_cast %323 : vector<2x1x1x128xf32> to vector<2x128xf32>
    %c0_424 = arith.constant 0 : index
    %c7_425 = arith.constant 7 : index
    %c7_426 = arith.constant 7 : index
    %c0_427 = arith.constant 0 : index
    %325 = vector.load %arg12[%c0_424, %c7_425, %c7_426, %c0_427] : memref<2x8x8x128xf32, #tpu.memory_space<vmem>>, vector<2x1x1x128xf32>
    %326 = vector.shape_cast %325 : vector<2x1x1x128xf32> to vector<2x128xf32>
    %327 = arith.maximumf %320, %322 : vector<2x128xf32>
    %328 = arith.maximumf %324, %326 : vector<2x128xf32>
    %329 = arith.maximumf %327, %328 : vector<2x128xf32>
    %cst_428 = arith.constant 0.000000e+00 : f32
    %330 = vector.broadcast %cst_428 : f32 to vector<2x128xf32>
    %331 = arith.maximumf %329, %330 : vector<2x128xf32>
    %332 = tpu.concatenate %136, %149, %162, %175, %188, %201, %214, %227, %240, %253, %266, %279, %292, %305, %318, %331 in 1 : vector<2x128xf32>, vector<2x128xf32>, vector<2x128xf32>, vector<2x128xf32>, vector<2x128xf32>, vector<2x128xf32>, vector<2x128xf32>, vector<2x128xf32>, vector<2x128xf32>, vector<2x128xf32>, vector<2x128xf32>, vector<2x128xf32>, vector<2x128xf32>, vector<2x128xf32>, vector<2x128xf32>, vector<2x128xf32> -> vector<2x2048xf32>
    %333 = arith.truncf %332 : vector<2x2048xf32> to vector<2x2048xbf16>
    %c0_429 = arith.constant 0 : index
    %c0_430 = arith.constant 0 : index
    %334 = vector.load %arg6[%c0_429, %c0_430] : memref<2048x128xbf16, #tpu.memory_space<vmem>>, vector<2048x128xbf16>
    %cst_431 = arith.constant dense<0.000000e+00> : vector<2x128xf32>
    %335 = tpu.matmul %333, %334, %cst_431 {dimension_numbers = #tpu.dot_dimension_numbers<[1], [0], [0], [1], [0, 0, 1, 1], [], []>} : vector<2x2048xbf16>, vector<2048x128xbf16>, vector<2x128xf32> -> vector<2x128xf32>
    %c0_432 = arith.constant 0 : index
    %c0_433 = arith.constant 0 : index
    %336 = vector.load %arg7[%c0_432, %c0_433] : memref<1x128xf32, #tpu.memory_space<vmem>>, vector<1x128xf32>
    %337 = vector.broadcast %336 : vector<1x128xf32> to vector<2x128xf32>
    %338 = arith.addf %335, %337 : vector<2x128xf32>
    %cst_434 = arith.constant 0.000000e+00 : f32
    %339 = vector.broadcast %cst_434 : f32 to vector<2x128xf32>
    %340 = arith.maximumf %338, %339 : vector<2x128xf32>
    %341 = arith.truncf %340 : vector<2x128xf32> to vector<2x128xbf16>
    %c0_435 = arith.constant 0 : index
    %c0_436 = arith.constant 0 : index
    %342 = vector.load %arg8[%c0_435, %c0_436] : memref<128x10xbf16, #tpu.memory_space<vmem>>, vector<128x10xbf16>
    %cst_437 = arith.constant dense<0.000000e+00> : vector<2x10xf32>
    %343 = tpu.matmul %341, %342, %cst_437 {dimension_numbers = #tpu.dot_dimension_numbers<[1], [0], [0], [1], [0, 0, 1, 1], [], []>} : vector<2x128xbf16>, vector<128x10xbf16>, vector<2x10xf32> -> vector<2x10xf32>
    %c0_438 = arith.constant 0 : index
    %c0_439 = arith.constant 0 : index
    %344 = vector.load %arg9[%c0_438, %c0_439] : memref<1x10xf32, #tpu.memory_space<vmem>>, vector<1x10xf32>
    %345 = vector.broadcast %344 : vector<1x10xf32> to vector<2x10xf32>
    %346 = arith.addf %343, %345 : vector<2x10xf32>
    %cst_440 = arith.constant dense<0xFF800000> : vector<2xf32>
    %347 = vector.multi_reduction <maximumf>, %346, %cst_440 [1] : vector<2x10xf32> to vector<2xf32>
    %348 = vector.shape_cast %347 : vector<2xf32> to vector<2x1xf32>
    %349 = vector.broadcast %348 : vector<2x1xf32> to vector<2x10xf32>
    %350 = arith.subf %346, %349 : vector<2x10xf32>
    %351 = math.exp %350 : vector<2x10xf32>
    %cst_441 = arith.constant dense<0.000000e+00> : vector<2xf32>
    %352 = vector.multi_reduction <add>, %351, %cst_441 [1] : vector<2x10xf32> to vector<2xf32>
    %353 = vector.shape_cast %352 : vector<2xf32> to vector<2x1xf32>
    %354 = math.log %353 : vector<2x1xf32>
    %355 = arith.addf %354, %348 : vector<2x1xf32>
    %356 = vector.broadcast %355 : vector<2x1xf32> to vector<2x10xf32>
    %357 = arith.subf %346, %356 : vector<2x10xf32>
    %c0_442 = arith.constant 0 : index
    %c0_443 = arith.constant 0 : index
    %358 = vector.load %arg10[%c0_442, %c0_443] : memref<2x10xf32, #tpu.memory_space<vmem>>, vector<2x10xf32>
    tpu.vector_store %arg10[%c0_442, %c0_443], %357 {strides = array<i32>} : memref<2x10xf32, #tpu.memory_space<vmem>>, vector<2x10xf32>,
    return
  }
  func.func @transform_0(%arg0: i32) -> (i32, i32) {
    %c0_i32 = arith.constant 0 : i32
    %c0_i32_0 = arith.constant 0 : i32
    return %arg0, %c0_i32 : i32, i32
  }
  func.func @transform_1(%arg0: i32) -> (i32, i32) {
    %c0_i32 = arith.constant 0 : i32
    %c0_i32_0 = arith.constant 0 : i32
    %c0_i32_1 = arith.constant 0 : i32
    return %c0_i32, %c0_i32_0 : i32, i32
  }
  func.func @transform_2(%arg0: i32) -> (i32, i32) {
    %c0_i32 = arith.constant 0 : i32
    %c0_i32_0 = arith.constant 0 : i32
    %c0_i32_1 = arith.constant 0 : i32
    return %c0_i32, %c0_i32_0 : i32, i32
  }
  func.func @transform_3(%arg0: i32) -> (i32, i32, i32) {
    %c0_i32 = arith.constant 0 : i32
    %c0_i32_0 = arith.constant 0 : i32
    %c0_i32_1 = arith.constant 0 : i32
    %c0_i32_2 = arith.constant 0 : i32
    return %c0_i32, %c0_i32_0, %c0_i32_1 : i32, i32, i32
  }
  func.func @transform_4(%arg0: i32) -> (i32, i32) {
    %c0_i32 = arith.constant 0 : i32
    %c0_i32_0 = arith.constant 0 : i32
    %c0_i32_1 = arith.constant 0 : i32
    return %c0_i32, %c0_i32_0 : i32, i32
  }
  func.func @transform_5(%arg0: i32) -> (i32, i32) {
    %c0_i32 = arith.constant 0 : i32
    %c0_i32_0 = arith.constant 0 : i32
    %c0_i32_1 = arith.constant 0 : i32
    return %c0_i32, %c0_i32_0 : i32, i32
  }
  func.func @transform_6(%arg0: i32) -> (i32, i32) {
    %c0_i32 = arith.constant 0 : i32
    %c0_i32_0 = arith.constant 0 : i32
    %c0_i32_1 = arith.constant 0 : i32
    return %c0_i32, %c0_i32_0 : i32, i32
  }
  func.func @transform_7(%arg0: i32) -> (i32, i32) {
    %c0_i32 = arith.constant 0 : i32
    %c0_i32_0 = arith.constant 0 : i32
    %c0_i32_1 = arith.constant 0 : i32
    return %c0_i32, %c0_i32_0 : i32, i32
  }
  func.func @transform_8(%arg0: i32) -> (i32, i32) {
    %c0_i32 = arith.constant 0 : i32
    %c0_i32_0 = arith.constant 0 : i32
    %c0_i32_1 = arith.constant 0 : i32
    return %c0_i32, %c0_i32_0 : i32, i32
  }
  func.func @transform_9(%arg0: i32) -> (i32, i32) {
    %c0_i32 = arith.constant 0 : i32
    %c0_i32_0 = arith.constant 0 : i32
    return %arg0, %c0_i32 : i32, i32
  }
}

</mosaic_0001>

<llo_original>
// kernel: tpu_custom_call.1
$region0: #{tpu_custom_call.1}
  #allocation0 [shape = 'u32[]', space=smem, size = 0x4, offset = 0x4, fixed_abs, tag = 'smem constant byte address 0x4 - core index']
  #allocation1 [shape = 'u32[72,128]{1,0:T(1,128)}', space=vmem, size = 0x9000, scoped, tag = 'internal scratch']
  #allocation2 [shape = 'bf16[2,12,12,128]{3,2,1,0:T(8,128)(2,1)}', space=vmem, size = 0x18000, scoped, tag = 'scratch operand']
  #allocation3 [shape = 'f32[2,8,8,128]{3,2,1,0:T(8,128)}', space=vmem, size = 0x10000, scoped, tag = 'scratch operand']
  %s0 = inlined_call_operand.hbm [shape: bf16[288,128], index: 0, kind: input, shape index: {}]
  %s1 = inlined_call_operand.vmem [shape: bf16[128,128], index: 1, kind: input, shape index: {}]
  %s2 = inlined_call_operand.vmem [shape: f32[1,128], index: 2, kind: input, shape index: {}]
  %s3 = inlined_call_operand.hbm [shape: bf16[13,256,128], index: 3, kind: input, shape index: {}]
  %s4 = inlined_call_operand.vmem [shape: f32[1,128], index: 4, kind: input, shape index: {}]
  %s5 = inlined_call_operand.hbm [shape: bf16[2048,128], index: 5, kind: input, shape index: {}]
  %s6 = inlined_call_operand.vmem [shape: f32[1,128], index: 6, kind: input, shape index: {}]
  %s7 = inlined_call_operand.vmem [shape: bf16[128,10], index: 7, kind: input, shape index: {}]
  %s8 = inlined_call_operand.vmem [shape: f32[1,10], index: 8, kind: input, shape index: {}]
  %s9 = inlined_call_operand.hbm [shape: f32[2,10], index: 9, kind: output, shape index: {}]
  %s10 = sld [smem:[#allocation0]]
  $region58: #{tpu_custom_call.1} parent=0
    _
  %s12 = ssub.s32 1, %s10
  %s13 = scalar_select 0, %s12, %s10
  $region1: #{tpu_custom_call.1} parent=0
    #allocation4 [shape = 'u8[73728]{0}', space=vmem, size = 0x12000, scoped, tag = 'input window, operand 0, single buffered']
    #allocation5 [shape = 's32[1]{0}', space=sflag, size = 0x4, scoped, tag = 'scoped memory for tpu_custom_call.1']
    #allocation6 [shape = 's32[1]{0}', space=sflag, size = 0x4, scoped, tag = 'scoped memory for tpu_custom_call.1']
    #allocation7 [shape = 'u8[851968]{0}', space=vmem, size = 0xd0000, scoped, tag = 'input window, operand 3, single buffered']
    #allocation8 [shape = 's32[1]{0}', space=sflag, size = 0x4, scoped, tag = 'scoped memory for tpu_custom_call.1']
    #allocation9 [shape = 'u8[524288]{0}', space=vmem, size = 0x80000, scoped, tag = 'input window, operand 5, single buffered']
    #allocation10 [shape = 'u8[1024]{0}', space=vmem, size = 0x400, scoped, tag = 'output window, operand 0, single buffered']
    %14 = vsyncpa [#allocation5], 0
    %15 = vsyncpa [#allocation8], 0
    %16 = vsyncpa [#allocation6], 0
    // Predicated region
    $region2: #{tpu_custom_call.1} parent=1 // pred_check
      _
    $region3: #{tpu_custom_call.1} parent=1 // pred_check_branch
      %18 = sbr.rel (0) target = $region5
    $region4: #{tpu_custom_call.1} parent=1 // pred_region
      %20 = vsyncadd [#allocation5], 0
      %s21 = sshll.u32 %s0, 4
      %s22 = int_to_ptr.hbm [resolvable:$true] %s21
      %s23 = sshll.u32 [#allocation4], 4
      %s24 = int_to_ptr.vmem [resolvable:$true] %s23
      %29 = dma.hbm_to_vmem [thread:$0]  %s22, 2304, %s24, [#allocation5], 64, 64, 4
    $region5: #{tpu_custom_call.1} parent=1 // pred_fallthru
      _
    // Predicated region
    $region6: #{tpu_custom_call.1} parent=1 // pred_check
      _
    $region7: #{tpu_custom_call.1} parent=1 // pred_check_branch
      %31 = sbr.rel (0) target = $region9
    $region8: #{tpu_custom_call.1} parent=1 // pred_region
      _
    $region9: #{tpu_custom_call.1} parent=1 // pred_fallthru
      _
    // Predicated region
    $region10: #{tpu_custom_call.1} parent=1 // pred_check
      _
    $region11: #{tpu_custom_call.1} parent=1 // pred_check_branch
      %33 = sbr.rel (0) target = $region13
    $region12: #{tpu_custom_call.1} parent=1 // pred_region
      _
    $region13: #{tpu_custom_call.1} parent=1 // pred_fallthru
      _
    // Predicated region
    $region14: #{tpu_custom_call.1} parent=1 // pred_check
      _
    $region15: #{tpu_custom_call.1} parent=1 // pred_check_branch
      %35 = sbr.rel (0) target = $region17
    $region16: #{tpu_custom_call.1} parent=1 // pred_region
      %37 = vsyncadd [#allocation8], 0
      %s38 = sshll.u32 %s3, 4
      %s39 = int_to_ptr.hbm [resolvable:$true] %s38
      %s40 = sshll.u32 [#allocation7], 4
      %s41 = int_to_ptr.vmem [resolvable:$true] %s40
      %46 = dma.hbm_to_vmem [thread:$0]  %s39, 26624, %s41, [#allocation8], 64, 64, 4
    $region17: #{tpu_custom_call.1} parent=1 // pred_fallthru
      _
    // Predicated region
    $region18: #{tpu_custom_call.1} parent=1 // pred_check
      _
    $region19: #{tpu_custom_call.1} parent=1 // pred_check_branch
      %48 = sbr.rel (0) target = $region21
    $region20: #{tpu_custom_call.1} parent=1 // pred_region
      _
    $region21: #{tpu_custom_call.1} parent=1 // pred_fallthru
      _
    // Predicated region
    $region22: #{tpu_custom_call.1} parent=1 // pred_check
      _
    $region23: #{tpu_custom_call.1} parent=1 // pred_check_branch
      %50 = sbr.rel (0) target = $region25
    $region24: #{tpu_custom_call.1} parent=1 // pred_region
      %52 = vsyncadd [#allocation8], 0
      %s53 = sshll.u32 %s5, 4
      %s54 = int_to_ptr.hbm [resolvable:$true] %s53
      %s55 = sshll.u32 [#allocation9], 4
      %s56 = int_to_ptr.vmem [resolvable:$true] %s55
      %61 = dma.hbm_to_vmem [thread:$0]  %s54, 16384, %s56, [#allocation8], 64, 64, 4
    $region25: #{tpu_custom_call.1} parent=1 // pred_fallthru
      _
    // Predicated region
    $region26: #{tpu_custom_call.1} parent=1 // pred_check
      _
    $region27: #{tpu_custom_call.1} parent=1 // pred_check_branch
      %63 = sbr.rel (0) target = $region29
    $region28: #{tpu_custom_call.1} parent=1 // pred_region
      _
    $region29: #{tpu_custom_call.1} parent=1 // pred_fallthru
      _
    // Predicated region
    $region30: #{tpu_custom_call.1} parent=1 // pred_check
      _
    $region31: #{tpu_custom_call.1} parent=1 // pred_check_branch
      %65 = sbr.rel (0) target = $region33
    $region32: #{tpu_custom_call.1} parent=1 // pred_region
      _
    $region33: #{tpu_custom_call.1} parent=1 // pred_fallthru
      _
    // Predicated region
    $region34: #{tpu_custom_call.1} parent=1 // pred_check
      _
    $region35: #{tpu_custom_call.1} parent=1 // pred_check_branch
      %67 = sbr.rel (0) target = $region37
    $region36: #{tpu_custom_call.1} parent=1 // pred_region
      _
    $region37: #{tpu_custom_call.1} parent=1 // pred_fallthru
      _
    // Predicated region
    $region38: #{tpu_custom_call.1} parent=1 // pred_check
      _
    $region39: #{tpu_custom_call.1} parent=1 // pred_check_branch
      %69 = sbr.rel (0) target = $region41
    $region40: #{tpu_custom_call.1} parent=1 // pred_region
      %71 = dma.done [#allocation5], 2304
    $region41: #{tpu_custom_call.1} parent=1 // pred_fallthru
      _
    // Predicated region
    $region42: #{tpu_custom_call.1} parent=1 // pred_check
      _
    $region43: #{tpu_custom_call.1} parent=1 // pred_check_branch
      %73 = sbr.rel (0) target = $region45
    $region44: #{tpu_custom_call.1} parent=1 // pred_region
      %75 = dma.done [#allocation8], 26624
    $region45: #{tpu_custom_call.1} parent=1 // pred_fallthru
      _
    // Predicated region
    $region46: #{tpu_custom_call.1} parent=1 // pred_check
      _
    $region47: #{tpu_custom_call.1} parent=1 // pred_check_branch
      %77 = sbr.rel (0) target = $region49
    $region48: #{tpu_custom_call.1} parent=1 // pred_region
      %79 = dma.done [#allocation8], 16384
    $region49: #{tpu_custom_call.1} parent=1 // pred_fallthru
      _
    %v80 = vld [vmem:[#allocation4] sm:$0xf]
    %v81 = vld [vmem:[#allocation4 + $0x4] sm:$0xf]
    %v82 = vld [vmem:[#allocation4 + $0x8] sm:$0xf]
    %v83 = vld [vmem:[#allocation4 + $0xc] sm:$0xf]
    %v84 = vld [vmem:[#allocation4 + $0x10] sm:$0xf]
    %v85 = vld [vmem:[#allocation4 + $0x14] sm:$0xf]
    %v86 = vld [vmem:[#allocation4 + $0x18] sm:$0xf]
    %v87 = vld [vmem:[#allocation4 + $0x1c] sm:$0xf]
    %v88 = vld [vmem:[#allocation4 + $0x20] sm:$0xf]
    %v89 = vld [vmem:[#allocation4 + $0x24] sm:$0xf]
    %v90 = vld [vmem:[#allocation4 + $0x28] sm:$0xf]
    %v91 = vld [vmem:[#allocation4 + $0x2c] sm:$0xf]
    %v92 = vld [vmem:[#allocation4 + $0x30] sm:$0xf]
    %v93 = vld [vmem:[#allocation4 + $0x34] sm:$0xf]
    %v94 = vld [vmem:[#allocation4 + $0x38] sm:$0xf]
    %v95 = vld [vmem:[#allocation4 + $0x3c] sm:$0xf]
    %v96 = vld [vmem:[#allocation4 + $0x40] sm:$0xf]
    %v97 = vld [vmem:[#allocation4 + $0x44] sm:$0xf]
    %v98 = vld [vmem:[#allocation4 + $0x48] sm:$0xf]
    %v99 = vld [vmem:[#allocation4 + $0x4c] sm:$0xf]
    %v100 = vld [vmem:[#allocation4 + $0x50] sm:$0xf]
    %v101 = vld [vmem:[#allocation4 + $0x54] sm:$0xf]
    %v102 = vld [vmem:[#allocation4 + $0x58] sm:$0xf]
    %v103 = vld [vmem:[#allocation4 + $0x5c] sm:$0xf]
    %v104 = vld [vmem:[#allocation4 + $0x60] sm:$0xf]
    %v105 = vld [vmem:[#allocation4 + $0x64] sm:$0xf]
    %v106 = vld [vmem:[#allocation4 + $0x68] sm:$0xf]
    %v107 = vld [vmem:[#allocation4 + $0x6c] sm:$0xf]
    %v108 = vld [vmem:[#allocation4 + $0x70] sm:$0xf]
    %v109 = vld [vmem:[#allocation4 + $0x74] sm:$0xf]
    %v110 = vld [vmem:[#allocation4 + $0x78] sm:$0xf]
    %v111 = vld [vmem:[#allocation4 + $0x7c] sm:$0xf]
    %v112 = vld [vmem:[#allocation4 + $0x80] sm:$0xf]
    %v113 = vld [vmem:[#allocation4 + $0x84] sm:$0xf]
    %v114 = vld [vmem:[#allocation4 + $0x88] sm:$0xf]
    %v115 = vld [vmem:[#allocation4 + $0x8c] sm:$0xf]
    %v116 = vld [vmem:[%s1] sm:$0xf]
    %v117 = vld [vmem:[%s1 + $0x4] sm:$0xf]
    %v118 = vld [vmem:[%s1 + $0x8] sm:$0xf]
    %v119 = vld [vmem:[%s1 + $0xc] sm:$0xf]
    %v120 = vld [vmem:[%s1 + $0x10] sm:$0xf]
    %v121 = vld [vmem:[%s1 + $0x14] sm:$0xf]
    %v122 = vld [vmem:[%s1 + $0x18] sm:$0xf]
    %v123 = vld [vmem:[%s1 + $0x1c] sm:$0xf]
    %v124 = vld [vmem:[%s1 + $0x20] sm:$0xf]
    %v125 = vld [vmem:[%s1 + $0x24] sm:$0xf]
    %v126 = vld [vmem:[%s1 + $0x28] sm:$0xf]
    %v127 = vld [vmem:[%s1 + $0x2c] sm:$0xf]
    %v128 = vld [vmem:[%s1 + $0x30] sm:$0xf]
    %v129 = vld [vmem:[%s1 + $0x34] sm:$0xf]
    %v130 = vld [vmem:[%s1 + $0x38] sm:$0xf]
    %v131 = vld [vmem:[%s1 + $0x3c] sm:$0xf]
    %v168 = vunpack.c.l.b16 %v80
    %v169 = vunpack.c.l.b16 %v81
    %v170 = vunpack.c.l.b16 %v82
    %v171 = vunpack.c.l.b16 %v83
    %v172 = vunpack.c.l.b16 %v84
    %v173 = vunpack.c.l.b16 %v85
    %v174 = vunpack.c.l.b16 %v86
    %v175 = vunpack.c.l.b16 %v87
    %v176 = vunpack.c.l.b16 %v88
    %v177 = vunpack.c.l.b16 %v89
    %v178 = vunpack.c.l.b16 %v90
    %v179 = vunpack.c.l.b16 %v91
    %v180 = vunpack.c.l.b16 %v92
    %v181 = vunpack.c.l.b16 %v93
    %v182 = vunpack.c.l.b16 %v94
    %v183 = vunpack.c.l.b16 %v95
    %v184 = vunpack.c.l.b16 %v96
    %v185 = vunpack.c.l.b16 %v97
    %v186 = vunpack.c.l.b16 %v98
    %v187 = vunpack.c.l.b16 %v99
    %v188 = vunpack.c.l.b16 %v100
    %v189 = vunpack.c.l.b16 %v101
    %v190 = vunpack.c.l.b16 %v102
    %v191 = vunpack.c.l.b16 %v103
    %v192 = vunpack.c.l.b16 %v104
    %v193 = vunpack.c.l.b16 %v105
    %v194 = vunpack.c.l.b16 %v106
    %v195 = vunpack.c.l.b16 %v107
    %v196 = vunpack.c.l.b16 %v108
    %v197 = vunpack.c.l.b16 %v109
    %v198 = vunpack.c.l.b16 %v110
    %v199 = vunpack.c.l.b16 %v111
    %v200 = vunpack.c.l.b16 %v112
    %v201 = vunpack.c.l.b16 %v113
    %v202 = vunpack.c.l.b16 %v114
    %v203 = vunpack.c.l.b16 %v115
    %v204 = vpack.c.b16 %v169, %v168
    %v205 = vpack.c.b16 %v171, %v170
    %v206 = vpack.c.b16 %v173, %v172
    %v207 = vpack.c.b16 %v175, %v174
    %v208 = vpack.c.b16 %v177, %v176
    %v209 = vpack.c.b16 %v179, %v178
    %v210 = vpack.c.b16 %v181, %v180
    %v211 = vpack.c.b16 %v183, %v182
    %v212 = vpack.c.b16 %v185, %v184
    %v213 = vpack.c.b16 %v187, %v186
    %v214 = vpack.c.b16 %v189, %v188
    %v215 = vpack.c.b16 %v191, %v190
    %v216 = vpack.c.b16 %v193, %v192
    %v217 = vpack.c.b16 %v195, %v194
    %v218 = vpack.c.b16 %v197, %v196
    %v219 = vpack.c.b16 %v199, %v198
    %v220 = vpack.c.b16 %v201, %v200
    %v221 = vpack.c.b16 %v203, %v202
    %v256 = vunpack.c.l.b16 %v116
    %v257 = vunpack.c.l.b16 %v117
    %v258 = vunpack.c.l.b16 %v118
    %v259 = vunpack.c.l.b16 %v119
    %v260 = vunpack.c.l.b16 %v120
    %v261 = vunpack.c.l.b16 %v121
    %v262 = vunpack.c.l.b16 %v122
    %v263 = vunpack.c.l.b16 %v123
    %v264 = vunpack.c.l.b16 %v124
    %v265 = vunpack.c.l.b16 %v125
    %v266 = vunpack.c.l.b16 %v126
    %v267 = vunpack.c.l.b16 %v127
    %v268 = vunpack.c.l.b16 %v128
    %v269 = vunpack.c.l.b16 %v129
    %v270 = vunpack.c.l.b16 %v130
    %v271 = vunpack.c.l.b16 %v131
    %v272 = vpack.c.b16 %v257, %v256
    %v273 = vpack.c.b16 %v259, %v258
    %v274 = vpack.c.b16 %v261, %v260
    %v275 = vpack.c.b16 %v263, %v262
    %v276 = vpack.c.b16 %v265, %v264
    %v277 = vpack.c.b16 %v267, %v266
    %v278 = vpack.c.b16 %v269, %v268
    %v279 = vpack.c.b16 %v271, %v270
    %288 = vmatpush.bf16.msra.mxu0 %v279
    %289 = vmatpush.bf16.msra.mxu0 %v278
    %290 = vmatpush.bf16.msra.mxu0 %v277
    %291 = vmatpush.bf16.msra.mxu0 %v276
    %292 = vmatpush.bf16.msra.mxu0 %v275
    %293 = vmatpush.bf16.msra.mxu0 %v274
    %294 = vmatpush.bf16.msra.mxu0 %v273
    %295 = vmatpush.bf16.msra.mxu0 %v272
    %296 = vmatmul.bf16.gmra.mxu0 %v204
    %v297 = vpop.f32.mrf.mxu0
    %v298 = vadd.f32 0.0, %v297
    %v299 = vpop.f32.mrf.mxu0
    %v300 = vadd.f32 0.0, %v299
    %301 = vmatmul.bf16.gmra.mxu0 %v205
    %v302 = vpop.f32.mrf.mxu0
    %v303 = vadd.f32 0.0, %v302
    %v304 = vpop.f32.mrf.mxu0
    %v305 = vadd.f32 0.0, %v304
    %306 = vmatmul.bf16.gmra.mxu0 %v206
    %v307 = vpop.f32.mrf.mxu0
    %v308 = vadd.f32 0.0, %v307
    %v309 = vpop.f32.mrf.mxu0
    %v310 = vadd.f32 0.0, %v309
    %311 = vmatmul.bf16.gmra.mxu0 %v207
    %v312 = vpop.f32.mrf.mxu0
    %v313 = vadd.f32 0.0, %v312
    %v314 = vpop.f32.mrf.mxu0
    %v315 = vadd.f32 0.0, %v314
    %316 = vmatmul.bf16.gmra.mxu0 %v208
    %v317 = vpop.f32.mrf.mxu0
    %v318 = vadd.f32 0.0, %v317
    %v319 = vpop.f32.mrf.mxu0
    %v320 = vadd.f32 0.0, %v319
    %321 = vmatmul.bf16.gmra.mxu0 %v209
    %v322 = vpop.f32.mrf.mxu0
    %v323 = vadd.f32 0.0, %v322
    %v324 = vpop.f32.mrf.mxu0
    %v325 = vadd.f32 0.0, %v324
    %326 = vmatmul.bf16.gmra.mxu0 %v210
    %v327 = vpop.f32.mrf.mxu0
    %v328 = vadd.f32 0.0, %v327
    %v329 = vpop.f32.mrf.mxu0
    %v330 = vadd.f32 0.0, %v329
    %331 = vmatmul.bf16.gmra.mxu0 %v211
    %v332 = vpop.f32.mrf.mxu0
    %v333 = vadd.f32 0.0, %v332
    %v334 = vpop.f32.mrf.mxu0
    %v335 = vadd.f32 0.0, %v334
    %336 = vmatmul.bf16.gmra.mxu0 %v212
    %v337 = vpop.f32.mrf.mxu0
    %v338 = vadd.f32 0.0, %v337
    %v339 = vpop.f32.mrf.mxu0
    %v340 = vadd.f32 0.0, %v339
    %341 = vmatmul.bf16.gmra.mxu0 %v213
    %v342 = vpop.f32.mrf.mxu0
    %v343 = vadd.f32 0.0, %v342
    %v344 = vpop.f32.mrf.mxu0
    %v345 = vadd.f32 0.0, %v344
    %346 = vmatmul.bf16.gmra.mxu0 %v214
    %v347 = vpop.f32.mrf.mxu0
    %v348 = vadd.f32 0.0, %v347
    %v349 = vpop.f32.mrf.mxu0
    %v350 = vadd.f32 0.0, %v349
    %351 = vmatmul.bf16.gmra.mxu0 %v215
    %v352 = vpop.f32.mrf.mxu0
    %v353 = vadd.f32 0.0, %v352
    %v354 = vpop.f32.mrf.mxu0
    %v355 = vadd.f32 0.0, %v354
    %356 = vmatmul.bf16.gmra.mxu0 %v216
    %v357 = vpop.f32.mrf.mxu0
    %v358 = vadd.f32 0.0, %v357
    %v359 = vpop.f32.mrf.mxu0
    %v360 = vadd.f32 0.0, %v359
    %361 = vmatmul.bf16.gmra.mxu0 %v217
    %v362 = vpop.f32.mrf.mxu0
    %v363 = vadd.f32 0.0, %v362
    %v364 = vpop.f32.mrf.mxu0
    %v365 = vadd.f32 0.0, %v364
    %366 = vmatmul.bf16.gmra.mxu0 %v218
    %v367 = vpop.f32.mrf.mxu0
    %v368 = vadd.f32 0.0, %v367
    %v369 = vpop.f32.mrf.mxu0
    %v370 = vadd.f32 0.0, %v369
    %371 = vmatmul.bf16.gmra.mxu0 %v219
    %v372 = vpop.f32.mrf.mxu0
    %v373 = vadd.f32 0.0, %v372
    %v374 = vpop.f32.mrf.mxu0
    %v375 = vadd.f32 0.0, %v374
    %376 = vmatmul.bf16.gmra.mxu0 %v220
    %v377 = vpop.f32.mrf.mxu0
    %v378 = vadd.f32 0.0, %v377
    %v379 = vpop.f32.mrf.mxu0
    %v380 = vadd.f32 0.0, %v379
    %381 = vmatmul.bf16.gmra.mxu0 %v221
    %v382 = vpop.f32.mrf.mxu0
    %v383 = vadd.f32 0.0, %v382
    %v384 = vpop.f32.mrf.mxu0
    %v385 = vadd.f32 0.0, %v384
    %386 = vdwg.mxu0
    %387 = vrot.lane.b32.xlu0 %v298, 64
    %v388 = vpop.permute.xlu0 %387
    %389 = vrot.lane.b32.xlu0 %v300, 64
    %v390 = vpop.permute.xlu0 %389
    %391 = vrot.lane.b32.xlu0 %v303, 64
    %v392 = vpop.permute.xlu0 %391
    %393 = vrot.lane.b32.xlu0 %v305, 64
    %v394 = vpop.permute.xlu0 %393
    %395 = vrot.lane.b32.xlu0 %v308, 64
    %v396 = vpop.permute.xlu0 %395
    %397 = vrot.lane.b32.xlu0 %v310, 64
    %v398 = vpop.permute.xlu0 %397
    %399 = vrot.lane.b32.xlu0 %v313, 64
    %v400 = vpop.permute.xlu0 %399
    %401 = vrot.lane.b32.xlu0 %v315, 64
    %v402 = vpop.permute.xlu0 %401
    %403 = vrot.lane.b32.xlu0 %v318, 64
    %v404 = vpop.permute.xlu0 %403
    %405 = vrot.lane.b32.xlu0 %v320, 64
    %v406 = vpop.permute.xlu0 %405
    %407 = vrot.lane.b32.xlu0 %v323, 64
    %v408 = vpop.permute.xlu0 %407
    %409 = vrot.lane.b32.xlu0 %v325, 64
    %v410 = vpop.permute.xlu0 %409
    %411 = vrot.lane.b32.xlu0 %v328, 64
    %v412 = vpop.permute.xlu0 %411
    %413 = vrot.lane.b32.xlu0 %v330, 64
    %v414 = vpop.permute.xlu0 %413
    %415 = vrot.lane.b32.xlu0 %v333, 64
    %v416 = vpop.permute.xlu0 %415
    %417 = vrot.lane.b32.xlu0 %v335, 64
    %v418 = vpop.permute.xlu0 %417
    %419 = vrot.lane.b32.xlu0 %v338, 64
    %v420 = vpop.permute.xlu0 %419
    %421 = vrot.lane.b32.xlu0 %v340, 64
    %v422 = vpop.permute.xlu0 %421
    %423 = vrot.lane.b32.xlu0 %v343, 64
    %v424 = vpop.permute.xlu0 %423
    %425 = vrot.lane.b32.xlu0 %v345, 64
    %v426 = vpop.permute.xlu0 %425
    %427 = vrot.lane.b32.xlu0 %v348, 64
    %v428 = vpop.permute.xlu0 %427
    %429 = vrot.lane.b32.xlu0 %v350, 64
    %v430 = vpop.permute.xlu0 %429
    %431 = vrot.lane.b32.xlu0 %v353, 64
    %v432 = vpop.permute.xlu0 %431
    %433 = vrot.lane.b32.xlu0 %v355, 64
    %v434 = vpop.permute.xlu0 %433
    %435 = vrot.lane.b32.xlu0 %v358, 64
    %v436 = vpop.permute.xlu0 %435
    %437 = vrot.lane.b32.xlu0 %v360, 64
    %v438 = vpop.permute.xlu0 %437
    %439 = vrot.lane.b32.xlu0 %v363, 64
    %v440 = vpop.permute.xlu0 %439
    %441 = vrot.lane.b32.xlu0 %v365, 64
    %v442 = vpop.permute.xlu0 %441
    %443 = vrot.lane.b32.xlu0 %v368, 64
    %v444 = vpop.permute.xlu0 %443
    %445 = vrot.lane.b32.xlu0 %v370, 64
    %v446 = vpop.permute.xlu0 %445
    %447 = vrot.lane.b32.xlu0 %v373, 64
    %v448 = vpop.permute.xlu0 %447
    %449 = vrot.lane.b32.xlu0 %v375, 64
    %v450 = vpop.permute.xlu0 %449
    %451 = vrot.lane.b32.xlu0 %v378, 64
    %v452 = vpop.permute.xlu0 %451
    %453 = vrot.lane.b32.xlu0 %v380, 64
    %v454 = vpop.permute.xlu0 %453
    %455 = vrot.lane.b32.xlu0 %v383, 64
    %v456 = vpop.permute.xlu0 %455
    %457 = vrot.lane.b32.xlu0 %v385, 64
    %v458 = vpop.permute.xlu0 %457
    %v459 = vmax.f32 %v298, %v388
    %v460 = vmax.f32 %v300, %v390
    %v461 = vmax.f32 %v303, %v392
    %v462 = vmax.f32 %v305, %v394
    %v463 = vmax.f32 %v308, %v396
    %v464 = vmax.f32 %v310, %v398
    %v465 = vmax.f32 %v313, %v400
    %v466 = vmax.f32 %v315, %v402
    %v467 = vmax.f32 %v318, %v404
    %v468 = vmax.f32 %v320, %v406
    %v469 = vmax.f32 %v323, %v408
    %v470 = vmax.f32 %v325, %v410
    %v471 = vmax.f32 %v328, %v412
    %v472 = vmax.f32 %v330, %v414
    %v473 = vmax.f32 %v333, %v416
    %v474 = vmax.f32 %v335, %v418
    %v475 = vmax.f32 %v338, %v420
    %v476 = vmax.f32 %v340, %v422
    %v477 = vmax.f32 %v343, %v424
    %v478 = vmax.f32 %v345, %v426
    %v479 = vmax.f32 %v348, %v428
    %v480 = vmax.f32 %v350, %v430
    %v481 = vmax.f32 %v353, %v432
    %v482 = vmax.f32 %v355, %v434
    %v483 = vmax.f32 %v358, %v436
    %v484 = vmax.f32 %v360, %v438
    %v485 = vmax.f32 %v363, %v440
    %v486 = vmax.f32 %v365, %v442
    %v487 = vmax.f32 %v368, %v444
    %v488 = vmax.f32 %v370, %v446
    %v489 = vmax.f32 %v373, %v448
    %v490 = vmax.f32 %v375, %v450
    %v491 = vmax.f32 %v378, %v452
    %v492 = vmax.f32 %v380, %v454
    %v493 = vmax.f32 %v383, %v456
    %v494 = vmax.f32 %v385, %v458
    %495 = vrot.lane.b32.xlu0 %v459, 32
    %v496 = vpop.permute.xlu0 %495
    %497 = vrot.lane.b32.xlu0 %v460, 32
    %v498 = vpop.permute.xlu0 %497
    %499 = vrot.lane.b32.xlu0 %v461, 32
    %v500 = vpop.permute.xlu0 %499
    %501 = vrot.lane.b32.xlu0 %v462, 32
    %v502 = vpop.permute.xlu0 %501
    %503 = vrot.lane.b32.xlu0 %v463, 32
    %v504 = vpop.permute.xlu0 %503
    %505 = vrot.lane.b32.xlu0 %v464, 32
    %v506 = vpop.permute.xlu0 %505
    %507 = vrot.lane.b32.xlu0 %v465, 32
    %v508 = vpop.permute.xlu0 %507
    %509 = vrot.lane.b32.xlu0 %v466, 32
    %v510 = vpop.permute.xlu0 %509
    %511 = vrot.lane.b32.xlu0 %v467, 32
    %v512 = vpop.permute.xlu0 %511
    %513 = vrot.lane.b32.xlu0 %v468, 32
    %v514 = vpop.permute.xlu0 %513
    %515 = vrot.lane.b32.xlu0 %v469, 32
    %v516 = vpop.permute.xlu0 %515
    %517 = vrot.lane.b32.xlu0 %v470, 32
    %v518 = vpop.permute.xlu0 %517
    %519 = vrot.lane.b32.xlu0 %v471, 32
    %v520 = vpop.permute.xlu0 %519
    %521 = vrot.lane.b32.xlu0 %v472, 32
    %v522 = vpop.permute.xlu0 %521
    %523 = vrot.lane.b32.xlu0 %v473, 32
    %v524 = vpop.permute.xlu0 %523
    %525 = vrot.lane.b32.xlu0 %v474, 32
    %v526 = vpop.permute.xlu0 %525
    %527 = vrot.lane.b32.xlu0 %v475, 32
    %v528 = vpop.permute.xlu0 %527
    %529 = vrot.lane.b32.xlu0 %v476, 32
    %v530 = vpop.permute.xlu0 %529
    %531 = vrot.lane.b32.xlu0 %v477, 32
    %v532 = vpop.permute.xlu0 %531
    %533 = vrot.lane.b32.xlu0 %v478, 32
    %v534 = vpop.permute.xlu0 %533
    %535 = vrot.lane.b32.xlu0 %v479, 32
    %v536 = vpop.permute.xlu0 %535
    %537 = vrot.lane.b32.xlu0 %v480, 32
    %v538 = vpop.permute.xlu0 %537
    %539 = vrot.lane.b32.xlu0 %v481, 32
    %v540 = vpop.permute.xlu0 %539
    %541 = vrot.lane.b32.xlu0 %v482, 32
    %v542 = vpop.permute.xlu0 %541
    %543 = vrot.lane.b32.xlu0 %v483, 32
    %v544 = vpop.permute.xlu0 %543
    %545 = vrot.lane.b32.xlu0 %v484, 32
    %v546 = vpop.permute.xlu0 %545
    %547 = vrot.lane.b32.xlu0 %v485, 32
    %v548 = vpop.permute.xlu0 %547
    %549 = vrot.lane.b32.xlu0 %v486, 32
    %v550 = vpop.permute.xlu0 %549
    %551 = vrot.lane.b32.xlu0 %v487, 32
    %v552 = vpop.permute.xlu0 %551
    %553 = vrot.lane.b32.xlu0 %v488, 32
    %v554 = vpop.permute.xlu0 %553
    %555 = vrot.lane.b32.xlu0 %v489, 32
    %v556 = vpop.permute.xlu0 %555
    %557 = vrot.lane.b32.xlu0 %v490, 32
    %v558 = vpop.permute.xlu0 %557
    %559 = vrot.lane.b32.xlu0 %v491, 32
    %v560 = vpop.permute.xlu0 %559
    %561 = vrot.lane.b32.xlu0 %v492, 32
    %v562 = vpop.permute.xlu0 %561
    %563 = vrot.lane.b32.xlu0 %v493, 32
    %v564 = vpop.permute.xlu0 %563
    %565 = vrot.lane.b32.xlu0 %v494, 32
    %v566 = vpop.permute.xlu0 %565
    %v567 = vmax.f32 %v459, %v496
    %v568 = vmax.f32 %v460, %v498
    %v569 = vmax.f32 %v461, %v500
    %v570 = vmax.f32 %v462, %v502
    %v571 = vmax.f32 %v463, %v504
    %v572 = vmax.f32 %v464, %v506
    %v573 = vmax.f32 %v465, %v508
    %v574 = vmax.f32 %v466, %v510
    %v575 = vmax.f32 %v467, %v512
    %v576 = vmax.f32 %v468, %v514
    %v577 = vmax.f32 %v469, %v516
    %v578 = vmax.f32 %v470, %v518
    %v579 = vmax.f32 %v471, %v520
    %v580 = vmax.f32 %v472, %v522
    %v581 = vmax.f32 %v473, %v524
    %v582 = vmax.f32 %v474, %v526
    %v583 = vmax.f32 %v475, %v528
    %v584 = vmax.f32 %v476, %v530
    %v585 = vmax.f32 %v477, %v532
    %v586 = vmax.f32 %v478, %v534
    %v587 = vmax.f32 %v479, %v536
    %v588 = vmax.f32 %v480, %v538
    %v589 = vmax.f32 %v481, %v540
    %v590 = vmax.f32 %v482, %v542
    %v591 = vmax.f32 %v483, %v544
    %v592 = vmax.f32 %v484, %v546
    %v593 = vmax.f32 %v485, %v548
    %v594 = vmax.f32 %v486, %v550
    %v595 = vmax.f32 %v487, %v552
    %v596 = vmax.f32 %v488, %v554
    %v597 = vmax.f32 %v489, %v556
    %v598 = vmax.f32 %v490, %v558
    %v599 = vmax.f32 %v491, %v560
    %v600 = vmax.f32 %v492, %v562
    %v601 = vmax.f32 %v493, %v564
    %v602 = vmax.f32 %v494, %v566
    %v603 = vld [vmem:[%s2] sm:$0x1]
    %v605 = vperm.slane %v603, 0
    %v607 = vadd.f32 %v567, %v605
    %v608 = vadd.f32 %v568, %v605
    %v609 = vadd.f32 %v569, %v605
    %v610 = vadd.f32 %v570, %v605
    %v611 = vadd.f32 %v571, %v605
    %v612 = vadd.f32 %v572, %v605
    %v613 = vadd.f32 %v573, %v605
    %v614 = vadd.f32 %v574, %v605
    %v615 = vadd.f32 %v575, %v605
    %v616 = vadd.f32 %v576, %v605
    %v617 = vadd.f32 %v577, %v605
    %v618 = vadd.f32 %v578, %v605
    %v619 = vadd.f32 %v579, %v605
    %v620 = vadd.f32 %v580, %v605
    %v621 = vadd.f32 %v581, %v605
    %v622 = vadd.f32 %v582, %v605
    %v623 = vadd.f32 %v583, %v605
    %v624 = vadd.f32 %v584, %v605
    %v625 = vadd.f32 %v585, %v605
    %v626 = vadd.f32 %v586, %v605
    %v627 = vadd.f32 %v587, %v605
    %v628 = vadd.f32 %v588, %v605
    %v629 = vadd.f32 %v589, %v605
    %v630 = vadd.f32 %v590, %v605
    %v631 = vadd.f32 %v591, %v605
    %v632 = vadd.f32 %v592, %v605
    %v633 = vadd.f32 %v593, %v605
    %v634 = vadd.f32 %v594, %v605
    %v635 = vadd.f32 %v595, %v605
    %v636 = vadd.f32 %v596, %v605
    %v637 = vadd.f32 %v597, %v605
    %v638 = vadd.f32 %v598, %v605
    %v639 = vadd.f32 %v599, %v605
    %v640 = vadd.f32 %v600, %v605
    %v641 = vadd.f32 %v601, %v605
    %v642 = vadd.f32 %v602, %v605
    %v643 = vmax.f32 %v607, 0.0
    %v644 = vmax.f32 %v608, 0.0
    %v645 = vmax.f32 %v609, 0.0
    %v646 = vmax.f32 %v610, 0.0
    %v647 = vmax.f32 %v611, 0.0
    %v648 = vmax.f32 %v612, 0.0
    %v649 = vmax.f32 %v613, 0.0
    %v650 = vmax.f32 %v614, 0.0
    %v651 = vmax.f32 %v615, 0.0
    %v652 = vmax.f32 %v616, 0.0
    %v653 = vmax.f32 %v617, 0.0
    %v654 = vmax.f32 %v618, 0.0
    %v655 = vmax.f32 %v619, 0.0
    %v656 = vmax.f32 %v620, 0.0
    %v657 = vmax.f32 %v621, 0.0
    %v658 = vmax.f32 %v622, 0.0
    %v659 = vmax.f32 %v623, 0.0
    %v660 = vmax.f32 %v624, 0.0
    %v661 = vmax.f32 %v625, 0.0
    %v662 = vmax.f32 %v626, 0.0
    %v663 = vmax.f32 %v627, 0.0
    %v664 = vmax.f32 %v628, 0.0
    %v665 = vmax.f32 %v629, 0.0
    %v666 = vmax.f32 %v630, 0.0
    %v667 = vmax.f32 %v631, 0.0
    %v668 = vmax.f32 %v632, 0.0
    %v669 = vmax.f32 %v633, 0.0
    %v670 = vmax.f32 %v634, 0.0
    %v671 = vmax.f32 %v635, 0.0
    %v672 = vmax.f32 %v636, 0.0
    %v673 = vmax.f32 %v637, 0.0
    %v674 = vmax.f32 %v638, 0.0
    %v675 = vmax.f32 %v639, 0.0
    %v676 = vmax.f32 %v640, 0.0
    %v677 = vmax.f32 %v641, 0.0
    %v678 = vmax.f32 %v642, 0.0
    %v679 = vpack.c.bf16 %v643, %v643
    %v680 = vpack.c.bf16 %v644, %v644
    %v681 = vpack.c.bf16 %v645, %v645
    %v682 = vpack.c.bf16 %v646, %v646
    %v683 = vpack.c.bf16 %v647, %v647
    %v684 = vpack.c.bf16 %v648, %v648
    %v685 = vpack.c.bf16 %v649, %v649
    %v686 = vpack.c.bf16 %v650, %v650
    %v687 = vpack.c.bf16 %v651, %v651
    %v688 = vpack.c.bf16 %v652, %v652
    %v689 = vpack.c.bf16 %v653, %v653
    %v690 = vpack.c.bf16 %v654, %v654
    %v691 = vpack.c.bf16 %v655, %v655
    %v692 = vpack.c.bf16 %v656, %v656
    %v693 = vpack.c.bf16 %v657, %v657
    %v694 = vpack.c.bf16 %v658, %v658
    %v695 = vpack.c.bf16 %v659, %v659
    %v696 = vpack.c.bf16 %v660, %v660
    %v697 = vpack.c.bf16 %v661, %v661
    %v698 = vpack.c.bf16 %v662, %v662
    %v699 = vpack.c.bf16 %v663, %v663
    %v700 = vpack.c.bf16 %v664, %v664
    %v701 = vpack.c.bf16 %v665, %v665
    %v702 = vpack.c.bf16 %v666, %v666
    %v703 = vpack.c.bf16 %v667, %v667
    %v704 = vpack.c.bf16 %v668, %v668
    %v705 = vpack.c.bf16 %v669, %v669
    %v706 = vpack.c.bf16 %v670, %v670
    %v707 = vpack.c.bf16 %v671, %v671
    %v708 = vpack.c.bf16 %v672, %v672
    %v709 = vpack.c.bf16 %v673, %v673
    %v710 = vpack.c.bf16 %v674, %v674
    %v711 = vpack.c.bf16 %v675, %v675
    %v712 = vpack.c.bf16 %v676, %v676
    %v713 = vpack.c.bf16 %v677, %v677
    %v714 = vpack.c.bf16 %v678, %v678
    %v751 = vrot.slane %v679, 2
    %v752 = vrot.slane %v680, 2
    %v753 = vrot.slane %v681, 2
    %v754 = vrot.slane %v682, 2
    %v755 = vrot.slane %v683, 2
    %v756 = vrot.slane %v684, 2
    %v757 = vrot.slane %v685, 2
    %v758 = vrot.slane %v686, 2
    %v759 = vrot.slane %v687, 2
    %v760 = vrot.slane %v688, 2
    %v761 = vrot.slane %v689, 2
    %v762 = vrot.slane %v690, 2
    %v763 = vrot.slane %v691, 2
    %v764 = vrot.slane %v692, 2
    %v765 = vrot.slane %v693, 2
    %v766 = vrot.slane %v694, 2
    %v767 = vrot.slane %v695, 2
    %v768 = vrot.slane %v696, 2
    %v769 = vrot.slane %v697, 2
    %v770 = vrot.slane %v698, 2
    %v771 = vrot.slane %v699, 2
    %v772 = vrot.slane %v700, 2
    %v773 = vrot.slane %v701, 2
    %v774 = vrot.slane %v702, 2
    %v775 = vrot.slane %v703, 2
    %v776 = vrot.slane %v704, 2
    %v777 = vrot.slane %v705, 2
    %v778 = vrot.slane %v706, 2
    %v779 = vrot.slane %v707, 2
    %v780 = vrot.slane %v708, 2
    %v781 = vrot.slane %v709, 2
    %v782 = vrot.slane %v710, 2
    %v783 = vrot.slane %v711, 2
    %v784 = vrot.slane %v712, 2
    %v785 = vrot.slane %v713, 2
    %v786 = vrot.slane %v714, 2
    %vm787 = vcmask 1041408
    %v790 = vsel %vm787, %v679, %v751
    %vm791 = vcmask 1043458
    %v792 = vsel %vm791, %v679, %v751
    %v794 = vrot.slane %v792, 2
    %v797 = vsel %vm787, %v680, %v752
    %v798 = vsel %vm791, %v680, %v752
    %v800 = vrot.slane %v798, 2
    %v803 = vsel %vm787, %v681, %v753
    %v804 = vsel %vm791, %v681, %v753
    %v806 = vrot.slane %v804, 2
    %v809 = vsel %vm787, %v682, %v754
    %v810 = vsel %vm791, %v682, %v754
    %v812 = vrot.slane %v810, 2
    %v815 = vsel %vm787, %v683, %v755
    %v816 = vsel %vm791, %v683, %v755
    %v818 = vrot.slane %v816, 2
    %v821 = vsel %vm787, %v684, %v756
    %v822 = vsel %vm791, %v684, %v756
    %v824 = vrot.slane %v822, 2
    %v827 = vsel %vm787, %v685, %v757
    %v828 = vsel %vm791, %v685, %v757
    %v830 = vrot.slane %v828, 2
    %v833 = vsel %vm787, %v686, %v758
    %v834 = vsel %vm791, %v686, %v758
    %v836 = vrot.slane %v834, 2
    %v839 = vsel %vm787, %v687, %v759
    %v840 = vsel %vm791, %v687, %v759
    %v842 = vrot.slane %v840, 2
    %v845 = vsel %vm787, %v688, %v760
    %v846 = vsel %vm791, %v688, %v760
    %v848 = vrot.slane %v846, 2
    %v851 = vsel %vm787, %v689, %v761
    %v852 = vsel %vm791, %v689, %v761
    %v854 = vrot.slane %v852, 2
    %v857 = vsel %vm787, %v690, %v762
    %v858 = vsel %vm791, %v690, %v762
    %v860 = vrot.slane %v858, 2
    %v863 = vsel %vm787, %v691, %v763
    %v864 = vsel %vm791, %v691, %v763
    %v866 = vrot.slane %v864, 2
    %v869 = vsel %vm787, %v692, %v764
    %v870 = vsel %vm791, %v692, %v764
    %v872 = vrot.slane %v870, 2
    %v875 = vsel %vm787, %v693, %v765
    %v876 = vsel %vm791, %v693, %v765
    %v878 = vrot.slane %v876, 2
    %v881 = vsel %vm787, %v694, %v766
    %v882 = vsel %vm791, %v694, %v766
    %v884 = vrot.slane %v882, 2
    %v887 = vsel %vm787, %v695, %v767
    %v888 = vsel %vm791, %v695, %v767
    %v890 = vrot.slane %v888, 2
    %v893 = vsel %vm787, %v696, %v768
    %v894 = vsel %vm791, %v696, %v768
    %v896 = vrot.slane %v894, 2
    %v899 = vsel %vm787, %v697, %v769
    %v900 = vsel %vm791, %v697, %v769
    %v902 = vrot.slane %v900, 2
    %v905 = vsel %vm787, %v698, %v770
    %v906 = vsel %vm791, %v698, %v770
    %v908 = vrot.slane %v906, 2
    %v911 = vsel %vm787, %v699, %v771
    %v912 = vsel %vm791, %v699, %v771
    %v914 = vrot.slane %v912, 2
    %v917 = vsel %vm787, %v700, %v772
    %v918 = vsel %vm791, %v700, %v772
    %v920 = vrot.slane %v918, 2
    %v923 = vsel %vm787, %v701, %v773
    %v924 = vsel %vm791, %v701, %v773
    %v926 = vrot.slane %v924, 2
    %v929 = vsel %vm787, %v702, %v774
    %v930 = vsel %vm791, %v702, %v774
    %v932 = vrot.slane %v930, 2
    %v935 = vsel %vm787, %v703, %v775
    %v936 = vsel %vm791, %v703, %v775
    %v938 = vrot.slane %v936, 2
    %v941 = vsel %vm787, %v704, %v776
    %v942 = vsel %vm791, %v704, %v776
    %v944 = vrot.slane %v942, 2
    %v947 = vsel %vm787, %v705, %v777
    %v948 = vsel %vm791, %v705, %v777
    %v950 = vrot.slane %v948, 2
    %v953 = vsel %vm787, %v706, %v778
    %v954 = vsel %vm791, %v706, %v778
    %v956 = vrot.slane %v954, 2
    %v959 = vsel %vm787, %v707, %v779
    %v960 = vsel %vm791, %v707, %v779
    %v962 = vrot.slane %v960, 2
    %v965 = vsel %vm787, %v708, %v780
    %v966 = vsel %vm791, %v708, %v780
    %v968 = vrot.slane %v966, 2
    %v971 = vsel %vm787, %v709, %v781
    %v972 = vsel %vm791, %v709, %v781
    %v974 = vrot.slane %v972, 2
    %v977 = vsel %vm787, %v710, %v782
    %v978 = vsel %vm791, %v710, %v782
    %v980 = vrot.slane %v978, 2
    %v983 = vsel %vm787, %v711, %v783
    %v984 = vsel %vm791, %v711, %v783
    %v986 = vrot.slane %v984, 2
    %v989 = vsel %vm787, %v712, %v784
    %v990 = vsel %vm791, %v712, %v784
    %v992 = vrot.slane %v990, 2
    %v995 = vsel %vm787, %v713, %v785
    %v996 = vsel %vm791, %v713, %v785
    %v998 = vrot.slane %v996, 2
    %v1001 = vsel %vm787, %v714, %v786
    %v1002 = vsel %vm791, %v714, %v786
    %v1004 = vrot.slane %v1002, 2
    %1005 = vst [vmem:[#allocation1] ss:$2 sm:$0xff] %v790
    %s1007 = scalar_lea.vmem [#allocation1], 1
    %1008 = vst [vmem:[%s1007] ss:$2 sm:$0xff] %v794
    %s1009 = scalar_lea.vmem [#allocation1], 16
    %1010 = vst [vmem:[%s1009] ss:$2 sm:$0xff] %v797
    %v1011 = vld.sshfl [vmem:[#allocation1] sm:$0xff pattern:$0x75643120]
    %v1012 = vld.sshfl [vmem:[#allocation1 + $0x10] sm:$0xff pattern:$0x75643120]
    %s1014 = scalar_lea.vmem [#allocation1], 32
    %1015 = vst [vmem:[%s1014] ss:$2 sm:$0xff] %v800
    %s1016 = scalar_lea.vmem [#allocation1], 33
    %1017 = vst [vmem:[%s1016] ss:$2 sm:$0xff] %v803
    %s1019 = scalar_lea.vmem [#allocation1], 48
    %1020 = vst [vmem:[%s1019] ss:$2 sm:$0xff] %v806
    %v1021 = vld.sshfl [vmem:[#allocation1 + $0x20] sm:$0xff pattern:$0x75643120]
    %v1022 = vld.sshfl [vmem:[#allocation1 + $0x30] sm:$0xff pattern:$0x75643120]
    %1023 = vst [vmem:[#allocation1] ss:$2 sm:$0xff] %v809
    %1025 = vst [vmem:[%s1007] ss:$2 sm:$0xff] %v812
    %1026 = vst [vmem:[%s1009] ss:$2 sm:$0xff] %v815
    %v1027 = vld.sshfl [vmem:[#allocation1] sm:$0xff pattern:$0x75643120]
    %v1028 = vld.sshfl [vmem:[#allocation1 + $0x10] sm:$0xff pattern:$0x75643120]
    %1030 = vst [vmem:[%s1014] ss:$2 sm:$0xff] %v818
    %1031 = vst [vmem:[%s1016] ss:$2 sm:$0xff] %v821
    %1033 = vst [vmem:[%s1019] ss:$2 sm:$0xff] %v824
    %v1034 = vld.sshfl [vmem:[#allocation1 + $0x20] sm:$0xff pattern:$0x75643120]
    %v1035 = vld.sshfl [vmem:[#allocation1 + $0x30] sm:$0xff pattern:$0x75643120]
    %1036 = vst [vmem:[#allocation1] ss:$2 sm:$0xff] %v827
    %1038 = vst [vmem:[%s1007] ss:$2 sm:$0xff] %v830
    %1039 = vst [vmem:[%s1009] ss:$2 sm:$0xff] %v833
    %v1040 = vld.sshfl [vmem:[#allocation1] sm:$0xff pattern:$0x75643120]
    %v1041 = vld.sshfl [vmem:[#allocation1 + $0x10] sm:$0xff pattern:$0x75643120]
    %1043 = vst [vmem:[%s1014] ss:$2 sm:$0xff] %v836
    %1044 = vst [vmem:[%s1016] ss:$2 sm:$0xff] %v839
    %1046 = vst [vmem:[%s1019] ss:$2 sm:$0xff] %v842
    %v1047 = vld.sshfl [vmem:[#allocation1 + $0x20] sm:$0xff pattern:$0x75643120]
    %v1048 = vld.sshfl [vmem:[#allocation1 + $0x30] sm:$0xff pattern:$0x75643120]
    %1049 = vst [vmem:[#allocation1] ss:$2 sm:$0xff] %v845
    %1051 = vst [vmem:[%s1007] ss:$2 sm:$0xff] %v848
    %1052 = vst [vmem:[%s1009] ss:$2 sm:$0xff] %v851
    %v1053 = vld.sshfl [vmem:[#allocation1] sm:$0xff pattern:$0x75643120]
    %v1054 = vld.sshfl [vmem:[#allocation1 + $0x10] sm:$0xff pattern:$0x75643120]
    %1056 = vst [vmem:[%s1014] ss:$2 sm:$0xff] %v854
    %1057 = vst [vmem:[%s1016] ss:$2 sm:$0xff] %v857
    %1059 = vst [vmem:[%s1019] ss:$2 sm:$0xff] %v860
    %v1060 = vld.sshfl [vmem:[#allocation1 + $0x20] sm:$0xff pattern:$0x75643120]
    %v1061 = vld.sshfl [vmem:[#allocation1 + $0x30] sm:$0xff pattern:$0x75643120]
    %1062 = vst [vmem:[#allocation1] ss:$2 sm:$0xff] %v863
    %1064 = vst [vmem:[%s1007] ss:$2 sm:$0xff] %v866
    %1065 = vst [vmem:[%s1009] ss:$2 sm:$0xff] %v869
    %v1066 = vld.sshfl [vmem:[#allocation1] sm:$0xff pattern:$0x75643120]
    %v1067 = vld.sshfl [vmem:[#allocation1 + $0x10] sm:$0xff pattern:$0x75643120]
    %1069 = vst [vmem:[%s1014] ss:$2 sm:$0xff] %v872
    %1070 = vst [vmem:[%s1016] ss:$2 sm:$0xff] %v875
    %1072 = vst [vmem:[%s1019] ss:$2 sm:$0xff] %v878
    %v1073 = vld.sshfl [vmem:[#allocation1 + $0x20] sm:$0xff pattern:$0x75643120]
    %v1074 = vld.sshfl [vmem:[#allocation1 + $0x30] sm:$0xff pattern:$0x75643120]
    %1075 = vst [vmem:[#allocation1] ss:$2 sm:$0xff] %v881
    %1077 = vst [vmem:[%s1007] ss:$2 sm:$0xff] %v884
    %1078 = vst [vmem:[%s1009] ss:$2 sm:$0xff] %v887
    %v1079 = vld.sshfl [vmem:[#allocation1] sm:$0xff pattern:$0x75643120]
    %v1080 = vld.sshfl [vmem:[#allocation1 + $0x10] sm:$0xff pattern:$0x75643120]
    %1082 = vst [vmem:[%s1014] ss:$2 sm:$0xff] %v890
    %1083 = vst [vmem:[%s1016] ss:$2 sm:$0xff] %v893
    %1085 = vst [vmem:[%s1019] ss:$2 sm:$0xff] %v896
    %v1086 = vld.sshfl [vmem:[#allocation1 + $0x20] sm:$0xff pattern:$0x75643120]
    %v1087 = vld.sshfl [vmem:[#allocation1 + $0x30] sm:$0xff pattern:$0x75643120]
    %1088 = vst [vmem:[#allocation1] ss:$2 sm:$0xff] %v899
    %1090 = vst [vmem:[%s1007] ss:$2 sm:$0xff] %v902
    %1091 = vst [vmem:[%s1009] ss:$2 sm:$0xff] %v905
    %v1092 = vld.sshfl [vmem:[#allocation1] sm:$0xff pattern:$0x75643120]
    %v1093 = vld.sshfl [vmem:[#allocation1 + $0x10] sm:$0xff pattern:$0x75643120]
    %1095 = vst [vmem:[%s1014] ss:$2 sm:$0xff] %v908
    %1096 = vst [vmem:[%s1016] ss:$2 sm:$0xff] %v911
    %1098 = vst [vmem:[%s1019] ss:$2 sm:$0xff] %v914
    %v1099 = vld.sshfl [vmem:[#allocation1 + $0x20] sm:$0xff pattern:$0x75643120]
    %v1100 = vld.sshfl [vmem:[#allocation1 + $0x30] sm:$0xff pattern:$0x75643120]
    %1101 = vst [vmem:[#allocation1] ss:$2 sm:$0xff] %v917
    %1103 = vst [vmem:[%s1007] ss:$2 sm:$0xff] %v920
    %1104 = vst [vmem:[%s1009] ss:$2 sm:$0xff] %v923
    %v1105 = vld.sshfl [vmem:[#allocation1] sm:$0xff pattern:$0x75643120]
    %v1106 = vld.sshfl [vmem:[#allocation1 + $0x10] sm:$0xff pattern:$0x75643120]
    %1108 = vst [vmem:[%s1014] ss:$2 sm:$0xff] %v926
    %1109 = vst [vmem:[%s1016] ss:$2 sm:$0xff] %v929
    %1111 = vst [vmem:[%s1019] ss:$2 sm:$0xff] %v932
    %v1112 = vld.sshfl [vmem:[#allocation1 + $0x20] sm:$0xff pattern:$0x75643120]
    %v1113 = vld.sshfl [vmem:[#allocation1 + $0x30] sm:$0xff pattern:$0x75643120]
    %1114 = vst [vmem:[#allocation1] ss:$2 sm:$0xff] %v935
    %1116 = vst [vmem:[%s1007] ss:$2 sm:$0xff] %v938
    %1117 = vst [vmem:[%s1009] ss:$2 sm:$0xff] %v941
    %v1118 = vld.sshfl [vmem:[#allocation1] sm:$0xff pattern:$0x75643120]
    %v1119 = vld.sshfl [vmem:[#allocation1 + $0x10] sm:$0xff pattern:$0x75643120]
    %1121 = vst [vmem:[%s1014] ss:$2 sm:$0xff] %v944
    %1122 = vst [vmem:[%s1016] ss:$2 sm:$0xff] %v947
    %1124 = vst [vmem:[%s1019] ss:$2 sm:$0xff] %v950
    %v1125 = vld.sshfl [vmem:[#allocation1 + $0x20] sm:$0xff pattern:$0x75643120]
    %v1126 = vld.sshfl [vmem:[#allocation1 + $0x30] sm:$0xff pattern:$0x75643120]
    %1127 = vst [vmem:[#allocation1] ss:$2 sm:$0xff] %v953
    %1129 = vst [vmem:[%s1007] ss:$2 sm:$0xff] %v956
    %1130 = vst [vmem:[%s1009] ss:$2 sm:$0xff] %v959
    %v1131 = vld.sshfl [vmem:[#allocation1] sm:$0xff pattern:$0x75643120]
    %v1132 = vld.sshfl [vmem:[#allocation1 + $0x10] sm:$0xff pattern:$0x75643120]
    %1134 = vst [vmem:[%s1014] ss:$2 sm:$0xff] %v962
    %1135 = vst [vmem:[%s1016] ss:$2 sm:$0xff] %v965
    %1137 = vst [vmem:[%s1019] ss:$2 sm:$0xff] %v968
    %v1138 = vld.sshfl [vmem:[#allocation1 + $0x20] sm:$0xff pattern:$0x75643120]
    %v1139 = vld.sshfl [vmem:[#allocation1 + $0x30] sm:$0xff pattern:$0x75643120]
    %1140 = vst [vmem:[#allocation1] ss:$2 sm:$0xff] %v971
    %1142 = vst [vmem:[%s1007] ss:$2 sm:$0xff] %v974
    %1143 = vst [vmem:[%s1009] ss:$2 sm:$0xff] %v977
    %v1144 = vld.sshfl [vmem:[#allocation1] sm:$0xff pattern:$0x75643120]
    %v1145 = vld.sshfl [vmem:[#allocation1 + $0x10] sm:$0xff pattern:$0x75643120]
    %1147 = vst [vmem:[%s1014] ss:$2 sm:$0xff] %v980
    %1148 = vst [vmem:[%s1016] ss:$2 sm:$0xff] %v983
    %1150 = vst [vmem:[%s1019] ss:$2 sm:$0xff] %v986
    %v1151 = vld.sshfl [vmem:[#allocation1 + $0x20] sm:$0xff pattern:$0x75643120]
    %v1152 = vld.sshfl [vmem:[#allocation1 + $0x30] sm:$0xff pattern:$0x75643120]
    %1153 = vst [vmem:[#allocation1] ss:$2 sm:$0xff] %v989
    %1155 = vst [vmem:[%s1007] ss:$2 sm:$0xff] %v992
    %1156 = vst [vmem:[%s1009] ss:$2 sm:$0xff] %v995
    %v1157 = vld.sshfl [vmem:[#allocation1] sm:$0xff pattern:$0x75643120]
    %v1158 = vld.sshfl [vmem:[#allocation1 + $0x10] sm:$0xff pattern:$0x75643120]
    %1160 = vst [vmem:[%s1014] ss:$2 sm:$0xff] %v998
    %1161 = vst [vmem:[%s1016] ss:$2 sm:$0xff] %v1001
    %1163 = vst [vmem:[%s1019] ss:$2 sm:$0xff] %v1004
    %v1164 = vld.sshfl [vmem:[#allocation1 + $0x20] sm:$0xff pattern:$0x75643120]
    %v1165 = vld.sshfl [vmem:[#allocation1 + $0x30] sm:$0xff pattern:$0x75643120]
    %1214 = vst [vmem:[#allocation2] sm:$0xf] %v1011
    %1215 = vst [vmem:[#allocation2 + $0x4] sm:$0x3] %v1012
    %1216 = vst [vmem:[#allocation2 + $0x8] sm:$0xf] %v1021
    %1217 = vst [vmem:[#allocation2 + $0xc] sm:$0x3] %v1022
    %1218 = vst [vmem:[#allocation2 + $0x10] sm:$0xf] %v1027
    %1219 = vst [vmem:[#allocation2 + $0x14] sm:$0x3] %v1028
    %1220 = vst [vmem:[#allocation2 + $0x18] sm:$0xf] %v1034
    %1221 = vst [vmem:[#allocation2 + $0x1c] sm:$0x3] %v1035
    %1222 = vst [vmem:[#allocation2 + $0x20] sm:$0xf] %v1040
    %1223 = vst [vmem:[#allocation2 + $0x24] sm:$0x3] %v1041
    %1224 = vst [vmem:[#allocation2 + $0x28] sm:$0xf] %v1047
    %1225 = vst [vmem:[#allocation2 + $0x2c] sm:$0x3] %v1048
    %1226 = vst [vmem:[#allocation2 + $0x30] sm:$0xf] %v1053
    %1227 = vst [vmem:[#allocation2 + $0x34] sm:$0x3] %v1054
    %1228 = vst [vmem:[#allocation2 + $0x38] sm:$0xf] %v1060
    %1229 = vst [vmem:[#allocation2 + $0x3c] sm:$0x3] %v1061
    %1230 = vst [vmem:[#allocation2 + $0x40] sm:$0xf] %v1066
    %1231 = vst [vmem:[#allocation2 + $0x44] sm:$0x3] %v1067
    %1232 = vst [vmem:[#allocation2 + $0x48] sm:$0xf] %v1073
    %1233 = vst [vmem:[#allocation2 + $0x4c] sm:$0x3] %v1074
    %1234 = vst [vmem:[#allocation2 + $0x50] sm:$0xf] %v1079
    %1235 = vst [vmem:[#allocation2 + $0x54] sm:$0x3] %v1080
    %1236 = vst [vmem:[#allocation2 + $0x58] sm:$0xf] %v1086
    %1237 = vst [vmem:[#allocation2 + $0x5c] sm:$0x3] %v1087
    %1238 = vst [vmem:[#allocation2 + $0x60] sm:$0xf] %v1092
    %1239 = vst [vmem:[#allocation2 + $0x64] sm:$0x3] %v1093
    %1240 = vst [vmem:[#allocation2 + $0x68] sm:$0xf] %v1099
    %1241 = vst [vmem:[#allocation2 + $0x6c] sm:$0x3] %v1100
    %1242 = vst [vmem:[#allocation2 + $0x70] sm:$0xf] %v1105
    %1243 = vst [vmem:[#allocation2 + $0x74] sm:$0x3] %v1106
    %1244 = vst [vmem:[#allocation2 + $0x78] sm:$0xf] %v1112
    %1245 = vst [vmem:[#allocation2 + $0x7c] sm:$0x3] %v1113
    %1246 = vst [vmem:[#allocation2 + $0x80] sm:$0xf] %v1118
    %1247 = vst [vmem:[#allocation2 + $0x84] sm:$0x3] %v1119
    %1248 = vst [vmem:[#allocation2 + $0x88] sm:$0xf] %v1125
    %1249 = vst [vmem:[#allocation2 + $0x8c] sm:$0x3] %v1126
    %1250 = vst [vmem:[#allocation2 + $0x90] sm:$0xf] %v1131
    %1251 = vst [vmem:[#allocation2 + $0x94] sm:$0x3] %v1132
    %1252 = vst [vmem:[#allocation2 + $0x98] sm:$0xf] %v1138
    %1253 = vst [vmem:[#allocation2 + $0x9c] sm:$0x3] %v1139
    %1254 = vst [vmem:[#allocation2 + $0xa0] sm:$0xf] %v1144
    %1255 = vst [vmem:[#allocation2 + $0xa4] sm:$0x3] %v1145
    %1256 = vst [vmem:[#allocation2 + $0xa8] sm:$0xf] %v1151
    %1257 = vst [vmem:[#allocation2 + $0xac] sm:$0x3] %v1152
    %1258 = vst [vmem:[#allocation2 + $0xb0] sm:$0xf] %v1157
    %1259 = vst [vmem:[#allocation2 + $0xb4] sm:$0x3] %v1158
    %1260 = vst [vmem:[#allocation2 + $0xb8] sm:$0xf] %v1164
    %1261 = vst [vmem:[#allocation2 + $0xbc] sm:$0x3] %v1165
    %v1262 = vld [vmem:[#allocation2] sm:$0xf]
    %v1263 = vld [vmem:[#allocation2 + $0x8] sm:$0xf]
    %v1264 = vld [vmem:[#allocation2 + $0x10] sm:$0xf]
    %v1265 = vld [vmem:[#allocation2 + $0x18] sm:$0xf]
    %v1266 = vld [vmem:[#allocation2 + $0x20] sm:$0xf]
    %v1267 = vld [vmem:[#allocation2 + $0x28] sm:$0xf]
    %v1268 = vld [vmem:[#allocation2 + $0x30] sm:$0xf]
    %v1269 = vld [vmem:[#allocation2 + $0x38] sm:$0xf]
    %v1270 = vld [vmem:[#allocation2 + $0x60] sm:$0xf]
    %v1271 = vld [vmem:[#allocation2 + $0x68] sm:$0xf]
    %v1272 = vld [vmem:[#allocation2 + $0x70] sm:$0xf]
    %v1273 = vld [vmem:[#allocation2 + $0x78] sm:$0xf]
    %v1274 = vld [vmem:[#allocation2 + $0x80] sm:$0xf]
    %v1275 = vld [vmem:[#allocation2 + $0x88] sm:$0xf]
    %v1276 = vld [vmem:[#allocation2 + $0x90] sm:$0xf]
    %v1277 = vld [vmem:[#allocation2 + $0x98] sm:$0xf]
    %v1278 = vld [vmem:[#allocation2 + $0x4] sm:$0x1]
    %v1279 = vld [vmem:[#allocation2 + $0xc] sm:$0x1]
    %v1280 = vld [vmem:[#allocation2 + $0x14] sm:$0x1]
    %v1281 = vld [vmem:[#allocation2 + $0x1c] sm:$0x1]
    %v1282 = vld [vmem:[#allocation2 + $0x24] sm:$0x1]
    %v1283 = vld [vmem:[#allocation2 + $0x2c] sm:$0x1]
    %v1284 = vld [vmem:[#allocation2 + $0x34] sm:$0x1]
    %v1285 = vld [vmem:[#allocation2 + $0x3c] sm:$0x1]
    %v1286 = vld [vmem:[#allocation2 + $0x64] sm:$0x1]
    %v1287 = vld [vmem:[#allocation2 + $0x6c] sm:$0x1]
    %v1288 = vld [vmem:[#allocation2 + $0x74] sm:$0x1]
    %v1289 = vld [vmem:[#allocation2 + $0x7c] sm:$0x1]
    %v1290 = vld [vmem:[#allocation2 + $0x84] sm:$0x1]
    %v1291 = vld [vmem:[#allocation2 + $0x8c] sm:$0x1]
    %v1292 = vld [vmem:[#allocation2 + $0x94] sm:$0x1]
    %v1293 = vld [vmem:[#allocation2 + $0x9c] sm:$0x1]
    %v1326 = vunpack.c.l.b16 %v1262
    %v1327 = vunpack.c.l.b16 %v1278
    %v1328 = vunpack.c.l.b16 %v1263
    %v1329 = vunpack.c.l.b16 %v1279
    %v1330 = vunpack.c.l.b16 %v1264
    %v1331 = vunpack.c.l.b16 %v1280
    %v1332 = vunpack.c.l.b16 %v1265
    %v1333 = vunpack.c.l.b16 %v1281
    %v1334 = vunpack.c.l.b16 %v1266
    %v1335 = vunpack.c.l.b16 %v1282
    %v1336 = vunpack.c.l.b16 %v1267
    %v1337 = vunpack.c.l.b16 %v1283
    %v1338 = vunpack.c.l.b16 %v1268
    %v1339 = vunpack.c.l.b16 %v1284
    %v1340 = vunpack.c.l.b16 %v1269
    %v1341 = vunpack.c.l.b16 %v1285
    %v1342 = vunpack.c.l.b16 %v1270
    %v1343 = vunpack.c.l.b16 %v1286
    %v1344 = vunpack.c.l.b16 %v1271
    %v1345 = vunpack.c.l.b16 %v1287
    %v1346 = vunpack.c.l.b16 %v1272
    %v1347 = vunpack.c.l.b16 %v1288
    %v1348 = vunpack.c.l.b16 %v1273
    %v1349 = vunpack.c.l.b16 %v1289
    %v1350 = vunpack.c.l.b16 %v1274
    %v1351 = vunpack.c.l.b16 %v1290
    %v1352 = vunpack.c.l.b16 %v1275
    %v1353 = vunpack.c.l.b16 %v1291
    %v1354 = vunpack.c.l.b16 %v1276
    %v1355 = vunpack.c.l.b16 %v1292
    %v1356 = vunpack.c.l.b16 %v1277
    %v1357 = vunpack.c.l.b16 %v1293
    %v1358 = vpack.c.b16 %v1327, %v1326
    %v1359 = vpack.c.b16 %v1329, %v1328
    %v1360 = vpack.c.b16 %v1331, %v1330
    %v1361 = vpack.c.b16 %v1333, %v1332
    %v1362 = vpack.c.b16 %v1335, %v1334
    %v1363 = vpack.c.b16 %v1337, %v1336
    %v1364 = vpack.c.b16 %v1339, %v1338
    %v1365 = vpack.c.b16 %v1341, %v1340
    %v1366 = vpack.c.b16 %v1343, %v1342
    %v1367 = vpack.c.b16 %v1345, %v1344
    %v1368 = vpack.c.b16 %v1347, %v1346
    %v1369 = vpack.c.b16 %v1349, %v1348
    %v1370 = vpack.c.b16 %v1351, %v1350
    %v1371 = vpack.c.b16 %v1353, %v1352
    %v1372 = vpack.c.b16 %v1355, %v1354
    %v1373 = vpack.c.b16 %v1357, %v1356
    %v1375 = vshrl.u32 %v1358, 16
    %v1377 = vshll.u32 %v1358, 16
    %v1379 = vrot.slane %v1377, 1
    %v1380 = vor.u32 %v1375, %v1379
    %v1382 = vshrl.u32 %v1359, 16
    %v1384 = vshll.u32 %v1359, 16
    %v1386 = vrot.slane %v1384, 1
    %v1387 = vor.u32 %v1382, %v1386
    %v1389 = vshrl.u32 %v1360, 16
    %v1391 = vshll.u32 %v1360, 16
    %v1393 = vrot.slane %v1391, 1
    %v1394 = vor.u32 %v1389, %v1393
    %v1396 = vshrl.u32 %v1361, 16
    %v1398 = vshll.u32 %v1361, 16
    %v1400 = vrot.slane %v1398, 1
    %v1401 = vor.u32 %v1396, %v1400
    %v1403 = vshrl.u32 %v1362, 16
    %v1405 = vshll.u32 %v1362, 16
    %v1407 = vrot.slane %v1405, 1
    %v1408 = vor.u32 %v1403, %v1407
    %v1410 = vshrl.u32 %v1363, 16
    %v1412 = vshll.u32 %v1363, 16
    %v1414 = vrot.slane %v1412, 1
    %v1415 = vor.u32 %v1410, %v1414
    %v1417 = vshrl.u32 %v1364, 16
    %v1419 = vshll.u32 %v1364, 16
    %v1421 = vrot.slane %v1419, 1
    %v1422 = vor.u32 %v1417, %v1421
    %v1424 = vshrl.u32 %v1365, 16
    %v1426 = vshll.u32 %v1365, 16
    %v1428 = vrot.slane %v1426, 1
    %v1429 = vor.u32 %v1424, %v1428
    %v1431 = vshrl.u32 %v1366, 16
    %v1433 = vshll.u32 %v1366, 16
    %v1435 = vrot.slane %v1433, 1
    %v1436 = vor.u32 %v1431, %v1435
    %v1438 = vshrl.u32 %v1367, 16
    %v1440 = vshll.u32 %v1367, 16
    %v1442 = vrot.slane %v1440, 1
    %v1443 = vor.u32 %v1438, %v1442
    %v1445 = vshrl.u32 %v1368, 16
    %v1447 = vshll.u32 %v1368, 16
    %v1449 = vrot.slane %v1447, 1
    %v1450 = vor.u32 %v1445, %v1449
    %v1452 = vshrl.u32 %v1369, 16
    %v1454 = vshll.u32 %v1369, 16
    %v1456 = vrot.slane %v1454, 1
    %v1457 = vor.u32 %v1452, %v1456
    %v1459 = vshrl.u32 %v1370, 16
    %v1461 = vshll.u32 %v1370, 16
    %v1463 = vrot.slane %v1461, 1
    %v1464 = vor.u32 %v1459, %v1463
    %v1466 = vshrl.u32 %v1371, 16
    %v1468 = vshll.u32 %v1371, 16
    %v1470 = vrot.slane %v1468, 1
    %v1471 = vor.u32 %v1466, %v1470
    %v1473 = vshrl.u32 %v1372, 16
    %v1475 = vshll.u32 %v1372, 16
    %v1477 = vrot.slane %v1475, 1
    %v1478 = vor.u32 %v1473, %v1477
    %v1480 = vshrl.u32 %v1373, 16
    %v1482 = vshll.u32 %v1373, 16
    %v1484 = vrot.slane %v1482, 1
    %v1485 = vor.u32 %v1480, %v1484
    %v1486 = vunpack.c.l.b16 %v1380
    %v1487 = vunpack.c.l.b16 %v1387
    %v1488 = vunpack.c.l.b16 %v1394
    %v1489 = vunpack.c.l.b16 %v1401
    %v1490 = vunpack.c.l.b16 %v1408
    %v1491 = vunpack.c.l.b16 %v1415
    %v1492 = vunpack.c.l.b16 %v1422
    %v1493 = vunpack.c.l.b16 %v1429
    %v1494 = vunpack.c.l.b16 %v1436
    %v1495 = vunpack.c.l.b16 %v1443
    %v1496 = vunpack.c.l.b16 %v1450
    %v1497 = vunpack.c.l.b16 %v1457
    %v1498 = vunpack.c.l.b16 %v1464
    %v1499 = vunpack.c.l.b16 %v1471
    %v1500 = vunpack.c.l.b16 %v1478
    %v1501 = vunpack.c.l.b16 %v1485
    %v1502 = vld [vmem:[#allocation7] sm:$0xf]
    %v1503 = vld [vmem:[#allocation7 + $0x4] sm:$0xf]
    %v1504 = vld [vmem:[#allocation7 + $0x8] sm:$0xf]
    %v1505 = vld [vmem:[#allocation7 + $0xc] sm:$0xf]
    %v1506 = vld [vmem:[#allocation7 + $0x10] sm:$0xf]
    %v1507 = vld [vmem:[#allocation7 + $0x14] sm:$0xf]
    %v1508 = vld [vmem:[#allocation7 + $0x18] sm:$0xf]
    %v1509 = vld [vmem:[#allocation7 + $0x1c] sm:$0xf]
    %v1510 = vld [vmem:[#allocation7 + $0x20] sm:$0xf]
    %v1511 = vld [vmem:[#allocation7 + $0x24] sm:$0xf]
    %v1512 = vld [vmem:[#allocation7 + $0x28] sm:$0xf]
    %v1513 = vld [vmem:[#allocation7 + $0x2c] sm:$0xf]
    %v1514 = vld [vmem:[#allocation7 + $0x30] sm:$0xf]
    %v1515 = vld [vmem:[#allocation7 + $0x34] sm:$0xf]
    %v1516 = vld [vmem:[#allocation7 + $0x38] sm:$0xf]
    %v1517 = vld [vmem:[#allocation7 + $0x3c] sm:$0xf]
    %v1518 = vld [vmem:[#allocation7 + $0x40] sm:$0xf]
    %v1519 = vld [vmem:[#allocation7 + $0x44] sm:$0xf]
    %v1520 = vld [vmem:[#allocation7 + $0x48] sm:$0xf]
    %v1521 = vld [vmem:[#allocation7 + $0x4c] sm:$0xf]
    %v1522 = vld [vmem:[#allocation7 + $0x50] sm:$0xf]
    %v1523 = vld [vmem:[#allocation7 + $0x54] sm:$0xf]
    %v1524 = vld [vmem:[#allocation7 + $0x58] sm:$0xf]
    %v1525 = vld [vmem:[#allocation7 + $0x5c] sm:$0xf]
    %v1526 = vld [vmem:[#allocation7 + $0x60] sm:$0xf]
    %v1527 = vld [vmem:[#allocation7 + $0x64] sm:$0xf]
    %v1528 = vld [vmem:[#allocation7 + $0x68] sm:$0xf]
    %v1529 = vld [vmem:[#allocation7 + $0x6c] sm:$0xf]
    %v1530 = vld [vmem:[#allocation7 + $0x70] sm:$0xf]
    %v1531 = vld [vmem:[#allocation7 + $0x74] sm:$0xf]
    %v1532 = vld [vmem:[#allocation7 + $0x78] sm:$0xf]
    %v1533 = vld [vmem:[#allocation7 + $0x7c] sm:$0xf]
    %v1534 = vld [vmem:[#allocation2] sm:$0xe]
    %v1535 = vld [vmem:[#allocation2 + $0x8] sm:$0xe]
    %v1536 = vld [vmem:[#allocation2 + $0x10] sm:$0xe]
    %v1537 = vld [vmem:[#allocation2 + $0x18] sm:$0xe]
    %v1538 = vld [vmem:[#allocation2 + $0x20] sm:$0xe]
    %v1539 = vld [vmem:[#allocation2 + $0x28] sm:$0xe]
    %v1540 = vld [vmem:[#allocation2 + $0x30] sm:$0xe]
    %v1541 = vld [vmem:[#allocation2 + $0x38] sm:$0xe]
    %v1542 = vld [vmem:[#allocation2 + $0x60] sm:$0xe]
    %v1543 = vld [vmem:[#allocation2 + $0x68] sm:$0xe]
    %v1544 = vld [vmem:[#allocation2 + $0x70] sm:$0xe]
    %v1545 = vld [vmem:[#allocation2 + $0x78] sm:$0xe]
    %v1546 = vld [vmem:[#allocation2 + $0x80] sm:$0xe]
    %v1547 = vld [vmem:[#allocation2 + $0x88] sm:$0xe]
    %v1548 = vld [vmem:[#allocation2 + $0x90] sm:$0xe]
    %v1549 = vld [vmem:[#allocation2 + $0x98] sm:$0xe]
    %v1550 = vld [vmem:[#allocation2 + $0x4] sm:$0x3]
    %v1551 = vld [vmem:[#allocation2 + $0xc] sm:$0x3]
    %v1552 = vld [vmem:[#allocation2 + $0x14] sm:$0x3]
    %v1553 = vld [vmem:[#allocation2 + $0x1c] sm:$0x3]
    %v1554 = vld [vmem:[#allocation2 + $0x24] sm:$0x3]
    %v1555 = vld [vmem:[#allocation2 + $0x2c] sm:$0x3]
    %v1556 = vld [vmem:[#allocation2 + $0x34] sm:$0x3]
    %v1557 = vld [vmem:[#allocation2 + $0x3c] sm:$0x3]
    %v1558 = vld [vmem:[#allocation2 + $0x64] sm:$0x3]
    %v1559 = vld [vmem:[#allocation2 + $0x6c] sm:$0x3]
    %v1560 = vld [vmem:[#allocation2 + $0x74] sm:$0x3]
    %v1561 = vld [vmem:[#allocation2 + $0x7c] sm:$0x3]
    %v1562 = vld [vmem:[#allocation2 + $0x84] sm:$0x3]
    %v1563 = vld [vmem:[#allocation2 + $0x8c] sm:$0x3]
    %v1564 = vld [vmem:[#allocation2 + $0x94] sm:$0x3]
    %v1565 = vld [vmem:[#allocation2 + $0x9c] sm:$0x3]
    %v1582 = vunpack.c.l.b16 %v1534
    %v1583 = vunpack.c.l.b16 %v1535
    %v1584 = vunpack.c.l.b16 %v1536
    %v1585 = vunpack.c.l.b16 %v1537
    %v1586 = vunpack.c.l.b16 %v1538
    %v1587 = vunpack.c.l.b16 %v1539
    %v1588 = vunpack.c.l.b16 %v1540
    %v1589 = vunpack.c.l.b16 %v1541
    %v1590 = vunpack.c.l.b16 %v1542
    %v1591 = vunpack.c.l.b16 %v1543
    %v1592 = vunpack.c.l.b16 %v1544
    %v1593 = vunpack.c.l.b16 %v1545
    %v1594 = vunpack.c.l.b16 %v1546
    %v1595 = vunpack.c.l.b16 %v1547
    %v1596 = vunpack.c.l.b16 %v1548
    %v1597 = vunpack.c.l.b16 %v1549
    %v1614 = vunpack.c.l.b16 %v1550
    %v1615 = vunpack.c.l.b16 %v1551
    %v1616 = vunpack.c.l.b16 %v1552
    %v1617 = vunpack.c.l.b16 %v1553
    %v1618 = vunpack.c.l.b16 %v1554
    %v1619 = vunpack.c.l.b16 %v1555
    %v1620 = vunpack.c.l.b16 %v1556
    %v1621 = vunpack.c.l.b16 %v1557
    %v1622 = vunpack.c.l.b16 %v1558
    %v1623 = vunpack.c.l.b16 %v1559
    %v1624 = vunpack.c.l.b16 %v1560
    %v1625 = vunpack.c.l.b16 %v1561
    %v1626 = vunpack.c.l.b16 %v1562
    %v1627 = vunpack.c.l.b16 %v1563
    %v1628 = vunpack.c.l.b16 %v1564
    %v1629 = vunpack.c.l.b16 %v1565
    %v1630 = vpack.c.b16 %v1614, %v1582
    %v1631 = vpack.c.b16 %v1615, %v1583
    %v1632 = vpack.c.b16 %v1616, %v1584
    %v1633 = vpack.c.b16 %v1617, %v1585
    %v1634 = vpack.c.b16 %v1618, %v1586
    %v1635 = vpack.c.b16 %v1619, %v1587
    %v1636 = vpack.c.b16 %v1620, %v1588
    %v1637 = vpack.c.b16 %v1621, %v1589
    %v1638 = vpack.c.b16 %v1622, %v1590
    %v1639 = vpack.c.b16 %v1623, %v1591
    %v1640 = vpack.c.b16 %v1624, %v1592
    %v1641 = vpack.c.b16 %v1625, %v1593
    %v1642 = vpack.c.b16 %v1626, %v1594
    %v1643 = vpack.c.b16 %v1627, %v1595
    %v1644 = vpack.c.b16 %v1628, %v1596
    %v1645 = vpack.c.b16 %v1629, %v1597
    %v1647 = vshrl.u32 %v1630, 16
    %v1649 = vshll.u32 %v1630, 16
    %v1651 = vrot.slane %v1649, 1
    %v1652 = vor.u32 %v1647, %v1651
    %v1654 = vshrl.u32 %v1631, 16
    %v1656 = vshll.u32 %v1631, 16
    %v1658 = vrot.slane %v1656, 1
    %v1659 = vor.u32 %v1654, %v1658
    %v1661 = vshrl.u32 %v1632, 16
    %v1663 = vshll.u32 %v1632, 16
    %v1665 = vrot.slane %v1663, 1
    %v1666 = vor.u32 %v1661, %v1665
    %v1668 = vshrl.u32 %v1633, 16
    %v1670 = vshll.u32 %v1633, 16
    %v1672 = vrot.slane %v1670, 1
    %v1673 = vor.u32 %v1668, %v1672
    %v1675 = vshrl.u32 %v1634, 16
    %v1677 = vshll.u32 %v1634, 16
    %v1679 = vrot.slane %v1677, 1
    %v1680 = vor.u32 %v1675, %v1679
    %v1682 = vshrl.u32 %v1635, 16
    %v1684 = vshll.u32 %v1635, 16
    %v1686 = vrot.slane %v1684, 1
    %v1687 = vor.u32 %v1682, %v1686
    %v1689 = vshrl.u32 %v1636, 16
    %v1691 = vshll.u32 %v1636, 16
    %v1693 = vrot.slane %v1691, 1
    %v1694 = vor.u32 %v1689, %v1693
    %v1696 = vshrl.u32 %v1637, 16
    %v1698 = vshll.u32 %v1637, 16
    %v1700 = vrot.slane %v1698, 1
    %v1701 = vor.u32 %v1696, %v1700
    %v1703 = vshrl.u32 %v1638, 16
    %v1705 = vshll.u32 %v1638, 16
    %v1707 = vrot.slane %v1705, 1
    %v1708 = vor.u32 %v1703, %v1707
    %v1710 = vshrl.u32 %v1639, 16
    %v1712 = vshll.u32 %v1639, 16
    %v1714 = vrot.slane %v1712, 1
    %v1715 = vor.u32 %v1710, %v1714
    %v1717 = vshrl.u32 %v1640, 16
    %v1719 = vshll.u32 %v1640, 16
    %v1721 = vrot.slane %v1719, 1
    %v1722 = vor.u32 %v1717, %v1721
    %v1724 = vshrl.u32 %v1641, 16
    %v1726 = vshll.u32 %v1641, 16
    %v1728 = vrot.slane %v1726, 1
    %v1729 = vor.u32 %v1724, %v1728
    %v1731 = vshrl.u32 %v1642, 16
    %v1733 = vshll.u32 %v1642, 16
    %v1735 = vrot.slane %v1733, 1
    %v1736 = vor.u32 %v1731, %v1735
    %v1738 = vshrl.u32 %v1643, 16
    %v1740 = vshll.u32 %v1643, 16
    %v1742 = vrot.slane %v1740, 1
    %v1743 = vor.u32 %v1738, %v1742
    %v1745 = vshrl.u32 %v1644, 16
    %v1747 = vshll.u32 %v1644, 16
    %v1749 = vrot.slane %v1747, 1
    %v1750 = vor.u32 %v1745, %v1749
    %v1752 = vshrl.u32 %v1645, 16
    %v1754 = vshll.u32 %v1645, 16
    %v1756 = vrot.slane %v1754, 1
    %v1757 = vor.u32 %v1752, %v1756
    %v1758 = vunpack.c.l.b16 %v1652
    %v1759 = vunpack.c.h.b16 %v1652
    %v1760 = vunpack.c.l.b16 %v1659
    %v1761 = vunpack.c.h.b16 %v1659
    %v1762 = vunpack.c.l.b16 %v1666
    %v1763 = vunpack.c.h.b16 %v1666
    %v1764 = vunpack.c.l.b16 %v1673
    %v1765 = vunpack.c.h.b16 %v1673
    %v1766 = vunpack.c.l.b16 %v1680
    %v1767 = vunpack.c.h.b16 %v1680
    %v1768 = vunpack.c.l.b16 %v1687
    %v1769 = vunpack.c.h.b16 %v1687
    %v1770 = vunpack.c.l.b16 %v1694
    %v1771 = vunpack.c.h.b16 %v1694
    %v1772 = vunpack.c.l.b16 %v1701
    %v1773 = vunpack.c.h.b16 %v1701
    %v1774 = vunpack.c.l.b16 %v1708
    %v1775 = vunpack.c.h.b16 %v1708
    %v1776 = vunpack.c.l.b16 %v1715
    %v1777 = vunpack.c.h.b16 %v1715
    %v1778 = vunpack.c.l.b16 %v1722
    %v1779 = vunpack.c.h.b16 %v1722
    %v1780 = vunpack.c.l.b16 %v1729
    %v1781 = vunpack.c.h.b16 %v1729
    %v1782 = vunpack.c.l.b16 %v1736
    %v1783 = vunpack.c.h.b16 %v1736
    %v1784 = vunpack.c.l.b16 %v1743
    %v1785 = vunpack.c.h.b16 %v1743
    %v1786 = vunpack.c.l.b16 %v1750
    %v1787 = vunpack.c.h.b16 %v1750
    %v1788 = vunpack.c.l.b16 %v1757
    %v1789 = vunpack.c.h.b16 %v1757
    %v1790 = vpack.c.b16 %v1758, %v1582
    %v1791 = vpack.c.b16 %v1759, %v1327
    %v1792 = vpack.c.b16 %v1760, %v1583
    %v1793 = vpack.c.b16 %v1761, %v1329
    %v1794 = vpack.c.b16 %v1762, %v1584
    %v1795 = vpack.c.b16 %v1763, %v1331
    %v1796 = vpack.c.b16 %v1764, %v1585
    %v1797 = vpack.c.b16 %v1765, %v1333
    %v1798 = vpack.c.b16 %v1766, %v1586
    %v1799 = vpack.c.b16 %v1767, %v1335
    %v1800 = vpack.c.b16 %v1768, %v1587
    %v1801 = vpack.c.b16 %v1769, %v1337
    %v1802 = vpack.c.b16 %v1770, %v1588
    %v1803 = vpack.c.b16 %v1771, %v1339
    %v1804 = vpack.c.b16 %v1772, %v1589
    %v1805 = vpack.c.b16 %v1773, %v1341
    %v1806 = vpack.c.b16 %v1774, %v1590
    %v1807 = vpack.c.b16 %v1775, %v1343
    %v1808 = vpack.c.b16 %v1776, %v1591
    %v1809 = vpack.c.b16 %v1777, %v1345
    %v1810 = vpack.c.b16 %v1778, %v1592
    %v1811 = vpack.c.b16 %v1779, %v1347
    %v1812 = vpack.c.b16 %v1780, %v1593
    %v1813 = vpack.c.b16 %v1781, %v1349
    %v1814 = vpack.c.b16 %v1782, %v1594
    %v1815 = vpack.c.b16 %v1783, %v1351
    %v1816 = vpack.c.b16 %v1784, %v1595
    %v1817 = vpack.c.b16 %v1785, %v1353
    %v1818 = vpack.c.b16 %v1786, %v1596
    %v1819 = vpack.c.b16 %v1787, %v1355
    %v1820 = vpack.c.b16 %v1788, %v1597
    %v1821 = vpack.c.b16 %v1789, %v1357
    %vm1822 = vcmask 1042432
    %vm1823 = vcmask 1046532
    %vm1824 = vmor %vm1822, %vm1823
    %v1825 = vrot.slane %v1790, 5
    %v1826 = vrot.slane %v1825, 4
    %v1827 = vrot.slane %v1791, 5
    %v1828 = vsel %vm1824, %v1826, %v1827
    %v1829 = vrot.slane %v1792, 5
    %v1830 = vrot.slane %v1829, 4
    %v1831 = vrot.slane %v1793, 5
    %v1832 = vsel %vm1824, %v1830, %v1831
    %v1833 = vrot.slane %v1794, 5
    %v1834 = vrot.slane %v1833, 4
    %v1835 = vrot.slane %v1795, 5
    %v1836 = vsel %vm1824, %v1834, %v1835
    %v1837 = vrot.slane %v1796, 5
    %v1838 = vrot.slane %v1837, 4
    %v1839 = vrot.slane %v1797, 5
    %v1840 = vsel %vm1824, %v1838, %v1839
    %v1841 = vrot.slane %v1798, 5
    %v1842 = vrot.slane %v1841, 4
    %v1843 = vrot.slane %v1799, 5
    %v1844 = vsel %vm1824, %v1842, %v1843
    %v1845 = vrot.slane %v1800, 5
    %v1846 = vrot.slane %v1845, 4
    %v1847 = vrot.slane %v1801, 5
    %v1848 = vsel %vm1824, %v1846, %v1847
    %v1849 = vrot.slane %v1802, 5
    %v1850 = vrot.slane %v1849, 4
    %v1851 = vrot.slane %v1803, 5
    %v1852 = vsel %vm1824, %v1850, %v1851
    %v1853 = vrot.slane %v1804, 5
    %v1854 = vrot.slane %v1853, 4
    %v1855 = vrot.slane %v1805, 5
    %v1856 = vsel %vm1824, %v1854, %v1855
    %v1857 = vrot.slane %v1806, 5
    %v1858 = vrot.slane %v1857, 4
    %v1859 = vrot.slane %v1807, 5
    %v1860 = vsel %vm1824, %v1858, %v1859
    %v1861 = vrot.slane %v1808, 5
    %v1862 = vrot.slane %v1861, 4
    %v1863 = vrot.slane %v1809, 5
    %v1864 = vsel %vm1824, %v1862, %v1863
    %v1865 = vrot.slane %v1810, 5
    %v1866 = vrot.slane %v1865, 4
    %v1867 = vrot.slane %v1811, 5
    %v1868 = vsel %vm1824, %v1866, %v1867
    %v1869 = vrot.slane %v1812, 5
    %v1870 = vrot.slane %v1869, 4
    %v1871 = vrot.slane %v1813, 5
    %v1872 = vsel %vm1824, %v1870, %v1871
    %v1873 = vrot.slane %v1814, 5
    %v1874 = vrot.slane %v1873, 4
    %v1875 = vrot.slane %v1815, 5
    %v1876 = vsel %vm1824, %v1874, %v1875
    %v1877 = vrot.slane %v1816, 5
    %v1878 = vrot.slane %v1877, 4
    %v1879 = vrot.slane %v1817, 5
    %v1880 = vsel %vm1824, %v1878, %v1879
    %v1881 = vrot.slane %v1818, 5
    %v1882 = vrot.slane %v1881, 4
    %v1883 = vrot.slane %v1819, 5
    %v1884 = vsel %vm1824, %v1882, %v1883
    %v1885 = vrot.slane %v1820, 5
    %v1886 = vrot.slane %v1885, 4
    %v1887 = vrot.slane %v1821, 5
    %v1888 = vsel %vm1824, %v1886, %v1887
    %s1889 = scalar_lea.vmem [#allocation7], 128
    %v1890 = vld [vmem:[%s1889] sm:$0xf]
    %v1891 = vld [vmem:[%s1889 + $0x4] sm:$0xf]
    %v1892 = vld [vmem:[%s1889 + $0x8] sm:$0xf]
    %v1893 = vld [vmem:[%s1889 + $0xc] sm:$0xf]
    %v1894 = vld [vmem:[%s1889 + $0x10] sm:$0xf]
    %v1895 = vld [vmem:[%s1889 + $0x14] sm:$0xf]
    %v1896 = vld [vmem:[%s1889 + $0x18] sm:$0xf]
    %v1897 = vld [vmem:[%s1889 + $0x1c] sm:$0xf]
    %v1898 = vld [vmem:[%s1889 + $0x20] sm:$0xf]
    %v1899 = vld [vmem:[%s1889 + $0x24] sm:$0xf]
    %v1900 = vld [vmem:[%s1889 + $0x28] sm:$0xf]
    %v1901 = vld [vmem:[%s1889 + $0x2c] sm:$0xf]
    %v1902 = vld [vmem:[%s1889 + $0x30] sm:$0xf]
    %v1903 = vld [vmem:[%s1889 + $0x34] sm:$0xf]
    %v1904 = vld [vmem:[%s1889 + $0x38] sm:$0xf]
    %v1905 = vld [vmem:[%s1889 + $0x3c] sm:$0xf]
    %v1906 = vld [vmem:[%s1889 + $0x40] sm:$0xf]
    %v1907 = vld [vmem:[%s1889 + $0x44] sm:$0xf]
    %v1908 = vld [vmem:[%s1889 + $0x48] sm:$0xf]
    %v1909 = vld [vmem:[%s1889 + $0x4c] sm:$0xf]
    %v1910 = vld [vmem:[%s1889 + $0x50] sm:$0xf]
    %v1911 = vld [vmem:[%s1889 + $0x54] sm:$0xf]
    %v1912 = vld [vmem:[%s1889 + $0x58] sm:$0xf]
    %v1913 = vld [vmem:[%s1889 + $0x5c] sm:$0xf]
    %v1914 = vld [vmem:[%s1889 + $0x60] sm:$0xf]
    %v1915 = vld [vmem:[%s1889 + $0x64] sm:$0xf]
    %v1916 = vld [vmem:[%s1889 + $0x68] sm:$0xf]
    %v1917 = vld [vmem:[%s1889 + $0x6c] sm:$0xf]
    %v1918 = vld [vmem:[%s1889 + $0x70] sm:$0xf]
    %v1919 = vld [vmem:[%s1889 + $0x74] sm:$0xf]
    %v1920 = vld [vmem:[%s1889 + $0x78] sm:$0xf]
    %v1921 = vld [vmem:[%s1889 + $0x7c] sm:$0xf]
    %v1922 = vunpack.c.l.b16 %v1828
    %v1923 = vunpack.c.h.b16 %v1828
    %v1924 = vunpack.c.l.b16 %v1832
    %v1925 = vunpack.c.h.b16 %v1832
    %v1926 = vunpack.c.l.b16 %v1836
    %v1927 = vunpack.c.h.b16 %v1836
    %v1928 = vunpack.c.l.b16 %v1840
    %v1929 = vunpack.c.h.b16 %v1840
    %v1930 = vunpack.c.l.b16 %v1844
    %v1931 = vunpack.c.h.b16 %v1844
    %v1932 = vunpack.c.l.b16 %v1848
    %v1933 = vunpack.c.h.b16 %v1848
    %v1934 = vunpack.c.l.b16 %v1852
    %v1935 = vunpack.c.h.b16 %v1852
    %v1936 = vunpack.c.l.b16 %v1856
    %v1937 = vunpack.c.h.b16 %v1856
    %v1938 = vunpack.c.l.b16 %v1860
    %v1939 = vunpack.c.h.b16 %v1860
    %v1940 = vunpack.c.l.b16 %v1864
    %v1941 = vunpack.c.h.b16 %v1864
    %v1942 = vunpack.c.l.b16 %v1868
    %v1943 = vunpack.c.h.b16 %v1868
    %v1944 = vunpack.c.l.b16 %v1872
    %v1945 = vunpack.c.h.b16 %v1872
    %v1946 = vunpack.c.l.b16 %v1876
    %v1947 = vunpack.c.h.b16 %v1876
    %v1948 = vunpack.c.l.b16 %v1880
    %v1949 = vunpack.c.h.b16 %v1880
    %v1950 = vunpack.c.l.b16 %v1884
    %v1951 = vunpack.c.h.b16 %v1884
    %v1952 = vunpack.c.l.b16 %v1888
    %v1953 = vunpack.c.h.b16 %v1888
    %v1954 = vpack.c.b16 %v1924, %v1922
    %v1955 = vpack.c.b16 %v1925, %v1923
    %v1956 = vpack.c.b16 %v1928, %v1926
    %v1957 = vpack.c.b16 %v1929, %v1927
    %v1958 = vpack.c.b16 %v1932, %v1930
    %v1959 = vpack.c.b16 %v1933, %v1931
    %v1960 = vpack.c.b16 %v1936, %v1934
    %v1961 = vpack.c.b16 %v1937, %v1935
    %v1962 = vpack.c.b16 %v1940, %v1938
    %v1963 = vpack.c.b16 %v1941, %v1939
    %v1964 = vpack.c.b16 %v1944, %v1942
    %v1965 = vpack.c.b16 %v1945, %v1943
    %v1966 = vpack.c.b16 %v1948, %v1946
    %v1967 = vpack.c.b16 %v1949, %v1947
    %v1968 = vpack.c.b16 %v1952, %v1950
    %v1969 = vpack.c.b16 %v1953, %v1951
    %v2018 = vunpack.c.l.b16 %v1890
    %v2019 = vunpack.c.l.b16 %v1891
    %v2020 = vunpack.c.l.b16 %v1892
    %v2021 = vunpack.c.l.b16 %v1893
    %v2022 = vunpack.c.l.b16 %v1894
    %v2023 = vunpack.c.l.b16 %v1895
    %v2024 = vunpack.c.l.b16 %v1896
    %v2025 = vunpack.c.l.b16 %v1897
    %v2026 = vunpack.c.l.b16 %v1898
    %v2027 = vunpack.c.l.b16 %v1899
    %v2028 = vunpack.c.l.b16 %v1900
    %v2029 = vunpack.c.l.b16 %v1901
    %v2030 = vunpack.c.l.b16 %v1902
    %v2031 = vunpack.c.l.b16 %v1903
    %v2032 = vunpack.c.l.b16 %v1904
    %v2033 = vunpack.c.l.b16 %v1905
    %v2034 = vunpack.c.l.b16 %v1906
    %v2035 = vunpack.c.l.b16 %v1907
    %v2036 = vunpack.c.l.b16 %v1908
    %v2037 = vunpack.c.l.b16 %v1909
    %v2038 = vunpack.c.l.b16 %v1910
    %v2039 = vunpack.c.l.b16 %v1911
    %v2040 = vunpack.c.l.b16 %v1912
    %v2041 = vunpack.c.l.b16 %v1913
    %v2042 = vunpack.c.l.b16 %v1914
    %v2043 = vunpack.c.l.b16 %v1915
    %v2044 = vunpack.c.l.b16 %v1916
    %v2045 = vunpack.c.l.b16 %v1917
    %v2046 = vunpack.c.l.b16 %v1918
    %v2047 = vunpack.c.l.b16 %v1919
    %v2048 = vunpack.c.l.b16 %v1920
    %v2049 = vunpack.c.l.b16 %v1921
    %v2050 = vpack.c.b16 %v2019, %v2018
    %v2051 = vpack.c.b16 %v2021, %v2020
    %v2052 = vpack.c.b16 %v2023, %v2022
    %v2053 = vpack.c.b16 %v2025, %v2024
    %v2054 = vpack.c.b16 %v2027, %v2026
    %v2055 = vpack.c.b16 %v2029, %v2028
    %v2056 = vpack.c.b16 %v2031, %v2030
    %v2057 = vpack.c.b16 %v2033, %v2032
    %v2058 = vpack.c.b16 %v2035, %v2034
    %v2059 = vpack.c.b16 %v2037, %v2036
    %v2060 = vpack.c.b16 %v2039, %v2038
    %v2061 = vpack.c.b16 %v2041, %v2040
    %v2062 = vpack.c.b16 %v2043, %v2042
    %v2063 = vpack.c.b16 %v2045, %v2044
    %v2064 = vpack.c.b16 %v2047, %v2046
    %v2065 = vpack.c.b16 %v2049, %v2048
    %2082 = vmatpush.bf16.msra.mxu0 %v2057
    %2083 = vmatpush.bf16.msra.mxu0 %v2056
    %2084 = vmatpush.bf16.msra.mxu0 %v2055
    %2085 = vmatpush.bf16.msra.mxu0 %v2054
    %2086 = vmatpush.bf16.msra.mxu0 %v2053
    %2087 = vmatpush.bf16.msra.mxu0 %v2052
    %2088 = vmatpush.bf16.msra.mxu0 %v2051
    %2089 = vmatpush.bf16.msra.mxu0 %v2050
    %2090 = vmatmul.bf16.gmra.mxu0 %v1954
    %v2091 = vpop.f32.mrf.mxu0
    %v2092 = vadd.f32 0.0, %v2091
    %v2093 = vpop.f32.mrf.mxu0
    %v2094 = vadd.f32 0.0, %v2093
    %2095 = vmatmul.bf16.gmra.mxu0 %v1956
    %v2096 = vpop.f32.mrf.mxu0
    %v2097 = vadd.f32 0.0, %v2096
    %v2098 = vpop.f32.mrf.mxu0
    %v2099 = vadd.f32 0.0, %v2098
    %2100 = vmatmul.bf16.gmra.mxu0 %v1958
    %v2101 = vpop.f32.mrf.mxu0
    %v2102 = vadd.f32 0.0, %v2101
    %v2103 = vpop.f32.mrf.mxu0
    %v2104 = vadd.f32 0.0, %v2103
    %2105 = vmatmul.bf16.gmra.mxu0 %v1960
    %v2106 = vpop.f32.mrf.mxu0
    %v2107 = vadd.f32 0.0, %v2106
    %v2108 = vpop.f32.mrf.mxu0
    %v2109 = vadd.f32 0.0, %v2108
    %2110 = vmatmul.bf16.gmra.mxu0 %v1962
    %v2111 = vpop.f32.mrf.mxu0
    %v2112 = vadd.f32 0.0, %v2111
    %v2113 = vpop.f32.mrf.mxu0
    %v2114 = vadd.f32 0.0, %v2113
    %2115 = vmatmul.bf16.gmra.mxu0 %v1964
    %v2116 = vpop.f32.mrf.mxu0
    %v2117 = vadd.f32 0.0, %v2116
    %v2118 = vpop.f32.mrf.mxu0
    %v2119 = vadd.f32 0.0, %v2118
    %2120 = vmatmul.bf16.gmra.mxu0 %v1966
    %v2121 = vpop.f32.mrf.mxu0
    %v2122 = vadd.f32 0.0, %v2121
    %v2123 = vpop.f32.mrf.mxu0
    %v2124 = vadd.f32 0.0, %v2123
    %2125 = vmatmul.bf16.gmra.mxu0 %v1968
    %v2126 = vpop.f32.mrf.mxu0
    %v2127 = vadd.f32 0.0, %v2126
    %v2128 = vpop.f32.mrf.mxu0
    %v2129 = vadd.f32 0.0, %v2128
    %2130 = vdwg.mxu0
    %2131 = vmatpush.bf16.msra.mxu0 %v2065
    %2132 = vmatpush.bf16.msra.mxu0 %v2064
    %2133 = vmatpush.bf16.msra.mxu0 %v2063
    %2134 = vmatpush.bf16.msra.mxu0 %v2062
    %2135 = vmatpush.bf16.msra.mxu0 %v2061
    %2136 = vmatpush.bf16.msra.mxu0 %v2060
    %2137 = vmatpush.bf16.msra.mxu0 %v2059
    %2138 = vmatpush.bf16.msra.mxu0 %v2058
    %2139 = vmatmul.bf16.gmra.mxu0 %v1955
    %v2140 = vpop.f32.mrf.mxu0
    %v2141 = vadd.f32 %v2092, %v2140
    %v2142 = vpop.f32.mrf.mxu0
    %v2143 = vadd.f32 %v2094, %v2142
    %2144 = vmatmul.bf16.gmra.mxu0 %v1957
    %v2145 = vpop.f32.mrf.mxu0
    %v2146 = vadd.f32 %v2097, %v2145
    %v2147 = vpop.f32.mrf.mxu0
    %v2148 = vadd.f32 %v2099, %v2147
    %2149 = vmatmul.bf16.gmra.mxu0 %v1959
    %v2150 = vpop.f32.mrf.mxu0
    %v2151 = vadd.f32 %v2102, %v2150
    %v2152 = vpop.f32.mrf.mxu0
    %v2153 = vadd.f32 %v2104, %v2152
    %2154 = vmatmul.bf16.gmra.mxu0 %v1961
    %v2155 = vpop.f32.mrf.mxu0
    %v2156 = vadd.f32 %v2107, %v2155
    %v2157 = vpop.f32.mrf.mxu0
    %v2158 = vadd.f32 %v2109, %v2157
    %2159 = vmatmul.bf16.gmra.mxu0 %v1963
    %v2160 = vpop.f32.mrf.mxu0
    %v2161 = vadd.f32 %v2112, %v2160
    %v2162 = vpop.f32.mrf.mxu0
    %v2163 = vadd.f32 %v2114, %v2162
    %2164 = vmatmul.bf16.gmra.mxu0 %v1965
    %v2165 = vpop.f32.mrf.mxu0
    %v2166 = vadd.f32 %v2117, %v2165
    %v2167 = vpop.f32.mrf.mxu0
    %v2168 = vadd.f32 %v2119, %v2167
    %2169 = vmatmul.bf16.gmra.mxu0 %v1967
    %v2170 = vpop.f32.mrf.mxu0
    %v2171 = vadd.f32 %v2122, %v2170
    %v2172 = vpop.f32.mrf.mxu0
    %v2173 = vadd.f32 %v2124, %v2172
    %2174 = vmatmul.bf16.gmra.mxu0 %v1969
    %v2175 = vpop.f32.mrf.mxu0
    %v2176 = vadd.f32 %v2127, %v2175
    %v2177 = vpop.f32.mrf.mxu0
    %v2178 = vadd.f32 %v2129, %v2177
    %2179 = vdwg.mxu0
    %v2180 = vpack.c.b16 %v1328, %v1326
    %v2181 = vpack.c.b16 %v1487, %v1486
    %v2182 = vpack.c.b16 %v1332, %v1330
    %v2183 = vpack.c.b16 %v1489, %v1488
    %v2184 = vpack.c.b16 %v1336, %v1334
    %v2185 = vpack.c.b16 %v1491, %v1490
    %v2186 = vpack.c.b16 %v1340, %v1338
    %v2187 = vpack.c.b16 %v1493, %v1492
    %v2188 = vpack.c.b16 %v1344, %v1342
    %v2189 = vpack.c.b16 %v1495, %v1494
    %v2190 = vpack.c.b16 %v1348, %v1346
    %v2191 = vpack.c.b16 %v1497, %v1496
    %v2192 = vpack.c.b16 %v1352, %v1350
    %v2193 = vpack.c.b16 %v1499, %v1498
    %v2194 = vpack.c.b16 %v1356, %v1354
    %v2195 = vpack.c.b16 %v1501, %v1500
    %v2244 = vunpack.c.l.b16 %v1502
    %v2245 = vunpack.c.l.b16 %v1503
    %v2246 = vunpack.c.l.b16 %v1504
    %v2247 = vunpack.c.l.b16 %v1505
    %v2248 = vunpack.c.l.b16 %v1506
    %v2249 = vunpack.c.l.b16 %v1507
    %v2250 = vunpack.c.l.b16 %v1508
    %v2251 = vunpack.c.l.b16 %v1509
    %v2252 = vunpack.c.l.b16 %v1510
    %v2253 = vunpack.c.l.b16 %v1511
    %v2254 = vunpack.c.l.b16 %v1512
    %v2255 = vunpack.c.l.b16 %v1513
    %v2256 = vunpack.c.l.b16 %v1514
    %v2257 = vunpack.c.l.b16 %v1515
    %v2258 = vunpack.c.l.b16 %v1516
    %v2259 = vunpack.c.l.b16 %v1517
    %v2260 = vunpack.c.l.b16 %v1518
    %v2261 = vunpack.c.l.b16 %v1519
    %v2262 = vunpack.c.l.b16 %v1520
    %v2263 = vunpack.c.l.b16 %v1521
    %v2264 = vunpack.c.l.b16 %v1522
    %v2265 = vunpack.c.l.b16 %v1523
    %v2266 = vunpack.c.l.b16 %v1524
    %v2267 = vunpack.c.l.b16 %v1525
    %v2268 = vunpack.c.l.b16 %v1526
    %v2269 = vunpack.c.l.b16 %v1527
    %v2270 = vunpack.c.l.b16 %v1528
    %v2271 = vunpack.c.l.b16 %v1529
    %v2272 = vunpack.c.l.b16 %v1530
    %v2273 = vunpack.c.l.b16 %v1531
    %v2274 = vunpack.c.l.b16 %v1532
    %v2275 = vunpack.c.l.b16 %v1533
    %v2276 = vpack.c.b16 %v2245, %v2244
    %v2277 = vpack.c.b16 %v2247, %v2246
    %v2278 = vpack.c.b16 %v2249, %v2248
    %v2279 = vpack.c.b16 %v2251, %v2250
    %v2280 = vpack.c.b16 %v2253, %v2252
    %v2281 = vpack.c.b16 %v2255, %v2254
    %v2282 = vpack.c.b16 %v2257, %v2256
    %v2283 = vpack.c.b16 %v2259, %v2258
    %v2284 = vpack.c.b16 %v2261, %v2260
    %v2285 = vpack.c.b16 %v2263, %v2262
    %v2286 = vpack.c.b16 %v2265, %v2264
    %v2287 = vpack.c.b16 %v2267, %v2266
    %v2288 = vpack.c.b16 %v2269, %v2268
    %v2289 = vpack.c.b16 %v2271, %v2270
    %v2290 = vpack.c.b16 %v2273, %v2272
    %v2291 = vpack.c.b16 %v2275, %v2274
    %2308 = vmatpush.bf16.msra.mxu0 %v2283
    %2309 = vmatpush.bf16.msra.mxu0 %v2282
    %2310 = vmatpush.bf16.msra.mxu0 %v2281
    %2311 = vmatpush.bf16.msra.mxu0 %v2280
    %2312 = vmatpush.bf16.msra.mxu0 %v2279
    %2313 = vmatpush.bf16.msra.mxu0 %v2278
    %2314 = vmatpush.bf16.msra.mxu0 %v2277
    %2315 = vmatpush.bf16.msra.mxu0 %v2276
    %2316 = vmatmul.bf16.gmra.mxu0 %v2180
    %v2317 = vpop.f32.mrf.mxu0
    %v2318 = vadd.f32 %v2141, %v2317
    %v2319 = vpop.f32.mrf.mxu0
    %v2320 = vadd.f32 %v2143, %v2319
    %2321 = vmatmul.bf16.gmra.mxu0 %v2182
    %v2322 = vpop.f32.mrf.mxu0
    %v2323 = vadd.f32 %v2146, %v2322
    %v2324 = vpop.f32.mrf.mxu0
    %v2325 = vadd.f32 %v2148, %v2324
    %2326 = vmatmul.bf16.gmra.mxu0 %v2184
    %v2327 = vpop.f32.mrf.mxu0
    %v2328 = vadd.f32 %v2151, %v2327
    %v2329 = vpop.f32.mrf.mxu0
    %v2330 = vadd.f32 %v2153, %v2329
    %2331 = vmatmul.bf16.gmra.mxu0 %v2186
    %v2332 = vpop.f32.mrf.mxu0
    %v2333 = vadd.f32 %v2156, %v2332
    %v2334 = vpop.f32.mrf.mxu0
    %v2335 = vadd.f32 %v2158, %v2334
    %2336 = vmatmul.bf16.gmra.mxu0 %v2188
    %v2337 = vpop.f32.mrf.mxu0
    %v2338 = vadd.f32 %v2161, %v2337
    %v2339 = vpop.f32.mrf.mxu0
    %v2340 = vadd.f32 %v2163, %v2339
    %2341 = vmatmul.bf16.gmra.mxu0 %v2190
    %v2342 = vpop.f32.mrf.mxu0
    %v2343 = vadd.f32 %v2166, %v2342
    %v2344 = vpop.f32.mrf.mxu0
    %v2345 = vadd.f32 %v2168, %v2344
    %2346 = vmatmul.bf16.gmra.mxu0 %v2192
    %v2347 = vpop.f32.mrf.mxu0
    %v2348 = vadd.f32 %v2171, %v2347
    %v2349 = vpop.f32.mrf.mxu0
    %v2350 = vadd.f32 %v2173, %v2349
    %2351 = vmatmul.bf16.gmra.mxu0 %v2194
    %v2352 = vpop.f32.mrf.mxu0
    %v2353 = vadd.f32 %v2176, %v2352
    %v2354 = vpop.f32.mrf.mxu0
    %v2355 = vadd.f32 %v2178, %v2354
    %2356 = vdwg.mxu0
    %2357 = vmatpush.bf16.msra.mxu0 %v2291
    %2358 = vmatpush.bf16.msra.mxu0 %v2290
    %2359 = vmatpush.bf16.msra.mxu0 %v2289
    %2360 = vmatpush.bf16.msra.mxu0 %v2288
    %2361 = vmatpush.bf16.msra.mxu0 %v2287
    %2362 = vmatpush.bf16.msra.mxu0 %v2286
    %2363 = vmatpush.bf16.msra.mxu0 %v2285
    %2364 = vmatpush.bf16.msra.mxu0 %v2284
    %2365 = vmatmul.bf16.gmra.mxu0 %v2181
    %v2366 = vpop.f32.mrf.mxu0
    %v2367 = vadd.f32 %v2318, %v2366
    %v2368 = vpop.f32.mrf.mxu0
    %v2369 = vadd.f32 %v2320, %v2368
    %2370 = vmatmul.bf16.gmra.mxu0 %v2183
    %v2371 = vpop.f32.mrf.mxu0
    %v2372 = vadd.f32 %v2323, %v2371
    %v2373 = vpop.f32.mrf.mxu0
    %v2374 = vadd.f32 %v2325, %v2373
    %2375 = vmatmul.bf16.gmra.mxu0 %v2185
    %v2376 = vpop.f32.mrf.mxu0
    %v2377 = vadd.f32 %v2328, %v2376
    %v2378 = vpop.f32.mrf.mxu0
    %v2379 = vadd.f32 %v2330, %v2378
    %2380 = vmatmul.bf16.gmra.mxu0 %v2187
    %v2381 = vpop.f32.mrf.mxu0
    %v2382 = vadd.f32 %v2333, %v2381
    %v2383 = vpop.f32.mrf.mxu0
    %v2384 = vadd.f32 %v2335, %v2383
    %2385 = vmatmul.bf16.gmra.mxu0 %v2189
    %v2386 = vpop.f32.mrf.mxu0
    %v2387 = vadd.f32 %v2338, %v2386
    %v2388 = vpop.f32.mrf.mxu0
    %v2389 = vadd.f32 %v2340, %v2388
    %2390 = vmatmul.bf16.gmra.mxu0 %v2191
    %v2391 = vpop.f32.mrf.mxu0
    %v2392 = vadd.f32 %v2343, %v2391
    %v2393 = vpop.f32.mrf.mxu0
    %v2394 = vadd.f32 %v2345, %v2393
    %2395 = vmatmul.bf16.gmra.mxu0 %v2193
    %v2396 = vpop.f32.mrf.mxu0
    %v2397 = vadd.f32 %v2348, %v2396
    %v2398 = vpop.f32.mrf.mxu0
    %v2399 = vadd.f32 %v2350, %v2398
    %2400 = vmatmul.bf16.gmra.mxu0 %v2195
    %v2401 = vpop.f32.mrf.mxu0
    %v2402 = vadd.f32 %v2353, %v2401
    %v2403 = vpop.f32.mrf.mxu0
    %v2404 = vadd.f32 %v2355, %v2403
    %2405 = vdwg.mxu0
    %v2406 = vld [vmem:[#allocation2] sm:$0xc]
    %v2407 = vld [vmem:[#allocation2 + $0x8] sm:$0xc]
    %v2408 = vld [vmem:[#allocation2 + $0x10] sm:$0xc]
    %v2409 = vld [vmem:[#allocation2 + $0x18] sm:$0xc]
    %v2410 = vld [vmem:[#allocation2 + $0x20] sm:$0xc]
    %v2411 = vld [vmem:[#allocation2 + $0x28] sm:$0xc]
    %v2412 = vld [vmem:[#allocation2 + $0x30] sm:$0xc]
    %v2413 = vld [vmem:[#allocation2 + $0x38] sm:$0xc]
    %v2414 = vld [vmem:[#allocation2 + $0x60] sm:$0xc]
    %v2415 = vld [vmem:[#allocation2 + $0x68] sm:$0xc]
    %v2416 = vld [vmem:[#allocation2 + $0x70] sm:$0xc]
    %v2417 = vld [vmem:[#allocation2 + $0x78] sm:$0xc]
    %v2418 = vld [vmem:[#allocation2 + $0x80] sm:$0xc]
    %v2419 = vld [vmem:[#allocation2 + $0x88] sm:$0xc]
    %v2420 = vld [vmem:[#allocation2 + $0x90] sm:$0xc]
    %v2421 = vld [vmem:[#allocation2 + $0x98] sm:$0xc]
    %s2422 = scalar_lea.vmem [#allocation2], 8
    %v2423 = vld [vmem:[%s2422] sm:$0xf]
    %v2424 = vld [vmem:[%s2422 + $0x8] sm:$0xf]
    %v2425 = vld [vmem:[%s2422 + $0x10] sm:$0xf]
    %v2426 = vld [vmem:[%s2422 + $0x18] sm:$0xf]
    %v2427 = vld [vmem:[%s2422 + $0x20] sm:$0xf]
    %v2428 = vld [vmem:[%s2422 + $0x28] sm:$0xf]
    %v2429 = vld [vmem:[%s2422 + $0x30] sm:$0xf]
    %v2430 = vld [vmem:[%s2422 + $0x38] sm:$0xf]
    %v2431 = vld [vmem:[%s2422 + $0x60] sm:$0xf]
    %v2432 = vld [vmem:[%s2422 + $0x68] sm:$0xf]
    %v2433 = vld [vmem:[%s2422 + $0x70] sm:$0xf]
    %v2434 = vld [vmem:[%s2422 + $0x78] sm:$0xf]
    %v2435 = vld [vmem:[%s2422 + $0x80] sm:$0xf]
    %v2436 = vld [vmem:[%s2422 + $0x88] sm:$0xf]
    %v2437 = vld [vmem:[%s2422 + $0x90] sm:$0xf]
    %v2438 = vld [vmem:[%s2422 + $0x98] sm:$0xf]
    %v2455 = vunpack.c.l.b16 %v2406
    %v2456 = vunpack.c.l.b16 %v2407
    %v2457 = vunpack.c.l.b16 %v2408
    %v2458 = vunpack.c.l.b16 %v2409
    %v2459 = vunpack.c.l.b16 %v2410
    %v2460 = vunpack.c.l.b16 %v2411
    %v2461 = vunpack.c.l.b16 %v2412
    %v2462 = vunpack.c.l.b16 %v2413
    %v2463 = vunpack.c.l.b16 %v2414
    %v2464 = vunpack.c.l.b16 %v2415
    %v2465 = vunpack.c.l.b16 %v2416
    %v2466 = vunpack.c.l.b16 %v2417
    %v2467 = vunpack.c.l.b16 %v2418
    %v2468 = vunpack.c.l.b16 %v2419
    %v2469 = vunpack.c.l.b16 %v2420
    %v2470 = vunpack.c.l.b16 %v2421
    %v2487 = vunpack.c.l.b16 %v2423
    %v2488 = vunpack.c.l.b16 %v2424
    %v2489 = vunpack.c.l.b16 %v2425
    %v2490 = vunpack.c.l.b16 %v2426
    %v2491 = vunpack.c.l.b16 %v2427
    %v2492 = vunpack.c.l.b16 %v2428
    %v2493 = vunpack.c.l.b16 %v2429
    %v2494 = vunpack.c.l.b16 %v2430
    %v2495 = vunpack.c.l.b16 %v2431
    %v2496 = vunpack.c.l.b16 %v2432
    %v2497 = vunpack.c.l.b16 %v2433
    %v2498 = vunpack.c.l.b16 %v2434
    %v2499 = vunpack.c.l.b16 %v2435
    %v2500 = vunpack.c.l.b16 %v2436
    %v2501 = vunpack.c.l.b16 %v2437
    %v2502 = vunpack.c.l.b16 %v2438
    %v2503 = vpack.c.b16 %v2487, %v2487
    %v2504 = vpack.c.b16 %v2488, %v2488
    %v2505 = vpack.c.b16 %v2489, %v2489
    %v2506 = vpack.c.b16 %v2490, %v2490
    %v2507 = vpack.c.b16 %v2491, %v2491
    %v2508 = vpack.c.b16 %v2492, %v2492
    %v2509 = vpack.c.b16 %v2493, %v2493
    %v2510 = vpack.c.b16 %v2494, %v2494
    %v2511 = vpack.c.b16 %v2495, %v2495
    %v2512 = vpack.c.b16 %v2496, %v2496
    %v2513 = vpack.c.b16 %v2497, %v2497
    %v2514 = vpack.c.b16 %v2498, %v2498
    %v2515 = vpack.c.b16 %v2499, %v2499
    %v2516 = vpack.c.b16 %v2500, %v2500
    %v2517 = vpack.c.b16 %v2501, %v2501
    %v2518 = vpack.c.b16 %v2502, %v2502
    %v2519 = vrot.slane %v2503, 6
    %v2520 = vrot.slane %v2504, 6
    %v2521 = vrot.slane %v2505, 6
    %v2522 = vrot.slane %v2506, 6
    %v2523 = vrot.slane %v2507, 6
    %v2524 = vrot.slane %v2508, 6
    %v2525 = vrot.slane %v2509, 6
    %v2526 = vrot.slane %v2510, 6
    %v2527 = vrot.slane %v2511, 6
    %v2528 = vrot.slane %v2512, 6
    %v2529 = vrot.slane %v2513, 6
    %v2530 = vrot.slane %v2514, 6
    %v2531 = vrot.slane %v2515, 6
    %v2532 = vrot.slane %v2516, 6
    %v2533 = vrot.slane %v2517, 6
    %v2534 = vrot.slane %v2518, 6
    %v2535 = vunpack.c.l.b16 %v2519
    %v2536 = vunpack.c.h.b16 %v2519
    %v2537 = vunpack.c.l.b16 %v2520
    %v2538 = vunpack.c.h.b16 %v2520
    %v2539 = vunpack.c.l.b16 %v2521
    %v2540 = vunpack.c.h.b16 %v2521
    %v2541 = vunpack.c.l.b16 %v2522
    %v2542 = vunpack.c.h.b16 %v2522
    %v2543 = vunpack.c.l.b16 %v2523
    %v2544 = vunpack.c.h.b16 %v2523
    %v2545 = vunpack.c.l.b16 %v2524
    %v2546 = vunpack.c.h.b16 %v2524
    %v2547 = vunpack.c.l.b16 %v2525
    %v2548 = vunpack.c.h.b16 %v2525
    %v2549 = vunpack.c.l.b16 %v2526
    %v2550 = vunpack.c.h.b16 %v2526
    %v2551 = vunpack.c.l.b16 %v2527
    %v2552 = vunpack.c.h.b16 %v2527
    %v2553 = vunpack.c.l.b16 %v2528
    %v2554 = vunpack.c.h.b16 %v2528
    %v2555 = vunpack.c.l.b16 %v2529
    %v2556 = vunpack.c.h.b16 %v2529
    %v2557 = vunpack.c.l.b16 %v2530
    %v2558 = vunpack.c.h.b16 %v2530
    %v2559 = vunpack.c.l.b16 %v2531
    %v2560 = vunpack.c.h.b16 %v2531
    %v2561 = vunpack.c.l.b16 %v2532
    %v2562 = vunpack.c.h.b16 %v2532
    %v2563 = vunpack.c.l.b16 %v2533
    %v2564 = vunpack.c.h.b16 %v2533
    %v2565 = vunpack.c.l.b16 %v2534
    %v2566 = vunpack.c.h.b16 %v2534
    %v2567 = vpack.c.b16 %v2535, %v2455
    %v2568 = vpack.c.b16 %v2536, %v1614
    %v2569 = vpack.c.b16 %v2537, %v2456
    %v2570 = vpack.c.b16 %v2538, %v1615
    %v2571 = vpack.c.b16 %v2539, %v2457
    %v2572 = vpack.c.b16 %v2540, %v1616
    %v2573 = vpack.c.b16 %v2541, %v2458
    %v2574 = vpack.c.b16 %v2542, %v1617
    %v2575 = vpack.c.b16 %v2543, %v2459
    %v2576 = vpack.c.b16 %v2544, %v1618
    %v2577 = vpack.c.b16 %v2545, %v2460
    %v2578 = vpack.c.b16 %v2546, %v1619
    %v2579 = vpack.c.b16 %v2547, %v2461
    %v2580 = vpack.c.b16 %v2548, %v1620
    %v2581 = vpack.c.b16 %v2549, %v2462
    %v2582 = vpack.c.b16 %v2550, %v1621
    %v2583 = vpack.c.b16 %v2551, %v2463
    %v2584 = vpack.c.b16 %v2552, %v1622
    %v2585 = vpack.c.b16 %v2553, %v2464
    %v2586 = vpack.c.b16 %v2554, %v1623
    %v2587 = vpack.c.b16 %v2555, %v2465
    %v2588 = vpack.c.b16 %v2556, %v1624
    %v2589 = vpack.c.b16 %v2557, %v2466
    %v2590 = vpack.c.b16 %v2558, %v1625
    %v2591 = vpack.c.b16 %v2559, %v2467
    %v2592 = vpack.c.b16 %v2560, %v1626
    %v2593 = vpack.c.b16 %v2561, %v2468
    %v2594 = vpack.c.b16 %v2562, %v1627
    %v2595 = vpack.c.b16 %v2563, %v2469
    %v2596 = vpack.c.b16 %v2564, %v1628
    %v2597 = vpack.c.b16 %v2565, %v2470
    %v2598 = vpack.c.b16 %v2566, %v1629
    %vm2599 = vcmask 1041408
    %vm2600 = vcmask 1045508
    %vm2601 = vmor %vm2599, %vm2600
    %v2602 = vrot.slane %v2567, 6
    %v2603 = vrot.slane %v2602, 4
    %v2604 = vrot.slane %v2568, 6
    %v2605 = vsel %vm2601, %v2603, %v2604
    %v2606 = vrot.slane %v2569, 6
    %v2607 = vrot.slane %v2606, 4
    %v2608 = vrot.slane %v2570, 6
    %v2609 = vsel %vm2601, %v2607, %v2608
    %v2610 = vrot.slane %v2571, 6
    %v2611 = vrot.slane %v2610, 4
    %v2612 = vrot.slane %v2572, 6
    %v2613 = vsel %vm2601, %v2611, %v2612
    %v2614 = vrot.slane %v2573, 6
    %v2615 = vrot.slane %v2614, 4
    %v2616 = vrot.slane %v2574, 6
    %v2617 = vsel %vm2601, %v2615, %v2616
    %v2618 = vrot.slane %v2575, 6
    %v2619 = vrot.slane %v2618, 4
    %v2620 = vrot.slane %v2576, 6
    %v2621 = vsel %vm2601, %v2619, %v2620
    %v2622 = vrot.slane %v2577, 6
    %v2623 = vrot.slane %v2622, 4
    %v2624 = vrot.slane %v2578, 6
    %v2625 = vsel %vm2601, %v2623, %v2624
    %v2626 = vrot.slane %v2579, 6
    %v2627 = vrot.slane %v2626, 4
    %v2628 = vrot.slane %v2580, 6
    %v2629 = vsel %vm2601, %v2627, %v2628
    %v2630 = vrot.slane %v2581, 6
    %v2631 = vrot.slane %v2630, 4
    %v2632 = vrot.slane %v2582, 6
    %v2633 = vsel %vm2601, %v2631, %v2632
    %v2634 = vrot.slane %v2583, 6
    %v2635 = vrot.slane %v2634, 4
    %v2636 = vrot.slane %v2584, 6
    %v2637 = vsel %vm2601, %v2635, %v2636
    %v2638 = vrot.slane %v2585, 6
    %v2639 = vrot.slane %v2638, 4
    %v2640 = vrot.slane %v2586, 6
    %v2641 = vsel %vm2601, %v2639, %v2640
    %v2642 = vrot.slane %v2587, 6
    %v2643 = vrot.slane %v2642, 4
    %v2644 = vrot.slane %v2588, 6
    %v2645 = vsel %vm2601, %v2643, %v2644
    %v2646 = vrot.slane %v2589, 6
    %v2647 = vrot.slane %v2646, 4
    %v2648 = vrot.slane %v2590, 6
    %v2649 = vsel %vm2601, %v2647, %v2648
    %v2650 = vrot.slane %v2591, 6
    %v2651 = vrot.slane %v2650, 4
    %v2652 = vrot.slane %v2592, 6
    %v2653 = vsel %vm2601, %v2651, %v2652
    %v2654 = vrot.slane %v2593, 6
    %v2655 = vrot.slane %v2654, 4
    %v2656 = vrot.slane %v2594, 6
    %v2657 = vsel %vm2601, %v2655, %v2656
    %v2658 = vrot.slane %v2595, 6
    %v2659 = vrot.slane %v2658, 4
    %v2660 = vrot.slane %v2596, 6
    %v2661 = vsel %vm2601, %v2659, %v2660
    %v2662 = vrot.slane %v2597, 6
    %v2663 = vrot.slane %v2662, 4
    %v2664 = vrot.slane %v2598, 6
    %v2665 = vsel %vm2601, %v2663, %v2664
    %s2666 = scalar_lea.vmem [#allocation7], 256
    %v2667 = vld [vmem:[%s2666] sm:$0xf]
    %v2668 = vld [vmem:[%s2666 + $0x4] sm:$0xf]
    %v2669 = vld [vmem:[%s2666 + $0x8] sm:$0xf]
    %v2670 = vld [vmem:[%s2666 + $0xc] sm:$0xf]
    %v2671 = vld [vmem:[%s2666 + $0x10] sm:$0xf]
    %v2672 = vld [vmem:[%s2666 + $0x14] sm:$0xf]
    %v2673 = vld [vmem:[%s2666 + $0x18] sm:$0xf]
    %v2674 = vld [vmem:[%s2666 + $0x1c] sm:$0xf]
    %v2675 = vld [vmem:[%s2666 + $0x20] sm:$0xf]
    %v2676 = vld [vmem:[%s2666 + $0x24] sm:$0xf]
    %v2677 = vld [vmem:[%s2666 + $0x28] sm:$0xf]
    %v2678 = vld [vmem:[%s2666 + $0x2c] sm:$0xf]
    %v2679 = vld [vmem:[%s2666 + $0x30] sm:$0xf]
    %v2680 = vld [vmem:[%s2666 + $0x34] sm:$0xf]
    %v2681 = vld [vmem:[%s2666 + $0x38] sm:$0xf]
    %v2682 = vld [vmem:[%s2666 + $0x3c] sm:$0xf]
    %v2683 = vld [vmem:[%s2666 + $0x40] sm:$0xf]
    %v2684 = vld [vmem:[%s2666 + $0x44] sm:$0xf]
    %v2685 = vld [vmem:[%s2666 + $0x48] sm:$0xf]
    %v2686 = vld [vmem:[%s2666 + $0x4c] sm:$0xf]
    %v2687 = vld [vmem:[%s2666 + $0x50] sm:$0xf]
    %v2688 = vld [vmem:[%s2666 + $0x54] sm:$0xf]
    %v2689 = vld [vmem:[%s2666 + $0x58] sm:$0xf]
    %v2690 = vld [vmem:[%s2666 + $0x5c] sm:$0xf]
    %v2691 = vld [vmem:[%s2666 + $0x60] sm:$0xf]
    %v2692 = vld [vmem:[%s2666 + $0x64] sm:$0xf]
    %v2693 = vld [vmem:[%s2666 + $0x68] sm:$0xf]
    %v2694 = vld [vmem:[%s2666 + $0x6c] sm:$0xf]
    %v2695 = vld [vmem:[%s2666 + $0x70] sm:$0xf]
    %v2696 = vld [vmem:[%s2666 + $0x74] sm:$0xf]
    %v2697 = vld [vmem:[%s2666 + $0x78] sm:$0xf]
    %v2698 = vld [vmem:[%s2666 + $0x7c] sm:$0xf]
    %v2699 = vunpack.c.l.b16 %v2605
    %v2700 = vunpack.c.h.b16 %v2605
    %v2701 = vunpack.c.l.b16 %v2609
    %v2702 = vunpack.c.h.b16 %v2609
    %v2703 = vunpack.c.l.b16 %v2613
    %v2704 = vunpack.c.h.b16 %v2613
    %v2705 = vunpack.c.l.b16 %v2617
    %v2706 = vunpack.c.h.b16 %v2617
    %v2707 = vunpack.c.l.b16 %v2621
    %v2708 = vunpack.c.h.b16 %v2621
    %v2709 = vunpack.c.l.b16 %v2625
    %v2710 = vunpack.c.h.b16 %v2625
    %v2711 = vunpack.c.l.b16 %v2629
    %v2712 = vunpack.c.h.b16 %v2629
    %v2713 = vunpack.c.l.b16 %v2633
    %v2714 = vunpack.c.h.b16 %v2633
    %v2715 = vunpack.c.l.b16 %v2637
    %v2716 = vunpack.c.h.b16 %v2637
    %v2717 = vunpack.c.l.b16 %v2641
    %v2718 = vunpack.c.h.b16 %v2641
    %v2719 = vunpack.c.l.b16 %v2645
    %v2720 = vunpack.c.h.b16 %v2645
    %v2721 = vunpack.c.l.b16 %v2649
    %v2722 = vunpack.c.h.b16 %v2649
    %v2723 = vunpack.c.l.b16 %v2653
    %v2724 = vunpack.c.h.b16 %v2653
    %v2725 = vunpack.c.l.b16 %v2657
    %v2726 = vunpack.c.h.b16 %v2657
    %v2727 = vunpack.c.l.b16 %v2661
    %v2728 = vunpack.c.h.b16 %v2661
    %v2729 = vunpack.c.l.b16 %v2665
    %v2730 = vunpack.c.h.b16 %v2665
    %v2731 = vpack.c.b16 %v2701, %v2699
    %v2732 = vpack.c.b16 %v2702, %v2700
    %v2733 = vpack.c.b16 %v2705, %v2703
    %v2734 = vpack.c.b16 %v2706, %v2704
    %v2735 = vpack.c.b16 %v2709, %v2707
    %v2736 = vpack.c.b16 %v2710, %v2708
    %v2737 = vpack.c.b16 %v2713, %v2711
    %v2738 = vpack.c.b16 %v2714, %v2712
    %v2739 = vpack.c.b16 %v2717, %v2715
    %v2740 = vpack.c.b16 %v2718, %v2716
    %v2741 = vpack.c.b16 %v2721, %v2719
    %v2742 = vpack.c.b16 %v2722, %v2720
    %v2743 = vpack.c.b16 %v2725, %v2723
    %v2744 = vpack.c.b16 %v2726, %v2724
    %v2745 = vpack.c.b16 %v2729, %v2727
    %v2746 = vpack.c.b16 %v2730, %v2728
    %v2795 = vunpack.c.l.b16 %v2667
    %v2796 = vunpack.c.l.b16 %v2668
    %v2797 = vunpack.c.l.b16 %v2669
    %v2798 = vunpack.c.l.b16 %v2670
    %v2799 = vunpack.c.l.b16 %v2671
    %v2800 = vunpack.c.l.b16 %v2672
    %v2801 = vunpack.c.l.b16 %v2673
    %v2802 = vunpack.c.l.b16 %v2674
    %v2803 = vunpack.c.l.b16 %v2675
    %v2804 = vunpack.c.l.b16 %v2676
    %v2805 = vunpack.c.l.b16 %v2677
    %v2806 = vunpack.c.l.b16 %v2678
    %v2807 = vunpack.c.l.b16 %v2679
    %v2808 = vunpack.c.l.b16 %v2680
    %v2809 = vunpack.c.l.b16 %v2681
    %v2810 = vunpack.c.l.b16 %v2682
    %v2811 = vunpack.c.l.b16 %v2683
    %v2812 = vunpack.c.l.b16 %v2684
    %v2813 = vunpack.c.l.b16 %v2685
    %v2814 = vunpack.c.l.b16 %v2686
    %v2815 = vunpack.c.l.b16 %v2687
    %v2816 = vunpack.c.l.b16 %v2688
    %v2817 = vunpack.c.l.b16 %v2689
    %v2818 = vunpack.c.l.b16 %v2690
    %v2819 = vunpack.c.l.b16 %v2691
    %v2820 = vunpack.c.l.b16 %v2692
    %v2821 = vunpack.c.l.b16 %v2693
    %v2822 = vunpack.c.l.b16 %v2694
    %v2823 = vunpack.c.l.b16 %v2695
    %v2824 = vunpack.c.l.b16 %v2696
    %v2825 = vunpack.c.l.b16 %v2697
    %v2826 = vunpack.c.l.b16 %v2698
    %v2827 = vpack.c.b16 %v2796, %v2795
    %v2828 = vpack.c.b16 %v2798, %v2797
    %v2829 = vpack.c.b16 %v2800, %v2799
    %v2830 = vpack.c.b16 %v2802, %v2801
    %v2831 = vpack.c.b16 %v2804, %v2803
    %v2832 = vpack.c.b16 %v2806, %v2805
    %v2833 = vpack.c.b16 %v2808, %v2807
    %v2834 = vpack.c.b16 %v2810, %v2809
    %v2835 = vpack.c.b16 %v2812, %v2811
    %v2836 = vpack.c.b16 %v2814, %v2813
    %v2837 = vpack.c.b16 %v2816, %v2815
    %v2838 = vpack.c.b16 %v2818, %v2817
    %v2839 = vpack.c.b16 %v2820, %v2819
    %v2840 = vpack.c.b16 %v2822, %v2821
    %v2841 = vpack.c.b16 %v2824, %v2823
    %v2842 = vpack.c.b16 %v2826, %v2825
    %2859 = vmatpush.bf16.msra.mxu0 %v2834
    %2860 = vmatpush.bf16.msra.mxu0 %v2833
    %2861 = vmatpush.bf16.msra.mxu0 %v2832
    %2862 = vmatpush.bf16.msra.mxu0 %v2831
    %2863 = vmatpush.bf16.msra.mxu0 %v2830
    %2864 = vmatpush.bf16.msra.mxu0 %v2829
    %2865 = vmatpush.bf16.msra.mxu0 %v2828
    %2866 = vmatpush.bf16.msra.mxu0 %v2827
    %2867 = vmatmul.bf16.gmra.mxu0 %v2731
    %v2868 = vpop.f32.mrf.mxu0
    %v2869 = vadd.f32 0.0, %v2868
    %v2870 = vpop.f32.mrf.mxu0
    %v2871 = vadd.f32 0.0, %v2870
    %2872 = vmatmul.bf16.gmra.mxu0 %v2733
    %v2873 = vpop.f32.mrf.mxu0
    %v2874 = vadd.f32 0.0, %v2873
    %v2875 = vpop.f32.mrf.mxu0
    %v2876 = vadd.f32 0.0, %v2875
    %2877 = vmatmul.bf16.gmra.mxu0 %v2735
    %v2878 = vpop.f32.mrf.mxu0
    %v2879 = vadd.f32 0.0, %v2878
    %v2880 = vpop.f32.mrf.mxu0
    %v2881 = vadd.f32 0.0, %v2880
    %2882 = vmatmul.bf16.gmra.mxu0 %v2737
    %v2883 = vpop.f32.mrf.mxu0
    %v2884 = vadd.f32 0.0, %v2883
    %v2885 = vpop.f32.mrf.mxu0
    %v2886 = vadd.f32 0.0, %v2885
    %2887 = vmatmul.bf16.gmra.mxu0 %v2739
    %v2888 = vpop.f32.mrf.mxu0
    %v2889 = vadd.f32 0.0, %v2888
    %v2890 = vpop.f32.mrf.mxu0
    %v2891 = vadd.f32 0.0, %v2890
    %2892 = vmatmul.bf16.gmra.mxu0 %v2741
    %v2893 = vpop.f32.mrf.mxu0
    %v2894 = vadd.f32 0.0, %v2893
    %v2895 = vpop.f32.mrf.mxu0
    %v2896 = vadd.f32 0.0, %v2895
    %2897 = vmatmul.bf16.gmra.mxu0 %v2743
    %v2898 = vpop.f32.mrf.mxu0
    %v2899 = vadd.f32 0.0, %v2898
    %v2900 = vpop.f32.mrf.mxu0
    %v2901 = vadd.f32 0.0, %v2900
    %2902 = vmatmul.bf16.gmra.mxu0 %v2745
    %v2903 = vpop.f32.mrf.mxu0
    %v2904 = vadd.f32 0.0, %v2903
    %v2905 = vpop.f32.mrf.mxu0
    %v2906 = vadd.f32 0.0, %v2905
    %2907 = vdwg.mxu0
    %2908 = vmatpush.bf16.msra.mxu0 %v2842
    %2909 = vmatpush.bf16.msra.mxu0 %v2841
    %2910 = vmatpush.bf16.msra.mxu0 %v2840
    %2911 = vmatpush.bf16.msra.mxu0 %v2839
    %2912 = vmatpush.bf16.msra.mxu0 %v2838
    %2913 = vmatpush.bf16.msra.mxu0 %v2837
    %2914 = vmatpush.bf16.msra.mxu0 %v2836
    %2915 = vmatpush.bf16.msra.mxu0 %v2835
    %2916 = vmatmul.bf16.gmra.mxu0 %v2732
    %v2917 = vpop.f32.mrf.mxu0
    %v2918 = vadd.f32 %v2869, %v2917
    %v2919 = vpop.f32.mrf.mxu0
    %v2920 = vadd.f32 %v2871, %v2919
    %2921 = vmatmul.bf16.gmra.mxu0 %v2734
    %v2922 = vpop.f32.mrf.mxu0
    %v2923 = vadd.f32 %v2874, %v2922
    %v2924 = vpop.f32.mrf.mxu0
    %v2925 = vadd.f32 %v2876, %v2924
    %2926 = vmatmul.bf16.gmra.mxu0 %v2736
    %v2927 = vpop.f32.mrf.mxu0
    %v2928 = vadd.f32 %v2879, %v2927
    %v2929 = vpop.f32.mrf.mxu0
    %v2930 = vadd.f32 %v2881, %v2929
    %2931 = vmatmul.bf16.gmra.mxu0 %v2738
    %v2932 = vpop.f32.mrf.mxu0
    %v2933 = vadd.f32 %v2884, %v2932
    %v2934 = vpop.f32.mrf.mxu0
    %v2935 = vadd.f32 %v2886, %v2934
    %2936 = vmatmul.bf16.gmra.mxu0 %v2740
    %v2937 = vpop.f32.mrf.mxu0
    %v2938 = vadd.f32 %v2889, %v2937
    %v2939 = vpop.f32.mrf.mxu0
    %v2940 = vadd.f32 %v2891, %v2939
    %2941 = vmatmul.bf16.gmra.mxu0 %v2742
    %v2942 = vpop.f32.mrf.mxu0
    %v2943 = vadd.f32 %v2894, %v2942
    %v2944 = vpop.f32.mrf.mxu0
    %v2945 = vadd.f32 %v2896, %v2944
    %2946 = vmatmul.bf16.gmra.mxu0 %v2744
    %v2947 = vpop.f32.mrf.mxu0
    %v2948 = vadd.f32 %v2899, %v2947
    %v2949 = vpop.f32.mrf.mxu0
    %v2950 = vadd.f32 %v2901, %v2949
    %2951 = vmatmul.bf16.gmra.mxu0 %v2746
    %v2952 = vpop.f32.mrf.mxu0
    %v2953 = vadd.f32 %v2904, %v2952
    %v2954 = vpop.f32.mrf.mxu0
    %v2955 = vadd.f32 %v2906, %v2954
    %2956 = vdwg.mxu0
    %v2957 = vadd.f32 %v2367, %v2918
    %v2958 = vadd.f32 %v2369, %v2920
    %v2959 = vadd.f32 %v2372, %v2923
    %v2960 = vadd.f32 %v2374, %v2925
    %v2961 = vadd.f32 %v2377, %v2928
    %v2962 = vadd.f32 %v2379, %v2930
    %v2963 = vadd.f32 %v2382, %v2933
    %v2964 = vadd.f32 %v2384, %v2935
    %v2965 = vadd.f32 %v2387, %v2938
    %v2966 = vadd.f32 %v2389, %v2940
    %v2967 = vadd.f32 %v2392, %v2943
    %v2968 = vadd.f32 %v2394, %v2945
    %v2969 = vadd.f32 %v2397, %v2948
    %v2970 = vadd.f32 %v2399, %v2950
    %v2971 = vadd.f32 %v2402, %v2953
    %v2972 = vadd.f32 %v2404, %v2955
    %v2973 = vld [vmem:[%s2422] sm:$0xf]
    %v2974 = vld [vmem:[%s2422 + $0x4] sm:$0x1]
    %v2975 = vld [vmem:[%s2422 + $0x8] sm:$0xf]
    %v2976 = vld [vmem:[%s2422 + $0xc] sm:$0x1]
    %v2977 = vld [vmem:[%s2422 + $0x10] sm:$0xf]
    %v2978 = vld [vmem:[%s2422 + $0x14] sm:$0x1]
    %v2979 = vld [vmem:[%s2422 + $0x18] sm:$0xf]
    %v2980 = vld [vmem:[%s2422 + $0x1c] sm:$0x1]
    %v2981 = vld [vmem:[%s2422 + $0x20] sm:$0xf]
    %v2982 = vld [vmem:[%s2422 + $0x24] sm:$0x1]
    %v2983 = vld [vmem:[%s2422 + $0x28] sm:$0xf]
    %v2984 = vld [vmem:[%s2422 + $0x2c] sm:$0x1]
    %v2985 = vld [vmem:[%s2422 + $0x30] sm:$0xf]
    %v2986 = vld [vmem:[%s2422 + $0x34] sm:$0x1]
    %v2987 = vld [vmem:[%s2422 + $0x38] sm:$0xf]
    %v2988 = vld [vmem:[%s2422 + $0x3c] sm:$0x1]
    %v2989 = vld [vmem:[%s2422 + $0x60] sm:$0xf]
    %v2990 = vld [vmem:[%s2422 + $0x64] sm:$0x1]
    %v2991 = vld [vmem:[%s2422 + $0x68] sm:$0xf]
    %v2992 = vld [vmem:[%s2422 + $0x6c] sm:$0x1]
    %v2993 = vld [vmem:[%s2422 + $0x70] sm:$0xf]
    %v2994 = vld [vmem:[%s2422 + $0x74] sm:$0x1]
    %v2995 = vld [vmem:[%s2422 + $0x78] sm:$0xf]
    %v2996 = vld [vmem:[%s2422 + $0x7c] sm:$0x1]
    %v2997 = vld [vmem:[%s2422 + $0x80] sm:$0xf]
    %v2998 = vld [vmem:[%s2422 + $0x84] sm:$0x1]
    %v2999 = vld [vmem:[%s2422 + $0x88] sm:$0xf]
    %v3000 = vld [vmem:[%s2422 + $0x8c] sm:$0x1]
    %v3001 = vld [vmem:[%s2422 + $0x90] sm:$0xf]
    %v3002 = vld [vmem:[%s2422 + $0x94] sm:$0x1]
    %v3003 = vld [vmem:[%s2422 + $0x98] sm:$0xf]
    %v3004 = vld [vmem:[%s2422 + $0x9c] sm:$0x1]
    %v3005 = vld [vmem:[%s2422] sm:$0xe]
    %v3006 = vld [vmem:[%s2422 + $0x8] sm:$0xe]
    %v3007 = vld [vmem:[%s2422 + $0x10] sm:$0xe]
    %v3008 = vld [vmem:[%s2422 + $0x18] sm:$0xe]
    %v3009 = vld [vmem:[%s2422 + $0x20] sm:$0xe]
    %v3010 = vld [vmem:[%s2422 + $0x28] sm:$0xe]
    %v3011 = vld [vmem:[%s2422 + $0x30] sm:$0xe]
    %v3012 = vld [vmem:[%s2422 + $0x38] sm:$0xe]
    %v3013 = vld [vmem:[%s2422 + $0x60] sm:$0xe]
    %v3014 = vld [vmem:[%s2422 + $0x68] sm:$0xe]
    %v3015 = vld [vmem:[%s2422 + $0x70] sm:$0xe]
    %v3016 = vld [vmem:[%s2422 + $0x78] sm:$0xe]
    %v3017 = vld [vmem:[%s2422 + $0x80] sm:$0xe]
    %v3018 = vld [vmem:[%s2422 + $0x88] sm:$0xe]
    %v3019 = vld [vmem:[%s2422 + $0x90] sm:$0xe]
    %v3020 = vld [vmem:[%s2422 + $0x98] sm:$0xe]
    %v3053 = vunpack.c.l.b16 %v2973
    %v3054 = vunpack.c.l.b16 %v2974
    %v3055 = vunpack.c.l.b16 %v2975
    %v3056 = vunpack.c.l.b16 %v2976
    %v3057 = vunpack.c.l.b16 %v2977
    %v3058 = vunpack.c.l.b16 %v2978
    %v3059 = vunpack.c.l.b16 %v2979
    %v3060 = vunpack.c.l.b16 %v2980
    %v3061 = vunpack.c.l.b16 %v2981
    %v3062 = vunpack.c.l.b16 %v2982
    %v3063 = vunpack.c.l.b16 %v2983
    %v3064 = vunpack.c.l.b16 %v2984
    %v3065 = vunpack.c.l.b16 %v2985
    %v3066 = vunpack.c.l.b16 %v2986
    %v3067 = vunpack.c.l.b16 %v2987
    %v3068 = vunpack.c.l.b16 %v2988
    %v3069 = vunpack.c.l.b16 %v2989
    %v3070 = vunpack.c.l.b16 %v2990
    %v3071 = vunpack.c.l.b16 %v2991
    %v3072 = vunpack.c.l.b16 %v2992
    %v3073 = vunpack.c.l.b16 %v2993
    %v3074 = vunpack.c.l.b16 %v2994
    %v3075 = vunpack.c.l.b16 %v2995
    %v3076 = vunpack.c.l.b16 %v2996
    %v3077 = vunpack.c.l.b16 %v2997
    %v3078 = vunpack.c.l.b16 %v2998
    %v3079 = vunpack.c.l.b16 %v2999
    %v3080 = vunpack.c.l.b16 %v3000
    %v3081 = vunpack.c.l.b16 %v3001
    %v3082 = vunpack.c.l.b16 %v3002
    %v3083 = vunpack.c.l.b16 %v3003
    %v3084 = vunpack.c.l.b16 %v3004
    %v3101 = vunpack.c.l.b16 %v3005
    %v3102 = vunpack.c.l.b16 %v3006
    %v3103 = vunpack.c.l.b16 %v3007
    %v3104 = vunpack.c.l.b16 %v3008
    %v3105 = vunpack.c.l.b16 %v3009
    %v3106 = vunpack.c.l.b16 %v3010
    %v3107 = vunpack.c.l.b16 %v3011
    %v3108 = vunpack.c.l.b16 %v3012
    %v3109 = vunpack.c.l.b16 %v3013
    %v3110 = vunpack.c.l.b16 %v3014
    %v3111 = vunpack.c.l.b16 %v3015
    %v3112 = vunpack.c.l.b16 %v3016
    %v3113 = vunpack.c.l.b16 %v3017
    %v3114 = vunpack.c.l.b16 %v3018
    %v3115 = vunpack.c.l.b16 %v3019
    %v3116 = vunpack.c.l.b16 %v3020
    %v3117 = vpack.c.b16 %v3054, %v3101
    %v3118 = vpack.c.b16 %v3056, %v3102
    %v3119 = vpack.c.b16 %v3058, %v3103
    %v3120 = vpack.c.b16 %v3060, %v3104
    %v3121 = vpack.c.b16 %v3062, %v3105
    %v3122 = vpack.c.b16 %v3064, %v3106
    %v3123 = vpack.c.b16 %v3066, %v3107
    %v3124 = vpack.c.b16 %v3068, %v3108
    %v3125 = vpack.c.b16 %v3070, %v3109
    %v3126 = vpack.c.b16 %v3072, %v3110
    %v3127 = vpack.c.b16 %v3074, %v3111
    %v3128 = vpack.c.b16 %v3076, %v3112
    %v3129 = vpack.c.b16 %v3078, %v3113
    %v3130 = vpack.c.b16 %v3080, %v3114
    %v3131 = vpack.c.b16 %v3082, %v3115
    %v3132 = vpack.c.b16 %v3084, %v3116
    %v3134 = vshrl.u32 %v3117, 16
    %v3136 = vshll.u32 %v3117, 16
    %v3138 = vrot.slane %v3136, 1
    %v3139 = vor.u32 %v3134, %v3138
    %v3141 = vshrl.u32 %v3118, 16
    %v3143 = vshll.u32 %v3118, 16
    %v3145 = vrot.slane %v3143, 1
    %v3146 = vor.u32 %v3141, %v3145
    %v3148 = vshrl.u32 %v3119, 16
    %v3150 = vshll.u32 %v3119, 16
    %v3152 = vrot.slane %v3150, 1
    %v3153 = vor.u32 %v3148, %v3152
    %v3155 = vshrl.u32 %v3120, 16
    %v3157 = vshll.u32 %v3120, 16
    %v3159 = vrot.slane %v3157, 1
    %v3160 = vor.u32 %v3155, %v3159
    %v3162 = vshrl.u32 %v3121, 16
    %v3164 = vshll.u32 %v3121, 16
    %v3166 = vrot.slane %v3164, 1
    %v3167 = vor.u32 %v3162, %v3166
    %v3169 = vshrl.u32 %v3122, 16
    %v3171 = vshll.u32 %v3122, 16
    %v3173 = vrot.slane %v3171, 1
    %v3174 = vor.u32 %v3169, %v3173
    %v3176 = vshrl.u32 %v3123, 16
    %v3178 = vshll.u32 %v3123, 16
    %v3180 = vrot.slane %v3178, 1
    %v3181 = vor.u32 %v3176, %v3180
    %v3183 = vshrl.u32 %v3124, 16
    %v3185 = vshll.u32 %v3124, 16
    %v3187 = vrot.slane %v3185, 1
    %v3188 = vor.u32 %v3183, %v3187
    %v3190 = vshrl.u32 %v3125, 16
    %v3192 = vshll.u32 %v3125, 16
    %v3194 = vrot.slane %v3192, 1
    %v3195 = vor.u32 %v3190, %v3194
    %v3197 = vshrl.u32 %v3126, 16
    %v3199 = vshll.u32 %v3126, 16
    %v3201 = vrot.slane %v3199, 1
    %v3202 = vor.u32 %v3197, %v3201
    %v3204 = vshrl.u32 %v3127, 16
    %v3206 = vshll.u32 %v3127, 16
    %v3208 = vrot.slane %v3206, 1
    %v3209 = vor.u32 %v3204, %v3208
    %v3211 = vshrl.u32 %v3128, 16
    %v3213 = vshll.u32 %v3128, 16
    %v3215 = vrot.slane %v3213, 1
    %v3216 = vor.u32 %v3211, %v3215
    %v3218 = vshrl.u32 %v3129, 16
    %v3220 = vshll.u32 %v3129, 16
    %v3222 = vrot.slane %v3220, 1
    %v3223 = vor.u32 %v3218, %v3222
    %v3225 = vshrl.u32 %v3130, 16
    %v3227 = vshll.u32 %v3130, 16
    %v3229 = vrot.slane %v3227, 1
    %v3230 = vor.u32 %v3225, %v3229
    %v3232 = vshrl.u32 %v3131, 16
    %v3234 = vshll.u32 %v3131, 16
    %v3236 = vrot.slane %v3234, 1
    %v3237 = vor.u32 %v3232, %v3236
    %v3239 = vshrl.u32 %v3132, 16
    %v3241 = vshll.u32 %v3132, 16
    %v3243 = vrot.slane %v3241, 1
    %v3244 = vor.u32 %v3239, %v3243
    %v3245 = vunpack.c.l.b16 %v3139
    %v3246 = vunpack.c.h.b16 %v3139
    %v3247 = vunpack.c.l.b16 %v3146
    %v3248 = vunpack.c.h.b16 %v3146
    %v3249 = vunpack.c.l.b16 %v3153
    %v3250 = vunpack.c.h.b16 %v3153
    %v3251 = vunpack.c.l.b16 %v3160
    %v3252 = vunpack.c.h.b16 %v3160
    %v3253 = vunpack.c.l.b16 %v3167
    %v3254 = vunpack.c.h.b16 %v3167
    %v3255 = vunpack.c.l.b16 %v3174
    %v3256 = vunpack.c.h.b16 %v3174
    %v3257 = vunpack.c.l.b16 %v3181
    %v3258 = vunpack.c.h.b16 %v3181
    %v3259 = vunpack.c.l.b16 %v3188
    %v3260 = vunpack.c.h.b16 %v3188
    %v3261 = vunpack.c.l.b16 %v3195
    %v3262 = vunpack.c.h.b16 %v3195
    %v3263 = vunpack.c.l.b16 %v3202
    %v3264 = vunpack.c.h.b16 %v3202
    %v3265 = vunpack.c.l.b16 %v3209
    %v3266 = vunpack.c.h.b16 %v3209
    %v3267 = vunpack.c.l.b16 %v3216
    %v3268 = vunpack.c.h.b16 %v3216
    %v3269 = vunpack.c.l.b16 %v3223
    %v3270 = vunpack.c.h.b16 %v3223
    %v3271 = vunpack.c.l.b16 %v3230
    %v3272 = vunpack.c.h.b16 %v3230
    %v3273 = vunpack.c.l.b16 %v3237
    %v3274 = vunpack.c.h.b16 %v3237
    %v3275 = vunpack.c.l.b16 %v3244
    %v3276 = vunpack.c.h.b16 %v3244
    %v3277 = vpack.c.b16 %v3245, %v3053
    %v3278 = vpack.c.b16 %v3246, %v3054
    %v3279 = vpack.c.b16 %v3247, %v3055
    %v3280 = vpack.c.b16 %v3248, %v3056
    %v3281 = vpack.c.b16 %v3249, %v3057
    %v3282 = vpack.c.b16 %v3250, %v3058
    %v3283 = vpack.c.b16 %v3251, %v3059
    %v3284 = vpack.c.b16 %v3252, %v3060
    %v3285 = vpack.c.b16 %v3253, %v3061
    %v3286 = vpack.c.b16 %v3254, %v3062
    %v3287 = vpack.c.b16 %v3255, %v3063
    %v3288 = vpack.c.b16 %v3256, %v3064
    %v3289 = vpack.c.b16 %v3257, %v3065
    %v3290 = vpack.c.b16 %v3258, %v3066
    %v3291 = vpack.c.b16 %v3259, %v3067
    %v3292 = vpack.c.b16 %v3260, %v3068
    %v3293 = vpack.c.b16 %v3261, %v3069
    %v3294 = vpack.c.b16 %v3262, %v3070
    %v3295 = vpack.c.b16 %v3263, %v3071
    %v3296 = vpack.c.b16 %v3264, %v3072
    %v3297 = vpack.c.b16 %v3265, %v3073
    %v3298 = vpack.c.b16 %v3266, %v3074
    %v3299 = vpack.c.b16 %v3267, %v3075
    %v3300 = vpack.c.b16 %v3268, %v3076
    %v3301 = vpack.c.b16 %v3269, %v3077
    %v3302 = vpack.c.b16 %v3270, %v3078
    %v3303 = vpack.c.b16 %v3271, %v3079
    %v3304 = vpack.c.b16 %v3272, %v3080
    %v3305 = vpack.c.b16 %v3273, %v3081
    %v3306 = vpack.c.b16 %v3274, %v3082
    %v3307 = vpack.c.b16 %v3275, %v3083
    %v3308 = vpack.c.b16 %v3276, %v3084
    %vm3309 = vsmask.f32 3328
    %vm3310 = vsmask.f32 7440
    %vm3311 = vmor %vm3309, %vm3310
    %v3313 = vshrl.u32 %v3277, 16
    %v3315 = vrot.slane %v3313, 4
    %v3316 = vshll.u32 %v3277, 16
    %v3318 = vrot.slane %v3316, 5
    %v3319 = vor.u32 %v3315, %v3318
    %v3320 = vrot.slane %v3319, 4
    %v3322 = vshll.u32 %v3278, 16
    %v3324 = vrot.slane %v3322, 5
    %v3325 = vsel %vm3311, %v3320, %v3324
    %v3327 = vshrl.u32 %v3279, 16
    %v3329 = vrot.slane %v3327, 4
    %v3330 = vshll.u32 %v3279, 16
    %v3332 = vrot.slane %v3330, 5
    %v3333 = vor.u32 %v3329, %v3332
    %v3334 = vrot.slane %v3333, 4
    %v3336 = vshll.u32 %v3280, 16
    %v3338 = vrot.slane %v3336, 5
    %v3339 = vsel %vm3311, %v3334, %v3338
    %v3341 = vshrl.u32 %v3281, 16
    %v3343 = vrot.slane %v3341, 4
    %v3344 = vshll.u32 %v3281, 16
    %v3346 = vrot.slane %v3344, 5
    %v3347 = vor.u32 %v3343, %v3346
    %v3348 = vrot.slane %v3347, 4
    %v3350 = vshll.u32 %v3282, 16
    %v3352 = vrot.slane %v3350, 5
    %v3353 = vsel %vm3311, %v3348, %v3352
    %v3355 = vshrl.u32 %v3283, 16
    %v3357 = vrot.slane %v3355, 4
    %v3358 = vshll.u32 %v3283, 16
    %v3360 = vrot.slane %v3358, 5
    %v3361 = vor.u32 %v3357, %v3360
    %v3362 = vrot.slane %v3361, 4
    %v3364 = vshll.u32 %v3284, 16
    %v3366 = vrot.slane %v3364, 5
    %v3367 = vsel %vm3311, %v3362, %v3366
    %v3369 = vshrl.u32 %v3285, 16
    %v3371 = vrot.slane %v3369, 4
    %v3372 = vshll.u32 %v3285, 16
    %v3374 = vrot.slane %v3372, 5
    %v3375 = vor.u32 %v3371, %v3374
    %v3376 = vrot.slane %v3375, 4
    %v3378 = vshll.u32 %v3286, 16
    %v3380 = vrot.slane %v3378, 5
    %v3381 = vsel %vm3311, %v3376, %v3380
    %v3383 = vshrl.u32 %v3287, 16
    %v3385 = vrot.slane %v3383, 4
    %v3386 = vshll.u32 %v3287, 16
    %v3388 = vrot.slane %v3386, 5
    %v3389 = vor.u32 %v3385, %v3388
    %v3390 = vrot.slane %v3389, 4
    %v3392 = vshll.u32 %v3288, 16
    %v3394 = vrot.slane %v3392, 5
    %v3395 = vsel %vm3311, %v3390, %v3394
    %v3397 = vshrl.u32 %v3289, 16
    %v3399 = vrot.slane %v3397, 4
    %v3400 = vshll.u32 %v3289, 16
    %v3402 = vrot.slane %v3400, 5
    %v3403 = vor.u32 %v3399, %v3402
    %v3404 = vrot.slane %v3403, 4
    %v3406 = vshll.u32 %v3290, 16
    %v3408 = vrot.slane %v3406, 5
    %v3409 = vsel %vm3311, %v3404, %v3408
    %v3411 = vshrl.u32 %v3291, 16
    %v3413 = vrot.slane %v3411, 4
    %v3414 = vshll.u32 %v3291, 16
    %v3416 = vrot.slane %v3414, 5
    %v3417 = vor.u32 %v3413, %v3416
    %v3418 = vrot.slane %v3417, 4
    %v3420 = vshll.u32 %v3292, 16
    %v3422 = vrot.slane %v3420, 5
    %v3423 = vsel %vm3311, %v3418, %v3422
    %v3425 = vshrl.u32 %v3293, 16
    %v3427 = vrot.slane %v3425, 4
    %v3428 = vshll.u32 %v3293, 16
    %v3430 = vrot.slane %v3428, 5
    %v3431 = vor.u32 %v3427, %v3430
    %v3432 = vrot.slane %v3431, 4
    %v3434 = vshll.u32 %v3294, 16
    %v3436 = vrot.slane %v3434, 5
    %v3437 = vsel %vm3311, %v3432, %v3436
    %v3439 = vshrl.u32 %v3295, 16
    %v3441 = vrot.slane %v3439, 4
    %v3442 = vshll.u32 %v3295, 16
    %v3444 = vrot.slane %v3442, 5
    %v3445 = vor.u32 %v3441, %v3444
    %v3446 = vrot.slane %v3445, 4
    %v3448 = vshll.u32 %v3296, 16
    %v3450 = vrot.slane %v3448, 5
    %v3451 = vsel %vm3311, %v3446, %v3450
    %v3453 = vshrl.u32 %v3297, 16
    %v3455 = vrot.slane %v3453, 4
    %v3456 = vshll.u32 %v3297, 16
    %v3458 = vrot.slane %v3456, 5
    %v3459 = vor.u32 %v3455, %v3458
    %v3460 = vrot.slane %v3459, 4
    %v3462 = vshll.u32 %v3298, 16
    %v3464 = vrot.slane %v3462, 5
    %v3465 = vsel %vm3311, %v3460, %v3464
    %v3467 = vshrl.u32 %v3299, 16
    %v3469 = vrot.slane %v3467, 4
    %v3470 = vshll.u32 %v3299, 16
    %v3472 = vrot.slane %v3470, 5
    %v3473 = vor.u32 %v3469, %v3472
    %v3474 = vrot.slane %v3473, 4
    %v3476 = vshll.u32 %v3300, 16
    %v3478 = vrot.slane %v3476, 5
    %v3479 = vsel %vm3311, %v3474, %v3478
    %v3481 = vshrl.u32 %v3301, 16
    %v3483 = vrot.slane %v3481, 4
    %v3484 = vshll.u32 %v3301, 16
    %v3486 = vrot.slane %v3484, 5
    %v3487 = vor.u32 %v3483, %v3486
    %v3488 = vrot.slane %v3487, 4
    %v3490 = vshll.u32 %v3302, 16
    %v3492 = vrot.slane %v3490, 5
    %v3493 = vsel %vm3311, %v3488, %v3492
    %v3495 = vshrl.u32 %v3303, 16
    %v3497 = vrot.slane %v3495, 4
    %v3498 = vshll.u32 %v3303, 16
    %v3500 = vrot.slane %v3498, 5
    %v3501 = vor.u32 %v3497, %v3500
    %v3502 = vrot.slane %v3501, 4
    %v3504 = vshll.u32 %v3304, 16
    %v3506 = vrot.slane %v3504, 5
    %v3507 = vsel %vm3311, %v3502, %v3506
    %v3509 = vshrl.u32 %v3305, 16
    %v3511 = vrot.slane %v3509, 4
    %v3512 = vshll.u32 %v3305, 16
    %v3514 = vrot.slane %v3512, 5
    %v3515 = vor.u32 %v3511, %v3514
    %v3516 = vrot.slane %v3515, 4
    %v3518 = vshll.u32 %v3306, 16
    %v3520 = vrot.slane %v3518, 5
    %v3521 = vsel %vm3311, %v3516, %v3520
    %v3523 = vshrl.u32 %v3307, 16
    %v3525 = vrot.slane %v3523, 4
    %v3526 = vshll.u32 %v3307, 16
    %v3528 = vrot.slane %v3526, 5
    %v3529 = vor.u32 %v3525, %v3528
    %v3530 = vrot.slane %v3529, 4
    %v3532 = vshll.u32 %v3308, 16
    %v3534 = vrot.slane %v3532, 5
    %v3535 = vsel %vm3311, %v3530, %v3534
    %s3536 = scalar_lea.vmem [#allocation7], 384
    %v3537 = vld [vmem:[%s3536] sm:$0xf]
    %v3538 = vld [vmem:[%s3536 + $0x4] sm:$0xf]
    %v3539 = vld [vmem:[%s3536 + $0x8] sm:$0xf]
    %v3540 = vld [vmem:[%s3536 + $0xc] sm:$0xf]
    %v3541 = vld [vmem:[%s3536 + $0x10] sm:$0xf]
    %v3542 = vld [vmem:[%s3536 + $0x14] sm:$0xf]
    %v3543 = vld [vmem:[%s3536 + $0x18] sm:$0xf]
    %v3544 = vld [vmem:[%s3536 + $0x1c] sm:$0xf]
    %v3545 = vld [vmem:[%s3536 + $0x20] sm:$0xf]
    %v3546 = vld [vmem:[%s3536 + $0x24] sm:$0xf]
    %v3547 = vld [vmem:[%s3536 + $0x28] sm:$0xf]
    %v3548 = vld [vmem:[%s3536 + $0x2c] sm:$0xf]
    %v3549 = vld [vmem:[%s3536 + $0x30] sm:$0xf]
    %v3550 = vld [vmem:[%s3536 + $0x34] sm:$0xf]
    %v3551 = vld [vmem:[%s3536 + $0x38] sm:$0xf]
    %v3552 = vld [vmem:[%s3536 + $0x3c] sm:$0xf]
    %v3553 = vld [vmem:[%s3536 + $0x40] sm:$0xf]
    %v3554 = vld [vmem:[%s3536 + $0x44] sm:$0xf]
    %v3555 = vld [vmem:[%s3536 + $0x48] sm:$0xf]
    %v3556 = vld [vmem:[%s3536 + $0x4c] sm:$0xf]
    %v3557 = vld [vmem:[%s3536 + $0x50] sm:$0xf]
    %v3558 = vld [vmem:[%s3536 + $0x54] sm:$0xf]
    %v3559 = vld [vmem:[%s3536 + $0x58] sm:$0xf]
    %v3560 = vld [vmem:[%s3536 + $0x5c] sm:$0xf]
    %v3561 = vld [vmem:[%s3536 + $0x60] sm:$0xf]
    %v3562 = vld [vmem:[%s3536 + $0x64] sm:$0xf]
    %v3563 = vld [vmem:[%s3536 + $0x68] sm:$0xf]
    %v3564 = vld [vmem:[%s3536 + $0x6c] sm:$0xf]
    %v3565 = vld [vmem:[%s3536 + $0x70] sm:$0xf]
    %v3566 = vld [vmem:[%s3536 + $0x74] sm:$0xf]
    %v3567 = vld [vmem:[%s3536 + $0x78] sm:$0xf]
    %v3568 = vld [vmem:[%s3536 + $0x7c] sm:$0xf]
    %v3569 = vunpack.c.l.b16 %v3325
    %v3570 = vunpack.c.h.b16 %v3325
    %v3571 = vunpack.c.l.b16 %v3339
    %v3572 = vunpack.c.h.b16 %v3339
    %v3573 = vunpack.c.l.b16 %v3353
    %v3574 = vunpack.c.h.b16 %v3353
    %v3575 = vunpack.c.l.b16 %v3367
    %v3576 = vunpack.c.h.b16 %v3367
    %v3577 = vunpack.c.l.b16 %v3381
    %v3578 = vunpack.c.h.b16 %v3381
    %v3579 = vunpack.c.l.b16 %v3395
    %v3580 = vunpack.c.h.b16 %v3395
    %v3581 = vunpack.c.l.b16 %v3409
    %v3582 = vunpack.c.h.b16 %v3409
    %v3583 = vunpack.c.l.b16 %v3423
    %v3584 = vunpack.c.h.b16 %v3423
    %v3585 = vunpack.c.l.b16 %v3437
    %v3586 = vunpack.c.h.b16 %v3437
    %v3587 = vunpack.c.l.b16 %v3451
    %v3588 = vunpack.c.h.b16 %v3451
    %v3589 = vunpack.c.l.b16 %v3465
    %v3590 = vunpack.c.h.b16 %v3465
    %v3591 = vunpack.c.l.b16 %v3479
    %v3592 = vunpack.c.h.b16 %v3479
    %v3593 = vunpack.c.l.b16 %v3493
    %v3594 = vunpack.c.h.b16 %v3493
    %v3595 = vunpack.c.l.b16 %v3507
    %v3596 = vunpack.c.h.b16 %v3507
    %v3597 = vunpack.c.l.b16 %v3521
    %v3598 = vunpack.c.h.b16 %v3521
    %v3599 = vunpack.c.l.b16 %v3535
    %v3600 = vunpack.c.h.b16 %v3535
    %v3601 = vpack.c.b16 %v3571, %v3569
    %v3602 = vpack.c.b16 %v3572, %v3570
    %v3603 = vpack.c.b16 %v3575, %v3573
    %v3604 = vpack.c.b16 %v3576, %v3574
    %v3605 = vpack.c.b16 %v3579, %v3577
    %v3606 = vpack.c.b16 %v3580, %v3578
    %v3607 = vpack.c.b16 %v3583, %v3581
    %v3608 = vpack.c.b16 %v3584, %v3582
    %v3609 = vpack.c.b16 %v3587, %v3585
    %v3610 = vpack.c.b16 %v3588, %v3586
    %v3611 = vpack.c.b16 %v3591, %v3589
    %v3612 = vpack.c.b16 %v3592, %v3590
    %v3613 = vpack.c.b16 %v3595, %v3593
    %v3614 = vpack.c.b16 %v3596, %v3594
    %v3615 = vpack.c.b16 %v3599, %v3597
    %v3616 = vpack.c.b16 %v3600, %v3598
    %v3665 = vunpack.c.l.b16 %v3537
    %v3666 = vunpack.c.l.b16 %v3538
    %v3667 = vunpack.c.l.b16 %v3539
    %v3668 = vunpack.c.l.b16 %v3540
    %v3669 = vunpack.c.l.b16 %v3541
    %v3670 = vunpack.c.l.b16 %v3542
    %v3671 = vunpack.c.l.b16 %v3543
    %v3672 = vunpack.c.l.b16 %v3544
    %v3673 = vunpack.c.l.b16 %v3545
    %v3674 = vunpack.c.l.b16 %v3546
    %v3675 = vunpack.c.l.b16 %v3547
    %v3676 = vunpack.c.l.b16 %v3548
    %v3677 = vunpack.c.l.b16 %v3549
    %v3678 = vunpack.c.l.b16 %v3550
    %v3679 = vunpack.c.l.b16 %v3551
    %v3680 = vunpack.c.l.b16 %v3552
    %v3681 = vunpack.c.l.b16 %v3553
    %v3682 = vunpack.c.l.b16 %v3554
    %v3683 = vunpack.c.l.b16 %v3555
    %v3684 = vunpack.c.l.b16 %v3556
    %v3685 = vunpack.c.l.b16 %v3557
    %v3686 = vunpack.c.l.b16 %v3558
    %v3687 = vunpack.c.l.b16 %v3559
    %v3688 = vunpack.c.l.b16 %v3560
    %v3689 = vunpack.c.l.b16 %v3561
    %v3690 = vunpack.c.l.b16 %v3562
    %v3691 = vunpack.c.l.b16 %v3563
    %v3692 = vunpack.c.l.b16 %v3564
    %v3693 = vunpack.c.l.b16 %v3565
    %v3694 = vunpack.c.l.b16 %v3566
    %v3695 = vunpack.c.l.b16 %v3567
    %v3696 = vunpack.c.l.b16 %v3568
    %v3697 = vpack.c.b16 %v3666, %v3665
    %v3698 = vpack.c.b16 %v3668, %v3667
    %v3699 = vpack.c.b16 %v3670, %v3669
    %v3700 = vpack.c.b16 %v3672, %v3671
    %v3701 = vpack.c.b16 %v3674, %v3673
    %v3702 = vpack.c.b16 %v3676, %v3675
    %v3703 = vpack.c.b16 %v3678, %v3677
    %v3704 = vpack.c.b16 %v3680, %v3679
    %v3705 = vpack.c.b16 %v3682, %v3681
    %v3706 = vpack.c.b16 %v3684, %v3683
    %v3707 = vpack.c.b16 %v3686, %v3685
    %v3708 = vpack.c.b16 %v3688, %v3687
    %v3709 = vpack.c.b16 %v3690, %v3689
    %v3710 = vpack.c.b16 %v3692, %v3691
    %v3711 = vpack.c.b16 %v3694, %v3693
    %v3712 = vpack.c.b16 %v3696, %v3695
    %3729 = vmatpush.bf16.msra.mxu0 %v3704
    %3730 = vmatpush.bf16.msra.mxu0 %v3703
    %3731 = vmatpush.bf16.msra.mxu0 %v3702
    %3732 = vmatpush.bf16.msra.mxu0 %v3701
    %3733 = vmatpush.bf16.msra.mxu0 %v3700
    %3734 = vmatpush.bf16.msra.mxu0 %v3699
    %3735 = vmatpush.bf16.msra.mxu0 %v3698
    %3736 = vmatpush.bf16.msra.mxu0 %v3697
    %3737 = vmatmul.bf16.gmra.mxu0 %v3601
    %v3738 = vpop.f32.mrf.mxu0
    %v3739 = vadd.f32 0.0, %v3738
    %v3740 = vpop.f32.mrf.mxu0
    %v3741 = vadd.f32 0.0, %v3740
    %3742 = vmatmul.bf16.gmra.mxu0 %v3603
    %v3743 = vpop.f32.mrf.mxu0
    %v3744 = vadd.f32 0.0, %v3743
    %v3745 = vpop.f32.mrf.mxu0
    %v3746 = vadd.f32 0.0, %v3745
    %3747 = vmatmul.bf16.gmra.mxu0 %v3605
    %v3748 = vpop.f32.mrf.mxu0
    %v3749 = vadd.f32 0.0, %v3748
    %v3750 = vpop.f32.mrf.mxu0
    %v3751 = vadd.f32 0.0, %v3750
    %3752 = vmatmul.bf16.gmra.mxu0 %v3607
    %v3753 = vpop.f32.mrf.mxu0
    %v3754 = vadd.f32 0.0, %v3753
    %v3755 = vpop.f32.mrf.mxu0
    %v3756 = vadd.f32 0.0, %v3755
    %3757 = vmatmul.bf16.gmra.mxu0 %v3609
    %v3758 = vpop.f32.mrf.mxu0
    %v3759 = vadd.f32 0.0, %v3758
    %v3760 = vpop.f32.mrf.mxu0
    %v3761 = vadd.f32 0.0, %v3760
    %3762 = vmatmul.bf16.gmra.mxu0 %v3611
    %v3763 = vpop.f32.mrf.mxu0
    %v3764 = vadd.f32 0.0, %v3763
    %v3765 = vpop.f32.mrf.mxu0
    %v3766 = vadd.f32 0.0, %v3765
    %3767 = vmatmul.bf16.gmra.mxu0 %v3613
    %v3768 = vpop.f32.mrf.mxu0
    %v3769 = vadd.f32 0.0, %v3768
    %v3770 = vpop.f32.mrf.mxu0
    %v3771 = vadd.f32 0.0, %v3770
    %3772 = vmatmul.bf16.gmra.mxu0 %v3615
    %v3773 = vpop.f32.mrf.mxu0
    %v3774 = vadd.f32 0.0, %v3773
    %v3775 = vpop.f32.mrf.mxu0
    %v3776 = vadd.f32 0.0, %v3775
    %3777 = vdwg.mxu0
    %3778 = vmatpush.bf16.msra.mxu0 %v3712
    %3779 = vmatpush.bf16.msra.mxu0 %v3711
    %3780 = vmatpush.bf16.msra.mxu0 %v3710
    %3781 = vmatpush.bf16.msra.mxu0 %v3709
    %3782 = vmatpush.bf16.msra.mxu0 %v3708
    %3783 = vmatpush.bf16.msra.mxu0 %v3707
    %3784 = vmatpush.bf16.msra.mxu0 %v3706
    %3785 = vmatpush.bf16.msra.mxu0 %v3705
    %3786 = vmatmul.bf16.gmra.mxu0 %v3602
    %v3787 = vpop.f32.mrf.mxu0
    %v3788 = vadd.f32 %v3739, %v3787
    %v3789 = vpop.f32.mrf.mxu0
    %v3790 = vadd.f32 %v3741, %v3789
    %3791 = vmatmul.bf16.gmra.mxu0 %v3604
    %v3792 = vpop.f32.mrf.mxu0
    %v3793 = vadd.f32 %v3744, %v3792
    %v3794 = vpop.f32.mrf.mxu0
    %v3795 = vadd.f32 %v3746, %v3794
    %3796 = vmatmul.bf16.gmra.mxu0 %v3606
    %v3797 = vpop.f32.mrf.mxu0
    %v3798 = vadd.f32 %v3749, %v3797
    %v3799 = vpop.f32.mrf.mxu0
    %v3800 = vadd.f32 %v3751, %v3799
    %3801 = vmatmul.bf16.gmra.mxu0 %v3608
    %v3802 = vpop.f32.mrf.mxu0
    %v3803 = vadd.f32 %v3754, %v3802
    %v3804 = vpop.f32.mrf.mxu0
    %v3805 = vadd.f32 %v3756, %v3804
    %3806 = vmatmul.bf16.gmra.mxu0 %v3610
    %v3807 = vpop.f32.mrf.mxu0
    %v3808 = vadd.f32 %v3759, %v3807
    %v3809 = vpop.f32.mrf.mxu0
    %v3810 = vadd.f32 %v3761, %v3809
    %3811 = vmatmul.bf16.gmra.mxu0 %v3612
    %v3812 = vpop.f32.mrf.mxu0
    %v3813 = vadd.f32 %v3764, %v3812
    %v3814 = vpop.f32.mrf.mxu0
    %v3815 = vadd.f32 %v3766, %v3814
    %3816 = vmatmul.bf16.gmra.mxu0 %v3614
    %v3817 = vpop.f32.mrf.mxu0
    %v3818 = vadd.f32 %v3769, %v3817
    %v3819 = vpop.f32.mrf.mxu0
    %v3820 = vadd.f32 %v3771, %v3819
    %3821 = vmatmul.bf16.gmra.mxu0 %v3616
    %v3822 = vpop.f32.mrf.mxu0
    %v3823 = vadd.f32 %v3774, %v3822
    %v3824 = vpop.f32.mrf.mxu0
    %v3825 = vadd.f32 %v3776, %v3824
    %3826 = vdwg.mxu0
    %v3827 = vadd.f32 %v2957, %v3788
    %v3828 = vadd.f32 %v2958, %v3790
    %v3829 = vadd.f32 %v2959, %v3793
    %v3830 = vadd.f32 %v2960, %v3795
    %v3831 = vadd.f32 %v2961, %v3798
    %v3832 = vadd.f32 %v2962, %v3800
    %v3833 = vadd.f32 %v2963, %v3803
    %v3834 = vadd.f32 %v2964, %v3805
    %v3835 = vadd.f32 %v2965, %v3808
    %v3836 = vadd.f32 %v2966, %v3810
    %v3837 = vadd.f32 %v2967, %v3813
    %v3838 = vadd.f32 %v2968, %v3815
    %v3839 = vadd.f32 %v2969, %v3818
    %v3840 = vadd.f32 %v2970, %v3820
    %v3841 = vadd.f32 %v2971, %v3823
    %v3842 = vadd.f32 %v2972, %v3825
    %v3843 = vld [vmem:[%s2422 + $0x4] sm:$0x3]
    %v3844 = vld [vmem:[%s2422 + $0xc] sm:$0x3]
    %v3845 = vld [vmem:[%s2422 + $0x14] sm:$0x3]
    %v3846 = vld [vmem:[%s2422 + $0x1c] sm:$0x3]
    %v3847 = vld [vmem:[%s2422 + $0x24] sm:$0x3]
    %v3848 = vld [vmem:[%s2422 + $0x2c] sm:$0x3]
    %v3849 = vld [vmem:[%s2422 + $0x34] sm:$0x3]
    %v3850 = vld [vmem:[%s2422 + $0x3c] sm:$0x3]
    %v3851 = vld [vmem:[%s2422 + $0x64] sm:$0x3]
    %v3852 = vld [vmem:[%s2422 + $0x6c] sm:$0x3]
    %v3853 = vld [vmem:[%s2422 + $0x74] sm:$0x3]
    %v3854 = vld [vmem:[%s2422 + $0x7c] sm:$0x3]
    %v3855 = vld [vmem:[%s2422 + $0x84] sm:$0x3]
    %v3856 = vld [vmem:[%s2422 + $0x8c] sm:$0x3]
    %v3857 = vld [vmem:[%s2422 + $0x94] sm:$0x3]
    %v3858 = vld [vmem:[%s2422 + $0x9c] sm:$0x3]
    %v3859 = vld [vmem:[%s2422] sm:$0xc]
    %v3860 = vld [vmem:[%s2422 + $0x8] sm:$0xc]
    %v3861 = vld [vmem:[%s2422 + $0x10] sm:$0xc]
    %v3862 = vld [vmem:[%s2422 + $0x18] sm:$0xc]
    %v3863 = vld [vmem:[%s2422 + $0x20] sm:$0xc]
    %v3864 = vld [vmem:[%s2422 + $0x28] sm:$0xc]
    %v3865 = vld [vmem:[%s2422 + $0x30] sm:$0xc]
    %v3866 = vld [vmem:[%s2422 + $0x38] sm:$0xc]
    %v3867 = vld [vmem:[%s2422 + $0x60] sm:$0xc]
    %v3868 = vld [vmem:[%s2422 + $0x68] sm:$0xc]
    %v3869 = vld [vmem:[%s2422 + $0x70] sm:$0xc]
    %v3870 = vld [vmem:[%s2422 + $0x78] sm:$0xc]
    %v3871 = vld [vmem:[%s2422 + $0x80] sm:$0xc]
    %v3872 = vld [vmem:[%s2422 + $0x88] sm:$0xc]
    %v3873 = vld [vmem:[%s2422 + $0x90] sm:$0xc]
    %v3874 = vld [vmem:[%s2422 + $0x98] sm:$0xc]
    %v3891 = vunpack.c.l.b16 %v3843
    %v3892 = vunpack.c.l.b16 %v3844
    %v3893 = vunpack.c.l.b16 %v3845
    %v3894 = vunpack.c.l.b16 %v3846
    %v3895 = vunpack.c.l.b16 %v3847
    %v3896 = vunpack.c.l.b16 %v3848
    %v3897 = vunpack.c.l.b16 %v3849
    %v3898 = vunpack.c.l.b16 %v3850
    %v3899 = vunpack.c.l.b16 %v3851
    %v3900 = vunpack.c.l.b16 %v3852
    %v3901 = vunpack.c.l.b16 %v3853
    %v3902 = vunpack.c.l.b16 %v3854
    %v3903 = vunpack.c.l.b16 %v3855
    %v3904 = vunpack.c.l.b16 %v3856
    %v3905 = vunpack.c.l.b16 %v3857
    %v3906 = vunpack.c.l.b16 %v3858
    %v3923 = vunpack.c.l.b16 %v3859
    %v3924 = vunpack.c.l.b16 %v3860
    %v3925 = vunpack.c.l.b16 %v3861
    %v3926 = vunpack.c.l.b16 %v3862
    %v3927 = vunpack.c.l.b16 %v3863
    %v3928 = vunpack.c.l.b16 %v3864
    %v3929 = vunpack.c.l.b16 %v3865
    %v3930 = vunpack.c.l.b16 %v3866
    %v3931 = vunpack.c.l.b16 %v3867
    %v3932 = vunpack.c.l.b16 %v3868
    %v3933 = vunpack.c.l.b16 %v3869
    %v3934 = vunpack.c.l.b16 %v3870
    %v3935 = vunpack.c.l.b16 %v3871
    %v3936 = vunpack.c.l.b16 %v3872
    %v3937 = vunpack.c.l.b16 %v3873
    %v3938 = vunpack.c.l.b16 %v3874
    %v3939 = vpack.c.b16 %v3891, %v3923
    %v3940 = vpack.c.b16 %v3892, %v3924
    %v3941 = vpack.c.b16 %v3893, %v3925
    %v3942 = vpack.c.b16 %v3894, %v3926
    %v3943 = vpack.c.b16 %v3895, %v3927
    %v3944 = vpack.c.b16 %v3896, %v3928
    %v3945 = vpack.c.b16 %v3897, %v3929
    %v3946 = vpack.c.b16 %v3898, %v3930
    %v3947 = vpack.c.b16 %v3899, %v3931
    %v3948 = vpack.c.b16 %v3900, %v3932
    %v3949 = vpack.c.b16 %v3901, %v3933
    %v3950 = vpack.c.b16 %v3902, %v3934
    %v3951 = vpack.c.b16 %v3903, %v3935
    %v3952 = vpack.c.b16 %v3904, %v3936
    %v3953 = vpack.c.b16 %v3905, %v3937
    %v3954 = vpack.c.b16 %v3906, %v3938
    %v3956 = vshrl.u32 %v3939, 16
    %v3958 = vshll.u32 %v3939, 16
    %v3960 = vrot.slane %v3958, 1
    %v3961 = vor.u32 %v3956, %v3960
    %v3963 = vshrl.u32 %v3940, 16
    %v3965 = vshll.u32 %v3940, 16
    %v3967 = vrot.slane %v3965, 1
    %v3968 = vor.u32 %v3963, %v3967
    %v3970 = vshrl.u32 %v3941, 16
    %v3972 = vshll.u32 %v3941, 16
    %v3974 = vrot.slane %v3972, 1
    %v3975 = vor.u32 %v3970, %v3974
    %v3977 = vshrl.u32 %v3942, 16
    %v3979 = vshll.u32 %v3942, 16
    %v3981 = vrot.slane %v3979, 1
    %v3982 = vor.u32 %v3977, %v3981
    %v3984 = vshrl.u32 %v3943, 16
    %v3986 = vshll.u32 %v3943, 16
    %v3988 = vrot.slane %v3986, 1
    %v3989 = vor.u32 %v3984, %v3988
    %v3991 = vshrl.u32 %v3944, 16
    %v3993 = vshll.u32 %v3944, 16
    %v3995 = vrot.slane %v3993, 1
    %v3996 = vor.u32 %v3991, %v3995
    %v3998 = vshrl.u32 %v3945, 16
    %v4000 = vshll.u32 %v3945, 16
    %v4002 = vrot.slane %v4000, 1
    %v4003 = vor.u32 %v3998, %v4002
    %v4005 = vshrl.u32 %v3946, 16
    %v4007 = vshll.u32 %v3946, 16
    %v4009 = vrot.slane %v4007, 1
    %v4010 = vor.u32 %v4005, %v4009
    %v4012 = vshrl.u32 %v3947, 16
    %v4014 = vshll.u32 %v3947, 16
    %v4016 = vrot.slane %v4014, 1
    %v4017 = vor.u32 %v4012, %v4016
    %v4019 = vshrl.u32 %v3948, 16
    %v4021 = vshll.u32 %v3948, 16
    %v4023 = vrot.slane %v4021, 1
    %v4024 = vor.u32 %v4019, %v4023
    %v4026 = vshrl.u32 %v3949, 16
    %v4028 = vshll.u32 %v3949, 16
    %v4030 = vrot.slane %v4028, 1
    %v4031 = vor.u32 %v4026, %v4030
    %v4033 = vshrl.u32 %v3950, 16
    %v4035 = vshll.u32 %v3950, 16
    %v4037 = vrot.slane %v4035, 1
    %v4038 = vor.u32 %v4033, %v4037
    %v4040 = vshrl.u32 %v3951, 16
    %v4042 = vshll.u32 %v3951, 16
    %v4044 = vrot.slane %v4042, 1
    %v4045 = vor.u32 %v4040, %v4044
    %v4047 = vshrl.u32 %v3952, 16
    %v4049 = vshll.u32 %v3952, 16
    %v4051 = vrot.slane %v4049, 1
    %v4052 = vor.u32 %v4047, %v4051
    %v4054 = vshrl.u32 %v3953, 16
    %v4056 = vshll.u32 %v3953, 16
    %v4058 = vrot.slane %v4056, 1
    %v4059 = vor.u32 %v4054, %v4058
    %v4061 = vshrl.u32 %v3954, 16
    %v4063 = vshll.u32 %v3954, 16
    %v4065 = vrot.slane %v4063, 1
    %v4066 = vor.u32 %v4061, %v4065
    %v4067 = vunpack.c.l.b16 %v3961
    %v4068 = vunpack.c.h.b16 %v3961
    %v4069 = vunpack.c.l.b16 %v3968
    %v4070 = vunpack.c.h.b16 %v3968
    %v4071 = vunpack.c.l.b16 %v3975
    %v4072 = vunpack.c.h.b16 %v3975
    %v4073 = vunpack.c.l.b16 %v3982
    %v4074 = vunpack.c.h.b16 %v3982
    %v4075 = vunpack.c.l.b16 %v3989
    %v4076 = vunpack.c.h.b16 %v3989
    %v4077 = vunpack.c.l.b16 %v3996
    %v4078 = vunpack.c.h.b16 %v3996
    %v4079 = vunpack.c.l.b16 %v4003
    %v4080 = vunpack.c.h.b16 %v4003
    %v4081 = vunpack.c.l.b16 %v4010
    %v4082 = vunpack.c.h.b16 %v4010
    %v4083 = vunpack.c.l.b16 %v4017
    %v4084 = vunpack.c.h.b16 %v4017
    %v4085 = vunpack.c.l.b16 %v4024
    %v4086 = vunpack.c.h.b16 %v4024
    %v4087 = vunpack.c.l.b16 %v4031
    %v4088 = vunpack.c.h.b16 %v4031
    %v4089 = vunpack.c.l.b16 %v4038
    %v4090 = vunpack.c.h.b16 %v4038
    %v4091 = vunpack.c.l.b16 %v4045
    %v4092 = vunpack.c.h.b16 %v4045
    %v4093 = vunpack.c.l.b16 %v4052
    %v4094 = vunpack.c.h.b16 %v4052
    %v4095 = vunpack.c.l.b16 %v4059
    %v4096 = vunpack.c.h.b16 %v4059
    %v4097 = vunpack.c.l.b16 %v4066
    %v4098 = vunpack.c.h.b16 %v4066
    %v4099 = vpack.c.b16 %v4067, %v3101
    %v4100 = vpack.c.b16 %v4068, %v3891
    %v4101 = vpack.c.b16 %v4069, %v3102
    %v4102 = vpack.c.b16 %v4070, %v3892
    %v4103 = vpack.c.b16 %v4071, %v3103
    %v4104 = vpack.c.b16 %v4072, %v3893
    %v4105 = vpack.c.b16 %v4073, %v3104
    %v4106 = vpack.c.b16 %v4074, %v3894
    %v4107 = vpack.c.b16 %v4075, %v3105
    %v4108 = vpack.c.b16 %v4076, %v3895
    %v4109 = vpack.c.b16 %v4077, %v3106
    %v4110 = vpack.c.b16 %v4078, %v3896
    %v4111 = vpack.c.b16 %v4079, %v3107
    %v4112 = vpack.c.b16 %v4080, %v3897
    %v4113 = vpack.c.b16 %v4081, %v3108
    %v4114 = vpack.c.b16 %v4082, %v3898
    %v4115 = vpack.c.b16 %v4083, %v3109
    %v4116 = vpack.c.b16 %v4084, %v3899
    %v4117 = vpack.c.b16 %v4085, %v3110
    %v4118 = vpack.c.b16 %v4086, %v3900
    %v4119 = vpack.c.b16 %v4087, %v3111
    %v4120 = vpack.c.b16 %v4088, %v3901
    %v4121 = vpack.c.b16 %v4089, %v3112
    %v4122 = vpack.c.b16 %v4090, %v3902
    %v4123 = vpack.c.b16 %v4091, %v3113
    %v4124 = vpack.c.b16 %v4092, %v3903
    %v4125 = vpack.c.b16 %v4093, %v3114
    %v4126 = vpack.c.b16 %v4094, %v3904
    %v4127 = vpack.c.b16 %v4095, %v3115
    %v4128 = vpack.c.b16 %v4096, %v3905
    %v4129 = vpack.c.b16 %v4097, %v3116
    %v4130 = vpack.c.b16 %v4098, %v3906
    %vm4131 = vsmask.f32 2304
    %vm4132 = vsmask.f32 6416
    %vm4133 = vmor %vm4131, %vm4132
    %v4135 = vshrl.u32 %v4099, 16
    %v4137 = vrot.slane %v4135, 5
    %v4138 = vshll.u32 %v4099, 16
    %v4140 = vrot.slane %v4138, 6
    %v4141 = vor.u32 %v4137, %v4140
    %v4142 = vrot.slane %v4141, 4
    %v4144 = vshrl.u32 %v4100, 16
    %v4146 = vrot.slane %v4144, 5
    %v4147 = vshll.u32 %v4100, 16
    %v4149 = vrot.slane %v4147, 6
    %v4150 = vor.u32 %v4146, %v4149
    %v4151 = vsel %vm4133, %v4142, %v4150
    %v4153 = vshrl.u32 %v4101, 16
    %v4155 = vrot.slane %v4153, 5
    %v4156 = vshll.u32 %v4101, 16
    %v4158 = vrot.slane %v4156, 6
    %v4159 = vor.u32 %v4155, %v4158
    %v4160 = vrot.slane %v4159, 4
    %v4162 = vshrl.u32 %v4102, 16
    %v4164 = vrot.slane %v4162, 5
    %v4165 = vshll.u32 %v4102, 16
    %v4167 = vrot.slane %v4165, 6
    %v4168 = vor.u32 %v4164, %v4167
    %v4169 = vsel %vm4133, %v4160, %v4168
    %v4171 = vshrl.u32 %v4103, 16
    %v4173 = vrot.slane %v4171, 5
    %v4174 = vshll.u32 %v4103, 16
    %v4176 = vrot.slane %v4174, 6
    %v4177 = vor.u32 %v4173, %v4176
    %v4178 = vrot.slane %v4177, 4
    %v4180 = vshrl.u32 %v4104, 16
    %v4182 = vrot.slane %v4180, 5
    %v4183 = vshll.u32 %v4104, 16
    %v4185 = vrot.slane %v4183, 6
    %v4186 = vor.u32 %v4182, %v4185
    %v4187 = vsel %vm4133, %v4178, %v4186
    %v4189 = vshrl.u32 %v4105, 16
    %v4191 = vrot.slane %v4189, 5
    %v4192 = vshll.u32 %v4105, 16
    %v4194 = vrot.slane %v4192, 6
    %v4195 = vor.u32 %v4191, %v4194
    %v4196 = vrot.slane %v4195, 4
    %v4198 = vshrl.u32 %v4106, 16
    %v4200 = vrot.slane %v4198, 5
    %v4201 = vshll.u32 %v4106, 16
    %v4203 = vrot.slane %v4201, 6
    %v4204 = vor.u32 %v4200, %v4203
    %v4205 = vsel %vm4133, %v4196, %v4204
    %v4207 = vshrl.u32 %v4107, 16
    %v4209 = vrot.slane %v4207, 5
    %v4210 = vshll.u32 %v4107, 16
    %v4212 = vrot.slane %v4210, 6
    %v4213 = vor.u32 %v4209, %v4212
    %v4214 = vrot.slane %v4213, 4
    %v4216 = vshrl.u32 %v4108, 16
    %v4218 = vrot.slane %v4216, 5
    %v4219 = vshll.u32 %v4108, 16
    %v4221 = vrot.slane %v4219, 6
    %v4222 = vor.u32 %v4218, %v4221
    %v4223 = vsel %vm4133, %v4214, %v4222
    %v4225 = vshrl.u32 %v4109, 16
    %v4227 = vrot.slane %v4225, 5
    %v4228 = vshll.u32 %v4109, 16
    %v4230 = vrot.slane %v4228, 6
    %v4231 = vor.u32 %v4227, %v4230
    %v4232 = vrot.slane %v4231, 4
    %v4234 = vshrl.u32 %v4110, 16
    %v4236 = vrot.slane %v4234, 5
    %v4237 = vshll.u32 %v4110, 16
    %v4239 = vrot.slane %v4237, 6
    %v4240 = vor.u32 %v4236, %v4239
    %v4241 = vsel %vm4133, %v4232, %v4240
    %v4243 = vshrl.u32 %v4111, 16
    %v4245 = vrot.slane %v4243, 5
    %v4246 = vshll.u32 %v4111, 16
    %v4248 = vrot.slane %v4246, 6
    %v4249 = vor.u32 %v4245, %v4248
    %v4250 = vrot.slane %v4249, 4
    %v4252 = vshrl.u32 %v4112, 16
    %v4254 = vrot.slane %v4252, 5
    %v4255 = vshll.u32 %v4112, 16
    %v4257 = vrot.slane %v4255, 6
    %v4258 = vor.u32 %v4254, %v4257
    %v4259 = vsel %vm4133, %v4250, %v4258
    %v4261 = vshrl.u32 %v4113, 16
    %v4263 = vrot.slane %v4261, 5
    %v4264 = vshll.u32 %v4113, 16
    %v4266 = vrot.slane %v4264, 6
    %v4267 = vor.u32 %v4263, %v4266
    %v4268 = vrot.slane %v4267, 4
    %v4270 = vshrl.u32 %v4114, 16
    %v4272 = vrot.slane %v4270, 5
    %v4273 = vshll.u32 %v4114, 16
    %v4275 = vrot.slane %v4273, 6
    %v4276 = vor.u32 %v4272, %v4275
    %v4277 = vsel %vm4133, %v4268, %v4276
    %v4279 = vshrl.u32 %v4115, 16
    %v4281 = vrot.slane %v4279, 5
    %v4282 = vshll.u32 %v4115, 16
    %v4284 = vrot.slane %v4282, 6
    %v4285 = vor.u32 %v4281, %v4284
    %v4286 = vrot.slane %v4285, 4
    %v4288 = vshrl.u32 %v4116, 16
    %v4290 = vrot.slane %v4288, 5
    %v4291 = vshll.u32 %v4116, 16
    %v4293 = vrot.slane %v4291, 6
    %v4294 = vor.u32 %v4290, %v4293
    %v4295 = vsel %vm4133, %v4286, %v4294
    %v4297 = vshrl.u32 %v4117, 16
    %v4299 = vrot.slane %v4297, 5
    %v4300 = vshll.u32 %v4117, 16
    %v4302 = vrot.slane %v4300, 6
    %v4303 = vor.u32 %v4299, %v4302
    %v4304 = vrot.slane %v4303, 4
    %v4306 = vshrl.u32 %v4118, 16
    %v4308 = vrot.slane %v4306, 5
    %v4309 = vshll.u32 %v4118, 16
    %v4311 = vrot.slane %v4309, 6
    %v4312 = vor.u32 %v4308, %v4311
    %v4313 = vsel %vm4133, %v4304, %v4312
    %v4315 = vshrl.u32 %v4119, 16
    %v4317 = vrot.slane %v4315, 5
    %v4318 = vshll.u32 %v4119, 16
    %v4320 = vrot.slane %v4318, 6
    %v4321 = vor.u32 %v4317, %v4320
    %v4322 = vrot.slane %v4321, 4
    %v4324 = vshrl.u32 %v4120, 16
    %v4326 = vrot.slane %v4324, 5
    %v4327 = vshll.u32 %v4120, 16
    %v4329 = vrot.slane %v4327, 6
    %v4330 = vor.u32 %v4326, %v4329
    %v4331 = vsel %vm4133, %v4322, %v4330
    %v4333 = vshrl.u32 %v4121, 16
    %v4335 = vrot.slane %v4333, 5
    %v4336 = vshll.u32 %v4121, 16
    %v4338 = vrot.slane %v4336, 6
    %v4339 = vor.u32 %v4335, %v4338
    %v4340 = vrot.slane %v4339, 4
    %v4342 = vshrl.u32 %v4122, 16
    %v4344 = vrot.slane %v4342, 5
    %v4345 = vshll.u32 %v4122, 16
    %v4347 = vrot.slane %v4345, 6
    %v4348 = vor.u32 %v4344, %v4347
    %v4349 = vsel %vm4133, %v4340, %v4348
    %v4351 = vshrl.u32 %v4123, 16
    %v4353 = vrot.slane %v4351, 5
    %v4354 = vshll.u32 %v4123, 16
    %v4356 = vrot.slane %v4354, 6
    %v4357 = vor.u32 %v4353, %v4356
    %v4358 = vrot.slane %v4357, 4
    %v4360 = vshrl.u32 %v4124, 16
    %v4362 = vrot.slane %v4360, 5
    %v4363 = vshll.u32 %v4124, 16
    %v4365 = vrot.slane %v4363, 6
    %v4366 = vor.u32 %v4362, %v4365
    %v4367 = vsel %vm4133, %v4358, %v4366
    %v4369 = vshrl.u32 %v4125, 16
    %v4371 = vrot.slane %v4369, 5
    %v4372 = vshll.u32 %v4125, 16
    %v4374 = vrot.slane %v4372, 6
    %v4375 = vor.u32 %v4371, %v4374
    %v4376 = vrot.slane %v4375, 4
    %v4378 = vshrl.u32 %v4126, 16
    %v4380 = vrot.slane %v4378, 5
    %v4381 = vshll.u32 %v4126, 16
    %v4383 = vrot.slane %v4381, 6
    %v4384 = vor.u32 %v4380, %v4383
    %v4385 = vsel %vm4133, %v4376, %v4384
    %v4387 = vshrl.u32 %v4127, 16
    %v4389 = vrot.slane %v4387, 5
    %v4390 = vshll.u32 %v4127, 16
    %v4392 = vrot.slane %v4390, 6
    %v4393 = vor.u32 %v4389, %v4392
    %v4394 = vrot.slane %v4393, 4
    %v4396 = vshrl.u32 %v4128, 16
    %v4398 = vrot.slane %v4396, 5
    %v4399 = vshll.u32 %v4128, 16
    %v4401 = vrot.slane %v4399, 6
    %v4402 = vor.u32 %v4398, %v4401
    %v4403 = vsel %vm4133, %v4394, %v4402
    %v4405 = vshrl.u32 %v4129, 16
    %v4407 = vrot.slane %v4405, 5
    %v4408 = vshll.u32 %v4129, 16
    %v4410 = vrot.slane %v4408, 6
    %v4411 = vor.u32 %v4407, %v4410
    %v4412 = vrot.slane %v4411, 4
    %v4414 = vshrl.u32 %v4130, 16
    %v4416 = vrot.slane %v4414, 5
    %v4417 = vshll.u32 %v4130, 16
    %v4419 = vrot.slane %v4417, 6
    %v4420 = vor.u32 %v4416, %v4419
    %v4421 = vsel %vm4133, %v4412, %v4420
    %s4422 = scalar_lea.vmem [#allocation7], 512
    %v4423 = vld [vmem:[%s4422] sm:$0xf]
    %v4424 = vld [vmem:[%s4422 + $0x4] sm:$0xf]
    %v4425 = vld [vmem:[%s4422 + $0x8] sm:$0xf]
    %v4426 = vld [vmem:[%s4422 + $0xc] sm:$0xf]
    %v4427 = vld [vmem:[%s4422 + $0x10] sm:$0xf]
    %v4428 = vld [vmem:[%s4422 + $0x14] sm:$0xf]
    %v4429 = vld [vmem:[%s4422 + $0x18] sm:$0xf]
    %v4430 = vld [vmem:[%s4422 + $0x1c] sm:$0xf]
    %v4431 = vld [vmem:[%s4422 + $0x20] sm:$0xf]
    %v4432 = vld [vmem:[%s4422 + $0x24] sm:$0xf]
    %v4433 = vld [vmem:[%s4422 + $0x28] sm:$0xf]
    %v4434 = vld [vmem:[%s4422 + $0x2c] sm:$0xf]
    %v4435 = vld [vmem:[%s4422 + $0x30] sm:$0xf]
    %v4436 = vld [vmem:[%s4422 + $0x34] sm:$0xf]
    %v4437 = vld [vmem:[%s4422 + $0x38] sm:$0xf]
    %v4438 = vld [vmem:[%s4422 + $0x3c] sm:$0xf]
    %v4439 = vld [vmem:[%s4422 + $0x40] sm:$0xf]
    %v4440 = vld [vmem:[%s4422 + $0x44] sm:$0xf]
    %v4441 = vld [vmem:[%s4422 + $0x48] sm:$0xf]
    %v4442 = vld [vmem:[%s4422 + $0x4c] sm:$0xf]
    %v4443 = vld [vmem:[%s4422 + $0x50] sm:$0xf]
    %v4444 = vld [vmem:[%s4422 + $0x54] sm:$0xf]
    %v4445 = vld [vmem:[%s4422 + $0x58] sm:$0xf]
    %v4446 = vld [vmem:[%s4422 + $0x5c] sm:$0xf]
    %v4447 = vld [vmem:[%s4422 + $0x60] sm:$0xf]
    %v4448 = vld [vmem:[%s4422 + $0x64] sm:$0xf]
    %v4449 = vld [vmem:[%s4422 + $0x68] sm:$0xf]
    %v4450 = vld [vmem:[%s4422 + $0x6c] sm:$0xf]
    %v4451 = vld [vmem:[%s4422 + $0x70] sm:$0xf]
    %v4452 = vld [vmem:[%s4422 + $0x74] sm:$0xf]
    %v4453 = vld [vmem:[%s4422 + $0x78] sm:$0xf]
    %v4454 = vld [vmem:[%s4422 + $0x7c] sm:$0xf]
    %v4455 = vunpack.c.l.b16 %v4151
    %v4456 = vunpack.c.h.b16 %v4151
    %v4457 = vunpack.c.l.b16 %v4169
    %v4458 = vunpack.c.h.b16 %v4169
    %v4459 = vunpack.c.l.b16 %v4187
    %v4460 = vunpack.c.h.b16 %v4187
    %v4461 = vunpack.c.l.b16 %v4205
    %v4462 = vunpack.c.h.b16 %v4205
    %v4463 = vunpack.c.l.b16 %v4223
    %v4464 = vunpack.c.h.b16 %v4223
    %v4465 = vunpack.c.l.b16 %v4241
    %v4466 = vunpack.c.h.b16 %v4241
    %v4467 = vunpack.c.l.b16 %v4259
    %v4468 = vunpack.c.h.b16 %v4259
    %v4469 = vunpack.c.l.b16 %v4277
    %v4470 = vunpack.c.h.b16 %v4277
    %v4471 = vunpack.c.l.b16 %v4295
    %v4472 = vunpack.c.h.b16 %v4295
    %v4473 = vunpack.c.l.b16 %v4313
    %v4474 = vunpack.c.h.b16 %v4313
    %v4475 = vunpack.c.l.b16 %v4331
    %v4476 = vunpack.c.h.b16 %v4331
    %v4477 = vunpack.c.l.b16 %v4349
    %v4478 = vunpack.c.h.b16 %v4349
    %v4479 = vunpack.c.l.b16 %v4367
    %v4480 = vunpack.c.h.b16 %v4367
    %v4481 = vunpack.c.l.b16 %v4385
    %v4482 = vunpack.c.h.b16 %v4385
    %v4483 = vunpack.c.l.b16 %v4403
    %v4484 = vunpack.c.h.b16 %v4403
    %v4485 = vunpack.c.l.b16 %v4421
    %v4486 = vunpack.c.h.b16 %v4421
    %v4487 = vpack.c.b16 %v4457, %v4455
    %v4488 = vpack.c.b16 %v4458, %v4456
    %v4489 = vpack.c.b16 %v4461, %v4459
    %v4490 = vpack.c.b16 %v4462, %v4460
    %v4491 = vpack.c.b16 %v4465, %v4463
    %v4492 = vpack.c.b16 %v4466, %v4464
    %v4493 = vpack.c.b16 %v4469, %v4467
    %v4494 = vpack.c.b16 %v4470, %v4468
    %v4495 = vpack.c.b16 %v4473, %v4471
    %v4496 = vpack.c.b16 %v4474, %v4472
    %v4497 = vpack.c.b16 %v4477, %v4475
    %v4498 = vpack.c.b16 %v4478, %v4476
    %v4499 = vpack.c.b16 %v4481, %v4479
    %v4500 = vpack.c.b16 %v4482, %v4480
    %v4501 = vpack.c.b16 %v4485, %v4483
    %v4502 = vpack.c.b16 %v4486, %v4484
    %v4551 = vunpack.c.l.b16 %v4423
    %v4552 = vunpack.c.l.b16 %v4424
    %v4553 = vunpack.c.l.b16 %v4425
    %v4554 = vunpack.c.l.b16 %v4426
    %v4555 = vunpack.c.l.b16 %v4427
    %v4556 = vunpack.c.l.b16 %v4428
    %v4557 = vunpack.c.l.b16 %v4429
    %v4558 = vunpack.c.l.b16 %v4430
    %v4559 = vunpack.c.l.b16 %v4431
    %v4560 = vunpack.c.l.b16 %v4432
    %v4561 = vunpack.c.l.b16 %v4433
    %v4562 = vunpack.c.l.b16 %v4434
    %v4563 = vunpack.c.l.b16 %v4435
    %v4564 = vunpack.c.l.b16 %v4436
    %v4565 = vunpack.c.l.b16 %v4437
    %v4566 = vunpack.c.l.b16 %v4438
    %v4567 = vunpack.c.l.b16 %v4439
    %v4568 = vunpack.c.l.b16 %v4440
    %v4569 = vunpack.c.l.b16 %v4441
    %v4570 = vunpack.c.l.b16 %v4442
    %v4571 = vunpack.c.l.b16 %v4443
    %v4572 = vunpack.c.l.b16 %v4444
    %v4573 = vunpack.c.l.b16 %v4445
    %v4574 = vunpack.c.l.b16 %v4446
    %v4575 = vunpack.c.l.b16 %v4447
    %v4576 = vunpack.c.l.b16 %v4448
    %v4577 = vunpack.c.l.b16 %v4449
    %v4578 = vunpack.c.l.b16 %v4450
    %v4579 = vunpack.c.l.b16 %v4451
    %v4580 = vunpack.c.l.b16 %v4452
    %v4581 = vunpack.c.l.b16 %v4453
    %v4582 = vunpack.c.l.b16 %v4454
    %v4583 = vpack.c.b16 %v4552, %v4551
    %v4584 = vpack.c.b16 %v4554, %v4553
    %v4585 = vpack.c.b16 %v4556, %v4555
    %v4586 = vpack.c.b16 %v4558, %v4557
    %v4587 = vpack.c.b16 %v4560, %v4559
    %v4588 = vpack.c.b16 %v4562, %v4561
    %v4589 = vpack.c.b16 %v4564, %v4563
    %v4590 = vpack.c.b16 %v4566, %v4565
    %v4591 = vpack.c.b16 %v4568, %v4567
    %v4592 = vpack.c.b16 %v4570, %v4569
    %v4593 = vpack.c.b16 %v4572, %v4571
    %v4594 = vpack.c.b16 %v4574, %v4573
    %v4595 = vpack.c.b16 %v4576, %v4575
    %v4596 = vpack.c.b16 %v4578, %v4577
    %v4597 = vpack.c.b16 %v4580, %v4579
    %v4598 = vpack.c.b16 %v4582, %v4581
    %4615 = vmatpush.bf16.msra.mxu0 %v4590
    %4616 = vmatpush.bf16.msra.mxu0 %v4589
    %4617 = vmatpush.bf16.msra.mxu0 %v4588
    %4618 = vmatpush.bf16.msra.mxu0 %v4587
    %4619 = vmatpush.bf16.msra.mxu0 %v4586
    %4620 = vmatpush.bf16.msra.mxu0 %v4585
    %4621 = vmatpush.bf16.msra.mxu0 %v4584
    %4622 = vmatpush.bf16.msra.mxu0 %v4583
    %4623 = vmatmul.bf16.gmra.mxu0 %v4487
    %v4624 = vpop.f32.mrf.mxu0
    %v4625 = vadd.f32 0.0, %v4624
    %v4626 = vpop.f32.mrf.mxu0
    %v4627 = vadd.f32 0.0, %v4626
    %4628 = vmatmul.bf16.gmra.mxu0 %v4489
    %v4629 = vpop.f32.mrf.mxu0
    %v4630 = vadd.f32 0.0, %v4629
    %v4631 = vpop.f32.mrf.mxu0
    %v4632 = vadd.f32 0.0, %v4631
    %4633 = vmatmul.bf16.gmra.mxu0 %v4491
    %v4634 = vpop.f32.mrf.mxu0
    %v4635 = vadd.f32 0.0, %v4634
    %v4636 = vpop.f32.mrf.mxu0
    %v4637 = vadd.f32 0.0, %v4636
    %4638 = vmatmul.bf16.gmra.mxu0 %v4493
    %v4639 = vpop.f32.mrf.mxu0
    %v4640 = vadd.f32 0.0, %v4639
    %v4641 = vpop.f32.mrf.mxu0
    %v4642 = vadd.f32 0.0, %v4641
    %4643 = vmatmul.bf16.gmra.mxu0 %v4495
    %v4644 = vpop.f32.mrf.mxu0
    %v4645 = vadd.f32 0.0, %v4644
    %v4646 = vpop.f32.mrf.mxu0
    %v4647 = vadd.f32 0.0, %v4646
    %4648 = vmatmul.bf16.gmra.mxu0 %v4497
    %v4649 = vpop.f32.mrf.mxu0
    %v4650 = vadd.f32 0.0, %v4649
    %v4651 = vpop.f32.mrf.mxu0
    %v4652 = vadd.f32 0.0, %v4651
    %4653 = vmatmul.bf16.gmra.mxu0 %v4499
    %v4654 = vpop.f32.mrf.mxu0
    %v4655 = vadd.f32 0.0, %v4654
    %v4656 = vpop.f32.mrf.mxu0
    %v4657 = vadd.f32 0.0, %v4656
    %4658 = vmatmul.bf16.gmra.mxu0 %v4501
    %v4659 = vpop.f32.mrf.mxu0
    %v4660 = vadd.f32 0.0, %v4659
    %v4661 = vpop.f32.mrf.mxu0
    %v4662 = vadd.f32 0.0, %v4661
    %4663 = vdwg.mxu0
    %4664 = vmatpush.bf16.msra.mxu0 %v4598
    %4665 = vmatpush.bf16.msra.mxu0 %v4597
    %4666 = vmatpush.bf16.msra.mxu0 %v4596
    %4667 = vmatpush.bf16.msra.mxu0 %v4595
    %4668 = vmatpush.bf16.msra.mxu0 %v4594
    %4669 = vmatpush.bf16.msra.mxu0 %v4593
    %4670 = vmatpush.bf16.msra.mxu0 %v4592
    %4671 = vmatpush.bf16.msra.mxu0 %v4591
    %4672 = vmatmul.bf16.gmra.mxu0 %v4488
    %v4673 = vpop.f32.mrf.mxu0
    %v4674 = vadd.f32 %v4625, %v4673
    %v4675 = vpop.f32.mrf.mxu0
    %v4676 = vadd.f32 %v4627, %v4675
    %4677 = vmatmul.bf16.gmra.mxu0 %v4490
    %v4678 = vpop.f32.mrf.mxu0
    %v4679 = vadd.f32 %v4630, %v4678
    %v4680 = vpop.f32.mrf.mxu0
    %v4681 = vadd.f32 %v4632, %v4680
    %4682 = vmatmul.bf16.gmra.mxu0 %v4492
    %v4683 = vpop.f32.mrf.mxu0
    %v4684 = vadd.f32 %v4635, %v4683
    %v4685 = vpop.f32.mrf.mxu0
    %v4686 = vadd.f32 %v4637, %v4685
    %4687 = vmatmul.bf16.gmra.mxu0 %v4494
    %v4688 = vpop.f32.mrf.mxu0
    %v4689 = vadd.f32 %v4640, %v4688
    %v4690 = vpop.f32.mrf.mxu0
    %v4691 = vadd.f32 %v4642, %v4690
    %4692 = vmatmul.bf16.gmra.mxu0 %v4496
    %v4693 = vpop.f32.mrf.mxu0
    %v4694 = vadd.f32 %v4645, %v4693
    %v4695 = vpop.f32.mrf.mxu0
    %v4696 = vadd.f32 %v4647, %v4695
    %4697 = vmatmul.bf16.gmra.mxu0 %v4498
    %v4698 = vpop.f32.mrf.mxu0
    %v4699 = vadd.f32 %v4650, %v4698
    %v4700 = vpop.f32.mrf.mxu0
    %v4701 = vadd.f32 %v4652, %v4700
    %4702 = vmatmul.bf16.gmra.mxu0 %v4500
    %v4703 = vpop.f32.mrf.mxu0
    %v4704 = vadd.f32 %v4655, %v4703
    %v4705 = vpop.f32.mrf.mxu0
    %v4706 = vadd.f32 %v4657, %v4705
    %4707 = vmatmul.bf16.gmra.mxu0 %v4502
    %v4708 = vpop.f32.mrf.mxu0
    %v4709 = vadd.f32 %v4660, %v4708
    %v4710 = vpop.f32.mrf.mxu0
    %v4711 = vadd.f32 %v4662, %v4710
    %4712 = vdwg.mxu0
    %v4713 = vadd.f32 %v3827, %v4674
    %v4714 = vadd.f32 %v3828, %v4676
    %v4715 = vadd.f32 %v3829, %v4679
    %v4716 = vadd.f32 %v3830, %v4681
    %v4717 = vadd.f32 %v3831, %v4684
    %v4718 = vadd.f32 %v3832, %v4686
    %v4719 = vadd.f32 %v3833, %v4689
    %v4720 = vadd.f32 %v3834, %v4691
    %v4721 = vadd.f32 %v3835, %v4694
    %v4722 = vadd.f32 %v3836, %v4696
    %v4723 = vadd.f32 %v3837, %v4699
    %v4724 = vadd.f32 %v3838, %v4701
    %v4725 = vadd.f32 %v3839, %v4704
    %v4726 = vadd.f32 %v3840, %v4706
    %v4727 = vadd.f32 %v3841, %v4709
    %v4728 = vadd.f32 %v3842, %v4711
    %s4729 = scalar_lea.vmem [#allocation2], 16
    %v4730 = vld [vmem:[%s4729] sm:$0xf]
    %v4731 = vld [vmem:[%s4729 + $0x8] sm:$0xf]
    %v4732 = vld [vmem:[%s4729 + $0x10] sm:$0xf]
    %v4733 = vld [vmem:[%s4729 + $0x18] sm:$0xf]
    %v4734 = vld [vmem:[%s4729 + $0x20] sm:$0xf]
    %v4735 = vld [vmem:[%s4729 + $0x28] sm:$0xf]
    %v4736 = vld [vmem:[%s4729 + $0x30] sm:$0xf]
    %v4737 = vld [vmem:[%s4729 + $0x38] sm:$0xf]
    %v4738 = vld [vmem:[%s4729 + $0x60] sm:$0xf]
    %v4739 = vld [vmem:[%s4729 + $0x68] sm:$0xf]
    %v4740 = vld [vmem:[%s4729 + $0x70] sm:$0xf]
    %v4741 = vld [vmem:[%s4729 + $0x78] sm:$0xf]
    %v4742 = vld [vmem:[%s4729 + $0x80] sm:$0xf]
    %v4743 = vld [vmem:[%s4729 + $0x88] sm:$0xf]
    %v4744 = vld [vmem:[%s4729 + $0x90] sm:$0xf]
    %v4745 = vld [vmem:[%s4729 + $0x98] sm:$0xf]
    %v4746 = vld [vmem:[%s4729 + $0x4] sm:$0x1]
    %v4747 = vld [vmem:[%s4729 + $0xc] sm:$0x1]
    %v4748 = vld [vmem:[%s4729 + $0x14] sm:$0x1]
    %v4749 = vld [vmem:[%s4729 + $0x1c] sm:$0x1]
    %v4750 = vld [vmem:[%s4729 + $0x24] sm:$0x1]
    %v4751 = vld [vmem:[%s4729 + $0x2c] sm:$0x1]
    %v4752 = vld [vmem:[%s4729 + $0x34] sm:$0x1]
    %v4753 = vld [vmem:[%s4729 + $0x3c] sm:$0x1]
    %v4754 = vld [vmem:[%s4729 + $0x64] sm:$0x1]
    %v4755 = vld [vmem:[%s4729 + $0x6c] sm:$0x1]
    %v4756 = vld [vmem:[%s4729 + $0x74] sm:$0x1]
    %v4757 = vld [vmem:[%s4729 + $0x7c] sm:$0x1]
    %v4758 = vld [vmem:[%s4729 + $0x84] sm:$0x1]
    %v4759 = vld [vmem:[%s4729 + $0x8c] sm:$0x1]
    %v4760 = vld [vmem:[%s4729 + $0x94] sm:$0x1]
    %v4761 = vld [vmem:[%s4729 + $0x9c] sm:$0x1]
    %v4794 = vunpack.c.l.b16 %v4730
    %v4795 = vunpack.c.l.b16 %v4746
    %v4796 = vunpack.c.l.b16 %v4731
    %v4797 = vunpack.c.l.b16 %v4747
    %v4798 = vunpack.c.l.b16 %v4732
    %v4799 = vunpack.c.l.b16 %v4748
    %v4800 = vunpack.c.l.b16 %v4733
    %v4801 = vunpack.c.l.b16 %v4749
    %v4802 = vunpack.c.l.b16 %v4734
    %v4803 = vunpack.c.l.b16 %v4750
    %v4804 = vunpack.c.l.b16 %v4735
    %v4805 = vunpack.c.l.b16 %v4751
    %v4806 = vunpack.c.l.b16 %v4736
    %v4807 = vunpack.c.l.b16 %v4752
    %v4808 = vunpack.c.l.b16 %v4737
    %v4809 = vunpack.c.l.b16 %v4753
    %v4810 = vunpack.c.l.b16 %v4738
    %v4811 = vunpack.c.l.b16 %v4754
    %v4812 = vunpack.c.l.b16 %v4739
    %v4813 = vunpack.c.l.b16 %v4755
    %v4814 = vunpack.c.l.b16 %v4740
    %v4815 = vunpack.c.l.b16 %v4756
    %v4816 = vunpack.c.l.b16 %v4741
    %v4817 = vunpack.c.l.b16 %v4757
    %v4818 = vunpack.c.l.b16 %v4742
    %v4819 = vunpack.c.l.b16 %v4758
    %v4820 = vunpack.c.l.b16 %v4743
    %v4821 = vunpack.c.l.b16 %v4759
    %v4822 = vunpack.c.l.b16 %v4744
    %v4823 = vunpack.c.l.b16 %v4760
    %v4824 = vunpack.c.l.b16 %v4745
    %v4825 = vunpack.c.l.b16 %v4761
    %v4826 = vpack.c.b16 %v4795, %v4794
    %v4827 = vpack.c.b16 %v4797, %v4796
    %v4828 = vpack.c.b16 %v4799, %v4798
    %v4829 = vpack.c.b16 %v4801, %v4800
    %v4830 = vpack.c.b16 %v4803, %v4802
    %v4831 = vpack.c.b16 %v4805, %v4804
    %v4832 = vpack.c.b16 %v4807, %v4806
    %v4833 = vpack.c.b16 %v4809, %v4808
    %v4834 = vpack.c.b16 %v4811, %v4810
    %v4835 = vpack.c.b16 %v4813, %v4812
    %v4836 = vpack.c.b16 %v4815, %v4814
    %v4837 = vpack.c.b16 %v4817, %v4816
    %v4838 = vpack.c.b16 %v4819, %v4818
    %v4839 = vpack.c.b16 %v4821, %v4820
    %v4840 = vpack.c.b16 %v4823, %v4822
    %v4841 = vpack.c.b16 %v4825, %v4824
    %v4843 = vshrl.u32 %v4826, 16
    %v4845 = vshll.u32 %v4826, 16
    %v4847 = vrot.slane %v4845, 1
    %v4848 = vor.u32 %v4843, %v4847
    %v4850 = vshrl.u32 %v4827, 16
    %v4852 = vshll.u32 %v4827, 16
    %v4854 = vrot.slane %v4852, 1
    %v4855 = vor.u32 %v4850, %v4854
    %v4857 = vshrl.u32 %v4828, 16
    %v4859 = vshll.u32 %v4828, 16
    %v4861 = vrot.slane %v4859, 1
    %v4862 = vor.u32 %v4857, %v4861
    %v4864 = vshrl.u32 %v4829, 16
    %v4866 = vshll.u32 %v4829, 16
    %v4868 = vrot.slane %v4866, 1
    %v4869 = vor.u32 %v4864, %v4868
    %v4871 = vshrl.u32 %v4830, 16
    %v4873 = vshll.u32 %v4830, 16
    %v4875 = vrot.slane %v4873, 1
    %v4876 = vor.u32 %v4871, %v4875
    %v4878 = vshrl.u32 %v4831, 16
    %v4880 = vshll.u32 %v4831, 16
    %v4882 = vrot.slane %v4880, 1
    %v4883 = vor.u32 %v4878, %v4882
    %v4885 = vshrl.u32 %v4832, 16
    %v4887 = vshll.u32 %v4832, 16
    %v4889 = vrot.slane %v4887, 1
    %v4890 = vor.u32 %v4885, %v4889
    %v4892 = vshrl.u32 %v4833, 16
    %v4894 = vshll.u32 %v4833, 16
    %v4896 = vrot.slane %v4894, 1
    %v4897 = vor.u32 %v4892, %v4896
    %v4899 = vshrl.u32 %v4834, 16
    %v4901 = vshll.u32 %v4834, 16
    %v4903 = vrot.slane %v4901, 1
    %v4904 = vor.u32 %v4899, %v4903
    %v4906 = vshrl.u32 %v4835, 16
    %v4908 = vshll.u32 %v4835, 16
    %v4910 = vrot.slane %v4908, 1
    %v4911 = vor.u32 %v4906, %v4910
    %v4913 = vshrl.u32 %v4836, 16
    %v4915 = vshll.u32 %v4836, 16
    %v4917 = vrot.slane %v4915, 1
    %v4918 = vor.u32 %v4913, %v4917
    %v4920 = vshrl.u32 %v4837, 16
    %v4922 = vshll.u32 %v4837, 16
    %v4924 = vrot.slane %v4922, 1
    %v4925 = vor.u32 %v4920, %v4924
    %v4927 = vshrl.u32 %v4838, 16
    %v4929 = vshll.u32 %v4838, 16
    %v4931 = vrot.slane %v4929, 1
    %v4932 = vor.u32 %v4927, %v4931
    %v4934 = vshrl.u32 %v4839, 16
    %v4936 = vshll.u32 %v4839, 16
    %v4938 = vrot.slane %v4936, 1
    %v4939 = vor.u32 %v4934, %v4938
    %v4941 = vshrl.u32 %v4840, 16
    %v4943 = vshll.u32 %v4840, 16
    %v4945 = vrot.slane %v4943, 1
    %v4946 = vor.u32 %v4941, %v4945
    %v4948 = vshrl.u32 %v4841, 16
    %v4950 = vshll.u32 %v4841, 16
    %v4952 = vrot.slane %v4950, 1
    %v4953 = vor.u32 %v4948, %v4952
    %v4954 = vunpack.c.l.b16 %v4848
    %v4955 = vunpack.c.l.b16 %v4855
    %v4956 = vunpack.c.l.b16 %v4862
    %v4957 = vunpack.c.l.b16 %v4869
    %v4958 = vunpack.c.l.b16 %v4876
    %v4959 = vunpack.c.l.b16 %v4883
    %v4960 = vunpack.c.l.b16 %v4890
    %v4961 = vunpack.c.l.b16 %v4897
    %v4962 = vunpack.c.l.b16 %v4904
    %v4963 = vunpack.c.l.b16 %v4911
    %v4964 = vunpack.c.l.b16 %v4918
    %v4965 = vunpack.c.l.b16 %v4925
    %v4966 = vunpack.c.l.b16 %v4932
    %v4967 = vunpack.c.l.b16 %v4939
    %v4968 = vunpack.c.l.b16 %v4946
    %v4969 = vunpack.c.l.b16 %v4953
    %s4970 = scalar_lea.vmem [#allocation7], 640
    %v4971 = vld [vmem:[%s4970] sm:$0xf]
    %v4972 = vld [vmem:[%s4970 + $0x4] sm:$0xf]
    %v4973 = vld [vmem:[%s4970 + $0x8] sm:$0xf]
    %v4974 = vld [vmem:[%s4970 + $0xc] sm:$0xf]
    %v4975 = vld [vmem:[%s4970 + $0x10] sm:$0xf]
    %v4976 = vld [vmem:[%s4970 + $0x14] sm:$0xf]
    %v4977 = vld [vmem:[%s4970 + $0x18] sm:$0xf]
    %v4978 = vld [vmem:[%s4970 + $0x1c] sm:$0xf]
    %v4979 = vld [vmem:[%s4970 + $0x20] sm:$0xf]
    %v4980 = vld [vmem:[%s4970 + $0x24] sm:$0xf]
    %v4981 = vld [vmem:[%s4970 + $0x28] sm:$0xf]
    %v4982 = vld [vmem:[%s4970 + $0x2c] sm:$0xf]
    %v4983 = vld [vmem:[%s4970 + $0x30] sm:$0xf]
    %v4984 = vld [vmem:[%s4970 + $0x34] sm:$0xf]
    %v4985 = vld [vmem:[%s4970 + $0x38] sm:$0xf]
    %v4986 = vld [vmem:[%s4970 + $0x3c] sm:$0xf]
    %v4987 = vld [vmem:[%s4970 + $0x40] sm:$0xf]
    %v4988 = vld [vmem:[%s4970 + $0x44] sm:$0xf]
    %v4989 = vld [vmem:[%s4970 + $0x48] sm:$0xf]
    %v4990 = vld [vmem:[%s4970 + $0x4c] sm:$0xf]
    %v4991 = vld [vmem:[%s4970 + $0x50] sm:$0xf]
    %v4992 = vld [vmem:[%s4970 + $0x54] sm:$0xf]
    %v4993 = vld [vmem:[%s4970 + $0x58] sm:$0xf]
    %v4994 = vld [vmem:[%s4970 + $0x5c] sm:$0xf]
    %v4995 = vld [vmem:[%s4970 + $0x60] sm:$0xf]
    %v4996 = vld [vmem:[%s4970 + $0x64] sm:$0xf]
    %v4997 = vld [vmem:[%s4970 + $0x68] sm:$0xf]
    %v4998 = vld [vmem:[%s4970 + $0x6c] sm:$0xf]
    %v4999 = vld [vmem:[%s4970 + $0x70] sm:$0xf]
    %v5000 = vld [vmem:[%s4970 + $0x74] sm:$0xf]
    %v5001 = vld [vmem:[%s4970 + $0x78] sm:$0xf]
    %v5002 = vld [vmem:[%s4970 + $0x7c] sm:$0xf]
    %v5003 = vpack.c.b16 %v4796, %v4794
    %v5004 = vpack.c.b16 %v4955, %v4954
    %v5005 = vpack.c.b16 %v4800, %v4798
    %v5006 = vpack.c.b16 %v4957, %v4956
    %v5007 = vpack.c.b16 %v4804, %v4802
    %v5008 = vpack.c.b16 %v4959, %v4958
    %v5009 = vpack.c.b16 %v4808, %v4806
    %v5010 = vpack.c.b16 %v4961, %v4960
    %v5011 = vpack.c.b16 %v4812, %v4810
    %v5012 = vpack.c.b16 %v4963, %v4962
    %v5013 = vpack.c.b16 %v4816, %v4814
    %v5014 = vpack.c.b16 %v4965, %v4964
    %v5015 = vpack.c.b16 %v4820, %v4818
    %v5016 = vpack.c.b16 %v4967, %v4966
    %v5017 = vpack.c.b16 %v4824, %v4822
    %v5018 = vpack.c.b16 %v4969, %v4968
    %v5067 = vunpack.c.l.b16 %v4971
    %v5068 = vunpack.c.l.b16 %v4972
    %v5069 = vunpack.c.l.b16 %v4973
    %v5070 = vunpack.c.l.b16 %v4974
    %v5071 = vunpack.c.l.b16 %v4975
    %v5072 = vunpack.c.l.b16 %v4976
    %v5073 = vunpack.c.l.b16 %v4977
    %v5074 = vunpack.c.l.b16 %v4978
    %v5075 = vunpack.c.l.b16 %v4979
    %v5076 = vunpack.c.l.b16 %v4980
    %v5077 = vunpack.c.l.b16 %v4981
    %v5078 = vunpack.c.l.b16 %v4982
    %v5079 = vunpack.c.l.b16 %v4983
    %v5080 = vunpack.c.l.b16 %v4984
    %v5081 = vunpack.c.l.b16 %v4985
    %v5082 = vunpack.c.l.b16 %v4986
    %v5083 = vunpack.c.l.b16 %v4987
    %v5084 = vunpack.c.l.b16 %v4988
    %v5085 = vunpack.c.l.b16 %v4989
    %v5086 = vunpack.c.l.b16 %v4990
    %v5087 = vunpack.c.l.b16 %v4991
    %v5088 = vunpack.c.l.b16 %v4992
    %v5089 = vunpack.c.l.b16 %v4993
    %v5090 = vunpack.c.l.b16 %v4994
    %v5091 = vunpack.c.l.b16 %v4995
    %v5092 = vunpack.c.l.b16 %v4996
    %v5093 = vunpack.c.l.b16 %v4997
    %v5094 = vunpack.c.l.b16 %v4998
    %v5095 = vunpack.c.l.b16 %v4999
    %v5096 = vunpack.c.l.b16 %v5000
    %v5097 = vunpack.c.l.b16 %v5001
    %v5098 = vunpack.c.l.b16 %v5002
    %v5099 = vpack.c.b16 %v5068, %v5067
    %v5100 = vpack.c.b16 %v5070, %v5069
    %v5101 = vpack.c.b16 %v5072, %v5071
    %v5102 = vpack.c.b16 %v5074, %v5073
    %v5103 = vpack.c.b16 %v5076, %v5075
    %v5104 = vpack.c.b16 %v5078, %v5077
    %v5105 = vpack.c.b16 %v5080, %v5079
    %v5106 = vpack.c.b16 %v5082, %v5081
    %v5107 = vpack.c.b16 %v5084, %v5083
    %v5108 = vpack.c.b16 %v5086, %v5085
    %v5109 = vpack.c.b16 %v5088, %v5087
    %v5110 = vpack.c.b16 %v5090, %v5089
    %v5111 = vpack.c.b16 %v5092, %v5091
    %v5112 = vpack.c.b16 %v5094, %v5093
    %v5113 = vpack.c.b16 %v5096, %v5095
    %v5114 = vpack.c.b16 %v5098, %v5097
    %5131 = vmatpush.bf16.msra.mxu0 %v5106
    %5132 = vmatpush.bf16.msra.mxu0 %v5105
    %5133 = vmatpush.bf16.msra.mxu0 %v5104
    %5134 = vmatpush.bf16.msra.mxu0 %v5103
    %5135 = vmatpush.bf16.msra.mxu0 %v5102
    %5136 = vmatpush.bf16.msra.mxu0 %v5101
    %5137 = vmatpush.bf16.msra.mxu0 %v5100
    %5138 = vmatpush.bf16.msra.mxu0 %v5099
    %5139 = vmatmul.bf16.gmra.mxu0 %v5003
    %v5140 = vpop.f32.mrf.mxu0
    %v5141 = vadd.f32 0.0, %v5140
    %v5142 = vpop.f32.mrf.mxu0
    %v5143 = vadd.f32 0.0, %v5142
    %5144 = vmatmul.bf16.gmra.mxu0 %v5005
    %v5145 = vpop.f32.mrf.mxu0
    %v5146 = vadd.f32 0.0, %v5145
    %v5147 = vpop.f32.mrf.mxu0
    %v5148 = vadd.f32 0.0, %v5147
    %5149 = vmatmul.bf16.gmra.mxu0 %v5007
    %v5150 = vpop.f32.mrf.mxu0
    %v5151 = vadd.f32 0.0, %v5150
    %v5152 = vpop.f32.mrf.mxu0
    %v5153 = vadd.f32 0.0, %v5152
    %5154 = vmatmul.bf16.gmra.mxu0 %v5009
    %v5155 = vpop.f32.mrf.mxu0
    %v5156 = vadd.f32 0.0, %v5155
    %v5157 = vpop.f32.mrf.mxu0
    %v5158 = vadd.f32 0.0, %v5157
    %5159 = vmatmul.bf16.gmra.mxu0 %v5011
    %v5160 = vpop.f32.mrf.mxu0
    %v5161 = vadd.f32 0.0, %v5160
    %v5162 = vpop.f32.mrf.mxu0
    %v5163 = vadd.f32 0.0, %v5162
    %5164 = vmatmul.bf16.gmra.mxu0 %v5013
    %v5165 = vpop.f32.mrf.mxu0
    %v5166 = vadd.f32 0.0, %v5165
    %v5167 = vpop.f32.mrf.mxu0
    %v5168 = vadd.f32 0.0, %v5167
    %5169 = vmatmul.bf16.gmra.mxu0 %v5015
    %v5170 = vpop.f32.mrf.mxu0
    %v5171 = vadd.f32 0.0, %v5170
    %v5172 = vpop.f32.mrf.mxu0
    %v5173 = vadd.f32 0.0, %v5172
    %5174 = vmatmul.bf16.gmra.mxu0 %v5017
    %v5175 = vpop.f32.mrf.mxu0
    %v5176 = vadd.f32 0.0, %v5175
    %v5177 = vpop.f32.mrf.mxu0
    %v5178 = vadd.f32 0.0, %v5177
    %5179 = vdwg.mxu0
    %5180 = vmatpush.bf16.msra.mxu0 %v5114
    %5181 = vmatpush.bf16.msra.mxu0 %v5113
    %5182 = vmatpush.bf16.msra.mxu0 %v5112
    %5183 = vmatpush.bf16.msra.mxu0 %v5111
    %5184 = vmatpush.bf16.msra.mxu0 %v5110
    %5185 = vmatpush.bf16.msra.mxu0 %v5109
    %5186 = vmatpush.bf16.msra.mxu0 %v5108
    %5187 = vmatpush.bf16.msra.mxu0 %v5107
    %5188 = vmatmul.bf16.gmra.mxu0 %v5004
    %v5189 = vpop.f32.mrf.mxu0
    %v5190 = vadd.f32 %v5141, %v5189
    %v5191 = vpop.f32.mrf.mxu0
    %v5192 = vadd.f32 %v5143, %v5191
    %5193 = vmatmul.bf16.gmra.mxu0 %v5006
    %v5194 = vpop.f32.mrf.mxu0
    %v5195 = vadd.f32 %v5146, %v5194
    %v5196 = vpop.f32.mrf.mxu0
    %v5197 = vadd.f32 %v5148, %v5196
    %5198 = vmatmul.bf16.gmra.mxu0 %v5008
    %v5199 = vpop.f32.mrf.mxu0
    %v5200 = vadd.f32 %v5151, %v5199
    %v5201 = vpop.f32.mrf.mxu0
    %v5202 = vadd.f32 %v5153, %v5201
    %5203 = vmatmul.bf16.gmra.mxu0 %v5010
    %v5204 = vpop.f32.mrf.mxu0
    %v5205 = vadd.f32 %v5156, %v5204
    %v5206 = vpop.f32.mrf.mxu0
    %v5207 = vadd.f32 %v5158, %v5206
    %5208 = vmatmul.bf16.gmra.mxu0 %v5012
    %v5209 = vpop.f32.mrf.mxu0
    %v5210 = vadd.f32 %v5161, %v5209
    %v5211 = vpop.f32.mrf.mxu0
    %v5212 = vadd.f32 %v5163, %v5211
    %5213 = vmatmul.bf16.gmra.mxu0 %v5014
    %v5214 = vpop.f32.mrf.mxu0
    %v5215 = vadd.f32 %v5166, %v5214
    %v5216 = vpop.f32.mrf.mxu0
    %v5217 = vadd.f32 %v5168, %v5216
    %5218 = vmatmul.bf16.gmra.mxu0 %v5016
    %v5219 = vpop.f32.mrf.mxu0
    %v5220 = vadd.f32 %v5171, %v5219
    %v5221 = vpop.f32.mrf.mxu0
    %v5222 = vadd.f32 %v5173, %v5221
    %5223 = vmatmul.bf16.gmra.mxu0 %v5018
    %v5224 = vpop.f32.mrf.mxu0
    %v5225 = vadd.f32 %v5176, %v5224
    %v5226 = vpop.f32.mrf.mxu0
    %v5227 = vadd.f32 %v5178, %v5226
    %5228 = vdwg.mxu0
    %v5229 = vadd.f32 %v4713, %v5190
    %v5230 = vadd.f32 %v4714, %v5192
    %v5231 = vadd.f32 %v4715, %v5195
    %v5232 = vadd.f32 %v4716, %v5197
    %v5233 = vadd.f32 %v4717, %v5200
    %v5234 = vadd.f32 %v4718, %v5202
    %v5235 = vadd.f32 %v4719, %v5205
    %v5236 = vadd.f32 %v4720, %v5207
    %v5237 = vadd.f32 %v4721, %v5210
    %v5238 = vadd.f32 %v4722, %v5212
    %v5239 = vadd.f32 %v4723, %v5215
    %v5240 = vadd.f32 %v4724, %v5217
    %v5241 = vadd.f32 %v4725, %v5220
    %v5242 = vadd.f32 %v4726, %v5222
    %v5243 = vadd.f32 %v4727, %v5225
    %v5244 = vadd.f32 %v4728, %v5227
    %v5245 = vld [vmem:[%s4729] sm:$0xe]
    %v5246 = vld [vmem:[%s4729 + $0x8] sm:$0xe]
    %v5247 = vld [vmem:[%s4729 + $0x10] sm:$0xe]
    %v5248 = vld [vmem:[%s4729 + $0x18] sm:$0xe]
    %v5249 = vld [vmem:[%s4729 + $0x20] sm:$0xe]
    %v5250 = vld [vmem:[%s4729 + $0x28] sm:$0xe]
    %v5251 = vld [vmem:[%s4729 + $0x30] sm:$0xe]
    %v5252 = vld [vmem:[%s4729 + $0x38] sm:$0xe]
    %v5253 = vld [vmem:[%s4729 + $0x60] sm:$0xe]
    %v5254 = vld [vmem:[%s4729 + $0x68] sm:$0xe]
    %v5255 = vld [vmem:[%s4729 + $0x70] sm:$0xe]
    %v5256 = vld [vmem:[%s4729 + $0x78] sm:$0xe]
    %v5257 = vld [vmem:[%s4729 + $0x80] sm:$0xe]
    %v5258 = vld [vmem:[%s4729 + $0x88] sm:$0xe]
    %v5259 = vld [vmem:[%s4729 + $0x90] sm:$0xe]
    %v5260 = vld [vmem:[%s4729 + $0x98] sm:$0xe]
    %v5261 = vld [vmem:[%s4729 + $0x4] sm:$0x3]
    %v5262 = vld [vmem:[%s4729 + $0xc] sm:$0x3]
    %v5263 = vld [vmem:[%s4729 + $0x14] sm:$0x3]
    %v5264 = vld [vmem:[%s4729 + $0x1c] sm:$0x3]
    %v5265 = vld [vmem:[%s4729 + $0x24] sm:$0x3]
    %v5266 = vld [vmem:[%s4729 + $0x2c] sm:$0x3]
    %v5267 = vld [vmem:[%s4729 + $0x34] sm:$0x3]
    %v5268 = vld [vmem:[%s4729 + $0x3c] sm:$0x3]
    %v5269 = vld [vmem:[%s4729 + $0x64] sm:$0x3]
    %v5270 = vld [vmem:[%s4729 + $0x6c] sm:$0x3]
    %v5271 = vld [vmem:[%s4729 + $0x74] sm:$0x3]
    %v5272 = vld [vmem:[%s4729 + $0x7c] sm:$0x3]
    %v5273 = vld [vmem:[%s4729 + $0x84] sm:$0x3]
    %v5274 = vld [vmem:[%s4729 + $0x8c] sm:$0x3]
    %v5275 = vld [vmem:[%s4729 + $0x94] sm:$0x3]
    %v5276 = vld [vmem:[%s4729 + $0x9c] sm:$0x3]
    %v5293 = vunpack.c.l.b16 %v5245
    %v5294 = vunpack.c.l.b16 %v5246
    %v5295 = vunpack.c.l.b16 %v5247
    %v5296 = vunpack.c.l.b16 %v5248
    %v5297 = vunpack.c.l.b16 %v5249
    %v5298 = vunpack.c.l.b16 %v5250
    %v5299 = vunpack.c.l.b16 %v5251
    %v5300 = vunpack.c.l.b16 %v5252
    %v5301 = vunpack.c.l.b16 %v5253
    %v5302 = vunpack.c.l.b16 %v5254
    %v5303 = vunpack.c.l.b16 %v5255
    %v5304 = vunpack.c.l.b16 %v5256
    %v5305 = vunpack.c.l.b16 %v5257
    %v5306 = vunpack.c.l.b16 %v5258
    %v5307 = vunpack.c.l.b16 %v5259
    %v5308 = vunpack.c.l.b16 %v5260
    %v5325 = vunpack.c.l.b16 %v5261
    %v5326 = vunpack.c.l.b16 %v5262
    %v5327 = vunpack.c.l.b16 %v5263
    %v5328 = vunpack.c.l.b16 %v5264
    %v5329 = vunpack.c.l.b16 %v5265
    %v5330 = vunpack.c.l.b16 %v5266
    %v5331 = vunpack.c.l.b16 %v5267
    %v5332 = vunpack.c.l.b16 %v5268
    %v5333 = vunpack.c.l.b16 %v5269
    %v5334 = vunpack.c.l.b16 %v5270
    %v5335 = vunpack.c.l.b16 %v5271
    %v5336 = vunpack.c.l.b16 %v5272
    %v5337 = vunpack.c.l.b16 %v5273
    %v5338 = vunpack.c.l.b16 %v5274
    %v5339 = vunpack.c.l.b16 %v5275
    %v5340 = vunpack.c.l.b16 %v5276
    %v5341 = vpack.c.b16 %v5325, %v5293
    %v5342 = vpack.c.b16 %v5326, %v5294
    %v5343 = vpack.c.b16 %v5327, %v5295
    %v5344 = vpack.c.b16 %v5328, %v5296
    %v5345 = vpack.c.b16 %v5329, %v5297
    %v5346 = vpack.c.b16 %v5330, %v5298
    %v5347 = vpack.c.b16 %v5331, %v5299
    %v5348 = vpack.c.b16 %v5332, %v5300
    %v5349 = vpack.c.b16 %v5333, %v5301
    %v5350 = vpack.c.b16 %v5334, %v5302
    %v5351 = vpack.c.b16 %v5335, %v5303
    %v5352 = vpack.c.b16 %v5336, %v5304
    %v5353 = vpack.c.b16 %v5337, %v5305
    %v5354 = vpack.c.b16 %v5338, %v5306
    %v5355 = vpack.c.b16 %v5339, %v5307
    %v5356 = vpack.c.b16 %v5340, %v5308
    %v5358 = vshrl.u32 %v5341, 16
    %v5360 = vshll.u32 %v5341, 16
    %v5362 = vrot.slane %v5360, 1
    %v5363 = vor.u32 %v5358, %v5362
    %v5365 = vshrl.u32 %v5342, 16
    %v5367 = vshll.u32 %v5342, 16
    %v5369 = vrot.slane %v5367, 1
    %v5370 = vor.u32 %v5365, %v5369
    %v5372 = vshrl.u32 %v5343, 16
    %v5374 = vshll.u32 %v5343, 16
    %v5376 = vrot.slane %v5374, 1
    %v5377 = vor.u32 %v5372, %v5376
    %v5379 = vshrl.u32 %v5344, 16
    %v5381 = vshll.u32 %v5344, 16
    %v5383 = vrot.slane %v5381, 1
    %v5384 = vor.u32 %v5379, %v5383
    %v5386 = vshrl.u32 %v5345, 16
    %v5388 = vshll.u32 %v5345, 16
    %v5390 = vrot.slane %v5388, 1
    %v5391 = vor.u32 %v5386, %v5390
    %v5393 = vshrl.u32 %v5346, 16
    %v5395 = vshll.u32 %v5346, 16
    %v5397 = vrot.slane %v5395, 1
    %v5398 = vor.u32 %v5393, %v5397
    %v5400 = vshrl.u32 %v5347, 16
    %v5402 = vshll.u32 %v5347, 16
    %v5404 = vrot.slane %v5402, 1
    %v5405 = vor.u32 %v5400, %v5404
    %v5407 = vshrl.u32 %v5348, 16
    %v5409 = vshll.u32 %v5348, 16
    %v5411 = vrot.slane %v5409, 1
    %v5412 = vor.u32 %v5407, %v5411
    %v5414 = vshrl.u32 %v5349, 16
    %v5416 = vshll.u32 %v5349, 16
    %v5418 = vrot.slane %v5416, 1
    %v5419 = vor.u32 %v5414, %v5418
    %v5421 = vshrl.u32 %v5350, 16
    %v5423 = vshll.u32 %v5350, 16
    %v5425 = vrot.slane %v5423, 1
    %v5426 = vor.u32 %v5421, %v5425
    %v5428 = vshrl.u32 %v5351, 16
    %v5430 = vshll.u32 %v5351, 16
    %v5432 = vrot.slane %v5430, 1
    %v5433 = vor.u32 %v5428, %v5432
    %v5435 = vshrl.u32 %v5352, 16
    %v5437 = vshll.u32 %v5352, 16
    %v5439 = vrot.slane %v5437, 1
    %v5440 = vor.u32 %v5435, %v5439
    %v5442 = vshrl.u32 %v5353, 16
    %v5444 = vshll.u32 %v5353, 16
    %v5446 = vrot.slane %v5444, 1
    %v5447 = vor.u32 %v5442, %v5446
    %v5449 = vshrl.u32 %v5354, 16
    %v5451 = vshll.u32 %v5354, 16
    %v5453 = vrot.slane %v5451, 1
    %v5454 = vor.u32 %v5449, %v5453
    %v5456 = vshrl.u32 %v5355, 16
    %v5458 = vshll.u32 %v5355, 16
    %v5460 = vrot.slane %v5458, 1
    %v5461 = vor.u32 %v5456, %v5460
    %v5463 = vshrl.u32 %v5356, 16
    %v5465 = vshll.u32 %v5356, 16
    %v5467 = vrot.slane %v5465, 1
    %v5468 = vor.u32 %v5463, %v5467
    %v5469 = vunpack.c.l.b16 %v5363
    %v5470 = vunpack.c.h.b16 %v5363
    %v5471 = vunpack.c.l.b16 %v5370
    %v5472 = vunpack.c.h.b16 %v5370
    %v5473 = vunpack.c.l.b16 %v5377
    %v5474 = vunpack.c.h.b16 %v5377
    %v5475 = vunpack.c.l.b16 %v5384
    %v5476 = vunpack.c.h.b16 %v5384
    %v5477 = vunpack.c.l.b16 %v5391
    %v5478 = vunpack.c.h.b16 %v5391
    %v5479 = vunpack.c.l.b16 %v5398
    %v5480 = vunpack.c.h.b16 %v5398
    %v5481 = vunpack.c.l.b16 %v5405
    %v5482 = vunpack.c.h.b16 %v5405
    %v5483 = vunpack.c.l.b16 %v5412
    %v5484 = vunpack.c.h.b16 %v5412
    %v5485 = vunpack.c.l.b16 %v5419
    %v5486 = vunpack.c.h.b16 %v5419
    %v5487 = vunpack.c.l.b16 %v5426
    %v5488 = vunpack.c.h.b16 %v5426
    %v5489 = vunpack.c.l.b16 %v5433
    %v5490 = vunpack.c.h.b16 %v5433
    %v5491 = vunpack.c.l.b16 %v5440
    %v5492 = vunpack.c.h.b16 %v5440
    %v5493 = vunpack.c.l.b16 %v5447
    %v5494 = vunpack.c.h.b16 %v5447
    %v5495 = vunpack.c.l.b16 %v5454
    %v5496 = vunpack.c.h.b16 %v5454
    %v5497 = vunpack.c.l.b16 %v5461
    %v5498 = vunpack.c.h.b16 %v5461
    %v5499 = vunpack.c.l.b16 %v5468
    %v5500 = vunpack.c.h.b16 %v5468
    %v5501 = vpack.c.b16 %v5469, %v5293
    %v5502 = vpack.c.b16 %v5470, %v4795
    %v5503 = vpack.c.b16 %v5471, %v5294
    %v5504 = vpack.c.b16 %v5472, %v4797
    %v5505 = vpack.c.b16 %v5473, %v5295
    %v5506 = vpack.c.b16 %v5474, %v4799
    %v5507 = vpack.c.b16 %v5475, %v5296
    %v5508 = vpack.c.b16 %v5476, %v4801
    %v5509 = vpack.c.b16 %v5477, %v5297
    %v5510 = vpack.c.b16 %v5478, %v4803
    %v5511 = vpack.c.b16 %v5479, %v5298
    %v5512 = vpack.c.b16 %v5480, %v4805
    %v5513 = vpack.c.b16 %v5481, %v5299
    %v5514 = vpack.c.b16 %v5482, %v4807
    %v5515 = vpack.c.b16 %v5483, %v5300
    %v5516 = vpack.c.b16 %v5484, %v4809
    %v5517 = vpack.c.b16 %v5485, %v5301
    %v5518 = vpack.c.b16 %v5486, %v4811
    %v5519 = vpack.c.b16 %v5487, %v5302
    %v5520 = vpack.c.b16 %v5488, %v4813
    %v5521 = vpack.c.b16 %v5489, %v5303
    %v5522 = vpack.c.b16 %v5490, %v4815
    %v5523 = vpack.c.b16 %v5491, %v5304
    %v5524 = vpack.c.b16 %v5492, %v4817
    %v5525 = vpack.c.b16 %v5493, %v5305
    %v5526 = vpack.c.b16 %v5494, %v4819
    %v5527 = vpack.c.b16 %v5495, %v5306
    %v5528 = vpack.c.b16 %v5496, %v4821
    %v5529 = vpack.c.b16 %v5497, %v5307
    %v5530 = vpack.c.b16 %v5498, %v4823
    %v5531 = vpack.c.b16 %v5499, %v5308
    %v5532 = vpack.c.b16 %v5500, %v4825
    %v5533 = vrot.slane %v5501, 5
    %v5534 = vrot.slane %v5533, 4
    %v5535 = vrot.slane %v5502, 5
    %v5536 = vsel %vm1824, %v5534, %v5535
    %v5537 = vrot.slane %v5503, 5
    %v5538 = vrot.slane %v5537, 4
    %v5539 = vrot.slane %v5504, 5
    %v5540 = vsel %vm1824, %v5538, %v5539
    %v5541 = vrot.slane %v5505, 5
    %v5542 = vrot.slane %v5541, 4
    %v5543 = vrot.slane %v5506, 5
    %v5544 = vsel %vm1824, %v5542, %v5543
    %v5545 = vrot.slane %v5507, 5
    %v5546 = vrot.slane %v5545, 4
    %v5547 = vrot.slane %v5508, 5
    %v5548 = vsel %vm1824, %v5546, %v5547
    %v5549 = vrot.slane %v5509, 5
    %v5550 = vrot.slane %v5549, 4
    %v5551 = vrot.slane %v5510, 5
    %v5552 = vsel %vm1824, %v5550, %v5551
    %v5553 = vrot.slane %v5511, 5
    %v5554 = vrot.slane %v5553, 4
    %v5555 = vrot.slane %v5512, 5
    %v5556 = vsel %vm1824, %v5554, %v5555
    %v5557 = vrot.slane %v5513, 5
    %v5558 = vrot.slane %v5557, 4
    %v5559 = vrot.slane %v5514, 5
    %v5560 = vsel %vm1824, %v5558, %v5559
    %v5561 = vrot.slane %v5515, 5
    %v5562 = vrot.slane %v5561, 4
    %v5563 = vrot.slane %v5516, 5
    %v5564 = vsel %vm1824, %v5562, %v5563
    %v5565 = vrot.slane %v5517, 5
    %v5566 = vrot.slane %v5565, 4
    %v5567 = vrot.slane %v5518, 5
    %v5568 = vsel %vm1824, %v5566, %v5567
    %v5569 = vrot.slane %v5519, 5
    %v5570 = vrot.slane %v5569, 4
    %v5571 = vrot.slane %v5520, 5
    %v5572 = vsel %vm1824, %v5570, %v5571
    %v5573 = vrot.slane %v5521, 5
    %v5574 = vrot.slane %v5573, 4
    %v5575 = vrot.slane %v5522, 5
    %v5576 = vsel %vm1824, %v5574, %v5575
    %v5577 = vrot.slane %v5523, 5
    %v5578 = vrot.slane %v5577, 4
    %v5579 = vrot.slane %v5524, 5
    %v5580 = vsel %vm1824, %v5578, %v5579
    %v5581 = vrot.slane %v5525, 5
    %v5582 = vrot.slane %v5581, 4
    %v5583 = vrot.slane %v5526, 5
    %v5584 = vsel %vm1824, %v5582, %v5583
    %v5585 = vrot.slane %v5527, 5
    %v5586 = vrot.slane %v5585, 4
    %v5587 = vrot.slane %v5528, 5
    %v5588 = vsel %vm1824, %v5586, %v5587
    %v5589 = vrot.slane %v5529, 5
    %v5590 = vrot.slane %v5589, 4
    %v5591 = vrot.slane %v5530, 5
    %v5592 = vsel %vm1824, %v5590, %v5591
    %v5593 = vrot.slane %v5531, 5
    %v5594 = vrot.slane %v5593, 4
    %v5595 = vrot.slane %v5532, 5
    %v5596 = vsel %vm1824, %v5594, %v5595
    %s5597 = scalar_lea.vmem [#allocation7], 768
    %v5598 = vld [vmem:[%s5597] sm:$0xf]
    %v5599 = vld [vmem:[%s5597 + $0x4] sm:$0xf]
    %v5600 = vld [vmem:[%s5597 + $0x8] sm:$0xf]
    %v5601 = vld [vmem:[%s5597 + $0xc] sm:$0xf]
    %v5602 = vld [vmem:[%s5597 + $0x10] sm:$0xf]
    %v5603 = vld [vmem:[%s5597 + $0x14] sm:$0xf]
    %v5604 = vld [vmem:[%s5597 + $0x18] sm:$0xf]
    %v5605 = vld [vmem:[%s5597 + $0x1c] sm:$0xf]
    %v5606 = vld [vmem:[%s5597 + $0x20] sm:$0xf]
    %v5607 = vld [vmem:[%s5597 + $0x24] sm:$0xf]
    %v5608 = vld [vmem:[%s5597 + $0x28] sm:$0xf]
    %v5609 = vld [vmem:[%s5597 + $0x2c] sm:$0xf]
    %v5610 = vld [vmem:[%s5597 + $0x30] sm:$0xf]
    %v5611 = vld [vmem:[%s5597 + $0x34] sm:$0xf]
    %v5612 = vld [vmem:[%s5597 + $0x38] sm:$0xf]
    %v5613 = vld [vmem:[%s5597 + $0x3c] sm:$0xf]
    %v5614 = vld [vmem:[%s5597 + $0x40] sm:$0xf]
    %v5615 = vld [vmem:[%s5597 + $0x44] sm:$0xf]
    %v5616 = vld [vmem:[%s5597 + $0x48] sm:$0xf]
    %v5617 = vld [vmem:[%s5597 + $0x4c] sm:$0xf]
    %v5618 = vld [vmem:[%s5597 + $0x50] sm:$0xf]
    %v5619 = vld [vmem:[%s5597 + $0x54] sm:$0xf]
    %v5620 = vld [vmem:[%s5597 + $0x58] sm:$0xf]
    %v5621 = vld [vmem:[%s5597 + $0x5c] sm:$0xf]
    %v5622 = vld [vmem:[%s5597 + $0x60] sm:$0xf]
    %v5623 = vld [vmem:[%s5597 + $0x64] sm:$0xf]
    %v5624 = vld [vmem:[%s5597 + $0x68] sm:$0xf]
    %v5625 = vld [vmem:[%s5597 + $0x6c] sm:$0xf]
    %v5626 = vld [vmem:[%s5597 + $0x70] sm:$0xf]
    %v5627 = vld [vmem:[%s5597 + $0x74] sm:$0xf]
    %v5628 = vld [vmem:[%s5597 + $0x78] sm:$0xf]
    %v5629 = vld [vmem:[%s5597 + $0x7c] sm:$0xf]
    %v5630 = vunpack.c.l.b16 %v5536
    %v5631 = vunpack.c.h.b16 %v5536
    %v5632 = vunpack.c.l.b16 %v5540
    %v5633 = vunpack.c.h.b16 %v5540
    %v5634 = vunpack.c.l.b16 %v5544
    %v5635 = vunpack.c.h.b16 %v5544
    %v5636 = vunpack.c.l.b16 %v5548
    %v5637 = vunpack.c.h.b16 %v5548
    %v5638 = vunpack.c.l.b16 %v5552
    %v5639 = vunpack.c.h.b16 %v5552
    %v5640 = vunpack.c.l.b16 %v5556
    %v5641 = vunpack.c.h.b16 %v5556
    %v5642 = vunpack.c.l.b16 %v5560
    %v5643 = vunpack.c.h.b16 %v5560
    %v5644 = vunpack.c.l.b16 %v5564
    %v5645 = vunpack.c.h.b16 %v5564
    %v5646 = vunpack.c.l.b16 %v5568
    %v5647 = vunpack.c.h.b16 %v5568
    %v5648 = vunpack.c.l.b16 %v5572
    %v5649 = vunpack.c.h.b16 %v5572
    %v5650 = vunpack.c.l.b16 %v5576
    %v5651 = vunpack.c.h.b16 %v5576
    %v5652 = vunpack.c.l.b16 %v5580
    %v5653 = vunpack.c.h.b16 %v5580
    %v5654 = vunpack.c.l.b16 %v5584
    %v5655 = vunpack.c.h.b16 %v5584
    %v5656 = vunpack.c.l.b16 %v5588
    %v5657 = vunpack.c.h.b16 %v5588
    %v5658 = vunpack.c.l.b16 %v5592
    %v5659 = vunpack.c.h.b16 %v5592
    %v5660 = vunpack.c.l.b16 %v5596
    %v5661 = vunpack.c.h.b16 %v5596
    %v5662 = vpack.c.b16 %v5632, %v5630
    %v5663 = vpack.c.b16 %v5633, %v5631
    %v5664 = vpack.c.b16 %v5636, %v5634
    %v5665 = vpack.c.b16 %v5637, %v5635
    %v5666 = vpack.c.b16 %v5640, %v5638
    %v5667 = vpack.c.b16 %v5641, %v5639
    %v5668 = vpack.c.b16 %v5644, %v5642
    %v5669 = vpack.c.b16 %v5645, %v5643
    %v5670 = vpack.c.b16 %v5648, %v5646
    %v5671 = vpack.c.b16 %v5649, %v5647
    %v5672 = vpack.c.b16 %v5652, %v5650
    %v5673 = vpack.c.b16 %v5653, %v5651
    %v5674 = vpack.c.b16 %v5656, %v5654
    %v5675 = vpack.c.b16 %v5657, %v5655
    %v5676 = vpack.c.b16 %v5660, %v5658
    %v5677 = vpack.c.b16 %v5661, %v5659
    %v5726 = vunpack.c.l.b16 %v5598
    %v5727 = vunpack.c.l.b16 %v5599
    %v5728 = vunpack.c.l.b16 %v5600
    %v5729 = vunpack.c.l.b16 %v5601
    %v5730 = vunpack.c.l.b16 %v5602
    %v5731 = vunpack.c.l.b16 %v5603
    %v5732 = vunpack.c.l.b16 %v5604
    %v5733 = vunpack.c.l.b16 %v5605
    %v5734 = vunpack.c.l.b16 %v5606
    %v5735 = vunpack.c.l.b16 %v5607
    %v5736 = vunpack.c.l.b16 %v5608
    %v5737 = vunpack.c.l.b16 %v5609
    %v5738 = vunpack.c.l.b16 %v5610
    %v5739 = vunpack.c.l.b16 %v5611
    %v5740 = vunpack.c.l.b16 %v5612
    %v5741 = vunpack.c.l.b16 %v5613
    %v5742 = vunpack.c.l.b16 %v5614
    %v5743 = vunpack.c.l.b16 %v5615
    %v5744 = vunpack.c.l.b16 %v5616
    %v5745 = vunpack.c.l.b16 %v5617
    %v5746 = vunpack.c.l.b16 %v5618
    %v5747 = vunpack.c.l.b16 %v5619
    %v5748 = vunpack.c.l.b16 %v5620
    %v5749 = vunpack.c.l.b16 %v5621
    %v5750 = vunpack.c.l.b16 %v5622
    %v5751 = vunpack.c.l.b16 %v5623
    %v5752 = vunpack.c.l.b16 %v5624
    %v5753 = vunpack.c.l.b16 %v5625
    %v5754 = vunpack.c.l.b16 %v5626
    %v5755 = vunpack.c.l.b16 %v5627
    %v5756 = vunpack.c.l.b16 %v5628
    %v5757 = vunpack.c.l.b16 %v5629
    %v5758 = vpack.c.b16 %v5727, %v5726
    %v5759 = vpack.c.b16 %v5729, %v5728
    %v5760 = vpack.c.b16 %v5731, %v5730
    %v5761 = vpack.c.b16 %v5733, %v5732
    %v5762 = vpack.c.b16 %v5735, %v5734
    %v5763 = vpack.c.b16 %v5737, %v5736
    %v5764 = vpack.c.b16 %v5739, %v5738
    %v5765 = vpack.c.b16 %v5741, %v5740
    %v5766 = vpack.c.b16 %v5743, %v5742
    %v5767 = vpack.c.b16 %v5745, %v5744
    %v5768 = vpack.c.b16 %v5747, %v5746
    %v5769 = vpack.c.b16 %v5749, %v5748
    %v5770 = vpack.c.b16 %v5751, %v5750
    %v5771 = vpack.c.b16 %v5753, %v5752
    %v5772 = vpack.c.b16 %v5755, %v5754
    %v5773 = vpack.c.b16 %v5757, %v5756
    %5790 = vmatpush.bf16.msra.mxu0 %v5765
    %5791 = vmatpush.bf16.msra.mxu0 %v5764
    %5792 = vmatpush.bf16.msra.mxu0 %v5763
    %5793 = vmatpush.bf16.msra.mxu0 %v5762
    %5794 = vmatpush.bf16.msra.mxu0 %v5761
    %5795 = vmatpush.bf16.msra.mxu0 %v5760
    %5796 = vmatpush.bf16.msra.mxu0 %v5759
    %5797 = vmatpush.bf16.msra.mxu0 %v5758
    %5798 = vmatmul.bf16.gmra.mxu0 %v5662
    %v5799 = vpop.f32.mrf.mxu0
    %v5800 = vadd.f32 0.0, %v5799
    %v5801 = vpop.f32.mrf.mxu0
    %v5802 = vadd.f32 0.0, %v5801
    %5803 = vmatmul.bf16.gmra.mxu0 %v5664
    %v5804 = vpop.f32.mrf.mxu0
    %v5805 = vadd.f32 0.0, %v5804
    %v5806 = vpop.f32.mrf.mxu0
    %v5807 = vadd.f32 0.0, %v5806
    %5808 = vmatmul.bf16.gmra.mxu0 %v5666
    %v5809 = vpop.f32.mrf.mxu0
    %v5810 = vadd.f32 0.0, %v5809
    %v5811 = vpop.f32.mrf.mxu0
    %v5812 = vadd.f32 0.0, %v5811
    %5813 = vmatmul.bf16.gmra.mxu0 %v5668
    %v5814 = vpop.f32.mrf.mxu0
    %v5815 = vadd.f32 0.0, %v5814
    %v5816 = vpop.f32.mrf.mxu0
    %v5817 = vadd.f32 0.0, %v5816
    %5818 = vmatmul.bf16.gmra.mxu0 %v5670
    %v5819 = vpop.f32.mrf.mxu0
    %v5820 = vadd.f32 0.0, %v5819
    %v5821 = vpop.f32.mrf.mxu0
    %v5822 = vadd.f32 0.0, %v5821
    %5823 = vmatmul.bf16.gmra.mxu0 %v5672
    %v5824 = vpop.f32.mrf.mxu0
    %v5825 = vadd.f32 0.0, %v5824
    %v5826 = vpop.f32.mrf.mxu0
    %v5827 = vadd.f32 0.0, %v5826
    %5828 = vmatmul.bf16.gmra.mxu0 %v5674
    %v5829 = vpop.f32.mrf.mxu0
    %v5830 = vadd.f32 0.0, %v5829
    %v5831 = vpop.f32.mrf.mxu0
    %v5832 = vadd.f32 0.0, %v5831
    %5833 = vmatmul.bf16.gmra.mxu0 %v5676
    %v5834 = vpop.f32.mrf.mxu0
    %v5835 = vadd.f32 0.0, %v5834
    %v5836 = vpop.f32.mrf.mxu0
    %v5837 = vadd.f32 0.0, %v5836
    %5838 = vdwg.mxu0
    %5839 = vmatpush.bf16.msra.mxu0 %v5773
    %5840 = vmatpush.bf16.msra.mxu0 %v5772
    %5841 = vmatpush.bf16.msra.mxu0 %v5771
    %5842 = vmatpush.bf16.msra.mxu0 %v5770
    %5843 = vmatpush.bf16.msra.mxu0 %v5769
    %5844 = vmatpush.bf16.msra.mxu0 %v5768
    %5845 = vmatpush.bf16.msra.mxu0 %v5767
    %5846 = vmatpush.bf16.msra.mxu0 %v5766
    %5847 = vmatmul.bf16.gmra.mxu0 %v5663
    %v5848 = vpop.f32.mrf.mxu0
    %v5849 = vadd.f32 %v5800, %v5848
    %v5850 = vpop.f32.mrf.mxu0
    %v5851 = vadd.f32 %v5802, %v5850
    %5852 = vmatmul.bf16.gmra.mxu0 %v5665
    %v5853 = vpop.f32.mrf.mxu0
    %v5854 = vadd.f32 %v5805, %v5853
    %v5855 = vpop.f32.mrf.mxu0
    %v5856 = vadd.f32 %v5807, %v5855
    %5857 = vmatmul.bf16.gmra.mxu0 %v5667
    %v5858 = vpop.f32.mrf.mxu0
    %v5859 = vadd.f32 %v5810, %v5858
    %v5860 = vpop.f32.mrf.mxu0
    %v5861 = vadd.f32 %v5812, %v5860
    %5862 = vmatmul.bf16.gmra.mxu0 %v5669
    %v5863 = vpop.f32.mrf.mxu0
    %v5864 = vadd.f32 %v5815, %v5863
    %v5865 = vpop.f32.mrf.mxu0
    %v5866 = vadd.f32 %v5817, %v5865
    %5867 = vmatmul.bf16.gmra.mxu0 %v5671
    %v5868 = vpop.f32.mrf.mxu0
    %v5869 = vadd.f32 %v5820, %v5868
    %v5870 = vpop.f32.mrf.mxu0
    %v5871 = vadd.f32 %v5822, %v5870
    %5872 = vmatmul.bf16.gmra.mxu0 %v5673
    %v5873 = vpop.f32.mrf.mxu0
    %v5874 = vadd.f32 %v5825, %v5873
    %v5875 = vpop.f32.mrf.mxu0
    %v5876 = vadd.f32 %v5827, %v5875
    %5877 = vmatmul.bf16.gmra.mxu0 %v5675
    %v5878 = vpop.f32.mrf.mxu0
    %v5879 = vadd.f32 %v5830, %v5878
    %v5880 = vpop.f32.mrf.mxu0
    %v5881 = vadd.f32 %v5832, %v5880
    %5882 = vmatmul.bf16.gmra.mxu0 %v5677
    %v5883 = vpop.f32.mrf.mxu0
    %v5884 = vadd.f32 %v5835, %v5883
    %v5885 = vpop.f32.mrf.mxu0
    %v5886 = vadd.f32 %v5837, %v5885
    %5887 = vdwg.mxu0
    %v5888 = vadd.f32 %v5229, %v5849
    %v5889 = vadd.f32 %v5230, %v5851
    %v5890 = vadd.f32 %v5231, %v5854
    %v5891 = vadd.f32 %v5232, %v5856
    %v5892 = vadd.f32 %v5233, %v5859
    %v5893 = vadd.f32 %v5234, %v5861
    %v5894 = vadd.f32 %v5235, %v5864
    %v5895 = vadd.f32 %v5236, %v5866
    %v5896 = vadd.f32 %v5237, %v5869
    %v5897 = vadd.f32 %v5238, %v5871
    %v5898 = vadd.f32 %v5239, %v5874
    %v5899 = vadd.f32 %v5240, %v5876
    %v5900 = vadd.f32 %v5241, %v5879
    %v5901 = vadd.f32 %v5242, %v5881
    %v5902 = vadd.f32 %v5243, %v5884
    %v5903 = vadd.f32 %v5244, %v5886
    %v5904 = vld [vmem:[%s4729] sm:$0xc]
    %v5905 = vld [vmem:[%s4729 + $0x8] sm:$0xc]
    %v5906 = vld [vmem:[%s4729 + $0x10] sm:$0xc]
    %v5907 = vld [vmem:[%s4729 + $0x18] sm:$0xc]
    %v5908 = vld [vmem:[%s4729 + $0x20] sm:$0xc]
    %v5909 = vld [vmem:[%s4729 + $0x28] sm:$0xc]
    %v5910 = vld [vmem:[%s4729 + $0x30] sm:$0xc]
    %v5911 = vld [vmem:[%s4729 + $0x38] sm:$0xc]
    %v5912 = vld [vmem:[%s4729 + $0x60] sm:$0xc]
    %v5913 = vld [vmem:[%s4729 + $0x68] sm:$0xc]
    %v5914 = vld [vmem:[%s4729 + $0x70] sm:$0xc]
    %v5915 = vld [vmem:[%s4729 + $0x78] sm:$0xc]
    %v5916 = vld [vmem:[%s4729 + $0x80] sm:$0xc]
    %v5917 = vld [vmem:[%s4729 + $0x88] sm:$0xc]
    %v5918 = vld [vmem:[%s4729 + $0x90] sm:$0xc]
    %v5919 = vld [vmem:[%s4729 + $0x98] sm:$0xc]
    %s5920 = scalar_lea.vmem [#allocation2], 24
    %v5921 = vld [vmem:[%s5920] sm:$0xf]
    %v5922 = vld [vmem:[%s5920 + $0x8] sm:$0xf]
    %v5923 = vld [vmem:[%s5920 + $0x10] sm:$0xf]
    %v5924 = vld [vmem:[%s5920 + $0x18] sm:$0xf]
    %v5925 = vld [vmem:[%s5920 + $0x20] sm:$0xf]
    %v5926 = vld [vmem:[%s5920 + $0x28] sm:$0xf]
    %v5927 = vld [vmem:[%s5920 + $0x30] sm:$0xf]
    %v5928 = vld [vmem:[%s5920 + $0x38] sm:$0xf]
    %v5929 = vld [vmem:[%s5920 + $0x60] sm:$0xf]
    %v5930 = vld [vmem:[%s5920 + $0x68] sm:$0xf]
    %v5931 = vld [vmem:[%s5920 + $0x70] sm:$0xf]
    %v5932 = vld [vmem:[%s5920 + $0x78] sm:$0xf]
    %v5933 = vld [vmem:[%s5920 + $0x80] sm:$0xf]
    %v5934 = vld [vmem:[%s5920 + $0x88] sm:$0xf]
    %v5935 = vld [vmem:[%s5920 + $0x90] sm:$0xf]
    %v5936 = vld [vmem:[%s5920 + $0x98] sm:$0xf]
    %v5953 = vunpack.c.l.b16 %v5904
    %v5954 = vunpack.c.l.b16 %v5905
    %v5955 = vunpack.c.l.b16 %v5906
    %v5956 = vunpack.c.l.b16 %v5907
    %v5957 = vunpack.c.l.b16 %v5908
    %v5958 = vunpack.c.l.b16 %v5909
    %v5959 = vunpack.c.l.b16 %v5910
    %v5960 = vunpack.c.l.b16 %v5911
    %v5961 = vunpack.c.l.b16 %v5912
    %v5962 = vunpack.c.l.b16 %v5913
    %v5963 = vunpack.c.l.b16 %v5914
    %v5964 = vunpack.c.l.b16 %v5915
    %v5965 = vunpack.c.l.b16 %v5916
    %v5966 = vunpack.c.l.b16 %v5917
    %v5967 = vunpack.c.l.b16 %v5918
    %v5968 = vunpack.c.l.b16 %v5919
    %v5985 = vunpack.c.l.b16 %v5921
    %v5986 = vunpack.c.l.b16 %v5922
    %v5987 = vunpack.c.l.b16 %v5923
    %v5988 = vunpack.c.l.b16 %v5924
    %v5989 = vunpack.c.l.b16 %v5925
    %v5990 = vunpack.c.l.b16 %v5926
    %v5991 = vunpack.c.l.b16 %v5927
    %v5992 = vunpack.c.l.b16 %v5928
    %v5993 = vunpack.c.l.b16 %v5929
    %v5994 = vunpack.c.l.b16 %v5930
    %v5995 = vunpack.c.l.b16 %v5931
    %v5996 = vunpack.c.l.b16 %v5932
    %v5997 = vunpack.c.l.b16 %v5933
    %v5998 = vunpack.c.l.b16 %v5934
    %v5999 = vunpack.c.l.b16 %v5935
    %v6000 = vunpack.c.l.b16 %v5936
    %v6001 = vpack.c.b16 %v5985, %v5985
    %v6002 = vpack.c.b16 %v5986, %v5986
    %v6003 = vpack.c.b16 %v5987, %v5987
    %v6004 = vpack.c.b16 %v5988, %v5988
    %v6005 = vpack.c.b16 %v5989, %v5989
    %v6006 = vpack.c.b16 %v5990, %v5990
    %v6007 = vpack.c.b16 %v5991, %v5991
    %v6008 = vpack.c.b16 %v5992, %v5992
    %v6009 = vpack.c.b16 %v5993, %v5993
    %v6010 = vpack.c.b16 %v5994, %v5994
    %v6011 = vpack.c.b16 %v5995, %v5995
    %v6012 = vpack.c.b16 %v5996, %v5996
    %v6013 = vpack.c.b16 %v5997, %v5997
    %v6014 = vpack.c.b16 %v5998, %v5998
    %v6015 = vpack.c.b16 %v5999, %v5999
    %v6016 = vpack.c.b16 %v6000, %v6000
    %v6017 = vrot.slane %v6001, 6
    %v6018 = vrot.slane %v6002, 6
    %v6019 = vrot.slane %v6003, 6
    %v6020 = vrot.slane %v6004, 6
    %v6021 = vrot.slane %v6005, 6
    %v6022 = vrot.slane %v6006, 6
    %v6023 = vrot.slane %v6007, 6
    %v6024 = vrot.slane %v6008, 6
    %v6025 = vrot.slane %v6009, 6
    %v6026 = vrot.slane %v6010, 6
    %v6027 = vrot.slane %v6011, 6
    %v6028 = vrot.slane %v6012, 6
    %v6029 = vrot.slane %v6013, 6
    %v6030 = vrot.slane %v6014, 6
    %v6031 = vrot.slane %v6015, 6
    %v6032 = vrot.slane %v6016, 6
    %v6033 = vunpack.c.l.b16 %v6017
    %v6034 = vunpack.c.h.b16 %v6017
    %v6035 = vunpack.c.l.b16 %v6018
    %v6036 = vunpack.c.h.b16 %v6018
    %v6037 = vunpack.c.l.b16 %v6019
    %v6038 = vunpack.c.h.b16 %v6019
    %v6039 = vunpack.c.l.b16 %v6020
    %v6040 = vunpack.c.h.b16 %v6020
    %v6041 = vunpack.c.l.b16 %v6021
    %v6042 = vunpack.c.h.b16 %v6021
    %v6043 = vunpack.c.l.b16 %v6022
    %v6044 = vunpack.c.h.b16 %v6022
    %v6045 = vunpack.c.l.b16 %v6023
    %v6046 = vunpack.c.h.b16 %v6023
    %v6047 = vunpack.c.l.b16 %v6024
    %v6048 = vunpack.c.h.b16 %v6024
    %v6049 = vunpack.c.l.b16 %v6025
    %v6050 = vunpack.c.h.b16 %v6025
    %v6051 = vunpack.c.l.b16 %v6026
    %v6052 = vunpack.c.h.b16 %v6026
    %v6053 = vunpack.c.l.b16 %v6027
    %v6054 = vunpack.c.h.b16 %v6027
    %v6055 = vunpack.c.l.b16 %v6028
    %v6056 = vunpack.c.h.b16 %v6028
    %v6057 = vunpack.c.l.b16 %v6029
    %v6058 = vunpack.c.h.b16 %v6029
    %v6059 = vunpack.c.l.b16 %v6030
    %v6060 = vunpack.c.h.b16 %v6030
    %v6061 = vunpack.c.l.b16 %v6031
    %v6062 = vunpack.c.h.b16 %v6031
    %v6063 = vunpack.c.l.b16 %v6032
    %v6064 = vunpack.c.h.b16 %v6032
    %v6065 = vpack.c.b16 %v6033, %v5953
    %v6066 = vpack.c.b16 %v6034, %v5325
    %v6067 = vpack.c.b16 %v6035, %v5954
    %v6068 = vpack.c.b16 %v6036, %v5326
    %v6069 = vpack.c.b16 %v6037, %v5955
    %v6070 = vpack.c.b16 %v6038, %v5327
    %v6071 = vpack.c.b16 %v6039, %v5956
    %v6072 = vpack.c.b16 %v6040, %v5328
    %v6073 = vpack.c.b16 %v6041, %v5957
    %v6074 = vpack.c.b16 %v6042, %v5329
    %v6075 = vpack.c.b16 %v6043, %v5958
    %v6076 = vpack.c.b16 %v6044, %v5330
    %v6077 = vpack.c.b16 %v6045, %v5959
    %v6078 = vpack.c.b16 %v6046, %v5331
    %v6079 = vpack.c.b16 %v6047, %v5960
    %v6080 = vpack.c.b16 %v6048, %v5332
    %v6081 = vpack.c.b16 %v6049, %v5961
    %v6082 = vpack.c.b16 %v6050, %v5333
    %v6083 = vpack.c.b16 %v6051, %v5962
    %v6084 = vpack.c.b16 %v6052, %v5334
    %v6085 = vpack.c.b16 %v6053, %v5963
    %v6086 = vpack.c.b16 %v6054, %v5335
    %v6087 = vpack.c.b16 %v6055, %v5964
    %v6088 = vpack.c.b16 %v6056, %v5336
    %v6089 = vpack.c.b16 %v6057, %v5965
    %v6090 = vpack.c.b16 %v6058, %v5337
    %v6091 = vpack.c.b16 %v6059, %v5966
    %v6092 = vpack.c.b16 %v6060, %v5338
    %v6093 = vpack.c.b16 %v6061, %v5967
    %v6094 = vpack.c.b16 %v6062, %v5339
    %v6095 = vpack.c.b16 %v6063, %v5968
    %v6096 = vpack.c.b16 %v6064, %v5340
    %v6097 = vrot.slane %v6065, 6
    %v6098 = vrot.slane %v6097, 4
    %v6099 = vrot.slane %v6066, 6
    %v6100 = vsel %vm2601, %v6098, %v6099
    %v6101 = vrot.slane %v6067, 6
    %v6102 = vrot.slane %v6101, 4
    %v6103 = vrot.slane %v6068, 6
    %v6104 = vsel %vm2601, %v6102, %v6103
    %v6105 = vrot.slane %v6069, 6
    %v6106 = vrot.slane %v6105, 4
    %v6107 = vrot.slane %v6070, 6
    %v6108 = vsel %vm2601, %v6106, %v6107
    %v6109 = vrot.slane %v6071, 6
    %v6110 = vrot.slane %v6109, 4
    %v6111 = vrot.slane %v6072, 6
    %v6112 = vsel %vm2601, %v6110, %v6111
    %v6113 = vrot.slane %v6073, 6
    %v6114 = vrot.slane %v6113, 4
    %v6115 = vrot.slane %v6074, 6
    %v6116 = vsel %vm2601, %v6114, %v6115
    %v6117 = vrot.slane %v6075, 6
    %v6118 = vrot.slane %v6117, 4
    %v6119 = vrot.slane %v6076, 6
    %v6120 = vsel %vm2601, %v6118, %v6119
    %v6121 = vrot.slane %v6077, 6
    %v6122 = vrot.slane %v6121, 4
    %v6123 = vrot.slane %v6078, 6
    %v6124 = vsel %vm2601, %v6122, %v6123
    %v6125 = vrot.slane %v6079, 6
    %v6126 = vrot.slane %v6125, 4
    %v6127 = vrot.slane %v6080, 6
    %v6128 = vsel %vm2601, %v6126, %v6127
    %v6129 = vrot.slane %v6081, 6
    %v6130 = vrot.slane %v6129, 4
    %v6131 = vrot.slane %v6082, 6
    %v6132 = vsel %vm2601, %v6130, %v6131
    %v6133 = vrot.slane %v6083, 6
    %v6134 = vrot.slane %v6133, 4
    %v6135 = vrot.slane %v6084, 6
    %v6136 = vsel %vm2601, %v6134, %v6135
    %v6137 = vrot.slane %v6085, 6
    %v6138 = vrot.slane %v6137, 4
    %v6139 = vrot.slane %v6086, 6
    %v6140 = vsel %vm2601, %v6138, %v6139
    %v6141 = vrot.slane %v6087, 6
    %v6142 = vrot.slane %v6141, 4
    %v6143 = vrot.slane %v6088, 6
    %v6144 = vsel %vm2601, %v6142, %v6143
    %v6145 = vrot.slane %v6089, 6
    %v6146 = vrot.slane %v6145, 4
    %v6147 = vrot.slane %v6090, 6
    %v6148 = vsel %vm2601, %v6146, %v6147
    %v6149 = vrot.slane %v6091, 6
    %v6150 = vrot.slane %v6149, 4
    %v6151 = vrot.slane %v6092, 6
    %v6152 = vsel %vm2601, %v6150, %v6151
    %v6153 = vrot.slane %v6093, 6
    %v6154 = vrot.slane %v6153, 4
    %v6155 = vrot.slane %v6094, 6
    %v6156 = vsel %vm2601, %v6154, %v6155
    %v6157 = vrot.slane %v6095, 6
    %v6158 = vrot.slane %v6157, 4
    %v6159 = vrot.slane %v6096, 6
    %v6160 = vsel %vm2601, %v6158, %v6159
    %s6161 = scalar_lea.vmem [#allocation7], 896
    %v6162 = vld [vmem:[%s6161] sm:$0xf]
    %v6163 = vld [vmem:[%s6161 + $0x4] sm:$0xf]
    %v6164 = vld [vmem:[%s6161 + $0x8] sm:$0xf]
    %v6165 = vld [vmem:[%s6161 + $0xc] sm:$0xf]
    %v6166 = vld [vmem:[%s6161 + $0x10] sm:$0xf]
    %v6167 = vld [vmem:[%s6161 + $0x14] sm:$0xf]
    %v6168 = vld [vmem:[%s6161 + $0x18] sm:$0xf]
    %v6169 = vld [vmem:[%s6161 + $0x1c] sm:$0xf]
    %v6170 = vld [vmem:[%s6161 + $0x20] sm:$0xf]
    %v6171 = vld [vmem:[%s6161 + $0x24] sm:$0xf]
    %v6172 = vld [vmem:[%s6161 + $0x28] sm:$0xf]
    %v6173 = vld [vmem:[%s6161 + $0x2c] sm:$0xf]
    %v6174 = vld [vmem:[%s6161 + $0x30] sm:$0xf]
    %v6175 = vld [vmem:[%s6161 + $0x34] sm:$0xf]
    %v6176 = vld [vmem:[%s6161 + $0x38] sm:$0xf]
    %v6177 = vld [vmem:[%s6161 + $0x3c] sm:$0xf]
    %v6178 = vld [vmem:[%s6161 + $0x40] sm:$0xf]
    %v6179 = vld [vmem:[%s6161 + $0x44] sm:$0xf]
    %v6180 = vld [vmem:[%s6161 + $0x48] sm:$0xf]
    %v6181 = vld [vmem:[%s6161 + $0x4c] sm:$0xf]
    %v6182 = vld [vmem:[%s6161 + $0x50] sm:$0xf]
    %v6183 = vld [vmem:[%s6161 + $0x54] sm:$0xf]
    %v6184 = vld [vmem:[%s6161 + $0x58] sm:$0xf]
    %v6185 = vld [vmem:[%s6161 + $0x5c] sm:$0xf]
    %v6186 = vld [vmem:[%s6161 + $0x60] sm:$0xf]
    %v6187 = vld [vmem:[%s6161 + $0x64] sm:$0xf]
    %v6188 = vld [vmem:[%s6161 + $0x68] sm:$0xf]
    %v6189 = vld [vmem:[%s6161 + $0x6c] sm:$0xf]
    %v6190 = vld [vmem:[%s6161 + $0x70] sm:$0xf]
    %v6191 = vld [vmem:[%s6161 + $0x74] sm:$0xf]
    %v6192 = vld [vmem:[%s6161 + $0x78] sm:$0xf]
    %v6193 = vld [vmem:[%s6161 + $0x7c] sm:$0xf]
    %v6194 = vunpack.c.l.b16 %v6100
    %v6195 = vunpack.c.h.b16 %v6100
    %v6196 = vunpack.c.l.b16 %v6104
    %v6197 = vunpack.c.h.b16 %v6104
    %v6198 = vunpack.c.l.b16 %v6108
    %v6199 = vunpack.c.h.b16 %v6108
    %v6200 = vunpack.c.l.b16 %v6112
    %v6201 = vunpack.c.h.b16 %v6112
    %v6202 = vunpack.c.l.b16 %v6116
    %v6203 = vunpack.c.h.b16 %v6116
    %v6204 = vunpack.c.l.b16 %v6120
    %v6205 = vunpack.c.h.b16 %v6120
    %v6206 = vunpack.c.l.b16 %v6124
    %v6207 = vunpack.c.h.b16 %v6124
    %v6208 = vunpack.c.l.b16 %v6128
    %v6209 = vunpack.c.h.b16 %v6128
    %v6210 = vunpack.c.l.b16 %v6132
    %v6211 = vunpack.c.h.b16 %v6132
    %v6212 = vunpack.c.l.b16 %v6136
    %v6213 = vunpack.c.h.b16 %v6136
    %v6214 = vunpack.c.l.b16 %v6140
    %v6215 = vunpack.c.h.b16 %v6140
    %v6216 = vunpack.c.l.b16 %v6144
    %v6217 = vunpack.c.h.b16 %v6144
    %v6218 = vunpack.c.l.b16 %v6148
    %v6219 = vunpack.c.h.b16 %v6148
    %v6220 = vunpack.c.l.b16 %v6152
    %v6221 = vunpack.c.h.b16 %v6152
    %v6222 = vunpack.c.l.b16 %v6156
    %v6223 = vunpack.c.h.b16 %v6156
    %v6224 = vunpack.c.l.b16 %v6160
    %v6225 = vunpack.c.h.b16 %v6160
    %v6226 = vpack.c.b16 %v6196, %v6194
    %v6227 = vpack.c.b16 %v6197, %v6195
    %v6228 = vpack.c.b16 %v6200, %v6198
    %v6229 = vpack.c.b16 %v6201, %v6199
    %v6230 = vpack.c.b16 %v6204, %v6202
    %v6231 = vpack.c.b16 %v6205, %v6203
    %v6232 = vpack.c.b16 %v6208, %v6206
    %v6233 = vpack.c.b16 %v6209, %v6207
    %v6234 = vpack.c.b16 %v6212, %v6210
    %v6235 = vpack.c.b16 %v6213, %v6211
    %v6236 = vpack.c.b16 %v6216, %v6214
    %v6237 = vpack.c.b16 %v6217, %v6215
    %v6238 = vpack.c.b16 %v6220, %v6218
    %v6239 = vpack.c.b16 %v6221, %v6219
    %v6240 = vpack.c.b16 %v6224, %v6222
    %v6241 = vpack.c.b16 %v6225, %v6223
    %v6290 = vunpack.c.l.b16 %v6162
    %v6291 = vunpack.c.l.b16 %v6163
    %v6292 = vunpack.c.l.b16 %v6164
    %v6293 = vunpack.c.l.b16 %v6165
    %v6294 = vunpack.c.l.b16 %v6166
    %v6295 = vunpack.c.l.b16 %v6167
    %v6296 = vunpack.c.l.b16 %v6168
    %v6297 = vunpack.c.l.b16 %v6169
    %v6298 = vunpack.c.l.b16 %v6170
    %v6299 = vunpack.c.l.b16 %v6171
    %v6300 = vunpack.c.l.b16 %v6172
    %v6301 = vunpack.c.l.b16 %v6173
    %v6302 = vunpack.c.l.b16 %v6174
    %v6303 = vunpack.c.l.b16 %v6175
    %v6304 = vunpack.c.l.b16 %v6176
    %v6305 = vunpack.c.l.b16 %v6177
    %v6306 = vunpack.c.l.b16 %v6178
    %v6307 = vunpack.c.l.b16 %v6179
    %v6308 = vunpack.c.l.b16 %v6180
    %v6309 = vunpack.c.l.b16 %v6181
    %v6310 = vunpack.c.l.b16 %v6182
    %v6311 = vunpack.c.l.b16 %v6183
    %v6312 = vunpack.c.l.b16 %v6184
    %v6313 = vunpack.c.l.b16 %v6185
    %v6314 = vunpack.c.l.b16 %v6186
    %v6315 = vunpack.c.l.b16 %v6187
    %v6316 = vunpack.c.l.b16 %v6188
    %v6317 = vunpack.c.l.b16 %v6189
    %v6318 = vunpack.c.l.b16 %v6190
    %v6319 = vunpack.c.l.b16 %v6191
    %v6320 = vunpack.c.l.b16 %v6192
    %v6321 = vunpack.c.l.b16 %v6193
    %v6322 = vpack.c.b16 %v6291, %v6290
    %v6323 = vpack.c.b16 %v6293, %v6292
    %v6324 = vpack.c.b16 %v6295, %v6294
    %v6325 = vpack.c.b16 %v6297, %v6296
    %v6326 = vpack.c.b16 %v6299, %v6298
    %v6327 = vpack.c.b16 %v6301, %v6300
    %v6328 = vpack.c.b16 %v6303, %v6302
    %v6329 = vpack.c.b16 %v6305, %v6304
    %v6330 = vpack.c.b16 %v6307, %v6306
    %v6331 = vpack.c.b16 %v6309, %v6308
    %v6332 = vpack.c.b16 %v6311, %v6310
    %v6333 = vpack.c.b16 %v6313, %v6312
    %v6334 = vpack.c.b16 %v6315, %v6314
    %v6335 = vpack.c.b16 %v6317, %v6316
    %v6336 = vpack.c.b16 %v6319, %v6318
    %v6337 = vpack.c.b16 %v6321, %v6320
    %6354 = vmatpush.bf16.msra.mxu0 %v6329
    %6355 = vmatpush.bf16.msra.mxu0 %v6328
    %6356 = vmatpush.bf16.msra.mxu0 %v6327
    %6357 = vmatpush.bf16.msra.mxu0 %v6326
    %6358 = vmatpush.bf16.msra.mxu0 %v6325
    %6359 = vmatpush.bf16.msra.mxu0 %v6324
    %6360 = vmatpush.bf16.msra.mxu0 %v6323
    %6361 = vmatpush.bf16.msra.mxu0 %v6322
    %6362 = vmatmul.bf16.gmra.mxu0 %v6226
    %v6363 = vpop.f32.mrf.mxu0
    %v6364 = vadd.f32 0.0, %v6363
    %v6365 = vpop.f32.mrf.mxu0
    %v6366 = vadd.f32 0.0, %v6365
    %6367 = vmatmul.bf16.gmra.mxu0 %v6228
    %v6368 = vpop.f32.mrf.mxu0
    %v6369 = vadd.f32 0.0, %v6368
    %v6370 = vpop.f32.mrf.mxu0
    %v6371 = vadd.f32 0.0, %v6370
    %6372 = vmatmul.bf16.gmra.mxu0 %v6230
    %v6373 = vpop.f32.mrf.mxu0
    %v6374 = vadd.f32 0.0, %v6373
    %v6375 = vpop.f32.mrf.mxu0
    %v6376 = vadd.f32 0.0, %v6375
    %6377 = vmatmul.bf16.gmra.mxu0 %v6232
    %v6378 = vpop.f32.mrf.mxu0
    %v6379 = vadd.f32 0.0, %v6378
    %v6380 = vpop.f32.mrf.mxu0
    %v6381 = vadd.f32 0.0, %v6380
    %6382 = vmatmul.bf16.gmra.mxu0 %v6234
    %v6383 = vpop.f32.mrf.mxu0
    %v6384 = vadd.f32 0.0, %v6383
    %v6385 = vpop.f32.mrf.mxu0
    %v6386 = vadd.f32 0.0, %v6385
    %6387 = vmatmul.bf16.gmra.mxu0 %v6236
    %v6388 = vpop.f32.mrf.mxu0
    %v6389 = vadd.f32 0.0, %v6388
    %v6390 = vpop.f32.mrf.mxu0
    %v6391 = vadd.f32 0.0, %v6390
    %6392 = vmatmul.bf16.gmra.mxu0 %v6238
    %v6393 = vpop.f32.mrf.mxu0
    %v6394 = vadd.f32 0.0, %v6393
    %v6395 = vpop.f32.mrf.mxu0
    %v6396 = vadd.f32 0.0, %v6395
    %6397 = vmatmul.bf16.gmra.mxu0 %v6240
    %v6398 = vpop.f32.mrf.mxu0
    %v6399 = vadd.f32 0.0, %v6398
    %v6400 = vpop.f32.mrf.mxu0
    %v6401 = vadd.f32 0.0, %v6400
    %6402 = vdwg.mxu0
    %6403 = vmatpush.bf16.msra.mxu0 %v6337
    %6404 = vmatpush.bf16.msra.mxu0 %v6336
    %6405 = vmatpush.bf16.msra.mxu0 %v6335
    %6406 = vmatpush.bf16.msra.mxu0 %v6334
    %6407 = vmatpush.bf16.msra.mxu0 %v6333
    %6408 = vmatpush.bf16.msra.mxu0 %v6332
    %6409 = vmatpush.bf16.msra.mxu0 %v6331
    %6410 = vmatpush.bf16.msra.mxu0 %v6330
    %6411 = vmatmul.bf16.gmra.mxu0 %v6227
    %v6412 = vpop.f32.mrf.mxu0
    %v6413 = vadd.f32 %v6364, %v6412
    %v6414 = vpop.f32.mrf.mxu0
    %v6415 = vadd.f32 %v6366, %v6414
    %6416 = vmatmul.bf16.gmra.mxu0 %v6229
    %v6417 = vpop.f32.mrf.mxu0
    %v6418 = vadd.f32 %v6369, %v6417
    %v6419 = vpop.f32.mrf.mxu0
    %v6420 = vadd.f32 %v6371, %v6419
    %6421 = vmatmul.bf16.gmra.mxu0 %v6231
    %v6422 = vpop.f32.mrf.mxu0
    %v6423 = vadd.f32 %v6374, %v6422
    %v6424 = vpop.f32.mrf.mxu0
    %v6425 = vadd.f32 %v6376, %v6424
    %6426 = vmatmul.bf16.gmra.mxu0 %v6233
    %v6427 = vpop.f32.mrf.mxu0
    %v6428 = vadd.f32 %v6379, %v6427
    %v6429 = vpop.f32.mrf.mxu0
    %v6430 = vadd.f32 %v6381, %v6429
    %6431 = vmatmul.bf16.gmra.mxu0 %v6235
    %v6432 = vpop.f32.mrf.mxu0
    %v6433 = vadd.f32 %v6384, %v6432
    %v6434 = vpop.f32.mrf.mxu0
    %v6435 = vadd.f32 %v6386, %v6434
    %6436 = vmatmul.bf16.gmra.mxu0 %v6237
    %v6437 = vpop.f32.mrf.mxu0
    %v6438 = vadd.f32 %v6389, %v6437
    %v6439 = vpop.f32.mrf.mxu0
    %v6440 = vadd.f32 %v6391, %v6439
    %6441 = vmatmul.bf16.gmra.mxu0 %v6239
    %v6442 = vpop.f32.mrf.mxu0
    %v6443 = vadd.f32 %v6394, %v6442
    %v6444 = vpop.f32.mrf.mxu0
    %v6445 = vadd.f32 %v6396, %v6444
    %6446 = vmatmul.bf16.gmra.mxu0 %v6241
    %v6447 = vpop.f32.mrf.mxu0
    %v6448 = vadd.f32 %v6399, %v6447
    %v6449 = vpop.f32.mrf.mxu0
    %v6450 = vadd.f32 %v6401, %v6449
    %6451 = vdwg.mxu0
    %v6452 = vadd.f32 %v5888, %v6413
    %v6453 = vadd.f32 %v5889, %v6415
    %v6454 = vadd.f32 %v5890, %v6418
    %v6455 = vadd.f32 %v5891, %v6420
    %v6456 = vadd.f32 %v5892, %v6423
    %v6457 = vadd.f32 %v5893, %v6425
    %v6458 = vadd.f32 %v5894, %v6428
    %v6459 = vadd.f32 %v5895, %v6430
    %v6460 = vadd.f32 %v5896, %v6433
    %v6461 = vadd.f32 %v5897, %v6435
    %v6462 = vadd.f32 %v5898, %v6438
    %v6463 = vadd.f32 %v5899, %v6440
    %v6464 = vadd.f32 %v5900, %v6443
    %v6465 = vadd.f32 %v5901, %v6445
    %v6466 = vadd.f32 %v5902, %v6448
    %v6467 = vadd.f32 %v5903, %v6450
    %v6468 = vld [vmem:[%s5920] sm:$0xf]
    %v6469 = vld [vmem:[%s5920 + $0x4] sm:$0x1]
    %v6470 = vld [vmem:[%s5920 + $0x8] sm:$0xf]
    %v6471 = vld [vmem:[%s5920 + $0xc] sm:$0x1]
    %v6472 = vld [vmem:[%s5920 + $0x10] sm:$0xf]
    %v6473 = vld [vmem:[%s5920 + $0x14] sm:$0x1]
    %v6474 = vld [vmem:[%s5920 + $0x18] sm:$0xf]
    %v6475 = vld [vmem:[%s5920 + $0x1c] sm:$0x1]
    %v6476 = vld [vmem:[%s5920 + $0x20] sm:$0xf]
    %v6477 = vld [vmem:[%s5920 + $0x24] sm:$0x1]
    %v6478 = vld [vmem:[%s5920 + $0x28] sm:$0xf]
    %v6479 = vld [vmem:[%s5920 + $0x2c] sm:$0x1]
    %v6480 = vld [vmem:[%s5920 + $0x30] sm:$0xf]
    %v6481 = vld [vmem:[%s5920 + $0x34] sm:$0x1]
    %v6482 = vld [vmem:[%s5920 + $0x38] sm:$0xf]
    %v6483 = vld [vmem:[%s5920 + $0x3c] sm:$0x1]
    %v6484 = vld [vmem:[%s5920 + $0x60] sm:$0xf]
    %v6485 = vld [vmem:[%s5920 + $0x64] sm:$0x1]
    %v6486 = vld [vmem:[%s5920 + $0x68] sm:$0xf]
    %v6487 = vld [vmem:[%s5920 + $0x6c] sm:$0x1]
    %v6488 = vld [vmem:[%s5920 + $0x70] sm:$0xf]
    %v6489 = vld [vmem:[%s5920 + $0x74] sm:$0x1]
    %v6490 = vld [vmem:[%s5920 + $0x78] sm:$0xf]
    %v6491 = vld [vmem:[%s5920 + $0x7c] sm:$0x1]
    %v6492 = vld [vmem:[%s5920 + $0x80] sm:$0xf]
    %v6493 = vld [vmem:[%s5920 + $0x84] sm:$0x1]
    %v6494 = vld [vmem:[%s5920 + $0x88] sm:$0xf]
    %v6495 = vld [vmem:[%s5920 + $0x8c] sm:$0x1]
    %v6496 = vld [vmem:[%s5920 + $0x90] sm:$0xf]
    %v6497 = vld [vmem:[%s5920 + $0x94] sm:$0x1]
    %v6498 = vld [vmem:[%s5920 + $0x98] sm:$0xf]
    %v6499 = vld [vmem:[%s5920 + $0x9c] sm:$0x1]
    %v6500 = vld [vmem:[%s5920] sm:$0xe]
    %v6501 = vld [vmem:[%s5920 + $0x8] sm:$0xe]
    %v6502 = vld [vmem:[%s5920 + $0x10] sm:$0xe]
    %v6503 = vld [vmem:[%s5920 + $0x18] sm:$0xe]
    %v6504 = vld [vmem:[%s5920 + $0x20] sm:$0xe]
    %v6505 = vld [vmem:[%s5920 + $0x28] sm:$0xe]
    %v6506 = vld [vmem:[%s5920 + $0x30] sm:$0xe]
    %v6507 = vld [vmem:[%s5920 + $0x38] sm:$0xe]
    %v6508 = vld [vmem:[%s5920 + $0x60] sm:$0xe]
    %v6509 = vld [vmem:[%s5920 + $0x68] sm:$0xe]
    %v6510 = vld [vmem:[%s5920 + $0x70] sm:$0xe]
    %v6511 = vld [vmem:[%s5920 + $0x78] sm:$0xe]
    %v6512 = vld [vmem:[%s5920 + $0x80] sm:$0xe]
    %v6513 = vld [vmem:[%s5920 + $0x88] sm:$0xe]
    %v6514 = vld [vmem:[%s5920 + $0x90] sm:$0xe]
    %v6515 = vld [vmem:[%s5920 + $0x98] sm:$0xe]
    %v6548 = vunpack.c.l.b16 %v6468
    %v6549 = vunpack.c.l.b16 %v6469
    %v6550 = vunpack.c.l.b16 %v6470
    %v6551 = vunpack.c.l.b16 %v6471
    %v6552 = vunpack.c.l.b16 %v6472
    %v6553 = vunpack.c.l.b16 %v6473
    %v6554 = vunpack.c.l.b16 %v6474
    %v6555 = vunpack.c.l.b16 %v6475
    %v6556 = vunpack.c.l.b16 %v6476
    %v6557 = vunpack.c.l.b16 %v6477
    %v6558 = vunpack.c.l.b16 %v6478
    %v6559 = vunpack.c.l.b16 %v6479
    %v6560 = vunpack.c.l.b16 %v6480
    %v6561 = vunpack.c.l.b16 %v6481
    %v6562 = vunpack.c.l.b16 %v6482
    %v6563 = vunpack.c.l.b16 %v6483
    %v6564 = vunpack.c.l.b16 %v6484
    %v6565 = vunpack.c.l.b16 %v6485
    %v6566 = vunpack.c.l.b16 %v6486
    %v6567 = vunpack.c.l.b16 %v6487
    %v6568 = vunpack.c.l.b16 %v6488
    %v6569 = vunpack.c.l.b16 %v6489
    %v6570 = vunpack.c.l.b16 %v6490
    %v6571 = vunpack.c.l.b16 %v6491
    %v6572 = vunpack.c.l.b16 %v6492
    %v6573 = vunpack.c.l.b16 %v6493
    %v6574 = vunpack.c.l.b16 %v6494
    %v6575 = vunpack.c.l.b16 %v6495
    %v6576 = vunpack.c.l.b16 %v6496
    %v6577 = vunpack.c.l.b16 %v6497
    %v6578 = vunpack.c.l.b16 %v6498
    %v6579 = vunpack.c.l.b16 %v6499
    %v6596 = vunpack.c.l.b16 %v6500
    %v6597 = vunpack.c.l.b16 %v6501
    %v6598 = vunpack.c.l.b16 %v6502
    %v6599 = vunpack.c.l.b16 %v6503
    %v6600 = vunpack.c.l.b16 %v6504
    %v6601 = vunpack.c.l.b16 %v6505
    %v6602 = vunpack.c.l.b16 %v6506
    %v6603 = vunpack.c.l.b16 %v6507
    %v6604 = vunpack.c.l.b16 %v6508
    %v6605 = vunpack.c.l.b16 %v6509
    %v6606 = vunpack.c.l.b16 %v6510
    %v6607 = vunpack.c.l.b16 %v6511
    %v6608 = vunpack.c.l.b16 %v6512
    %v6609 = vunpack.c.l.b16 %v6513
    %v6610 = vunpack.c.l.b16 %v6514
    %v6611 = vunpack.c.l.b16 %v6515
    %v6612 = vpack.c.b16 %v6549, %v6596
    %v6613 = vpack.c.b16 %v6551, %v6597
    %v6614 = vpack.c.b16 %v6553, %v6598
    %v6615 = vpack.c.b16 %v6555, %v6599
    %v6616 = vpack.c.b16 %v6557, %v6600
    %v6617 = vpack.c.b16 %v6559, %v6601
    %v6618 = vpack.c.b16 %v6561, %v6602
    %v6619 = vpack.c.b16 %v6563, %v6603
    %v6620 = vpack.c.b16 %v6565, %v6604
    %v6621 = vpack.c.b16 %v6567, %v6605
    %v6622 = vpack.c.b16 %v6569, %v6606
    %v6623 = vpack.c.b16 %v6571, %v6607
    %v6624 = vpack.c.b16 %v6573, %v6608
    %v6625 = vpack.c.b16 %v6575, %v6609
    %v6626 = vpack.c.b16 %v6577, %v6610
    %v6627 = vpack.c.b16 %v6579, %v6611
    %v6629 = vshrl.u32 %v6612, 16
    %v6631 = vshll.u32 %v6612, 16
    %v6633 = vrot.slane %v6631, 1
    %v6634 = vor.u32 %v6629, %v6633
    %v6636 = vshrl.u32 %v6613, 16
    %v6638 = vshll.u32 %v6613, 16
    %v6640 = vrot.slane %v6638, 1
    %v6641 = vor.u32 %v6636, %v6640
    %v6643 = vshrl.u32 %v6614, 16
    %v6645 = vshll.u32 %v6614, 16
    %v6647 = vrot.slane %v6645, 1
    %v6648 = vor.u32 %v6643, %v6647
    %v6650 = vshrl.u32 %v6615, 16
    %v6652 = vshll.u32 %v6615, 16
    %v6654 = vrot.slane %v6652, 1
    %v6655 = vor.u32 %v6650, %v6654
    %v6657 = vshrl.u32 %v6616, 16
    %v6659 = vshll.u32 %v6616, 16
    %v6661 = vrot.slane %v6659, 1
    %v6662 = vor.u32 %v6657, %v6661
    %v6664 = vshrl.u32 %v6617, 16
    %v6666 = vshll.u32 %v6617, 16
    %v6668 = vrot.slane %v6666, 1
    %v6669 = vor.u32 %v6664, %v6668
    %v6671 = vshrl.u32 %v6618, 16
    %v6673 = vshll.u32 %v6618, 16
    %v6675 = vrot.slane %v6673, 1
    %v6676 = vor.u32 %v6671, %v6675
    %v6678 = vshrl.u32 %v6619, 16
    %v6680 = vshll.u32 %v6619, 16
    %v6682 = vrot.slane %v6680, 1
    %v6683 = vor.u32 %v6678, %v6682
    %v6685 = vshrl.u32 %v6620, 16
    %v6687 = vshll.u32 %v6620, 16
    %v6689 = vrot.slane %v6687, 1
    %v6690 = vor.u32 %v6685, %v6689
    %v6692 = vshrl.u32 %v6621, 16
    %v6694 = vshll.u32 %v6621, 16
    %v6696 = vrot.slane %v6694, 1
    %v6697 = vor.u32 %v6692, %v6696
    %v6699 = vshrl.u32 %v6622, 16
    %v6701 = vshll.u32 %v6622, 16
    %v6703 = vrot.slane %v6701, 1
    %v6704 = vor.u32 %v6699, %v6703
    %v6706 = vshrl.u32 %v6623, 16
    %v6708 = vshll.u32 %v6623, 16
    %v6710 = vrot.slane %v6708, 1
    %v6711 = vor.u32 %v6706, %v6710
    %v6713 = vshrl.u32 %v6624, 16
    %v6715 = vshll.u32 %v6624, 16
    %v6717 = vrot.slane %v6715, 1
    %v6718 = vor.u32 %v6713, %v6717
    %v6720 = vshrl.u32 %v6625, 16
    %v6722 = vshll.u32 %v6625, 16
    %v6724 = vrot.slane %v6722, 1
    %v6725 = vor.u32 %v6720, %v6724
    %v6727 = vshrl.u32 %v6626, 16
    %v6729 = vshll.u32 %v6626, 16
    %v6731 = vrot.slane %v6729, 1
    %v6732 = vor.u32 %v6727, %v6731
    %v6734 = vshrl.u32 %v6627, 16
    %v6736 = vshll.u32 %v6627, 16
    %v6738 = vrot.slane %v6736, 1
    %v6739 = vor.u32 %v6734, %v6738
    %v6740 = vunpack.c.l.b16 %v6634
    %v6741 = vunpack.c.h.b16 %v6634
    %v6742 = vunpack.c.l.b16 %v6641
    %v6743 = vunpack.c.h.b16 %v6641
    %v6744 = vunpack.c.l.b16 %v6648
    %v6745 = vunpack.c.h.b16 %v6648
    %v6746 = vunpack.c.l.b16 %v6655
    %v6747 = vunpack.c.h.b16 %v6655
    %v6748 = vunpack.c.l.b16 %v6662
    %v6749 = vunpack.c.h.b16 %v6662
    %v6750 = vunpack.c.l.b16 %v6669
    %v6751 = vunpack.c.h.b16 %v6669
    %v6752 = vunpack.c.l.b16 %v6676
    %v6753 = vunpack.c.h.b16 %v6676
    %v6754 = vunpack.c.l.b16 %v6683
    %v6755 = vunpack.c.h.b16 %v6683
    %v6756 = vunpack.c.l.b16 %v6690
    %v6757 = vunpack.c.h.b16 %v6690
    %v6758 = vunpack.c.l.b16 %v6697
    %v6759 = vunpack.c.h.b16 %v6697
    %v6760 = vunpack.c.l.b16 %v6704
    %v6761 = vunpack.c.h.b16 %v6704
    %v6762 = vunpack.c.l.b16 %v6711
    %v6763 = vunpack.c.h.b16 %v6711
    %v6764 = vunpack.c.l.b16 %v6718
    %v6765 = vunpack.c.h.b16 %v6718
    %v6766 = vunpack.c.l.b16 %v6725
    %v6767 = vunpack.c.h.b16 %v6725
    %v6768 = vunpack.c.l.b16 %v6732
    %v6769 = vunpack.c.h.b16 %v6732
    %v6770 = vunpack.c.l.b16 %v6739
    %v6771 = vunpack.c.h.b16 %v6739
    %v6772 = vpack.c.b16 %v6740, %v6548
    %v6773 = vpack.c.b16 %v6741, %v6549
    %v6774 = vpack.c.b16 %v6742, %v6550
    %v6775 = vpack.c.b16 %v6743, %v6551
    %v6776 = vpack.c.b16 %v6744, %v6552
    %v6777 = vpack.c.b16 %v6745, %v6553
    %v6778 = vpack.c.b16 %v6746, %v6554
    %v6779 = vpack.c.b16 %v6747, %v6555
    %v6780 = vpack.c.b16 %v6748, %v6556
    %v6781 = vpack.c.b16 %v6749, %v6557
    %v6782 = vpack.c.b16 %v6750, %v6558
    %v6783 = vpack.c.b16 %v6751, %v6559
    %v6784 = vpack.c.b16 %v6752, %v6560
    %v6785 = vpack.c.b16 %v6753, %v6561
    %v6786 = vpack.c.b16 %v6754, %v6562
    %v6787 = vpack.c.b16 %v6755, %v6563
    %v6788 = vpack.c.b16 %v6756, %v6564
    %v6789 = vpack.c.b16 %v6757, %v6565
    %v6790 = vpack.c.b16 %v6758, %v6566
    %v6791 = vpack.c.b16 %v6759, %v6567
    %v6792 = vpack.c.b16 %v6760, %v6568
    %v6793 = vpack.c.b16 %v6761, %v6569
    %v6794 = vpack.c.b16 %v6762, %v6570
    %v6795 = vpack.c.b16 %v6763, %v6571
    %v6796 = vpack.c.b16 %v6764, %v6572
    %v6797 = vpack.c.b16 %v6765, %v6573
    %v6798 = vpack.c.b16 %v6766, %v6574
    %v6799 = vpack.c.b16 %v6767, %v6575
    %v6800 = vpack.c.b16 %v6768, %v6576
    %v6801 = vpack.c.b16 %v6769, %v6577
    %v6802 = vpack.c.b16 %v6770, %v6578
    %v6803 = vpack.c.b16 %v6771, %v6579
    %v6805 = vshrl.u32 %v6772, 16
    %v6807 = vrot.slane %v6805, 4
    %v6808 = vshll.u32 %v6772, 16
    %v6810 = vrot.slane %v6808, 5
    %v6811 = vor.u32 %v6807, %v6810
    %v6812 = vrot.slane %v6811, 4
    %v6814 = vshll.u32 %v6773, 16
    %v6816 = vrot.slane %v6814, 5
    %v6817 = vsel %vm3311, %v6812, %v6816
    %v6819 = vshrl.u32 %v6774, 16
    %v6821 = vrot.slane %v6819, 4
    %v6822 = vshll.u32 %v6774, 16
    %v6824 = vrot.slane %v6822, 5
    %v6825 = vor.u32 %v6821, %v6824
    %v6826 = vrot.slane %v6825, 4
    %v6828 = vshll.u32 %v6775, 16
    %v6830 = vrot.slane %v6828, 5
    %v6831 = vsel %vm3311, %v6826, %v6830
    %v6833 = vshrl.u32 %v6776, 16
    %v6835 = vrot.slane %v6833, 4
    %v6836 = vshll.u32 %v6776, 16
    %v6838 = vrot.slane %v6836, 5
    %v6839 = vor.u32 %v6835, %v6838
    %v6840 = vrot.slane %v6839, 4
    %v6842 = vshll.u32 %v6777, 16
    %v6844 = vrot.slane %v6842, 5
    %v6845 = vsel %vm3311, %v6840, %v6844
    %v6847 = vshrl.u32 %v6778, 16
    %v6849 = vrot.slane %v6847, 4
    %v6850 = vshll.u32 %v6778, 16
    %v6852 = vrot.slane %v6850, 5
    %v6853 = vor.u32 %v6849, %v6852
    %v6854 = vrot.slane %v6853, 4
    %v6856 = vshll.u32 %v6779, 16
    %v6858 = vrot.slane %v6856, 5
    %v6859 = vsel %vm3311, %v6854, %v6858
    %v6861 = vshrl.u32 %v6780, 16
    %v6863 = vrot.slane %v6861, 4
    %v6864 = vshll.u32 %v6780, 16
    %v6866 = vrot.slane %v6864, 5
    %v6867 = vor.u32 %v6863, %v6866
    %v6868 = vrot.slane %v6867, 4
    %v6870 = vshll.u32 %v6781, 16
    %v6872 = vrot.slane %v6870, 5
    %v6873 = vsel %vm3311, %v6868, %v6872
    %v6875 = vshrl.u32 %v6782, 16
    %v6877 = vrot.slane %v6875, 4
    %v6878 = vshll.u32 %v6782, 16
    %v6880 = vrot.slane %v6878, 5
    %v6881 = vor.u32 %v6877, %v6880
    %v6882 = vrot.slane %v6881, 4
    %v6884 = vshll.u32 %v6783, 16
    %v6886 = vrot.slane %v6884, 5
    %v6887 = vsel %vm3311, %v6882, %v6886
    %v6889 = vshrl.u32 %v6784, 16
    %v6891 = vrot.slane %v6889, 4
    %v6892 = vshll.u32 %v6784, 16
    %v6894 = vrot.slane %v6892, 5
    %v6895 = vor.u32 %v6891, %v6894
    %v6896 = vrot.slane %v6895, 4
    %v6898 = vshll.u32 %v6785, 16
    %v6900 = vrot.slane %v6898, 5
    %v6901 = vsel %vm3311, %v6896, %v6900
    %v6903 = vshrl.u32 %v6786, 16
    %v6905 = vrot.slane %v6903, 4
    %v6906 = vshll.u32 %v6786, 16
    %v6908 = vrot.slane %v6906, 5
    %v6909 = vor.u32 %v6905, %v6908
    %v6910 = vrot.slane %v6909, 4
    %v6912 = vshll.u32 %v6787, 16
    %v6914 = vrot.slane %v6912, 5
    %v6915 = vsel %vm3311, %v6910, %v6914
    %v6917 = vshrl.u32 %v6788, 16
    %v6919 = vrot.slane %v6917, 4
    %v6920 = vshll.u32 %v6788, 16
    %v6922 = vrot.slane %v6920, 5
    %v6923 = vor.u32 %v6919, %v6922
    %v6924 = vrot.slane %v6923, 4
    %v6926 = vshll.u32 %v6789, 16
    %v6928 = vrot.slane %v6926, 5
    %v6929 = vsel %vm3311, %v6924, %v6928
    %v6931 = vshrl.u32 %v6790, 16
    %v6933 = vrot.slane %v6931, 4
    %v6934 = vshll.u32 %v6790, 16
    %v6936 = vrot.slane %v6934, 5
    %v6937 = vor.u32 %v6933, %v6936
    %v6938 = vrot.slane %v6937, 4
    %v6940 = vshll.u32 %v6791, 16
    %v6942 = vrot.slane %v6940, 5
    %v6943 = vsel %vm3311, %v6938, %v6942
    %v6945 = vshrl.u32 %v6792, 16
    %v6947 = vrot.slane %v6945, 4
    %v6948 = vshll.u32 %v6792, 16
    %v6950 = vrot.slane %v6948, 5
    %v6951 = vor.u32 %v6947, %v6950
    %v6952 = vrot.slane %v6951, 4
    %v6954 = vshll.u32 %v6793, 16
    %v6956 = vrot.slane %v6954, 5
    %v6957 = vsel %vm3311, %v6952, %v6956
    %v6959 = vshrl.u32 %v6794, 16
    %v6961 = vrot.slane %v6959, 4
    %v6962 = vshll.u32 %v6794, 16
    %v6964 = vrot.slane %v6962, 5
    %v6965 = vor.u32 %v6961, %v6964
    %v6966 = vrot.slane %v6965, 4
    %v6968 = vshll.u32 %v6795, 16
    %v6970 = vrot.slane %v6968, 5
    %v6971 = vsel %vm3311, %v6966, %v6970
    %v6973 = vshrl.u32 %v6796, 16
    %v6975 = vrot.slane %v6973, 4
    %v6976 = vshll.u32 %v6796, 16
    %v6978 = vrot.slane %v6976, 5
    %v6979 = vor.u32 %v6975, %v6978
    %v6980 = vrot.slane %v6979, 4
    %v6982 = vshll.u32 %v6797, 16
    %v6984 = vrot.slane %v6982, 5
    %v6985 = vsel %vm3311, %v6980, %v6984
    %v6987 = vshrl.u32 %v6798, 16
    %v6989 = vrot.slane %v6987, 4
    %v6990 = vshll.u32 %v6798, 16
    %v6992 = vrot.slane %v6990, 5
    %v6993 = vor.u32 %v6989, %v6992
    %v6994 = vrot.slane %v6993, 4
    %v6996 = vshll.u32 %v6799, 16
    %v6998 = vrot.slane %v6996, 5
    %v6999 = vsel %vm3311, %v6994, %v6998
    %v7001 = vshrl.u32 %v6800, 16
    %v7003 = vrot.slane %v7001, 4
    %v7004 = vshll.u32 %v6800, 16
    %v7006 = vrot.slane %v7004, 5
    %v7007 = vor.u32 %v7003, %v7006
    %v7008 = vrot.slane %v7007, 4
    %v7010 = vshll.u32 %v6801, 16
    %v7012 = vrot.slane %v7010, 5
    %v7013 = vsel %vm3311, %v7008, %v7012
    %v7015 = vshrl.u32 %v6802, 16
    %v7017 = vrot.slane %v7015, 4
    %v7018 = vshll.u32 %v6802, 16
    %v7020 = vrot.slane %v7018, 5
    %v7021 = vor.u32 %v7017, %v7020
    %v7022 = vrot.slane %v7021, 4
    %v7024 = vshll.u32 %v6803, 16
    %v7026 = vrot.slane %v7024, 5
    %v7027 = vsel %vm3311, %v7022, %v7026
    %s7028 = scalar_lea.vmem [#allocation7], 1024
    %v7029 = vld [vmem:[%s7028] sm:$0xf]
    %v7030 = vld [vmem:[%s7028 + $0x4] sm:$0xf]
    %v7031 = vld [vmem:[%s7028 + $0x8] sm:$0xf]
    %v7032 = vld [vmem:[%s7028 + $0xc] sm:$0xf]
    %v7033 = vld [vmem:[%s7028 + $0x10] sm:$0xf]
    %v7034 = vld [vmem:[%s7028 + $0x14] sm:$0xf]
    %v7035 = vld [vmem:[%s7028 + $0x18] sm:$0xf]
    %v7036 = vld [vmem:[%s7028 + $0x1c] sm:$0xf]
    %v7037 = vld [vmem:[%s7028 + $0x20] sm:$0xf]
    %v7038 = vld [vmem:[%s7028 + $0x24] sm:$0xf]
    %v7039 = vld [vmem:[%s7028 + $0x28] sm:$0xf]
    %v7040 = vld [vmem:[%s7028 + $0x2c] sm:$0xf]
    %v7041 = vld [vmem:[%s7028 + $0x30] sm:$0xf]
    %v7042 = vld [vmem:[%s7028 + $0x34] sm:$0xf]
    %v7043 = vld [vmem:[%s7028 + $0x38] sm:$0xf]
    %v7044 = vld [vmem:[%s7028 + $0x3c] sm:$0xf]
    %v7045 = vld [vmem:[%s7028 + $0x40] sm:$0xf]
    %v7046 = vld [vmem:[%s7028 + $0x44] sm:$0xf]
    %v7047 = vld [vmem:[%s7028 + $0x48] sm:$0xf]
    %v7048 = vld [vmem:[%s7028 + $0x4c] sm:$0xf]
    %v7049 = vld [vmem:[%s7028 + $0x50] sm:$0xf]
    %v7050 = vld [vmem:[%s7028 + $0x54] sm:$0xf]
    %v7051 = vld [vmem:[%s7028 + $0x58] sm:$0xf]
    %v7052 = vld [vmem:[%s7028 + $0x5c] sm:$0xf]
    %v7053 = vld [vmem:[%s7028 + $0x60] sm:$0xf]
    %v7054 = vld [vmem:[%s7028 + $0x64] sm:$0xf]
    %v7055 = vld [vmem:[%s7028 + $0x68] sm:$0xf]
    %v7056 = vld [vmem:[%s7028 + $0x6c] sm:$0xf]
    %v7057 = vld [vmem:[%s7028 + $0x70] sm:$0xf]
    %v7058 = vld [vmem:[%s7028 + $0x74] sm:$0xf]
    %v7059 = vld [vmem:[%s7028 + $0x78] sm:$0xf]
    %v7060 = vld [vmem:[%s7028 + $0x7c] sm:$0xf]
    %v7061 = vunpack.c.l.b16 %v6817
    %v7062 = vunpack.c.h.b16 %v6817
    %v7063 = vunpack.c.l.b16 %v6831
    %v7064 = vunpack.c.h.b16 %v6831
    %v7065 = vunpack.c.l.b16 %v6845
    %v7066 = vunpack.c.h.b16 %v6845
    %v7067 = vunpack.c.l.b16 %v6859
    %v7068 = vunpack.c.h.b16 %v6859
    %v7069 = vunpack.c.l.b16 %v6873
    %v7070 = vunpack.c.h.b16 %v6873
    %v7071 = vunpack.c.l.b16 %v6887
    %v7072 = vunpack.c.h.b16 %v6887
    %v7073 = vunpack.c.l.b16 %v6901
    %v7074 = vunpack.c.h.b16 %v6901
    %v7075 = vunpack.c.l.b16 %v6915
    %v7076 = vunpack.c.h.b16 %v6915
    %v7077 = vunpack.c.l.b16 %v6929
    %v7078 = vunpack.c.h.b16 %v6929
    %v7079 = vunpack.c.l.b16 %v6943
    %v7080 = vunpack.c.h.b16 %v6943
    %v7081 = vunpack.c.l.b16 %v6957
    %v7082 = vunpack.c.h.b16 %v6957
    %v7083 = vunpack.c.l.b16 %v6971
    %v7084 = vunpack.c.h.b16 %v6971
    %v7085 = vunpack.c.l.b16 %v6985
    %v7086 = vunpack.c.h.b16 %v6985
    %v7087 = vunpack.c.l.b16 %v6999
    %v7088 = vunpack.c.h.b16 %v6999
    %v7089 = vunpack.c.l.b16 %v7013
    %v7090 = vunpack.c.h.b16 %v7013
    %v7091 = vunpack.c.l.b16 %v7027
    %v7092 = vunpack.c.h.b16 %v7027
    %v7093 = vpack.c.b16 %v7063, %v7061
    %v7094 = vpack.c.b16 %v7064, %v7062
    %v7095 = vpack.c.b16 %v7067, %v7065
    %v7096 = vpack.c.b16 %v7068, %v7066
    %v7097 = vpack.c.b16 %v7071, %v7069
    %v7098 = vpack.c.b16 %v7072, %v7070
    %v7099 = vpack.c.b16 %v7075, %v7073
    %v7100 = vpack.c.b16 %v7076, %v7074
    %v7101 = vpack.c.b16 %v7079, %v7077
    %v7102 = vpack.c.b16 %v7080, %v7078
    %v7103 = vpack.c.b16 %v7083, %v7081
    %v7104 = vpack.c.b16 %v7084, %v7082
    %v7105 = vpack.c.b16 %v7087, %v7085
    %v7106 = vpack.c.b16 %v7088, %v7086
    %v7107 = vpack.c.b16 %v7091, %v7089
    %v7108 = vpack.c.b16 %v7092, %v7090
    %v7157 = vunpack.c.l.b16 %v7029
    %v7158 = vunpack.c.l.b16 %v7030
    %v7159 = vunpack.c.l.b16 %v7031
    %v7160 = vunpack.c.l.b16 %v7032
    %v7161 = vunpack.c.l.b16 %v7033
    %v7162 = vunpack.c.l.b16 %v7034
    %v7163 = vunpack.c.l.b16 %v7035
    %v7164 = vunpack.c.l.b16 %v7036
    %v7165 = vunpack.c.l.b16 %v7037
    %v7166 = vunpack.c.l.b16 %v7038
    %v7167 = vunpack.c.l.b16 %v7039
    %v7168 = vunpack.c.l.b16 %v7040
    %v7169 = vunpack.c.l.b16 %v7041
    %v7170 = vunpack.c.l.b16 %v7042
    %v7171 = vunpack.c.l.b16 %v7043
    %v7172 = vunpack.c.l.b16 %v7044
    %v7173 = vunpack.c.l.b16 %v7045
    %v7174 = vunpack.c.l.b16 %v7046
    %v7175 = vunpack.c.l.b16 %v7047
    %v7176 = vunpack.c.l.b16 %v7048
    %v7177 = vunpack.c.l.b16 %v7049
    %v7178 = vunpack.c.l.b16 %v7050
    %v7179 = vunpack.c.l.b16 %v7051
    %v7180 = vunpack.c.l.b16 %v7052
    %v7181 = vunpack.c.l.b16 %v7053
    %v7182 = vunpack.c.l.b16 %v7054
    %v7183 = vunpack.c.l.b16 %v7055
    %v7184 = vunpack.c.l.b16 %v7056
    %v7185 = vunpack.c.l.b16 %v7057
    %v7186 = vunpack.c.l.b16 %v7058
    %v7187 = vunpack.c.l.b16 %v7059
    %v7188 = vunpack.c.l.b16 %v7060
    %v7189 = vpack.c.b16 %v7158, %v7157
    %v7190 = vpack.c.b16 %v7160, %v7159
    %v7191 = vpack.c.b16 %v7162, %v7161
    %v7192 = vpack.c.b16 %v7164, %v7163
    %v7193 = vpack.c.b16 %v7166, %v7165
    %v7194 = vpack.c.b16 %v7168, %v7167
    %v7195 = vpack.c.b16 %v7170, %v7169
    %v7196 = vpack.c.b16 %v7172, %v7171
    %v7197 = vpack.c.b16 %v7174, %v7173
    %v7198 = vpack.c.b16 %v7176, %v7175
    %v7199 = vpack.c.b16 %v7178, %v7177
    %v7200 = vpack.c.b16 %v7180, %v7179
    %v7201 = vpack.c.b16 %v7182, %v7181
    %v7202 = vpack.c.b16 %v7184, %v7183
    %v7203 = vpack.c.b16 %v7186, %v7185
    %v7204 = vpack.c.b16 %v7188, %v7187
    %7221 = vmatpush.bf16.msra.mxu0 %v7196
    %7222 = vmatpush.bf16.msra.mxu0 %v7195
    %7223 = vmatpush.bf16.msra.mxu0 %v7194
    %7224 = vmatpush.bf16.msra.mxu0 %v7193
    %7225 = vmatpush.bf16.msra.mxu0 %v7192
    %7226 = vmatpush.bf16.msra.mxu0 %v7191
    %7227 = vmatpush.bf16.msra.mxu0 %v7190
    %7228 = vmatpush.bf16.msra.mxu0 %v7189
    %7229 = vmatmul.bf16.gmra.mxu0 %v7093
    %v7230 = vpop.f32.mrf.mxu0
    %v7231 = vadd.f32 0.0, %v7230
    %v7232 = vpop.f32.mrf.mxu0
    %v7233 = vadd.f32 0.0, %v7232
    %7234 = vmatmul.bf16.gmra.mxu0 %v7095
    %v7235 = vpop.f32.mrf.mxu0
    %v7236 = vadd.f32 0.0, %v7235
    %v7237 = vpop.f32.mrf.mxu0
    %v7238 = vadd.f32 0.0, %v7237
    %7239 = vmatmul.bf16.gmra.mxu0 %v7097
    %v7240 = vpop.f32.mrf.mxu0
    %v7241 = vadd.f32 0.0, %v7240
    %v7242 = vpop.f32.mrf.mxu0
    %v7243 = vadd.f32 0.0, %v7242
    %7244 = vmatmul.bf16.gmra.mxu0 %v7099
    %v7245 = vpop.f32.mrf.mxu0
    %v7246 = vadd.f32 0.0, %v7245
    %v7247 = vpop.f32.mrf.mxu0
    %v7248 = vadd.f32 0.0, %v7247
    %7249 = vmatmul.bf16.gmra.mxu0 %v7101
    %v7250 = vpop.f32.mrf.mxu0
    %v7251 = vadd.f32 0.0, %v7250
    %v7252 = vpop.f32.mrf.mxu0
    %v7253 = vadd.f32 0.0, %v7252
    %7254 = vmatmul.bf16.gmra.mxu0 %v7103
    %v7255 = vpop.f32.mrf.mxu0
    %v7256 = vadd.f32 0.0, %v7255
    %v7257 = vpop.f32.mrf.mxu0
    %v7258 = vadd.f32 0.0, %v7257
    %7259 = vmatmul.bf16.gmra.mxu0 %v7105
    %v7260 = vpop.f32.mrf.mxu0
    %v7261 = vadd.f32 0.0, %v7260
    %v7262 = vpop.f32.mrf.mxu0
    %v7263 = vadd.f32 0.0, %v7262
    %7264 = vmatmul.bf16.gmra.mxu0 %v7107
    %v7265 = vpop.f32.mrf.mxu0
    %v7266 = vadd.f32 0.0, %v7265
    %v7267 = vpop.f32.mrf.mxu0
    %v7268 = vadd.f32 0.0, %v7267
    %7269 = vdwg.mxu0
    %7270 = vmatpush.bf16.msra.mxu0 %v7204
    %7271 = vmatpush.bf16.msra.mxu0 %v7203
    %7272 = vmatpush.bf16.msra.mxu0 %v7202
    %7273 = vmatpush.bf16.msra.mxu0 %v7201
    %7274 = vmatpush.bf16.msra.mxu0 %v7200
    %7275 = vmatpush.bf16.msra.mxu0 %v7199
    %7276 = vmatpush.bf16.msra.mxu0 %v7198
    %7277 = vmatpush.bf16.msra.mxu0 %v7197
    %7278 = vmatmul.bf16.gmra.mxu0 %v7094
    %v7279 = vpop.f32.mrf.mxu0
    %v7280 = vadd.f32 %v7231, %v7279
    %v7281 = vpop.f32.mrf.mxu0
    %v7282 = vadd.f32 %v7233, %v7281
    %7283 = vmatmul.bf16.gmra.mxu0 %v7096
    %v7284 = vpop.f32.mrf.mxu0
    %v7285 = vadd.f32 %v7236, %v7284
    %v7286 = vpop.f32.mrf.mxu0
    %v7287 = vadd.f32 %v7238, %v7286
    %7288 = vmatmul.bf16.gmra.mxu0 %v7098
    %v7289 = vpop.f32.mrf.mxu0
    %v7290 = vadd.f32 %v7241, %v7289
    %v7291 = vpop.f32.mrf.mxu0
    %v7292 = vadd.f32 %v7243, %v7291
    %7293 = vmatmul.bf16.gmra.mxu0 %v7100
    %v7294 = vpop.f32.mrf.mxu0
    %v7295 = vadd.f32 %v7246, %v7294
    %v7296 = vpop.f32.mrf.mxu0
    %v7297 = vadd.f32 %v7248, %v7296
    %7298 = vmatmul.bf16.gmra.mxu0 %v7102
    %v7299 = vpop.f32.mrf.mxu0
    %v7300 = vadd.f32 %v7251, %v7299
    %v7301 = vpop.f32.mrf.mxu0
    %v7302 = vadd.f32 %v7253, %v7301
    %7303 = vmatmul.bf16.gmra.mxu0 %v7104
    %v7304 = vpop.f32.mrf.mxu0
    %v7305 = vadd.f32 %v7256, %v7304
    %v7306 = vpop.f32.mrf.mxu0
    %v7307 = vadd.f32 %v7258, %v7306
    %7308 = vmatmul.bf16.gmra.mxu0 %v7106
    %v7309 = vpop.f32.mrf.mxu0
    %v7310 = vadd.f32 %v7261, %v7309
    %v7311 = vpop.f32.mrf.mxu0
    %v7312 = vadd.f32 %v7263, %v7311
    %7313 = vmatmul.bf16.gmra.mxu0 %v7108
    %v7314 = vpop.f32.mrf.mxu0
    %v7315 = vadd.f32 %v7266, %v7314
    %v7316 = vpop.f32.mrf.mxu0
    %v7317 = vadd.f32 %v7268, %v7316
    %7318 = vdwg.mxu0
    %v7319 = vadd.f32 %v6452, %v7280
    %v7320 = vadd.f32 %v6453, %v7282
    %v7321 = vadd.f32 %v6454, %v7285
    %v7322 = vadd.f32 %v6455, %v7287
    %v7323 = vadd.f32 %v6456, %v7290
    %v7324 = vadd.f32 %v6457, %v7292
    %v7325 = vadd.f32 %v6458, %v7295
    %v7326 = vadd.f32 %v6459, %v7297
    %v7327 = vadd.f32 %v6460, %v7300
    %v7328 = vadd.f32 %v6461, %v7302
    %v7329 = vadd.f32 %v6462, %v7305
    %v7330 = vadd.f32 %v6463, %v7307
    %v7331 = vadd.f32 %v6464, %v7310
    %v7332 = vadd.f32 %v6465, %v7312
    %v7333 = vadd.f32 %v6466, %v7315
    %v7334 = vadd.f32 %v6467, %v7317
    %v7335 = vld [vmem:[%s5920 + $0x4] sm:$0x3]
    %v7336 = vld [vmem:[%s5920 + $0xc] sm:$0x3]
    %v7337 = vld [vmem:[%s5920 + $0x14] sm:$0x3]
    %v7338 = vld [vmem:[%s5920 + $0x1c] sm:$0x3]
    %v7339 = vld [vmem:[%s5920 + $0x24] sm:$0x3]
    %v7340 = vld [vmem:[%s5920 + $0x2c] sm:$0x3]
    %v7341 = vld [vmem:[%s5920 + $0x34] sm:$0x3]
    %v7342 = vld [vmem:[%s5920 + $0x3c] sm:$0x3]
    %v7343 = vld [vmem:[%s5920 + $0x64] sm:$0x3]
    %v7344 = vld [vmem:[%s5920 + $0x6c] sm:$0x3]
    %v7345 = vld [vmem:[%s5920 + $0x74] sm:$0x3]
    %v7346 = vld [vmem:[%s5920 + $0x7c] sm:$0x3]
    %v7347 = vld [vmem:[%s5920 + $0x84] sm:$0x3]
    %v7348 = vld [vmem:[%s5920 + $0x8c] sm:$0x3]
    %v7349 = vld [vmem:[%s5920 + $0x94] sm:$0x3]
    %v7350 = vld [vmem:[%s5920 + $0x9c] sm:$0x3]
    %v7351 = vld [vmem:[%s5920] sm:$0xc]
    %v7352 = vld [vmem:[%s5920 + $0x8] sm:$0xc]
    %v7353 = vld [vmem:[%s5920 + $0x10] sm:$0xc]
    %v7354 = vld [vmem:[%s5920 + $0x18] sm:$0xc]
    %v7355 = vld [vmem:[%s5920 + $0x20] sm:$0xc]
    %v7356 = vld [vmem:[%s5920 + $0x28] sm:$0xc]
    %v7357 = vld [vmem:[%s5920 + $0x30] sm:$0xc]
    %v7358 = vld [vmem:[%s5920 + $0x38] sm:$0xc]
    %v7359 = vld [vmem:[%s5920 + $0x60] sm:$0xc]
    %v7360 = vld [vmem:[%s5920 + $0x68] sm:$0xc]
    %v7361 = vld [vmem:[%s5920 + $0x70] sm:$0xc]
    %v7362 = vld [vmem:[%s5920 + $0x78] sm:$0xc]
    %v7363 = vld [vmem:[%s5920 + $0x80] sm:$0xc]
    %v7364 = vld [vmem:[%s5920 + $0x88] sm:$0xc]
    %v7365 = vld [vmem:[%s5920 + $0x90] sm:$0xc]
    %v7366 = vld [vmem:[%s5920 + $0x98] sm:$0xc]
    %v7383 = vunpack.c.l.b16 %v7335
    %v7384 = vunpack.c.l.b16 %v7336
    %v7385 = vunpack.c.l.b16 %v7337
    %v7386 = vunpack.c.l.b16 %v7338
    %v7387 = vunpack.c.l.b16 %v7339
    %v7388 = vunpack.c.l.b16 %v7340
    %v7389 = vunpack.c.l.b16 %v7341
    %v7390 = vunpack.c.l.b16 %v7342
    %v7391 = vunpack.c.l.b16 %v7343
    %v7392 = vunpack.c.l.b16 %v7344
    %v7393 = vunpack.c.l.b16 %v7345
    %v7394 = vunpack.c.l.b16 %v7346
    %v7395 = vunpack.c.l.b16 %v7347
    %v7396 = vunpack.c.l.b16 %v7348
    %v7397 = vunpack.c.l.b16 %v7349
    %v7398 = vunpack.c.l.b16 %v7350
    %v7415 = vunpack.c.l.b16 %v7351
    %v7416 = vunpack.c.l.b16 %v7352
    %v7417 = vunpack.c.l.b16 %v7353
    %v7418 = vunpack.c.l.b16 %v7354
    %v7419 = vunpack.c.l.b16 %v7355
    %v7420 = vunpack.c.l.b16 %v7356
    %v7421 = vunpack.c.l.b16 %v7357
    %v7422 = vunpack.c.l.b16 %v7358
    %v7423 = vunpack.c.l.b16 %v7359
    %v7424 = vunpack.c.l.b16 %v7360
    %v7425 = vunpack.c.l.b16 %v7361
    %v7426 = vunpack.c.l.b16 %v7362
    %v7427 = vunpack.c.l.b16 %v7363
    %v7428 = vunpack.c.l.b16 %v7364
    %v7429 = vunpack.c.l.b16 %v7365
    %v7430 = vunpack.c.l.b16 %v7366
    %v7431 = vpack.c.b16 %v7383, %v7415
    %v7432 = vpack.c.b16 %v7384, %v7416
    %v7433 = vpack.c.b16 %v7385, %v7417
    %v7434 = vpack.c.b16 %v7386, %v7418
    %v7435 = vpack.c.b16 %v7387, %v7419
    %v7436 = vpack.c.b16 %v7388, %v7420
    %v7437 = vpack.c.b16 %v7389, %v7421
    %v7438 = vpack.c.b16 %v7390, %v7422
    %v7439 = vpack.c.b16 %v7391, %v7423
    %v7440 = vpack.c.b16 %v7392, %v7424
    %v7441 = vpack.c.b16 %v7393, %v7425
    %v7442 = vpack.c.b16 %v7394, %v7426
    %v7443 = vpack.c.b16 %v7395, %v7427
    %v7444 = vpack.c.b16 %v7396, %v7428
    %v7445 = vpack.c.b16 %v7397, %v7429
    %v7446 = vpack.c.b16 %v7398, %v7430
    %v7448 = vshrl.u32 %v7431, 16
    %v7450 = vshll.u32 %v7431, 16
    %v7452 = vrot.slane %v7450, 1
    %v7453 = vor.u32 %v7448, %v7452
    %v7455 = vshrl.u32 %v7432, 16
    %v7457 = vshll.u32 %v7432, 16
    %v7459 = vrot.slane %v7457, 1
    %v7460 = vor.u32 %v7455, %v7459
    %v7462 = vshrl.u32 %v7433, 16
    %v7464 = vshll.u32 %v7433, 16
    %v7466 = vrot.slane %v7464, 1
    %v7467 = vor.u32 %v7462, %v7466
    %v7469 = vshrl.u32 %v7434, 16
    %v7471 = vshll.u32 %v7434, 16
    %v7473 = vrot.slane %v7471, 1
    %v7474 = vor.u32 %v7469, %v7473
    %v7476 = vshrl.u32 %v7435, 16
    %v7478 = vshll.u32 %v7435, 16
    %v7480 = vrot.slane %v7478, 1
    %v7481 = vor.u32 %v7476, %v7480
    %v7483 = vshrl.u32 %v7436, 16
    %v7485 = vshll.u32 %v7436, 16
    %v7487 = vrot.slane %v7485, 1
    %v7488 = vor.u32 %v7483, %v7487
    %v7490 = vshrl.u32 %v7437, 16
    %v7492 = vshll.u32 %v7437, 16
    %v7494 = vrot.slane %v7492, 1
    %v7495 = vor.u32 %v7490, %v7494
    %v7497 = vshrl.u32 %v7438, 16
    %v7499 = vshll.u32 %v7438, 16
    %v7501 = vrot.slane %v7499, 1
    %v7502 = vor.u32 %v7497, %v7501
    %v7504 = vshrl.u32 %v7439, 16
    %v7506 = vshll.u32 %v7439, 16
    %v7508 = vrot.slane %v7506, 1
    %v7509 = vor.u32 %v7504, %v7508
    %v7511 = vshrl.u32 %v7440, 16
    %v7513 = vshll.u32 %v7440, 16
    %v7515 = vrot.slane %v7513, 1
    %v7516 = vor.u32 %v7511, %v7515
    %v7518 = vshrl.u32 %v7441, 16
    %v7520 = vshll.u32 %v7441, 16
    %v7522 = vrot.slane %v7520, 1
    %v7523 = vor.u32 %v7518, %v7522
    %v7525 = vshrl.u32 %v7442, 16
    %v7527 = vshll.u32 %v7442, 16
    %v7529 = vrot.slane %v7527, 1
    %v7530 = vor.u32 %v7525, %v7529
    %v7532 = vshrl.u32 %v7443, 16
    %v7534 = vshll.u32 %v7443, 16
    %v7536 = vrot.slane %v7534, 1
    %v7537 = vor.u32 %v7532, %v7536
    %v7539 = vshrl.u32 %v7444, 16
    %v7541 = vshll.u32 %v7444, 16
    %v7543 = vrot.slane %v7541, 1
    %v7544 = vor.u32 %v7539, %v7543
    %v7546 = vshrl.u32 %v7445, 16
    %v7548 = vshll.u32 %v7445, 16
    %v7550 = vrot.slane %v7548, 1
    %v7551 = vor.u32 %v7546, %v7550
    %v7553 = vshrl.u32 %v7446, 16
    %v7555 = vshll.u32 %v7446, 16
    %v7557 = vrot.slane %v7555, 1
    %v7558 = vor.u32 %v7553, %v7557
    %v7559 = vunpack.c.l.b16 %v7453
    %v7560 = vunpack.c.h.b16 %v7453
    %v7561 = vunpack.c.l.b16 %v7460
    %v7562 = vunpack.c.h.b16 %v7460
    %v7563 = vunpack.c.l.b16 %v7467
    %v7564 = vunpack.c.h.b16 %v7467
    %v7565 = vunpack.c.l.b16 %v7474
    %v7566 = vunpack.c.h.b16 %v7474
    %v7567 = vunpack.c.l.b16 %v7481
    %v7568 = vunpack.c.h.b16 %v7481
    %v7569 = vunpack.c.l.b16 %v7488
    %v7570 = vunpack.c.h.b16 %v7488
    %v7571 = vunpack.c.l.b16 %v7495
    %v7572 = vunpack.c.h.b16 %v7495
    %v7573 = vunpack.c.l.b16 %v7502
    %v7574 = vunpack.c.h.b16 %v7502
    %v7575 = vunpack.c.l.b16 %v7509
    %v7576 = vunpack.c.h.b16 %v7509
    %v7577 = vunpack.c.l.b16 %v7516
    %v7578 = vunpack.c.h.b16 %v7516
    %v7579 = vunpack.c.l.b16 %v7523
    %v7580 = vunpack.c.h.b16 %v7523
    %v7581 = vunpack.c.l.b16 %v7530
    %v7582 = vunpack.c.h.b16 %v7530
    %v7583 = vunpack.c.l.b16 %v7537
    %v7584 = vunpack.c.h.b16 %v7537
    %v7585 = vunpack.c.l.b16 %v7544
    %v7586 = vunpack.c.h.b16 %v7544
    %v7587 = vunpack.c.l.b16 %v7551
    %v7588 = vunpack.c.h.b16 %v7551
    %v7589 = vunpack.c.l.b16 %v7558
    %v7590 = vunpack.c.h.b16 %v7558
    %v7591 = vpack.c.b16 %v7559, %v6596
    %v7592 = vpack.c.b16 %v7560, %v7383
    %v7593 = vpack.c.b16 %v7561, %v6597
    %v7594 = vpack.c.b16 %v7562, %v7384
    %v7595 = vpack.c.b16 %v7563, %v6598
    %v7596 = vpack.c.b16 %v7564, %v7385
    %v7597 = vpack.c.b16 %v7565, %v6599
    %v7598 = vpack.c.b16 %v7566, %v7386
    %v7599 = vpack.c.b16 %v7567, %v6600
    %v7600 = vpack.c.b16 %v7568, %v7387
    %v7601 = vpack.c.b16 %v7569, %v6601
    %v7602 = vpack.c.b16 %v7570, %v7388
    %v7603 = vpack.c.b16 %v7571, %v6602
    %v7604 = vpack.c.b16 %v7572, %v7389
    %v7605 = vpack.c.b16 %v7573, %v6603
    %v7606 = vpack.c.b16 %v7574, %v7390
    %v7607 = vpack.c.b16 %v7575, %v6604
    %v7608 = vpack.c.b16 %v7576, %v7391
    %v7609 = vpack.c.b16 %v7577, %v6605
    %v7610 = vpack.c.b16 %v7578, %v7392
    %v7611 = vpack.c.b16 %v7579, %v6606
    %v7612 = vpack.c.b16 %v7580, %v7393
    %v7613 = vpack.c.b16 %v7581, %v6607
    %v7614 = vpack.c.b16 %v7582, %v7394
    %v7615 = vpack.c.b16 %v7583, %v6608
    %v7616 = vpack.c.b16 %v7584, %v7395
    %v7617 = vpack.c.b16 %v7585, %v6609
    %v7618 = vpack.c.b16 %v7586, %v7396
    %v7619 = vpack.c.b16 %v7587, %v6610
    %v7620 = vpack.c.b16 %v7588, %v7397
    %v7621 = vpack.c.b16 %v7589, %v6611
    %v7622 = vpack.c.b16 %v7590, %v7398
    %v7624 = vshrl.u32 %v7591, 16
    %v7626 = vrot.slane %v7624, 5
    %v7627 = vshll.u32 %v7591, 16
    %v7629 = vrot.slane %v7627, 6
    %v7630 = vor.u32 %v7626, %v7629
    %v7631 = vrot.slane %v7630, 4
    %v7633 = vshrl.u32 %v7592, 16
    %v7635 = vrot.slane %v7633, 5
    %v7636 = vshll.u32 %v7592, 16
    %v7638 = vrot.slane %v7636, 6
    %v7639 = vor.u32 %v7635, %v7638
    %v7640 = vsel %vm4133, %v7631, %v7639
    %v7642 = vshrl.u32 %v7593, 16
    %v7644 = vrot.slane %v7642, 5
    %v7645 = vshll.u32 %v7593, 16
    %v7647 = vrot.slane %v7645, 6
    %v7648 = vor.u32 %v7644, %v7647
    %v7649 = vrot.slane %v7648, 4
    %v7651 = vshrl.u32 %v7594, 16
    %v7653 = vrot.slane %v7651, 5
    %v7654 = vshll.u32 %v7594, 16
    %v7656 = vrot.slane %v7654, 6
    %v7657 = vor.u32 %v7653, %v7656
    %v7658 = vsel %vm4133, %v7649, %v7657
    %v7660 = vshrl.u32 %v7595, 16
    %v7662 = vrot.slane %v7660, 5
    %v7663 = vshll.u32 %v7595, 16
    %v7665 = vrot.slane %v7663, 6
    %v7666 = vor.u32 %v7662, %v7665
    %v7667 = vrot.slane %v7666, 4
    %v7669 = vshrl.u32 %v7596, 16
    %v7671 = vrot.slane %v7669, 5
    %v7672 = vshll.u32 %v7596, 16
    %v7674 = vrot.slane %v7672, 6
    %v7675 = vor.u32 %v7671, %v7674
    %v7676 = vsel %vm4133, %v7667, %v7675
    %v7678 = vshrl.u32 %v7597, 16
    %v7680 = vrot.slane %v7678, 5
    %v7681 = vshll.u32 %v7597, 16
    %v7683 = vrot.slane %v7681, 6
    %v7684 = vor.u32 %v7680, %v7683
    %v7685 = vrot.slane %v7684, 4
    %v7687 = vshrl.u32 %v7598, 16
    %v7689 = vrot.slane %v7687, 5
    %v7690 = vshll.u32 %v7598, 16
    %v7692 = vrot.slane %v7690, 6
    %v7693 = vor.u32 %v7689, %v7692
    %v7694 = vsel %vm4133, %v7685, %v7693
    %v7696 = vshrl.u32 %v7599, 16
    %v7698 = vrot.slane %v7696, 5
    %v7699 = vshll.u32 %v7599, 16
    %v7701 = vrot.slane %v7699, 6
    %v7702 = vor.u32 %v7698, %v7701
    %v7703 = vrot.slane %v7702, 4
    %v7705 = vshrl.u32 %v7600, 16
    %v7707 = vrot.slane %v7705, 5
    %v7708 = vshll.u32 %v7600, 16
    %v7710 = vrot.slane %v7708, 6
    %v7711 = vor.u32 %v7707, %v7710
    %v7712 = vsel %vm4133, %v7703, %v7711
    %v7714 = vshrl.u32 %v7601, 16
    %v7716 = vrot.slane %v7714, 5
    %v7717 = vshll.u32 %v7601, 16
    %v7719 = vrot.slane %v7717, 6
    %v7720 = vor.u32 %v7716, %v7719
    %v7721 = vrot.slane %v7720, 4
    %v7723 = vshrl.u32 %v7602, 16
    %v7725 = vrot.slane %v7723, 5
    %v7726 = vshll.u32 %v7602, 16
    %v7728 = vrot.slane %v7726, 6
    %v7729 = vor.u32 %v7725, %v7728
    %v7730 = vsel %vm4133, %v7721, %v7729
    %v7732 = vshrl.u32 %v7603, 16
    %v7734 = vrot.slane %v7732, 5
    %v7735 = vshll.u32 %v7603, 16
    %v7737 = vrot.slane %v7735, 6
    %v7738 = vor.u32 %v7734, %v7737
    %v7739 = vrot.slane %v7738, 4
    %v7741 = vshrl.u32 %v7604, 16
    %v7743 = vrot.slane %v7741, 5
    %v7744 = vshll.u32 %v7604, 16
    %v7746 = vrot.slane %v7744, 6
    %v7747 = vor.u32 %v7743, %v7746
    %v7748 = vsel %vm4133, %v7739, %v7747
    %v7750 = vshrl.u32 %v7605, 16
    %v7752 = vrot.slane %v7750, 5
    %v7753 = vshll.u32 %v7605, 16
    %v7755 = vrot.slane %v7753, 6
    %v7756 = vor.u32 %v7752, %v7755
    %v7757 = vrot.slane %v7756, 4
    %v7759 = vshrl.u32 %v7606, 16
    %v7761 = vrot.slane %v7759, 5
    %v7762 = vshll.u32 %v7606, 16
    %v7764 = vrot.slane %v7762, 6
    %v7765 = vor.u32 %v7761, %v7764
    %v7766 = vsel %vm4133, %v7757, %v7765
    %v7768 = vshrl.u32 %v7607, 16
    %v7770 = vrot.slane %v7768, 5
    %v7771 = vshll.u32 %v7607, 16
    %v7773 = vrot.slane %v7771, 6
    %v7774 = vor.u32 %v7770, %v7773
    %v7775 = vrot.slane %v7774, 4
    %v7777 = vshrl.u32 %v7608, 16
    %v7779 = vrot.slane %v7777, 5
    %v7780 = vshll.u32 %v7608, 16
    %v7782 = vrot.slane %v7780, 6
    %v7783 = vor.u32 %v7779, %v7782
    %v7784 = vsel %vm4133, %v7775, %v7783
    %v7786 = vshrl.u32 %v7609, 16
    %v7788 = vrot.slane %v7786, 5
    %v7789 = vshll.u32 %v7609, 16
    %v7791 = vrot.slane %v7789, 6
    %v7792 = vor.u32 %v7788, %v7791
    %v7793 = vrot.slane %v7792, 4
    %v7795 = vshrl.u32 %v7610, 16
    %v7797 = vrot.slane %v7795, 5
    %v7798 = vshll.u32 %v7610, 16
    %v7800 = vrot.slane %v7798, 6
    %v7801 = vor.u32 %v7797, %v7800
    %v7802 = vsel %vm4133, %v7793, %v7801
    %v7804 = vshrl.u32 %v7611, 16
    %v7806 = vrot.slane %v7804, 5
    %v7807 = vshll.u32 %v7611, 16
    %v7809 = vrot.slane %v7807, 6
    %v7810 = vor.u32 %v7806, %v7809
    %v7811 = vrot.slane %v7810, 4
    %v7813 = vshrl.u32 %v7612, 16
    %v7815 = vrot.slane %v7813, 5
    %v7816 = vshll.u32 %v7612, 16
    %v7818 = vrot.slane %v7816, 6
    %v7819 = vor.u32 %v7815, %v7818
    %v7820 = vsel %vm4133, %v7811, %v7819
    %v7822 = vshrl.u32 %v7613, 16
    %v7824 = vrot.slane %v7822, 5
    %v7825 = vshll.u32 %v7613, 16
    %v7827 = vrot.slane %v7825, 6
    %v7828 = vor.u32 %v7824, %v7827
    %v7829 = vrot.slane %v7828, 4
    %v7831 = vshrl.u32 %v7614, 16
    %v7833 = vrot.slane %v7831, 5
    %v7834 = vshll.u32 %v7614, 16
    %v7836 = vrot.slane %v7834, 6
    %v7837 = vor.u32 %v7833, %v7836
    %v7838 = vsel %vm4133, %v7829, %v7837
    %v7840 = vshrl.u32 %v7615, 16
    %v7842 = vrot.slane %v7840, 5
    %v7843 = vshll.u32 %v7615, 16
    %v7845 = vrot.slane %v7843, 6
    %v7846 = vor.u32 %v7842, %v7845
    %v7847 = vrot.slane %v7846, 4
    %v7849 = vshrl.u32 %v7616, 16
    %v7851 = vrot.slane %v7849, 5
    %v7852 = vshll.u32 %v7616, 16
    %v7854 = vrot.slane %v7852, 6
    %v7855 = vor.u32 %v7851, %v7854
    %v7856 = vsel %vm4133, %v7847, %v7855
    %v7858 = vshrl.u32 %v7617, 16
    %v7860 = vrot.slane %v7858, 5
    %v7861 = vshll.u32 %v7617, 16
    %v7863 = vrot.slane %v7861, 6
    %v7864 = vor.u32 %v7860, %v7863
    %v7865 = vrot.slane %v7864, 4
    %v7867 = vshrl.u32 %v7618, 16
    %v7869 = vrot.slane %v7867, 5
    %v7870 = vshll.u32 %v7618, 16
    %v7872 = vrot.slane %v7870, 6
    %v7873 = vor.u32 %v7869, %v7872
    %v7874 = vsel %vm4133, %v7865, %v7873
    %v7876 = vshrl.u32 %v7619, 16
    %v7878 = vrot.slane %v7876, 5
    %v7879 = vshll.u32 %v7619, 16
    %v7881 = vrot.slane %v7879, 6
    %v7882 = vor.u32 %v7878, %v7881
    %v7883 = vrot.slane %v7882, 4
    %v7885 = vshrl.u32 %v7620, 16
    %v7887 = vrot.slane %v7885, 5
    %v7888 = vshll.u32 %v7620, 16
    %v7890 = vrot.slane %v7888, 6
    %v7891 = vor.u32 %v7887, %v7890
    %v7892 = vsel %vm4133, %v7883, %v7891
    %v7894 = vshrl.u32 %v7621, 16
    %v7896 = vrot.slane %v7894, 5
    %v7897 = vshll.u32 %v7621, 16
    %v7899 = vrot.slane %v7897, 6
    %v7900 = vor.u32 %v7896, %v7899
    %v7901 = vrot.slane %v7900, 4
    %v7903 = vshrl.u32 %v7622, 16
    %v7905 = vrot.slane %v7903, 5
    %v7906 = vshll.u32 %v7622, 16
    %v7908 = vrot.slane %v7906, 6
    %v7909 = vor.u32 %v7905, %v7908
    %v7910 = vsel %vm4133, %v7901, %v7909
    %s7911 = scalar_lea.vmem [#allocation7], 1152
    %v7912 = vld [vmem:[%s7911] sm:$0xf]
    %v7913 = vld [vmem:[%s7911 + $0x4] sm:$0xf]
    %v7914 = vld [vmem:[%s7911 + $0x8] sm:$0xf]
    %v7915 = vld [vmem:[%s7911 + $0xc] sm:$0xf]
    %v7916 = vld [vmem:[%s7911 + $0x10] sm:$0xf]
    %v7917 = vld [vmem:[%s7911 + $0x14] sm:$0xf]
    %v7918 = vld [vmem:[%s7911 + $0x18] sm:$0xf]
    %v7919 = vld [vmem:[%s7911 + $0x1c] sm:$0xf]
    %v7920 = vld [vmem:[%s7911 + $0x20] sm:$0xf]
    %v7921 = vld [vmem:[%s7911 + $0x24] sm:$0xf]
    %v7922 = vld [vmem:[%s7911 + $0x28] sm:$0xf]
    %v7923 = vld [vmem:[%s7911 + $0x2c] sm:$0xf]
    %v7924 = vld [vmem:[%s7911 + $0x30] sm:$0xf]
    %v7925 = vld [vmem:[%s7911 + $0x34] sm:$0xf]
    %v7926 = vld [vmem:[%s7911 + $0x38] sm:$0xf]
    %v7927 = vld [vmem:[%s7911 + $0x3c] sm:$0xf]
    %v7928 = vld [vmem:[%s7911 + $0x40] sm:$0xf]
    %v7929 = vld [vmem:[%s7911 + $0x44] sm:$0xf]
    %v7930 = vld [vmem:[%s7911 + $0x48] sm:$0xf]
    %v7931 = vld [vmem:[%s7911 + $0x4c] sm:$0xf]
    %v7932 = vld [vmem:[%s7911 + $0x50] sm:$0xf]
    %v7933 = vld [vmem:[%s7911 + $0x54] sm:$0xf]
    %v7934 = vld [vmem:[%s7911 + $0x58] sm:$0xf]
    %v7935 = vld [vmem:[%s7911 + $0x5c] sm:$0xf]
    %v7936 = vld [vmem:[%s7911 + $0x60] sm:$0xf]
    %v7937 = vld [vmem:[%s7911 + $0x64] sm:$0xf]
    %v7938 = vld [vmem:[%s7911 + $0x68] sm:$0xf]
    %v7939 = vld [vmem:[%s7911 + $0x6c] sm:$0xf]
    %v7940 = vld [vmem:[%s7911 + $0x70] sm:$0xf]
    %v7941 = vld [vmem:[%s7911 + $0x74] sm:$0xf]
    %v7942 = vld [vmem:[%s7911 + $0x78] sm:$0xf]
    %v7943 = vld [vmem:[%s7911 + $0x7c] sm:$0xf]
    %v7944 = vunpack.c.l.b16 %v7640
    %v7945 = vunpack.c.h.b16 %v7640
    %v7946 = vunpack.c.l.b16 %v7658
    %v7947 = vunpack.c.h.b16 %v7658
    %v7948 = vunpack.c.l.b16 %v7676
    %v7949 = vunpack.c.h.b16 %v7676
    %v7950 = vunpack.c.l.b16 %v7694
    %v7951 = vunpack.c.h.b16 %v7694
    %v7952 = vunpack.c.l.b16 %v7712
    %v7953 = vunpack.c.h.b16 %v7712
    %v7954 = vunpack.c.l.b16 %v7730
    %v7955 = vunpack.c.h.b16 %v7730
    %v7956 = vunpack.c.l.b16 %v7748
    %v7957 = vunpack.c.h.b16 %v7748
    %v7958 = vunpack.c.l.b16 %v7766
    %v7959 = vunpack.c.h.b16 %v7766
    %v7960 = vunpack.c.l.b16 %v7784
    %v7961 = vunpack.c.h.b16 %v7784
    %v7962 = vunpack.c.l.b16 %v7802
    %v7963 = vunpack.c.h.b16 %v7802
    %v7964 = vunpack.c.l.b16 %v7820
    %v7965 = vunpack.c.h.b16 %v7820
    %v7966 = vunpack.c.l.b16 %v7838
    %v7967 = vunpack.c.h.b16 %v7838
    %v7968 = vunpack.c.l.b16 %v7856
    %v7969 = vunpack.c.h.b16 %v7856
    %v7970 = vunpack.c.l.b16 %v7874
    %v7971 = vunpack.c.h.b16 %v7874
    %v7972 = vunpack.c.l.b16 %v7892
    %v7973 = vunpack.c.h.b16 %v7892
    %v7974 = vunpack.c.l.b16 %v7910
    %v7975 = vunpack.c.h.b16 %v7910
    %v7976 = vpack.c.b16 %v7946, %v7944
    %v7977 = vpack.c.b16 %v7947, %v7945
    %v7978 = vpack.c.b16 %v7950, %v7948
    %v7979 = vpack.c.b16 %v7951, %v7949
    %v7980 = vpack.c.b16 %v7954, %v7952
    %v7981 = vpack.c.b16 %v7955, %v7953
    %v7982 = vpack.c.b16 %v7958, %v7956
    %v7983 = vpack.c.b16 %v7959, %v7957
    %v7984 = vpack.c.b16 %v7962, %v7960
    %v7985 = vpack.c.b16 %v7963, %v7961
    %v7986 = vpack.c.b16 %v7966, %v7964
    %v7987 = vpack.c.b16 %v7967, %v7965
    %v7988 = vpack.c.b16 %v7970, %v7968
    %v7989 = vpack.c.b16 %v7971, %v7969
    %v7990 = vpack.c.b16 %v7974, %v7972
    %v7991 = vpack.c.b16 %v7975, %v7973
    %v8040 = vunpack.c.l.b16 %v7912
    %v8041 = vunpack.c.l.b16 %v7913
    %v8042 = vunpack.c.l.b16 %v7914
    %v8043 = vunpack.c.l.b16 %v7915
    %v8044 = vunpack.c.l.b16 %v7916
    %v8045 = vunpack.c.l.b16 %v7917
    %v8046 = vunpack.c.l.b16 %v7918
    %v8047 = vunpack.c.l.b16 %v7919
    %v8048 = vunpack.c.l.b16 %v7920
    %v8049 = vunpack.c.l.b16 %v7921
    %v8050 = vunpack.c.l.b16 %v7922
    %v8051 = vunpack.c.l.b16 %v7923
    %v8052 = vunpack.c.l.b16 %v7924
    %v8053 = vunpack.c.l.b16 %v7925
    %v8054 = vunpack.c.l.b16 %v7926
    %v8055 = vunpack.c.l.b16 %v7927
    %v8056 = vunpack.c.l.b16 %v7928
    %v8057 = vunpack.c.l.b16 %v7929
    %v8058 = vunpack.c.l.b16 %v7930
    %v8059 = vunpack.c.l.b16 %v7931
    %v8060 = vunpack.c.l.b16 %v7932
    %v8061 = vunpack.c.l.b16 %v7933
    %v8062 = vunpack.c.l.b16 %v7934
    %v8063 = vunpack.c.l.b16 %v7935
    %v8064 = vunpack.c.l.b16 %v7936
    %v8065 = vunpack.c.l.b16 %v7937
    %v8066 = vunpack.c.l.b16 %v7938
    %v8067 = vunpack.c.l.b16 %v7939
    %v8068 = vunpack.c.l.b16 %v7940
    %v8069 = vunpack.c.l.b16 %v7941
    %v8070 = vunpack.c.l.b16 %v7942
    %v8071 = vunpack.c.l.b16 %v7943
    %v8072 = vpack.c.b16 %v8041, %v8040
    %v8073 = vpack.c.b16 %v8043, %v8042
    %v8074 = vpack.c.b16 %v8045, %v8044
    %v8075 = vpack.c.b16 %v8047, %v8046
    %v8076 = vpack.c.b16 %v8049, %v8048
    %v8077 = vpack.c.b16 %v8051, %v8050
    %v8078 = vpack.c.b16 %v8053, %v8052
    %v8079 = vpack.c.b16 %v8055, %v8054
    %v8080 = vpack.c.b16 %v8057, %v8056
    %v8081 = vpack.c.b16 %v8059, %v8058
    %v8082 = vpack.c.b16 %v8061, %v8060
    %v8083 = vpack.c.b16 %v8063, %v8062
    %v8084 = vpack.c.b16 %v8065, %v8064
    %v8085 = vpack.c.b16 %v8067, %v8066
    %v8086 = vpack.c.b16 %v8069, %v8068
    %v8087 = vpack.c.b16 %v8071, %v8070
    %8104 = vmatpush.bf16.msra.mxu0 %v8079
    %8105 = vmatpush.bf16.msra.mxu0 %v8078
    %8106 = vmatpush.bf16.msra.mxu0 %v8077
    %8107 = vmatpush.bf16.msra.mxu0 %v8076
    %8108 = vmatpush.bf16.msra.mxu0 %v8075
    %8109 = vmatpush.bf16.msra.mxu0 %v8074
    %8110 = vmatpush.bf16.msra.mxu0 %v8073
    %8111 = vmatpush.bf16.msra.mxu0 %v8072
    %8112 = vmatmul.bf16.gmra.mxu0 %v7976
    %v8113 = vpop.f32.mrf.mxu0
    %v8114 = vadd.f32 0.0, %v8113
    %v8115 = vpop.f32.mrf.mxu0
    %v8116 = vadd.f32 0.0, %v8115
    %8117 = vmatmul.bf16.gmra.mxu0 %v7978
    %v8118 = vpop.f32.mrf.mxu0
    %v8119 = vadd.f32 0.0, %v8118
    %v8120 = vpop.f32.mrf.mxu0
    %v8121 = vadd.f32 0.0, %v8120
    %8122 = vmatmul.bf16.gmra.mxu0 %v7980
    %v8123 = vpop.f32.mrf.mxu0
    %v8124 = vadd.f32 0.0, %v8123
    %v8125 = vpop.f32.mrf.mxu0
    %v8126 = vadd.f32 0.0, %v8125
    %8127 = vmatmul.bf16.gmra.mxu0 %v7982
    %v8128 = vpop.f32.mrf.mxu0
    %v8129 = vadd.f32 0.0, %v8128
    %v8130 = vpop.f32.mrf.mxu0
    %v8131 = vadd.f32 0.0, %v8130
    %8132 = vmatmul.bf16.gmra.mxu0 %v7984
    %v8133 = vpop.f32.mrf.mxu0
    %v8134 = vadd.f32 0.0, %v8133
    %v8135 = vpop.f32.mrf.mxu0
    %v8136 = vadd.f32 0.0, %v8135
    %8137 = vmatmul.bf16.gmra.mxu0 %v7986
    %v8138 = vpop.f32.mrf.mxu0
    %v8139 = vadd.f32 0.0, %v8138
    %v8140 = vpop.f32.mrf.mxu0
    %v8141 = vadd.f32 0.0, %v8140
    %8142 = vmatmul.bf16.gmra.mxu0 %v7988
    %v8143 = vpop.f32.mrf.mxu0
    %v8144 = vadd.f32 0.0, %v8143
    %v8145 = vpop.f32.mrf.mxu0
    %v8146 = vadd.f32 0.0, %v8145
    %8147 = vmatmul.bf16.gmra.mxu0 %v7990
    %v8148 = vpop.f32.mrf.mxu0
    %v8149 = vadd.f32 0.0, %v8148
    %v8150 = vpop.f32.mrf.mxu0
    %v8151 = vadd.f32 0.0, %v8150
    %8152 = vdwg.mxu0
    %8153 = vmatpush.bf16.msra.mxu0 %v8087
    %8154 = vmatpush.bf16.msra.mxu0 %v8086
    %8155 = vmatpush.bf16.msra.mxu0 %v8085
    %8156 = vmatpush.bf16.msra.mxu0 %v8084
    %8157 = vmatpush.bf16.msra.mxu0 %v8083
    %8158 = vmatpush.bf16.msra.mxu0 %v8082
    %8159 = vmatpush.bf16.msra.mxu0 %v8081
    %8160 = vmatpush.bf16.msra.mxu0 %v8080
    %8161 = vmatmul.bf16.gmra.mxu0 %v7977
    %v8162 = vpop.f32.mrf.mxu0
    %v8163 = vadd.f32 %v8114, %v8162
    %v8164 = vpop.f32.mrf.mxu0
    %v8165 = vadd.f32 %v8116, %v8164
    %8166 = vmatmul.bf16.gmra.mxu0 %v7979
    %v8167 = vpop.f32.mrf.mxu0
    %v8168 = vadd.f32 %v8119, %v8167
    %v8169 = vpop.f32.mrf.mxu0
    %v8170 = vadd.f32 %v8121, %v8169
    %8171 = vmatmul.bf16.gmra.mxu0 %v7981
    %v8172 = vpop.f32.mrf.mxu0
    %v8173 = vadd.f32 %v8124, %v8172
    %v8174 = vpop.f32.mrf.mxu0
    %v8175 = vadd.f32 %v8126, %v8174
    %8176 = vmatmul.bf16.gmra.mxu0 %v7983
    %v8177 = vpop.f32.mrf.mxu0
    %v8178 = vadd.f32 %v8129, %v8177
    %v8179 = vpop.f32.mrf.mxu0
    %v8180 = vadd.f32 %v8131, %v8179
    %8181 = vmatmul.bf16.gmra.mxu0 %v7985
    %v8182 = vpop.f32.mrf.mxu0
    %v8183 = vadd.f32 %v8134, %v8182
    %v8184 = vpop.f32.mrf.mxu0
    %v8185 = vadd.f32 %v8136, %v8184
    %8186 = vmatmul.bf16.gmra.mxu0 %v7987
    %v8187 = vpop.f32.mrf.mxu0
    %v8188 = vadd.f32 %v8139, %v8187
    %v8189 = vpop.f32.mrf.mxu0
    %v8190 = vadd.f32 %v8141, %v8189
    %8191 = vmatmul.bf16.gmra.mxu0 %v7989
    %v8192 = vpop.f32.mrf.mxu0
    %v8193 = vadd.f32 %v8144, %v8192
    %v8194 = vpop.f32.mrf.mxu0
    %v8195 = vadd.f32 %v8146, %v8194
    %8196 = vmatmul.bf16.gmra.mxu0 %v7991
    %v8197 = vpop.f32.mrf.mxu0
    %v8198 = vadd.f32 %v8149, %v8197
    %v8199 = vpop.f32.mrf.mxu0
    %v8200 = vadd.f32 %v8151, %v8199
    %8201 = vdwg.mxu0
    %v8202 = vadd.f32 %v7319, %v8163
    %v8203 = vadd.f32 %v7320, %v8165
    %v8204 = vadd.f32 %v7321, %v8168
    %v8205 = vadd.f32 %v7322, %v8170
    %v8206 = vadd.f32 %v7323, %v8173
    %v8207 = vadd.f32 %v7324, %v8175
    %v8208 = vadd.f32 %v7325, %v8178
    %v8209 = vadd.f32 %v7326, %v8180
    %v8210 = vadd.f32 %v7327, %v8183
    %v8211 = vadd.f32 %v7328, %v8185
    %v8212 = vadd.f32 %v7329, %v8188
    %v8213 = vadd.f32 %v7330, %v8190
    %v8214 = vadd.f32 %v7331, %v8193
    %v8215 = vadd.f32 %v7332, %v8195
    %v8216 = vadd.f32 %v7333, %v8198
    %v8217 = vadd.f32 %v7334, %v8200
    %s8218 = scalar_lea.vmem [#allocation2], 32
    %v8219 = vld [vmem:[%s8218] sm:$0xf]
    %v8220 = vld [vmem:[%s8218 + $0x8] sm:$0xf]
    %v8221 = vld [vmem:[%s8218 + $0x10] sm:$0xf]
    %v8222 = vld [vmem:[%s8218 + $0x18] sm:$0xf]
    %v8223 = vld [vmem:[%s8218 + $0x20] sm:$0xf]
    %v8224 = vld [vmem:[%s8218 + $0x28] sm:$0xf]
    %v8225 = vld [vmem:[%s8218 + $0x30] sm:$0xf]
    %v8226 = vld [vmem:[%s8218 + $0x38] sm:$0xf]
    %v8227 = vld [vmem:[%s8218 + $0x60] sm:$0xf]
    %v8228 = vld [vmem:[%s8218 + $0x68] sm:$0xf]
    %v8229 = vld [vmem:[%s8218 + $0x70] sm:$0xf]
    %v8230 = vld [vmem:[%s8218 + $0x78] sm:$0xf]
    %v8231 = vld [vmem:[%s8218 + $0x80] sm:$0xf]
    %v8232 = vld [vmem:[%s8218 + $0x88] sm:$0xf]
    %v8233 = vld [vmem:[%s8218 + $0x90] sm:$0xf]
    %v8234 = vld [vmem:[%s8218 + $0x98] sm:$0xf]
    %v8235 = vld [vmem:[%s8218 + $0x4] sm:$0x1]
    %v8236 = vld [vmem:[%s8218 + $0xc] sm:$0x1]
    %v8237 = vld [vmem:[%s8218 + $0x14] sm:$0x1]
    %v8238 = vld [vmem:[%s8218 + $0x1c] sm:$0x1]
    %v8239 = vld [vmem:[%s8218 + $0x24] sm:$0x1]
    %v8240 = vld [vmem:[%s8218 + $0x2c] sm:$0x1]
    %v8241 = vld [vmem:[%s8218 + $0x34] sm:$0x1]
    %v8242 = vld [vmem:[%s8218 + $0x3c] sm:$0x1]
    %v8243 = vld [vmem:[%s8218 + $0x64] sm:$0x1]
    %v8244 = vld [vmem:[%s8218 + $0x6c] sm:$0x1]
    %v8245 = vld [vmem:[%s8218 + $0x74] sm:$0x1]
    %v8246 = vld [vmem:[%s8218 + $0x7c] sm:$0x1]
    %v8247 = vld [vmem:[%s8218 + $0x84] sm:$0x1]
    %v8248 = vld [vmem:[%s8218 + $0x8c] sm:$0x1]
    %v8249 = vld [vmem:[%s8218 + $0x94] sm:$0x1]
    %v8250 = vld [vmem:[%s8218 + $0x9c] sm:$0x1]
    %v8283 = vunpack.c.l.b16 %v8219
    %v8284 = vunpack.c.l.b16 %v8235
    %v8285 = vunpack.c.l.b16 %v8220
    %v8286 = vunpack.c.l.b16 %v8236
    %v8287 = vunpack.c.l.b16 %v8221
    %v8288 = vunpack.c.l.b16 %v8237
    %v8289 = vunpack.c.l.b16 %v8222
    %v8290 = vunpack.c.l.b16 %v8238
    %v8291 = vunpack.c.l.b16 %v8223
    %v8292 = vunpack.c.l.b16 %v8239
    %v8293 = vunpack.c.l.b16 %v8224
    %v8294 = vunpack.c.l.b16 %v8240
    %v8295 = vunpack.c.l.b16 %v8225
    %v8296 = vunpack.c.l.b16 %v8241
    %v8297 = vunpack.c.l.b16 %v8226
    %v8298 = vunpack.c.l.b16 %v8242
    %v8299 = vunpack.c.l.b16 %v8227
    %v8300 = vunpack.c.l.b16 %v8243
    %v8301 = vunpack.c.l.b16 %v8228
    %v8302 = vunpack.c.l.b16 %v8244
    %v8303 = vunpack.c.l.b16 %v8229
    %v8304 = vunpack.c.l.b16 %v8245
    %v8305 = vunpack.c.l.b16 %v8230
    %v8306 = vunpack.c.l.b16 %v8246
    %v8307 = vunpack.c.l.b16 %v8231
    %v8308 = vunpack.c.l.b16 %v8247
    %v8309 = vunpack.c.l.b16 %v8232
    %v8310 = vunpack.c.l.b16 %v8248
    %v8311 = vunpack.c.l.b16 %v8233
    %v8312 = vunpack.c.l.b16 %v8249
    %v8313 = vunpack.c.l.b16 %v8234
    %v8314 = vunpack.c.l.b16 %v8250
    %v8315 = vpack.c.b16 %v8284, %v8283
    %v8316 = vpack.c.b16 %v8286, %v8285
    %v8317 = vpack.c.b16 %v8288, %v8287
    %v8318 = vpack.c.b16 %v8290, %v8289
    %v8319 = vpack.c.b16 %v8292, %v8291
    %v8320 = vpack.c.b16 %v8294, %v8293
    %v8321 = vpack.c.b16 %v8296, %v8295
    %v8322 = vpack.c.b16 %v8298, %v8297
    %v8323 = vpack.c.b16 %v8300, %v8299
    %v8324 = vpack.c.b16 %v8302, %v8301
    %v8325 = vpack.c.b16 %v8304, %v8303
    %v8326 = vpack.c.b16 %v8306, %v8305
    %v8327 = vpack.c.b16 %v8308, %v8307
    %v8328 = vpack.c.b16 %v8310, %v8309
    %v8329 = vpack.c.b16 %v8312, %v8311
    %v8330 = vpack.c.b16 %v8314, %v8313
    %v8332 = vshrl.u32 %v8315, 16
    %v8334 = vshll.u32 %v8315, 16
    %v8336 = vrot.slane %v8334, 1
    %v8337 = vor.u32 %v8332, %v8336
    %v8339 = vshrl.u32 %v8316, 16
    %v8341 = vshll.u32 %v8316, 16
    %v8343 = vrot.slane %v8341, 1
    %v8344 = vor.u32 %v8339, %v8343
    %v8346 = vshrl.u32 %v8317, 16
    %v8348 = vshll.u32 %v8317, 16
    %v8350 = vrot.slane %v8348, 1
    %v8351 = vor.u32 %v8346, %v8350
    %v8353 = vshrl.u32 %v8318, 16
    %v8355 = vshll.u32 %v8318, 16
    %v8357 = vrot.slane %v8355, 1
    %v8358 = vor.u32 %v8353, %v8357
    %v8360 = vshrl.u32 %v8319, 16
    %v8362 = vshll.u32 %v8319, 16
    %v8364 = vrot.slane %v8362, 1
    %v8365 = vor.u32 %v8360, %v8364
    %v8367 = vshrl.u32 %v8320, 16
    %v8369 = vshll.u32 %v8320, 16
    %v8371 = vrot.slane %v8369, 1
    %v8372 = vor.u32 %v8367, %v8371
    %v8374 = vshrl.u32 %v8321, 16
    %v8376 = vshll.u32 %v8321, 16
    %v8378 = vrot.slane %v8376, 1
    %v8379 = vor.u32 %v8374, %v8378
    %v8381 = vshrl.u32 %v8322, 16
    %v8383 = vshll.u32 %v8322, 16
    %v8385 = vrot.slane %v8383, 1
    %v8386 = vor.u32 %v8381, %v8385
    %v8388 = vshrl.u32 %v8323, 16
    %v8390 = vshll.u32 %v8323, 16
    %v8392 = vrot.slane %v8390, 1
    %v8393 = vor.u32 %v8388, %v8392
    %v8395 = vshrl.u32 %v8324, 16
    %v8397 = vshll.u32 %v8324, 16
    %v8399 = vrot.slane %v8397, 1
    %v8400 = vor.u32 %v8395, %v8399
    %v8402 = vshrl.u32 %v8325, 16
    %v8404 = vshll.u32 %v8325, 16
    %v8406 = vrot.slane %v8404, 1
    %v8407 = vor.u32 %v8402, %v8406
    %v8409 = vshrl.u32 %v8326, 16
    %v8411 = vshll.u32 %v8326, 16
    %v8413 = vrot.slane %v8411, 1
    %v8414 = vor.u32 %v8409, %v8413
    %v8416 = vshrl.u32 %v8327, 16
    %v8418 = vshll.u32 %v8327, 16
    %v8420 = vrot.slane %v8418, 1
    %v8421 = vor.u32 %v8416, %v8420
    %v8423 = vshrl.u32 %v8328, 16
    %v8425 = vshll.u32 %v8328, 16
    %v8427 = vrot.slane %v8425, 1
    %v8428 = vor.u32 %v8423, %v8427
    %v8430 = vshrl.u32 %v8329, 16
    %v8432 = vshll.u32 %v8329, 16
    %v8434 = vrot.slane %v8432, 1
    %v8435 = vor.u32 %v8430, %v8434
    %v8437 = vshrl.u32 %v8330, 16
    %v8439 = vshll.u32 %v8330, 16
    %v8441 = vrot.slane %v8439, 1
    %v8442 = vor.u32 %v8437, %v8441
    %v8443 = vunpack.c.l.b16 %v8337
    %v8444 = vunpack.c.l.b16 %v8344
    %v8445 = vunpack.c.l.b16 %v8351
    %v8446 = vunpack.c.l.b16 %v8358
    %v8447 = vunpack.c.l.b16 %v8365
    %v8448 = vunpack.c.l.b16 %v8372
    %v8449 = vunpack.c.l.b16 %v8379
    %v8450 = vunpack.c.l.b16 %v8386
    %v8451 = vunpack.c.l.b16 %v8393
    %v8452 = vunpack.c.l.b16 %v8400
    %v8453 = vunpack.c.l.b16 %v8407
    %v8454 = vunpack.c.l.b16 %v8414
    %v8455 = vunpack.c.l.b16 %v8421
    %v8456 = vunpack.c.l.b16 %v8428
    %v8457 = vunpack.c.l.b16 %v8435
    %v8458 = vunpack.c.l.b16 %v8442
    %s8459 = scalar_lea.vmem [#allocation7], 1280
    %v8460 = vld [vmem:[%s8459] sm:$0xf]
    %v8461 = vld [vmem:[%s8459 + $0x4] sm:$0xf]
    %v8462 = vld [vmem:[%s8459 + $0x8] sm:$0xf]
    %v8463 = vld [vmem:[%s8459 + $0xc] sm:$0xf]
    %v8464 = vld [vmem:[%s8459 + $0x10] sm:$0xf]
    %v8465 = vld [vmem:[%s8459 + $0x14] sm:$0xf]
    %v8466 = vld [vmem:[%s8459 + $0x18] sm:$0xf]
    %v8467 = vld [vmem:[%s8459 + $0x1c] sm:$0xf]
    %v8468 = vld [vmem:[%s8459 + $0x20] sm:$0xf]
    %v8469 = vld [vmem:[%s8459 + $0x24] sm:$0xf]
    %v8470 = vld [vmem:[%s8459 + $0x28] sm:$0xf]
    %v8471 = vld [vmem:[%s8459 + $0x2c] sm:$0xf]
    %v8472 = vld [vmem:[%s8459 + $0x30] sm:$0xf]
    %v8473 = vld [vmem:[%s8459 + $0x34] sm:$0xf]
    %v8474 = vld [vmem:[%s8459 + $0x38] sm:$0xf]
    %v8475 = vld [vmem:[%s8459 + $0x3c] sm:$0xf]
    %v8476 = vld [vmem:[%s8459 + $0x40] sm:$0xf]
    %v8477 = vld [vmem:[%s8459 + $0x44] sm:$0xf]
    %v8478 = vld [vmem:[%s8459 + $0x48] sm:$0xf]
    %v8479 = vld [vmem:[%s8459 + $0x4c] sm:$0xf]
    %v8480 = vld [vmem:[%s8459 + $0x50] sm:$0xf]
    %v8481 = vld [vmem:[%s8459 + $0x54] sm:$0xf]
    %v8482 = vld [vmem:[%s8459 + $0x58] sm:$0xf]
    %v8483 = vld [vmem:[%s8459 + $0x5c] sm:$0xf]
    %v8484 = vld [vmem:[%s8459 + $0x60] sm:$0xf]
    %v8485 = vld [vmem:[%s8459 + $0x64] sm:$0xf]
    %v8486 = vld [vmem:[%s8459 + $0x68] sm:$0xf]
    %v8487 = vld [vmem:[%s8459 + $0x6c] sm:$0xf]
    %v8488 = vld [vmem:[%s8459 + $0x70] sm:$0xf]
    %v8489 = vld [vmem:[%s8459 + $0x74] sm:$0xf]
    %v8490 = vld [vmem:[%s8459 + $0x78] sm:$0xf]
    %v8491 = vld [vmem:[%s8459 + $0x7c] sm:$0xf]
    %v8492 = vpack.c.b16 %v8285, %v8283
    %v8493 = vpack.c.b16 %v8444, %v8443
    %v8494 = vpack.c.b16 %v8289, %v8287
    %v8495 = vpack.c.b16 %v8446, %v8445
    %v8496 = vpack.c.b16 %v8293, %v8291
    %v8497 = vpack.c.b16 %v8448, %v8447
    %v8498 = vpack.c.b16 %v8297, %v8295
    %v8499 = vpack.c.b16 %v8450, %v8449
    %v8500 = vpack.c.b16 %v8301, %v8299
    %v8501 = vpack.c.b16 %v8452, %v8451
    %v8502 = vpack.c.b16 %v8305, %v8303
    %v8503 = vpack.c.b16 %v8454, %v8453
    %v8504 = vpack.c.b16 %v8309, %v8307
    %v8505 = vpack.c.b16 %v8456, %v8455
    %v8506 = vpack.c.b16 %v8313, %v8311
    %v8507 = vpack.c.b16 %v8458, %v8457
    %v8556 = vunpack.c.l.b16 %v8460
    %v8557 = vunpack.c.l.b16 %v8461
    %v8558 = vunpack.c.l.b16 %v8462
    %v8559 = vunpack.c.l.b16 %v8463
    %v8560 = vunpack.c.l.b16 %v8464
    %v8561 = vunpack.c.l.b16 %v8465
    %v8562 = vunpack.c.l.b16 %v8466
    %v8563 = vunpack.c.l.b16 %v8467
    %v8564 = vunpack.c.l.b16 %v8468
    %v8565 = vunpack.c.l.b16 %v8469
    %v8566 = vunpack.c.l.b16 %v8470
    %v8567 = vunpack.c.l.b16 %v8471
    %v8568 = vunpack.c.l.b16 %v8472
    %v8569 = vunpack.c.l.b16 %v8473
    %v8570 = vunpack.c.l.b16 %v8474
    %v8571 = vunpack.c.l.b16 %v8475
    %v8572 = vunpack.c.l.b16 %v8476
    %v8573 = vunpack.c.l.b16 %v8477
    %v8574 = vunpack.c.l.b16 %v8478
    %v8575 = vunpack.c.l.b16 %v8479
    %v8576 = vunpack.c.l.b16 %v8480
    %v8577 = vunpack.c.l.b16 %v8481
    %v8578 = vunpack.c.l.b16 %v8482
    %v8579 = vunpack.c.l.b16 %v8483
    %v8580 = vunpack.c.l.b16 %v8484
    %v8581 = vunpack.c.l.b16 %v8485
    %v8582 = vunpack.c.l.b16 %v8486
    %v8583 = vunpack.c.l.b16 %v8487
    %v8584 = vunpack.c.l.b16 %v8488
    %v8585 = vunpack.c.l.b16 %v8489
    %v8586 = vunpack.c.l.b16 %v8490
    %v8587 = vunpack.c.l.b16 %v8491
    %v8588 = vpack.c.b16 %v8557, %v8556
    %v8589 = vpack.c.b16 %v8559, %v8558
    %v8590 = vpack.c.b16 %v8561, %v8560
    %v8591 = vpack.c.b16 %v8563, %v8562
    %v8592 = vpack.c.b16 %v8565, %v8564
    %v8593 = vpack.c.b16 %v8567, %v8566
    %v8594 = vpack.c.b16 %v8569, %v8568
    %v8595 = vpack.c.b16 %v8571, %v8570
    %v8596 = vpack.c.b16 %v8573, %v8572
    %v8597 = vpack.c.b16 %v8575, %v8574
    %v8598 = vpack.c.b16 %v8577, %v8576
    %v8599 = vpack.c.b16 %v8579, %v8578
    %v8600 = vpack.c.b16 %v8581, %v8580
    %v8601 = vpack.c.b16 %v8583, %v8582
    %v8602 = vpack.c.b16 %v8585, %v8584
    %v8603 = vpack.c.b16 %v8587, %v8586
    %8620 = vmatpush.bf16.msra.mxu0 %v8595
    %8621 = vmatpush.bf16.msra.mxu0 %v8594
    %8622 = vmatpush.bf16.msra.mxu0 %v8593
    %8623 = vmatpush.bf16.msra.mxu0 %v8592
    %8624 = vmatpush.bf16.msra.mxu0 %v8591
    %8625 = vmatpush.bf16.msra.mxu0 %v8590
    %8626 = vmatpush.bf16.msra.mxu0 %v8589
    %8627 = vmatpush.bf16.msra.mxu0 %v8588
    %8628 = vmatmul.bf16.gmra.mxu0 %v8492
    %v8629 = vpop.f32.mrf.mxu0
    %v8630 = vadd.f32 0.0, %v8629
    %v8631 = vpop.f32.mrf.mxu0
    %v8632 = vadd.f32 0.0, %v8631
    %8633 = vmatmul.bf16.gmra.mxu0 %v8494
    %v8634 = vpop.f32.mrf.mxu0
    %v8635 = vadd.f32 0.0, %v8634
    %v8636 = vpop.f32.mrf.mxu0
    %v8637 = vadd.f32 0.0, %v8636
    %8638 = vmatmul.bf16.gmra.mxu0 %v8496
    %v8639 = vpop.f32.mrf.mxu0
    %v8640 = vadd.f32 0.0, %v8639
    %v8641 = vpop.f32.mrf.mxu0
    %v8642 = vadd.f32 0.0, %v8641
    %8643 = vmatmul.bf16.gmra.mxu0 %v8498
    %v8644 = vpop.f32.mrf.mxu0
    %v8645 = vadd.f32 0.0, %v8644
    %v8646 = vpop.f32.mrf.mxu0
    %v8647 = vadd.f32 0.0, %v8646
    %8648 = vmatmul.bf16.gmra.mxu0 %v8500
    %v8649 = vpop.f32.mrf.mxu0
    %v8650 = vadd.f32 0.0, %v8649
    %v8651 = vpop.f32.mrf.mxu0
    %v8652 = vadd.f32 0.0, %v8651
    %8653 = vmatmul.bf16.gmra.mxu0 %v8502
    %v8654 = vpop.f32.mrf.mxu0
    %v8655 = vadd.f32 0.0, %v8654
    %v8656 = vpop.f32.mrf.mxu0
    %v8657 = vadd.f32 0.0, %v8656
    %8658 = vmatmul.bf16.gmra.mxu0 %v8504
    %v8659 = vpop.f32.mrf.mxu0
    %v8660 = vadd.f32 0.0, %v8659
    %v8661 = vpop.f32.mrf.mxu0
    %v8662 = vadd.f32 0.0, %v8661
    %8663 = vmatmul.bf16.gmra.mxu0 %v8506
    %v8664 = vpop.f32.mrf.mxu0
    %v8665 = vadd.f32 0.0, %v8664
    %v8666 = vpop.f32.mrf.mxu0
    %v8667 = vadd.f32 0.0, %v8666
    %8668 = vdwg.mxu0
    %8669 = vmatpush.bf16.msra.mxu0 %v8603
    %8670 = vmatpush.bf16.msra.mxu0 %v8602
    %8671 = vmatpush.bf16.msra.mxu0 %v8601
    %8672 = vmatpush.bf16.msra.mxu0 %v8600
    %8673 = vmatpush.bf16.msra.mxu0 %v8599
    %8674 = vmatpush.bf16.msra.mxu0 %v8598
    %8675 = vmatpush.bf16.msra.mxu0 %v8597
    %8676 = vmatpush.bf16.msra.mxu0 %v8596
    %8677 = vmatmul.bf16.gmra.mxu0 %v8493
    %v8678 = vpop.f32.mrf.mxu0
    %v8679 = vadd.f32 %v8630, %v8678
    %v8680 = vpop.f32.mrf.mxu0
    %v8681 = vadd.f32 %v8632, %v8680
    %8682 = vmatmul.bf16.gmra.mxu0 %v8495
    %v8683 = vpop.f32.mrf.mxu0
    %v8684 = vadd.f32 %v8635, %v8683
    %v8685 = vpop.f32.mrf.mxu0
    %v8686 = vadd.f32 %v8637, %v8685
    %8687 = vmatmul.bf16.gmra.mxu0 %v8497
    %v8688 = vpop.f32.mrf.mxu0
    %v8689 = vadd.f32 %v8640, %v8688
    %v8690 = vpop.f32.mrf.mxu0
    %v8691 = vadd.f32 %v8642, %v8690
    %8692 = vmatmul.bf16.gmra.mxu0 %v8499
    %v8693 = vpop.f32.mrf.mxu0
    %v8694 = vadd.f32 %v8645, %v8693
    %v8695 = vpop.f32.mrf.mxu0
    %v8696 = vadd.f32 %v8647, %v8695
    %8697 = vmatmul.bf16.gmra.mxu0 %v8501
    %v8698 = vpop.f32.mrf.mxu0
    %v8699 = vadd.f32 %v8650, %v8698
    %v8700 = vpop.f32.mrf.mxu0
    %v8701 = vadd.f32 %v8652, %v8700
    %8702 = vmatmul.bf16.gmra.mxu0 %v8503
    %v8703 = vpop.f32.mrf.mxu0
    %v8704 = vadd.f32 %v8655, %v8703
    %v8705 = vpop.f32.mrf.mxu0
    %v8706 = vadd.f32 %v8657, %v8705
    %8707 = vmatmul.bf16.gmra.mxu0 %v8505
    %v8708 = vpop.f32.mrf.mxu0
    %v8709 = vadd.f32 %v8660, %v8708
    %v8710 = vpop.f32.mrf.mxu0
    %v8711 = vadd.f32 %v8662, %v8710
    %8712 = vmatmul.bf16.gmra.mxu0 %v8507
    %v8713 = vpop.f32.mrf.mxu0
    %v8714 = vadd.f32 %v8665, %v8713
    %v8715 = vpop.f32.mrf.mxu0
    %v8716 = vadd.f32 %v8667, %v8715
    %8717 = vdwg.mxu0
    %v8718 = vadd.f32 %v8202, %v8679
    %v8719 = vadd.f32 %v8203, %v8681
    %v8720 = vadd.f32 %v8204, %v8684
    %v8721 = vadd.f32 %v8205, %v8686
    %v8722 = vadd.f32 %v8206, %v8689
    %v8723 = vadd.f32 %v8207, %v8691
    %v8724 = vadd.f32 %v8208, %v8694
    %v8725 = vadd.f32 %v8209, %v8696
    %v8726 = vadd.f32 %v8210, %v8699
    %v8727 = vadd.f32 %v8211, %v8701
    %v8728 = vadd.f32 %v8212, %v8704
    %v8729 = vadd.f32 %v8213, %v8706
    %v8730 = vadd.f32 %v8214, %v8709
    %v8731 = vadd.f32 %v8215, %v8711
    %v8732 = vadd.f32 %v8216, %v8714
    %v8733 = vadd.f32 %v8217, %v8716
    %v8734 = vld [vmem:[%s8218] sm:$0xe]
    %v8735 = vld [vmem:[%s8218 + $0x8] sm:$0xe]
    %v8736 = vld [vmem:[%s8218 + $0x10] sm:$0xe]
    %v8737 = vld [vmem:[%s8218 + $0x18] sm:$0xe]
    %v8738 = vld [vmem:[%s8218 + $0x20] sm:$0xe]
    %v8739 = vld [vmem:[%s8218 + $0x28] sm:$0xe]
    %v8740 = vld [vmem:[%s8218 + $0x30] sm:$0xe]
    %v8741 = vld [vmem:[%s8218 + $0x38] sm:$0xe]
    %v8742 = vld [vmem:[%s8218 + $0x60] sm:$0xe]
    %v8743 = vld [vmem:[%s8218 + $0x68] sm:$0xe]
    %v8744 = vld [vmem:[%s8218 + $0x70] sm:$0xe]
    %v8745 = vld [vmem:[%s8218 + $0x78] sm:$0xe]
    %v8746 = vld [vmem:[%s8218 + $0x80] sm:$0xe]
    %v8747 = vld [vmem:[%s8218 + $0x88] sm:$0xe]
    %v8748 = vld [vmem:[%s8218 + $0x90] sm:$0xe]
    %v8749 = vld [vmem:[%s8218 + $0x98] sm:$0xe]
    %v8750 = vld [vmem:[%s8218 + $0x4] sm:$0x3]
    %v8751 = vld [vmem:[%s8218 + $0xc] sm:$0x3]
    %v8752 = vld [vmem:[%s8218 + $0x14] sm:$0x3]
    %v8753 = vld [vmem:[%s8218 + $0x1c] sm:$0x3]
    %v8754 = vld [vmem:[%s8218 + $0x24] sm:$0x3]
    %v8755 = vld [vmem:[%s8218 + $0x2c] sm:$0x3]
    %v8756 = vld [vmem:[%s8218 + $0x34] sm:$0x3]
    %v8757 = vld [vmem:[%s8218 + $0x3c] sm:$0x3]
    %v8758 = vld [vmem:[%s8218 + $0x64] sm:$0x3]
    %v8759 = vld [vmem:[%s8218 + $0x6c] sm:$0x3]
    %v8760 = vld [vmem:[%s8218 + $0x74] sm:$0x3]
    %v8761 = vld [vmem:[%s8218 + $0x7c] sm:$0x3]
    %v8762 = vld [vmem:[%s8218 + $0x84] sm:$0x3]
    %v8763 = vld [vmem:[%s8218 + $0x8c] sm:$0x3]
    %v8764 = vld [vmem:[%s8218 + $0x94] sm:$0x3]
    %v8765 = vld [vmem:[%s8218 + $0x9c] sm:$0x3]
    %v8782 = vunpack.c.l.b16 %v8734
    %v8783 = vunpack.c.l.b16 %v8735
    %v8784 = vunpack.c.l.b16 %v8736
    %v8785 = vunpack.c.l.b16 %v8737
    %v8786 = vunpack.c.l.b16 %v8738
    %v8787 = vunpack.c.l.b16 %v8739
    %v8788 = vunpack.c.l.b16 %v8740
    %v8789 = vunpack.c.l.b16 %v8741
    %v8790 = vunpack.c.l.b16 %v8742
    %v8791 = vunpack.c.l.b16 %v8743
    %v8792 = vunpack.c.l.b16 %v8744
    %v8793 = vunpack.c.l.b16 %v8745
    %v8794 = vunpack.c.l.b16 %v8746
    %v8795 = vunpack.c.l.b16 %v8747
    %v8796 = vunpack.c.l.b16 %v8748
    %v8797 = vunpack.c.l.b16 %v8749
    %v8814 = vunpack.c.l.b16 %v8750
    %v8815 = vunpack.c.l.b16 %v8751
    %v8816 = vunpack.c.l.b16 %v8752
    %v8817 = vunpack.c.l.b16 %v8753
    %v8818 = vunpack.c.l.b16 %v8754
    %v8819 = vunpack.c.l.b16 %v8755
    %v8820 = vunpack.c.l.b16 %v8756
    %v8821 = vunpack.c.l.b16 %v8757
    %v8822 = vunpack.c.l.b16 %v8758
    %v8823 = vunpack.c.l.b16 %v8759
    %v8824 = vunpack.c.l.b16 %v8760
    %v8825 = vunpack.c.l.b16 %v8761
    %v8826 = vunpack.c.l.b16 %v8762
    %v8827 = vunpack.c.l.b16 %v8763
    %v8828 = vunpack.c.l.b16 %v8764
    %v8829 = vunpack.c.l.b16 %v8765
    %v8830 = vpack.c.b16 %v8814, %v8782
    %v8831 = vpack.c.b16 %v8815, %v8783
    %v8832 = vpack.c.b16 %v8816, %v8784
    %v8833 = vpack.c.b16 %v8817, %v8785
    %v8834 = vpack.c.b16 %v8818, %v8786
    %v8835 = vpack.c.b16 %v8819, %v8787
    %v8836 = vpack.c.b16 %v8820, %v8788
    %v8837 = vpack.c.b16 %v8821, %v8789
    %v8838 = vpack.c.b16 %v8822, %v8790
    %v8839 = vpack.c.b16 %v8823, %v8791
    %v8840 = vpack.c.b16 %v8824, %v8792
    %v8841 = vpack.c.b16 %v8825, %v8793
    %v8842 = vpack.c.b16 %v8826, %v8794
    %v8843 = vpack.c.b16 %v8827, %v8795
    %v8844 = vpack.c.b16 %v8828, %v8796
    %v8845 = vpack.c.b16 %v8829, %v8797
    %v8847 = vshrl.u32 %v8830, 16
    %v8849 = vshll.u32 %v8830, 16
    %v8851 = vrot.slane %v8849, 1
    %v8852 = vor.u32 %v8847, %v8851
    %v8854 = vshrl.u32 %v8831, 16
    %v8856 = vshll.u32 %v8831, 16
    %v8858 = vrot.slane %v8856, 1
    %v8859 = vor.u32 %v8854, %v8858
    %v8861 = vshrl.u32 %v8832, 16
    %v8863 = vshll.u32 %v8832, 16
    %v8865 = vrot.slane %v8863, 1
    %v8866 = vor.u32 %v8861, %v8865
    %v8868 = vshrl.u32 %v8833, 16
    %v8870 = vshll.u32 %v8833, 16
    %v8872 = vrot.slane %v8870, 1
    %v8873 = vor.u32 %v8868, %v8872
    %v8875 = vshrl.u32 %v8834, 16
    %v8877 = vshll.u32 %v8834, 16
    %v8879 = vrot.slane %v8877, 1
    %v8880 = vor.u32 %v8875, %v8879
    %v8882 = vshrl.u32 %v8835, 16
    %v8884 = vshll.u32 %v8835, 16
    %v8886 = vrot.slane %v8884, 1
    %v8887 = vor.u32 %v8882, %v8886
    %v8889 = vshrl.u32 %v8836, 16
    %v8891 = vshll.u32 %v8836, 16
    %v8893 = vrot.slane %v8891, 1
    %v8894 = vor.u32 %v8889, %v8893
    %v8896 = vshrl.u32 %v8837, 16
    %v8898 = vshll.u32 %v8837, 16
    %v8900 = vrot.slane %v8898, 1
    %v8901 = vor.u32 %v8896, %v8900
    %v8903 = vshrl.u32 %v8838, 16
    %v8905 = vshll.u32 %v8838, 16
    %v8907 = vrot.slane %v8905, 1
    %v8908 = vor.u32 %v8903, %v8907
    %v8910 = vshrl.u32 %v8839, 16
    %v8912 = vshll.u32 %v8839, 16
    %v8914 = vrot.slane %v8912, 1
    %v8915 = vor.u32 %v8910, %v8914
    %v8917 = vshrl.u32 %v8840, 16
    %v8919 = vshll.u32 %v8840, 16
    %v8921 = vrot.slane %v8919, 1
    %v8922 = vor.u32 %v8917, %v8921
    %v8924 = vshrl.u32 %v8841, 16
    %v8926 = vshll.u32 %v8841, 16
    %v8928 = vrot.slane %v8926, 1
    %v8929 = vor.u32 %v8924, %v8928
    %v8931 = vshrl.u32 %v8842, 16
    %v8933 = vshll.u32 %v8842, 16
    %v8935 = vrot.slane %v8933, 1
    %v8936 = vor.u32 %v8931, %v8935
    %v8938 = vshrl.u32 %v8843, 16
    %v8940 = vshll.u32 %v8843, 16
    %v8942 = vrot.slane %v8940, 1
    %v8943 = vor.u32 %v8938, %v8942
    %v8945 = vshrl.u32 %v8844, 16
    %v8947 = vshll.u32 %v8844, 16
    %v8949 = vrot.slane %v8947, 1
    %v8950 = vor.u32 %v8945, %v8949
    %v8952 = vshrl.u32 %v8845, 16
    %v8954 = vshll.u32 %v8845, 16
    %v8956 = vrot.slane %v8954, 1
    %v8957 = vor.u32 %v8952, %v8956
    %v8958 = vunpack.c.l.b16 %v8852
    %v8959 = vunpack.c.h.b16 %v8852
    %v8960 = vunpack.c.l.b16 %v8859
    %v8961 = vunpack.c.h.b16 %v8859
    %v8962 = vunpack.c.l.b16 %v8866
    %v8963 = vunpack.c.h.b16 %v8866
    %v8964 = vunpack.c.l.b16 %v8873
    %v8965 = vunpack.c.h.b16 %v8873
    %v8966 = vunpack.c.l.b16 %v8880
    %v8967 = vunpack.c.h.b16 %v8880
    %v8968 = vunpack.c.l.b16 %v8887
    %v8969 = vunpack.c.h.b16 %v8887
    %v8970 = vunpack.c.l.b16 %v8894
    %v8971 = vunpack.c.h.b16 %v8894
    %v8972 = vunpack.c.l.b16 %v8901
    %v8973 = vunpack.c.h.b16 %v8901
    %v8974 = vunpack.c.l.b16 %v8908
    %v8975 = vunpack.c.h.b16 %v8908
    %v8976 = vunpack.c.l.b16 %v8915
    %v8977 = vunpack.c.h.b16 %v8915
    %v8978 = vunpack.c.l.b16 %v8922
    %v8979 = vunpack.c.h.b16 %v8922
    %v8980 = vunpack.c.l.b16 %v8929
    %v8981 = vunpack.c.h.b16 %v8929
    %v8982 = vunpack.c.l.b16 %v8936
    %v8983 = vunpack.c.h.b16 %v8936
    %v8984 = vunpack.c.l.b16 %v8943
    %v8985 = vunpack.c.h.b16 %v8943
    %v8986 = vunpack.c.l.b16 %v8950
    %v8987 = vunpack.c.h.b16 %v8950
    %v8988 = vunpack.c.l.b16 %v8957
    %v8989 = vunpack.c.h.b16 %v8957
    %v8990 = vpack.c.b16 %v8958, %v8782
    %v8991 = vpack.c.b16 %v8959, %v8284
    %v8992 = vpack.c.b16 %v8960, %v8783
    %v8993 = vpack.c.b16 %v8961, %v8286
    %v8994 = vpack.c.b16 %v8962, %v8784
    %v8995 = vpack.c.b16 %v8963, %v8288
    %v8996 = vpack.c.b16 %v8964, %v8785
    %v8997 = vpack.c.b16 %v8965, %v8290
    %v8998 = vpack.c.b16 %v8966, %v8786
    %v8999 = vpack.c.b16 %v8967, %v8292
    %v9000 = vpack.c.b16 %v8968, %v8787
    %v9001 = vpack.c.b16 %v8969, %v8294
    %v9002 = vpack.c.b16 %v8970, %v8788
    %v9003 = vpack.c.b16 %v8971, %v8296
    %v9004 = vpack.c.b16 %v8972, %v8789
    %v9005 = vpack.c.b16 %v8973, %v8298
    %v9006 = vpack.c.b16 %v8974, %v8790
    %v9007 = vpack.c.b16 %v8975, %v8300
    %v9008 = vpack.c.b16 %v8976, %v8791
    %v9009 = vpack.c.b16 %v8977, %v8302
    %v9010 = vpack.c.b16 %v8978, %v8792
    %v9011 = vpack.c.b16 %v8979, %v8304
    %v9012 = vpack.c.b16 %v8980, %v8793
    %v9013 = vpack.c.b16 %v8981, %v8306
    %v9014 = vpack.c.b16 %v8982, %v8794
    %v9015 = vpack.c.b16 %v8983, %v8308
    %v9016 = vpack.c.b16 %v8984, %v8795
    %v9017 = vpack.c.b16 %v8985, %v8310
    %v9018 = vpack.c.b16 %v8986, %v8796
    %v9019 = vpack.c.b16 %v8987, %v8312
    %v9020 = vpack.c.b16 %v8988, %v8797
    %v9021 = vpack.c.b16 %v8989, %v8314
    %v9022 = vrot.slane %v8990, 5
    %v9023 = vrot.slane %v9022, 4
    %v9024 = vrot.slane %v8991, 5
    %v9025 = vsel %vm1824, %v9023, %v9024
    %v9026 = vrot.slane %v8992, 5
    %v9027 = vrot.slane %v9026, 4
    %v9028 = vrot.slane %v8993, 5
    %v9029 = vsel %vm1824, %v9027, %v9028
    %v9030 = vrot.slane %v8994, 5
    %v9031 = vrot.slane %v9030, 4
    %v9032 = vrot.slane %v8995, 5
    %v9033 = vsel %vm1824, %v9031, %v9032
    %v9034 = vrot.slane %v8996, 5
    %v9035 = vrot.slane %v9034, 4
    %v9036 = vrot.slane %v8997, 5
    %v9037 = vsel %vm1824, %v9035, %v9036
    %v9038 = vrot.slane %v8998, 5
    %v9039 = vrot.slane %v9038, 4
    %v9040 = vrot.slane %v8999, 5
    %v9041 = vsel %vm1824, %v9039, %v9040
    %v9042 = vrot.slane %v9000, 5
    %v9043 = vrot.slane %v9042, 4
    %v9044 = vrot.slane %v9001, 5
    %v9045 = vsel %vm1824, %v9043, %v9044
    %v9046 = vrot.slane %v9002, 5
    %v9047 = vrot.slane %v9046, 4
    %v9048 = vrot.slane %v9003, 5
    %v9049 = vsel %vm1824, %v9047, %v9048
    %v9050 = vrot.slane %v9004, 5
    %v9051 = vrot.slane %v9050, 4
    %v9052 = vrot.slane %v9005, 5
    %v9053 = vsel %vm1824, %v9051, %v9052
    %v9054 = vrot.slane %v9006, 5
    %v9055 = vrot.slane %v9054, 4
    %v9056 = vrot.slane %v9007, 5
    %v9057 = vsel %vm1824, %v9055, %v9056
    %v9058 = vrot.slane %v9008, 5
    %v9059 = vrot.slane %v9058, 4
    %v9060 = vrot.slane %v9009, 5
    %v9061 = vsel %vm1824, %v9059, %v9060
    %v9062 = vrot.slane %v9010, 5
    %v9063 = vrot.slane %v9062, 4
    %v9064 = vrot.slane %v9011, 5
    %v9065 = vsel %vm1824, %v9063, %v9064
    %v9066 = vrot.slane %v9012, 5
    %v9067 = vrot.slane %v9066, 4
    %v9068 = vrot.slane %v9013, 5
    %v9069 = vsel %vm1824, %v9067, %v9068
    %v9070 = vrot.slane %v9014, 5
    %v9071 = vrot.slane %v9070, 4
    %v9072 = vrot.slane %v9015, 5
    %v9073 = vsel %vm1824, %v9071, %v9072
    %v9074 = vrot.slane %v9016, 5
    %v9075 = vrot.slane %v9074, 4
    %v9076 = vrot.slane %v9017, 5
    %v9077 = vsel %vm1824, %v9075, %v9076
    %v9078 = vrot.slane %v9018, 5
    %v9079 = vrot.slane %v9078, 4
    %v9080 = vrot.slane %v9019, 5
    %v9081 = vsel %vm1824, %v9079, %v9080
    %v9082 = vrot.slane %v9020, 5
    %v9083 = vrot.slane %v9082, 4
    %v9084 = vrot.slane %v9021, 5
    %v9085 = vsel %vm1824, %v9083, %v9084
    %s9086 = scalar_lea.vmem [#allocation7], 1408
    %v9087 = vld [vmem:[%s9086] sm:$0xf]
    %v9088 = vld [vmem:[%s9086 + $0x4] sm:$0xf]
    %v9089 = vld [vmem:[%s9086 + $0x8] sm:$0xf]
    %v9090 = vld [vmem:[%s9086 + $0xc] sm:$0xf]
    %v9091 = vld [vmem:[%s9086 + $0x10] sm:$0xf]
    %v9092 = vld [vmem:[%s9086 + $0x14] sm:$0xf]
    %v9093 = vld [vmem:[%s9086 + $0x18] sm:$0xf]
    %v9094 = vld [vmem:[%s9086 + $0x1c] sm:$0xf]
    %v9095 = vld [vmem:[%s9086 + $0x20] sm:$0xf]
    %v9096 = vld [vmem:[%s9086 + $0x24] sm:$0xf]
    %v9097 = vld [vmem:[%s9086 + $0x28] sm:$0xf]
    %v9098 = vld [vmem:[%s9086 + $0x2c] sm:$0xf]
    %v9099 = vld [vmem:[%s9086 + $0x30] sm:$0xf]
    %v9100 = vld [vmem:[%s9086 + $0x34] sm:$0xf]
    %v9101 = vld [vmem:[%s9086 + $0x38] sm:$0xf]
    %v9102 = vld [vmem:[%s9086 + $0x3c] sm:$0xf]
    %v9103 = vld [vmem:[%s9086 + $0x40] sm:$0xf]
    %v9104 = vld [vmem:[%s9086 + $0x44] sm:$0xf]
    %v9105 = vld [vmem:[%s9086 + $0x48] sm:$0xf]
    %v9106 = vld [vmem:[%s9086 + $0x4c] sm:$0xf]
    %v9107 = vld [vmem:[%s9086 + $0x50] sm:$0xf]
    %v9108 = vld [vmem:[%s9086 + $0x54] sm:$0xf]
    %v9109 = vld [vmem:[%s9086 + $0x58] sm:$0xf]
    %v9110 = vld [vmem:[%s9086 + $0x5c] sm:$0xf]
    %v9111 = vld [vmem:[%s9086 + $0x60] sm:$0xf]
    %v9112 = vld [vmem:[%s9086 + $0x64] sm:$0xf]
    %v9113 = vld [vmem:[%s9086 + $0x68] sm:$0xf]
    %v9114 = vld [vmem:[%s9086 + $0x6c] sm:$0xf]
    %v9115 = vld [vmem:[%s9086 + $0x70] sm:$0xf]
    %v9116 = vld [vmem:[%s9086 + $0x74] sm:$0xf]
    %v9117 = vld [vmem:[%s9086 + $0x78] sm:$0xf]
    %v9118 = vld [vmem:[%s9086 + $0x7c] sm:$0xf]
    %v9119 = vunpack.c.l.b16 %v9025
    %v9120 = vunpack.c.h.b16 %v9025
    %v9121 = vunpack.c.l.b16 %v9029
    %v9122 = vunpack.c.h.b16 %v9029
    %v9123 = vunpack.c.l.b16 %v9033
    %v9124 = vunpack.c.h.b16 %v9033
    %v9125 = vunpack.c.l.b16 %v9037
    %v9126 = vunpack.c.h.b16 %v9037
    %v9127 = vunpack.c.l.b16 %v9041
    %v9128 = vunpack.c.h.b16 %v9041
    %v9129 = vunpack.c.l.b16 %v9045
    %v9130 = vunpack.c.h.b16 %v9045
    %v9131 = vunpack.c.l.b16 %v9049
    %v9132 = vunpack.c.h.b16 %v9049
    %v9133 = vunpack.c.l.b16 %v9053
    %v9134 = vunpack.c.h.b16 %v9053
    %v9135 = vunpack.c.l.b16 %v9057
    %v9136 = vunpack.c.h.b16 %v9057
    %v9137 = vunpack.c.l.b16 %v9061
    %v9138 = vunpack.c.h.b16 %v9061
    %v9139 = vunpack.c.l.b16 %v9065
    %v9140 = vunpack.c.h.b16 %v9065
    %v9141 = vunpack.c.l.b16 %v9069
    %v9142 = vunpack.c.h.b16 %v9069
    %v9143 = vunpack.c.l.b16 %v9073
    %v9144 = vunpack.c.h.b16 %v9073
    %v9145 = vunpack.c.l.b16 %v9077
    %v9146 = vunpack.c.h.b16 %v9077
    %v9147 = vunpack.c.l.b16 %v9081
    %v9148 = vunpack.c.h.b16 %v9081
    %v9149 = vunpack.c.l.b16 %v9085
    %v9150 = vunpack.c.h.b16 %v9085
    %v9151 = vpack.c.b16 %v9121, %v9119
    %v9152 = vpack.c.b16 %v9122, %v9120
    %v9153 = vpack.c.b16 %v9125, %v9123
    %v9154 = vpack.c.b16 %v9126, %v9124
    %v9155 = vpack.c.b16 %v9129, %v9127
    %v9156 = vpack.c.b16 %v9130, %v9128
    %v9157 = vpack.c.b16 %v9133, %v9131
    %v9158 = vpack.c.b16 %v9134, %v9132
    %v9159 = vpack.c.b16 %v9137, %v9135
    %v9160 = vpack.c.b16 %v9138, %v9136
    %v9161 = vpack.c.b16 %v9141, %v9139
    %v9162 = vpack.c.b16 %v9142, %v9140
    %v9163 = vpack.c.b16 %v9145, %v9143
    %v9164 = vpack.c.b16 %v9146, %v9144
    %v9165 = vpack.c.b16 %v9149, %v9147
    %v9166 = vpack.c.b16 %v9150, %v9148
    %v9215 = vunpack.c.l.b16 %v9087
    %v9216 = vunpack.c.l.b16 %v9088
    %v9217 = vunpack.c.l.b16 %v9089
    %v9218 = vunpack.c.l.b16 %v9090
    %v9219 = vunpack.c.l.b16 %v9091
    %v9220 = vunpack.c.l.b16 %v9092
    %v9221 = vunpack.c.l.b16 %v9093
    %v9222 = vunpack.c.l.b16 %v9094
    %v9223 = vunpack.c.l.b16 %v9095
    %v9224 = vunpack.c.l.b16 %v9096
    %v9225 = vunpack.c.l.b16 %v9097
    %v9226 = vunpack.c.l.b16 %v9098
    %v9227 = vunpack.c.l.b16 %v9099
    %v9228 = vunpack.c.l.b16 %v9100
    %v9229 = vunpack.c.l.b16 %v9101
    %v9230 = vunpack.c.l.b16 %v9102
    %v9231 = vunpack.c.l.b16 %v9103
    %v9232 = vunpack.c.l.b16 %v9104
    %v9233 = vunpack.c.l.b16 %v9105
    %v9234 = vunpack.c.l.b16 %v9106
    %v9235 = vunpack.c.l.b16 %v9107
    %v9236 = vunpack.c.l.b16 %v9108
    %v9237 = vunpack.c.l.b16 %v9109
    %v9238 = vunpack.c.l.b16 %v9110
    %v9239 = vunpack.c.l.b16 %v9111
    %v9240 = vunpack.c.l.b16 %v9112
    %v9241 = vunpack.c.l.b16 %v9113
    %v9242 = vunpack.c.l.b16 %v9114
    %v9243 = vunpack.c.l.b16 %v9115
    %v9244 = vunpack.c.l.b16 %v9116
    %v9245 = vunpack.c.l.b16 %v9117
    %v9246 = vunpack.c.l.b16 %v9118
    %v9247 = vpack.c.b16 %v9216, %v9215
    %v9248 = vpack.c.b16 %v9218, %v9217
    %v9249 = vpack.c.b16 %v9220, %v9219
    %v9250 = vpack.c.b16 %v9222, %v9221
    %v9251 = vpack.c.b16 %v9224, %v9223
    %v9252 = vpack.c.b16 %v9226, %v9225
    %v9253 = vpack.c.b16 %v9228, %v9227
    %v9254 = vpack.c.b16 %v9230, %v9229
    %v9255 = vpack.c.b16 %v9232, %v9231
    %v9256 = vpack.c.b16 %v9234, %v9233
    %v9257 = vpack.c.b16 %v9236, %v9235
    %v9258 = vpack.c.b16 %v9238, %v9237
    %v9259 = vpack.c.b16 %v9240, %v9239
    %v9260 = vpack.c.b16 %v9242, %v9241
    %v9261 = vpack.c.b16 %v9244, %v9243
    %v9262 = vpack.c.b16 %v9246, %v9245
    %9279 = vmatpush.bf16.msra.mxu0 %v9254
    %9280 = vmatpush.bf16.msra.mxu0 %v9253
    %9281 = vmatpush.bf16.msra.mxu0 %v9252
    %9282 = vmatpush.bf16.msra.mxu0 %v9251
    %9283 = vmatpush.bf16.msra.mxu0 %v9250
    %9284 = vmatpush.bf16.msra.mxu0 %v9249
    %9285 = vmatpush.bf16.msra.mxu0 %v9248
    %9286 = vmatpush.bf16.msra.mxu0 %v9247
    %9287 = vmatmul.bf16.gmra.mxu0 %v9151
    %v9288 = vpop.f32.mrf.mxu0
    %v9289 = vadd.f32 0.0, %v9288
    %v9290 = vpop.f32.mrf.mxu0
    %v9291 = vadd.f32 0.0, %v9290
    %9292 = vmatmul.bf16.gmra.mxu0 %v9153
    %v9293 = vpop.f32.mrf.mxu0
    %v9294 = vadd.f32 0.0, %v9293
    %v9295 = vpop.f32.mrf.mxu0
    %v9296 = vadd.f32 0.0, %v9295
    %9297 = vmatmul.bf16.gmra.mxu0 %v9155
    %v9298 = vpop.f32.mrf.mxu0
    %v9299 = vadd.f32 0.0, %v9298
    %v9300 = vpop.f32.mrf.mxu0
    %v9301 = vadd.f32 0.0, %v9300
    %9302 = vmatmul.bf16.gmra.mxu0 %v9157
    %v9303 = vpop.f32.mrf.mxu0
    %v9304 = vadd.f32 0.0, %v9303
    %v9305 = vpop.f32.mrf.mxu0
    %v9306 = vadd.f32 0.0, %v9305
    %9307 = vmatmul.bf16.gmra.mxu0 %v9159
    %v9308 = vpop.f32.mrf.mxu0
    %v9309 = vadd.f32 0.0, %v9308
    %v9310 = vpop.f32.mrf.mxu0
    %v9311 = vadd.f32 0.0, %v9310
    %9312 = vmatmul.bf16.gmra.mxu0 %v9161
    %v9313 = vpop.f32.mrf.mxu0
    %v9314 = vadd.f32 0.0, %v9313
    %v9315 = vpop.f32.mrf.mxu0
    %v9316 = vadd.f32 0.0, %v9315
    %9317 = vmatmul.bf16.gmra.mxu0 %v9163
    %v9318 = vpop.f32.mrf.mxu0
    %v9319 = vadd.f32 0.0, %v9318
    %v9320 = vpop.f32.mrf.mxu0
    %v9321 = vadd.f32 0.0, %v9320
    %9322 = vmatmul.bf16.gmra.mxu0 %v9165
    %v9323 = vpop.f32.mrf.mxu0
    %v9324 = vadd.f32 0.0, %v9323
    %v9325 = vpop.f32.mrf.mxu0
    %v9326 = vadd.f32 0.0, %v9325
    %9327 = vdwg.mxu0
    %9328 = vmatpush.bf16.msra.mxu0 %v9262
    %9329 = vmatpush.bf16.msra.mxu0 %v9261
    %9330 = vmatpush.bf16.msra.mxu0 %v9260
    %9331 = vmatpush.bf16.msra.mxu0 %v9259
    %9332 = vmatpush.bf16.msra.mxu0 %v9258
    %9333 = vmatpush.bf16.msra.mxu0 %v9257
    %9334 = vmatpush.bf16.msra.mxu0 %v9256
    %9335 = vmatpush.bf16.msra.mxu0 %v9255
    %9336 = vmatmul.bf16.gmra.mxu0 %v9152
    %v9337 = vpop.f32.mrf.mxu0
    %v9338 = vadd.f32 %v9289, %v9337
    %v9339 = vpop.f32.mrf.mxu0
    %v9340 = vadd.f32 %v9291, %v9339
    %9341 = vmatmul.bf16.gmra.mxu0 %v9154
    %v9342 = vpop.f32.mrf.mxu0
    %v9343 = vadd.f32 %v9294, %v9342
    %v9344 = vpop.f32.mrf.mxu0
    %v9345 = vadd.f32 %v9296, %v9344
    %9346 = vmatmul.bf16.gmra.mxu0 %v9156
    %v9347 = vpop.f32.mrf.mxu0
    %v9348 = vadd.f32 %v9299, %v9347
    %v9349 = vpop.f32.mrf.mxu0
    %v9350 = vadd.f32 %v9301, %v9349
    %9351 = vmatmul.bf16.gmra.mxu0 %v9158
    %v9352 = vpop.f32.mrf.mxu0
    %v9353 = vadd.f32 %v9304, %v9352
    %v9354 = vpop.f32.mrf.mxu0
    %v9355 = vadd.f32 %v9306, %v9354
    %9356 = vmatmul.bf16.gmra.mxu0 %v9160
    %v9357 = vpop.f32.mrf.mxu0
    %v9358 = vadd.f32 %v9309, %v9357
    %v9359 = vpop.f32.mrf.mxu0
    %v9360 = vadd.f32 %v9311, %v9359
    %9361 = vmatmul.bf16.gmra.mxu0 %v9162
    %v9362 = vpop.f32.mrf.mxu0
    %v9363 = vadd.f32 %v9314, %v9362
    %v9364 = vpop.f32.mrf.mxu0
    %v9365 = vadd.f32 %v9316, %v9364
    %9366 = vmatmul.bf16.gmra.mxu0 %v9164
    %v9367 = vpop.f32.mrf.mxu0
    %v9368 = vadd.f32 %v9319, %v9367
    %v9369 = vpop.f32.mrf.mxu0
    %v9370 = vadd.f32 %v9321, %v9369
    %9371 = vmatmul.bf16.gmra.mxu0 %v9166
    %v9372 = vpop.f32.mrf.mxu0
    %v9373 = vadd.f32 %v9324, %v9372
    %v9374 = vpop.f32.mrf.mxu0
    %v9375 = vadd.f32 %v9326, %v9374
    %9376 = vdwg.mxu0
    %v9377 = vadd.f32 %v8718, %v9338
    %v9378 = vadd.f32 %v8719, %v9340
    %v9379 = vadd.f32 %v8720, %v9343
    %v9380 = vadd.f32 %v8721, %v9345
    %v9381 = vadd.f32 %v8722, %v9348
    %v9382 = vadd.f32 %v8723, %v9350
    %v9383 = vadd.f32 %v8724, %v9353
    %v9384 = vadd.f32 %v8725, %v9355
    %v9385 = vadd.f32 %v8726, %v9358
    %v9386 = vadd.f32 %v8727, %v9360
    %v9387 = vadd.f32 %v8728, %v9363
    %v9388 = vadd.f32 %v8729, %v9365
    %v9389 = vadd.f32 %v8730, %v9368
    %v9390 = vadd.f32 %v8731, %v9370
    %v9391 = vadd.f32 %v8732, %v9373
    %v9392 = vadd.f32 %v8733, %v9375
    %v9393 = vld [vmem:[%s8218] sm:$0xc]
    %v9394 = vld [vmem:[%s8218 + $0x8] sm:$0xc]
    %v9395 = vld [vmem:[%s8218 + $0x10] sm:$0xc]
    %v9396 = vld [vmem:[%s8218 + $0x18] sm:$0xc]
    %v9397 = vld [vmem:[%s8218 + $0x20] sm:$0xc]
    %v9398 = vld [vmem:[%s8218 + $0x28] sm:$0xc]
    %v9399 = vld [vmem:[%s8218 + $0x30] sm:$0xc]
    %v9400 = vld [vmem:[%s8218 + $0x38] sm:$0xc]
    %v9401 = vld [vmem:[%s8218 + $0x60] sm:$0xc]
    %v9402 = vld [vmem:[%s8218 + $0x68] sm:$0xc]
    %v9403 = vld [vmem:[%s8218 + $0x70] sm:$0xc]
    %v9404 = vld [vmem:[%s8218 + $0x78] sm:$0xc]
    %v9405 = vld [vmem:[%s8218 + $0x80] sm:$0xc]
    %v9406 = vld [vmem:[%s8218 + $0x88] sm:$0xc]
    %v9407 = vld [vmem:[%s8218 + $0x90] sm:$0xc]
    %v9408 = vld [vmem:[%s8218 + $0x98] sm:$0xc]
    %v9425 = vunpack.c.l.b16 %v9393
    %v9426 = vunpack.c.l.b16 %v9394
    %v9427 = vunpack.c.l.b16 %v9395
    %v9428 = vunpack.c.l.b16 %v9396
    %v9429 = vunpack.c.l.b16 %v9397
    %v9430 = vunpack.c.l.b16 %v9398
    %v9431 = vunpack.c.l.b16 %v9399
    %v9432 = vunpack.c.l.b16 %v9400
    %v9433 = vunpack.c.l.b16 %v9401
    %v9434 = vunpack.c.l.b16 %v9402
    %v9435 = vunpack.c.l.b16 %v9403
    %v9436 = vunpack.c.l.b16 %v9404
    %v9437 = vunpack.c.l.b16 %v9405
    %v9438 = vunpack.c.l.b16 %v9406
    %v9439 = vunpack.c.l.b16 %v9407
    %v9440 = vunpack.c.l.b16 %v9408
    %v9441 = vpack.c.b16 %v9425, %v9425
    %v9442 = vpack.c.b16 %v8814, %v8814
    %v9443 = vpack.c.b16 %v9426, %v9426
    %v9444 = vpack.c.b16 %v8815, %v8815
    %v9445 = vpack.c.b16 %v9427, %v9427
    %v9446 = vpack.c.b16 %v8816, %v8816
    %v9447 = vpack.c.b16 %v9428, %v9428
    %v9448 = vpack.c.b16 %v8817, %v8817
    %v9449 = vpack.c.b16 %v9429, %v9429
    %v9450 = vpack.c.b16 %v8818, %v8818
    %v9451 = vpack.c.b16 %v9430, %v9430
    %v9452 = vpack.c.b16 %v8819, %v8819
    %v9453 = vpack.c.b16 %v9431, %v9431
    %v9454 = vpack.c.b16 %v8820, %v8820
    %v9455 = vpack.c.b16 %v9432, %v9432
    %v9456 = vpack.c.b16 %v8821, %v8821
    %v9457 = vpack.c.b16 %v9433, %v9433
    %v9458 = vpack.c.b16 %v8822, %v8822
    %v9459 = vpack.c.b16 %v9434, %v9434
    %v9460 = vpack.c.b16 %v8823, %v8823
    %v9461 = vpack.c.b16 %v9435, %v9435
    %v9462 = vpack.c.b16 %v8824, %v8824
    %v9463 = vpack.c.b16 %v9436, %v9436
    %v9464 = vpack.c.b16 %v8825, %v8825
    %v9465 = vpack.c.b16 %v9437, %v9437
    %v9466 = vpack.c.b16 %v8826, %v8826
    %v9467 = vpack.c.b16 %v9438, %v9438
    %v9468 = vpack.c.b16 %v8827, %v8827
    %v9469 = vpack.c.b16 %v9439, %v9439
    %v9470 = vpack.c.b16 %v8828, %v8828
    %v9471 = vpack.c.b16 %v9440, %v9440
    %v9472 = vpack.c.b16 %v8829, %v8829
    %v9473 = vrot.slane %v9441, 6
    %v9474 = vrot.slane %v9473, 4
    %v9475 = vrot.slane %v9442, 6
    %v9476 = vsel %vm2601, %v9474, %v9475
    %v9477 = vrot.slane %v9443, 6
    %v9478 = vrot.slane %v9477, 4
    %v9479 = vrot.slane %v9444, 6
    %v9480 = vsel %vm2601, %v9478, %v9479
    %v9481 = vrot.slane %v9445, 6
    %v9482 = vrot.slane %v9481, 4
    %v9483 = vrot.slane %v9446, 6
    %v9484 = vsel %vm2601, %v9482, %v9483
    %v9485 = vrot.slane %v9447, 6
    %v9486 = vrot.slane %v9485, 4
    %v9487 = vrot.slane %v9448, 6
    %v9488 = vsel %vm2601, %v9486, %v9487
    %v9489 = vrot.slane %v9449, 6
    %v9490 = vrot.slane %v9489, 4
    %v9491 = vrot.slane %v9450, 6
    %v9492 = vsel %vm2601, %v9490, %v9491
    %v9493 = vrot.slane %v9451, 6
    %v9494 = vrot.slane %v9493, 4
    %v9495 = vrot.slane %v9452, 6
    %v9496 = vsel %vm2601, %v9494, %v9495
    %v9497 = vrot.slane %v9453, 6
    %v9498 = vrot.slane %v9497, 4
    %v9499 = vrot.slane %v9454, 6
    %v9500 = vsel %vm2601, %v9498, %v9499
    %v9501 = vrot.slane %v9455, 6
    %v9502 = vrot.slane %v9501, 4
    %v9503 = vrot.slane %v9456, 6
    %v9504 = vsel %vm2601, %v9502, %v9503
    %v9505 = vrot.slane %v9457, 6
    %v9506 = vrot.slane %v9505, 4
    %v9507 = vrot.slane %v9458, 6
    %v9508 = vsel %vm2601, %v9506, %v9507
    %v9509 = vrot.slane %v9459, 6
    %v9510 = vrot.slane %v9509, 4
    %v9511 = vrot.slane %v9460, 6
    %v9512 = vsel %vm2601, %v9510, %v9511
    %v9513 = vrot.slane %v9461, 6
    %v9514 = vrot.slane %v9513, 4
    %v9515 = vrot.slane %v9462, 6
    %v9516 = vsel %vm2601, %v9514, %v9515
    %v9517 = vrot.slane %v9463, 6
    %v9518 = vrot.slane %v9517, 4
    %v9519 = vrot.slane %v9464, 6
    %v9520 = vsel %vm2601, %v9518, %v9519
    %v9521 = vrot.slane %v9465, 6
    %v9522 = vrot.slane %v9521, 4
    %v9523 = vrot.slane %v9466, 6
    %v9524 = vsel %vm2601, %v9522, %v9523
    %v9525 = vrot.slane %v9467, 6
    %v9526 = vrot.slane %v9525, 4
    %v9527 = vrot.slane %v9468, 6
    %v9528 = vsel %vm2601, %v9526, %v9527
    %v9529 = vrot.slane %v9469, 6
    %v9530 = vrot.slane %v9529, 4
    %v9531 = vrot.slane %v9470, 6
    %v9532 = vsel %vm2601, %v9530, %v9531
    %v9533 = vrot.slane %v9471, 6
    %v9534 = vrot.slane %v9533, 4
    %v9535 = vrot.slane %v9472, 6
    %v9536 = vsel %vm2601, %v9534, %v9535
    %s9537 = scalar_lea.vmem [#allocation7], 1536
    %v9538 = vld [vmem:[%s9537] sm:$0xf]
    %v9539 = vld [vmem:[%s9537 + $0x4] sm:$0xf]
    %v9540 = vld [vmem:[%s9537 + $0x8] sm:$0xf]
    %v9541 = vld [vmem:[%s9537 + $0xc] sm:$0xf]
    %v9542 = vld [vmem:[%s9537 + $0x10] sm:$0xf]
    %v9543 = vld [vmem:[%s9537 + $0x14] sm:$0xf]
    %v9544 = vld [vmem:[%s9537 + $0x18] sm:$0xf]
    %v9545 = vld [vmem:[%s9537 + $0x1c] sm:$0xf]
    %v9546 = vld [vmem:[%s9537 + $0x20] sm:$0xf]
    %v9547 = vld [vmem:[%s9537 + $0x24] sm:$0xf]
    %v9548 = vld [vmem:[%s9537 + $0x28] sm:$0xf]
    %v9549 = vld [vmem:[%s9537 + $0x2c] sm:$0xf]
    %v9550 = vld [vmem:[%s9537 + $0x30] sm:$0xf]
    %v9551 = vld [vmem:[%s9537 + $0x34] sm:$0xf]
    %v9552 = vld [vmem:[%s9537 + $0x38] sm:$0xf]
    %v9553 = vld [vmem:[%s9537 + $0x3c] sm:$0xf]
    %v9554 = vld [vmem:[%s9537 + $0x40] sm:$0xf]
    %v9555 = vld [vmem:[%s9537 + $0x44] sm:$0xf]
    %v9556 = vld [vmem:[%s9537 + $0x48] sm:$0xf]
    %v9557 = vld [vmem:[%s9537 + $0x4c] sm:$0xf]
    %v9558 = vld [vmem:[%s9537 + $0x50] sm:$0xf]
    %v9559 = vld [vmem:[%s9537 + $0x54] sm:$0xf]
    %v9560 = vld [vmem:[%s9537 + $0x58] sm:$0xf]
    %v9561 = vld [vmem:[%s9537 + $0x5c] sm:$0xf]
    %v9562 = vld [vmem:[%s9537 + $0x60] sm:$0xf]
    %v9563 = vld [vmem:[%s9537 + $0x64] sm:$0xf]
    %v9564 = vld [vmem:[%s9537 + $0x68] sm:$0xf]
    %v9565 = vld [vmem:[%s9537 + $0x6c] sm:$0xf]
    %v9566 = vld [vmem:[%s9537 + $0x70] sm:$0xf]
    %v9567 = vld [vmem:[%s9537 + $0x74] sm:$0xf]
    %v9568 = vld [vmem:[%s9537 + $0x78] sm:$0xf]
    %v9569 = vld [vmem:[%s9537 + $0x7c] sm:$0xf]
    %v9570 = vunpack.c.l.b16 %v9476
    %v9571 = vunpack.c.h.b16 %v9476
    %v9572 = vunpack.c.l.b16 %v9480
    %v9573 = vunpack.c.h.b16 %v9480
    %v9574 = vunpack.c.l.b16 %v9484
    %v9575 = vunpack.c.h.b16 %v9484
    %v9576 = vunpack.c.l.b16 %v9488
    %v9577 = vunpack.c.h.b16 %v9488
    %v9578 = vunpack.c.l.b16 %v9492
    %v9579 = vunpack.c.h.b16 %v9492
    %v9580 = vunpack.c.l.b16 %v9496
    %v9581 = vunpack.c.h.b16 %v9496
    %v9582 = vunpack.c.l.b16 %v9500
    %v9583 = vunpack.c.h.b16 %v9500
    %v9584 = vunpack.c.l.b16 %v9504
    %v9585 = vunpack.c.h.b16 %v9504
    %v9586 = vunpack.c.l.b16 %v9508
    %v9587 = vunpack.c.h.b16 %v9508
    %v9588 = vunpack.c.l.b16 %v9512
    %v9589 = vunpack.c.h.b16 %v9512
    %v9590 = vunpack.c.l.b16 %v9516
    %v9591 = vunpack.c.h.b16 %v9516
    %v9592 = vunpack.c.l.b16 %v9520
    %v9593 = vunpack.c.h.b16 %v9520
    %v9594 = vunpack.c.l.b16 %v9524
    %v9595 = vunpack.c.h.b16 %v9524
    %v9596 = vunpack.c.l.b16 %v9528
    %v9597 = vunpack.c.h.b16 %v9528
    %v9598 = vunpack.c.l.b16 %v9532
    %v9599 = vunpack.c.h.b16 %v9532
    %v9600 = vunpack.c.l.b16 %v9536
    %v9601 = vunpack.c.h.b16 %v9536
    %v9602 = vpack.c.b16 %v9572, %v9570
    %v9603 = vpack.c.b16 %v9573, %v9571
    %v9604 = vpack.c.b16 %v9576, %v9574
    %v9605 = vpack.c.b16 %v9577, %v9575
    %v9606 = vpack.c.b16 %v9580, %v9578
    %v9607 = vpack.c.b16 %v9581, %v9579
    %v9608 = vpack.c.b16 %v9584, %v9582
    %v9609 = vpack.c.b16 %v9585, %v9583
    %v9610 = vpack.c.b16 %v9588, %v9586
    %v9611 = vpack.c.b16 %v9589, %v9587
    %v9612 = vpack.c.b16 %v9592, %v9590
    %v9613 = vpack.c.b16 %v9593, %v9591
    %v9614 = vpack.c.b16 %v9596, %v9594
    %v9615 = vpack.c.b16 %v9597, %v9595
    %v9616 = vpack.c.b16 %v9600, %v9598
    %v9617 = vpack.c.b16 %v9601, %v9599
    %v9666 = vunpack.c.l.b16 %v9538
    %v9667 = vunpack.c.l.b16 %v9539
    %v9668 = vunpack.c.l.b16 %v9540
    %v9669 = vunpack.c.l.b16 %v9541
    %v9670 = vunpack.c.l.b16 %v9542
    %v9671 = vunpack.c.l.b16 %v9543
    %v9672 = vunpack.c.l.b16 %v9544
    %v9673 = vunpack.c.l.b16 %v9545
    %v9674 = vunpack.c.l.b16 %v9546
    %v9675 = vunpack.c.l.b16 %v9547
    %v9676 = vunpack.c.l.b16 %v9548
    %v9677 = vunpack.c.l.b16 %v9549
    %v9678 = vunpack.c.l.b16 %v9550
    %v9679 = vunpack.c.l.b16 %v9551
    %v9680 = vunpack.c.l.b16 %v9552
    %v9681 = vunpack.c.l.b16 %v9553
    %v9682 = vunpack.c.l.b16 %v9554
    %v9683 = vunpack.c.l.b16 %v9555
    %v9684 = vunpack.c.l.b16 %v9556
    %v9685 = vunpack.c.l.b16 %v9557
    %v9686 = vunpack.c.l.b16 %v9558
    %v9687 = vunpack.c.l.b16 %v9559
    %v9688 = vunpack.c.l.b16 %v9560
    %v9689 = vunpack.c.l.b16 %v9561
    %v9690 = vunpack.c.l.b16 %v9562
    %v9691 = vunpack.c.l.b16 %v9563
    %v9692 = vunpack.c.l.b16 %v9564
    %v9693 = vunpack.c.l.b16 %v9565
    %v9694 = vunpack.c.l.b16 %v9566
    %v9695 = vunpack.c.l.b16 %v9567
    %v9696 = vunpack.c.l.b16 %v9568
    %v9697 = vunpack.c.l.b16 %v9569
    %v9698 = vpack.c.b16 %v9667, %v9666
    %v9699 = vpack.c.b16 %v9669, %v9668
    %v9700 = vpack.c.b16 %v9671, %v9670
    %v9701 = vpack.c.b16 %v9673, %v9672
    %v9702 = vpack.c.b16 %v9675, %v9674
    %v9703 = vpack.c.b16 %v9677, %v9676
    %v9704 = vpack.c.b16 %v9679, %v9678
    %v9705 = vpack.c.b16 %v9681, %v9680
    %v9706 = vpack.c.b16 %v9683, %v9682
    %v9707 = vpack.c.b16 %v9685, %v9684
    %v9708 = vpack.c.b16 %v9687, %v9686
    %v9709 = vpack.c.b16 %v9689, %v9688
    %v9710 = vpack.c.b16 %v9691, %v9690
    %v9711 = vpack.c.b16 %v9693, %v9692
    %v9712 = vpack.c.b16 %v9695, %v9694
    %v9713 = vpack.c.b16 %v9697, %v9696
    %9730 = vmatpush.bf16.msra.mxu0 %v9705
    %9731 = vmatpush.bf16.msra.mxu0 %v9704
    %9732 = vmatpush.bf16.msra.mxu0 %v9703
    %9733 = vmatpush.bf16.msra.mxu0 %v9702
    %9734 = vmatpush.bf16.msra.mxu0 %v9701
    %9735 = vmatpush.bf16.msra.mxu0 %v9700
    %9736 = vmatpush.bf16.msra.mxu0 %v9699
    %9737 = vmatpush.bf16.msra.mxu0 %v9698
    %9738 = vmatmul.bf16.gmra.mxu0 %v9602
    %v9739 = vpop.f32.mrf.mxu0
    %v9740 = vadd.f32 0.0, %v9739
    %v9741 = vpop.f32.mrf.mxu0
    %v9742 = vadd.f32 0.0, %v9741
    %9743 = vmatmul.bf16.gmra.mxu0 %v9604
    %v9744 = vpop.f32.mrf.mxu0
    %v9745 = vadd.f32 0.0, %v9744
    %v9746 = vpop.f32.mrf.mxu0
    %v9747 = vadd.f32 0.0, %v9746
    %9748 = vmatmul.bf16.gmra.mxu0 %v9606
    %v9749 = vpop.f32.mrf.mxu0
    %v9750 = vadd.f32 0.0, %v9749
    %v9751 = vpop.f32.mrf.mxu0
    %v9752 = vadd.f32 0.0, %v9751
    %9753 = vmatmul.bf16.gmra.mxu0 %v9608
    %v9754 = vpop.f32.mrf.mxu0
    %v9755 = vadd.f32 0.0, %v9754
    %v9756 = vpop.f32.mrf.mxu0
    %v9757 = vadd.f32 0.0, %v9756
    %9758 = vmatmul.bf16.gmra.mxu0 %v9610
    %v9759 = vpop.f32.mrf.mxu0
    %v9760 = vadd.f32 0.0, %v9759
    %v9761 = vpop.f32.mrf.mxu0
    %v9762 = vadd.f32 0.0, %v9761
    %9763 = vmatmul.bf16.gmra.mxu0 %v9612
    %v9764 = vpop.f32.mrf.mxu0
    %v9765 = vadd.f32 0.0, %v9764
    %v9766 = vpop.f32.mrf.mxu0
    %v9767 = vadd.f32 0.0, %v9766
    %9768 = vmatmul.bf16.gmra.mxu0 %v9614
    %v9769 = vpop.f32.mrf.mxu0
    %v9770 = vadd.f32 0.0, %v9769
    %v9771 = vpop.f32.mrf.mxu0
    %v9772 = vadd.f32 0.0, %v9771
    %9773 = vmatmul.bf16.gmra.mxu0 %v9616
    %v9774 = vpop.f32.mrf.mxu0
    %v9775 = vadd.f32 0.0, %v9774
    %v9776 = vpop.f32.mrf.mxu0
    %v9777 = vadd.f32 0.0, %v9776
    %9778 = vdwg.mxu0
    %9779 = vmatpush.bf16.msra.mxu0 %v9713
    %9780 = vmatpush.bf16.msra.mxu0 %v9712
    %9781 = vmatpush.bf16.msra.mxu0 %v9711
    %9782 = vmatpush.bf16.msra.mxu0 %v9710
    %9783 = vmatpush.bf16.msra.mxu0 %v9709
    %9784 = vmatpush.bf16.msra.mxu0 %v9708
    %9785 = vmatpush.bf16.msra.mxu0 %v9707
    %9786 = vmatpush.bf16.msra.mxu0 %v9706
    %9787 = vmatmul.bf16.gmra.mxu0 %v9603
    %v9788 = vpop.f32.mrf.mxu0
    %v9789 = vadd.f32 %v9740, %v9788
    %v9790 = vpop.f32.mrf.mxu0
    %v9791 = vadd.f32 %v9742, %v9790
    %9792 = vmatmul.bf16.gmra.mxu0 %v9605
    %v9793 = vpop.f32.mrf.mxu0
    %v9794 = vadd.f32 %v9745, %v9793
    %v9795 = vpop.f32.mrf.mxu0
    %v9796 = vadd.f32 %v9747, %v9795
    %9797 = vmatmul.bf16.gmra.mxu0 %v9607
    %v9798 = vpop.f32.mrf.mxu0
    %v9799 = vadd.f32 %v9750, %v9798
    %v9800 = vpop.f32.mrf.mxu0
    %v9801 = vadd.f32 %v9752, %v9800
    %9802 = vmatmul.bf16.gmra.mxu0 %v9609
    %v9803 = vpop.f32.mrf.mxu0
    %v9804 = vadd.f32 %v9755, %v9803
    %v9805 = vpop.f32.mrf.mxu0
    %v9806 = vadd.f32 %v9757, %v9805
    %9807 = vmatmul.bf16.gmra.mxu0 %v9611
    %v9808 = vpop.f32.mrf.mxu0
    %v9809 = vadd.f32 %v9760, %v9808
    %v9810 = vpop.f32.mrf.mxu0
    %v9811 = vadd.f32 %v9762, %v9810
    %9812 = vmatmul.bf16.gmra.mxu0 %v9613
    %v9813 = vpop.f32.mrf.mxu0
    %v9814 = vadd.f32 %v9765, %v9813
    %v9815 = vpop.f32.mrf.mxu0
    %v9816 = vadd.f32 %v9767, %v9815
    %9817 = vmatmul.bf16.gmra.mxu0 %v9615
    %v9818 = vpop.f32.mrf.mxu0
    %v9819 = vadd.f32 %v9770, %v9818
    %v9820 = vpop.f32.mrf.mxu0
    %v9821 = vadd.f32 %v9772, %v9820
    %9822 = vmatmul.bf16.gmra.mxu0 %v9617
    %v9823 = vpop.f32.mrf.mxu0
    %v9824 = vadd.f32 %v9775, %v9823
    %v9825 = vpop.f32.mrf.mxu0
    %v9826 = vadd.f32 %v9777, %v9825
    %9827 = vdwg.mxu0
    %v9828 = vadd.f32 %v9377, %v9789
    %v9829 = vadd.f32 %v9378, %v9791
    %v9830 = vadd.f32 %v9379, %v9794
    %v9831 = vadd.f32 %v9380, %v9796
    %v9832 = vadd.f32 %v9381, %v9799
    %v9833 = vadd.f32 %v9382, %v9801
    %v9834 = vadd.f32 %v9383, %v9804
    %v9835 = vadd.f32 %v9384, %v9806
    %v9836 = vadd.f32 %v9385, %v9809
    %v9837 = vadd.f32 %v9386, %v9811
    %v9838 = vadd.f32 %v9387, %v9814
    %v9839 = vadd.f32 %v9388, %v9816
    %v9840 = vadd.f32 %v9389, %v9819
    %v9841 = vadd.f32 %v9390, %v9821
    %v9842 = vadd.f32 %v9391, %v9824
    %v9843 = vadd.f32 %v9392, %v9826
    %v9844 = vld [vmem:[%s4] sm:$0x1]
    %v9846 = vperm.slane %v9844, 0
    %v9848 = vadd.f32 %v9828, %v9846
    %v9849 = vadd.f32 %v9829, %v9846
    %v9850 = vadd.f32 %v9830, %v9846
    %v9851 = vadd.f32 %v9831, %v9846
    %v9852 = vadd.f32 %v9832, %v9846
    %v9853 = vadd.f32 %v9833, %v9846
    %v9854 = vadd.f32 %v9834, %v9846
    %v9855 = vadd.f32 %v9835, %v9846
    %v9856 = vadd.f32 %v9836, %v9846
    %v9857 = vadd.f32 %v9837, %v9846
    %v9858 = vadd.f32 %v9838, %v9846
    %v9859 = vadd.f32 %v9839, %v9846
    %v9860 = vadd.f32 %v9840, %v9846
    %v9861 = vadd.f32 %v9841, %v9846
    %v9862 = vadd.f32 %v9842, %v9846
    %v9863 = vadd.f32 %v9843, %v9846
    %9864 = vst [vmem:[#allocation3] sm:$0xff] %v9848
    %9865 = vst [vmem:[#allocation3 + $0x8] sm:$0xff] %v9849
    %9866 = vst [vmem:[#allocation3 + $0x10] sm:$0xff] %v9850
    %9867 = vst [vmem:[#allocation3 + $0x18] sm:$0xff] %v9851
    %9868 = vst [vmem:[#allocation3 + $0x20] sm:$0xff] %v9852
    %9869 = vst [vmem:[#allocation3 + $0x28] sm:$0xff] %v9853
    %9870 = vst [vmem:[#allocation3 + $0x30] sm:$0xff] %v9854
    %9871 = vst [vmem:[#allocation3 + $0x38] sm:$0xff] %v9855
    %9872 = vst [vmem:[#allocation3 + $0x40] sm:$0xff] %v9856
    %9873 = vst [vmem:[#allocation3 + $0x48] sm:$0xff] %v9857
    %9874 = vst [vmem:[#allocation3 + $0x50] sm:$0xff] %v9858
    %9875 = vst [vmem:[#allocation3 + $0x58] sm:$0xff] %v9859
    %9876 = vst [vmem:[#allocation3 + $0x60] sm:$0xff] %v9860
    %9877 = vst [vmem:[#allocation3 + $0x68] sm:$0xff] %v9861
    %9878 = vst [vmem:[#allocation3 + $0x70] sm:$0xff] %v9862
    %9879 = vst [vmem:[#allocation3 + $0x78] sm:$0xff] %v9863
    %v9880 = vld [vmem:[#allocation3] sm:$0x1]
    %v9881 = vld [vmem:[#allocation3 + $0x40] sm:$0x1]
    %v9882 = vld [vmem:[#allocation3 + $0x1] sm:$0x1]
    %v9883 = vld [vmem:[#allocation3 + $0x41] sm:$0x1]
    %s9884 = scalar_lea.vmem [#allocation3], 8
    %v9885 = vld [vmem:[%s9884] sm:$0x1]
    %v9886 = vld [vmem:[%s9884 + $0x40] sm:$0x1]
    %v9887 = vld [vmem:[%s9884 + $0x1] sm:$0x1]
    %v9888 = vld [vmem:[%s9884 + $0x41] sm:$0x1]
    %v9889 = vmax.f32 %v9880, %v9882
    %v9890 = vmax.f32 %v9881, %v9883
    %v9891 = vmax.f32 %v9885, %v9887
    %v9892 = vmax.f32 %v9886, %v9888
    %v9893 = vmax.f32 %v9889, %v9891
    %v9894 = vmax.f32 %v9890, %v9892
    %v9895 = vmax.f32 %v9893, 0.0
    %v9896 = vmax.f32 %v9894, 0.0
    %v9897 = vld [vmem:[#allocation3 + $0x2] sm:$0x1]
    %v9898 = vld [vmem:[#allocation3 + $0x42] sm:$0x1]
    %v9899 = vld [vmem:[#allocation3 + $0x3] sm:$0x1]
    %v9900 = vld [vmem:[#allocation3 + $0x43] sm:$0x1]
    %v9901 = vld [vmem:[%s9884 + $0x2] sm:$0x1]
    %v9902 = vld [vmem:[%s9884 + $0x42] sm:$0x1]
    %v9903 = vld [vmem:[%s9884 + $0x3] sm:$0x1]
    %v9904 = vld [vmem:[%s9884 + $0x43] sm:$0x1]
    %v9905 = vmax.f32 %v9897, %v9899
    %v9906 = vmax.f32 %v9898, %v9900
    %v9907 = vmax.f32 %v9901, %v9903
    %v9908 = vmax.f32 %v9902, %v9904
    %v9909 = vmax.f32 %v9905, %v9907
    %v9910 = vmax.f32 %v9906, %v9908
    %v9911 = vmax.f32 %v9909, 0.0
    %v9912 = vmax.f32 %v9910, 0.0
    %v9913 = vld [vmem:[#allocation3 + $0x4] sm:$0x1]
    %v9914 = vld [vmem:[#allocation3 + $0x44] sm:$0x1]
    %v9915 = vld [vmem:[#allocation3 + $0x5] sm:$0x1]
    %v9916 = vld [vmem:[#allocation3 + $0x45] sm:$0x1]
    %v9917 = vld [vmem:[%s9884 + $0x4] sm:$0x1]
    %v9918 = vld [vmem:[%s9884 + $0x44] sm:$0x1]
    %v9919 = vld [vmem:[%s9884 + $0x5] sm:$0x1]
    %v9920 = vld [vmem:[%s9884 + $0x45] sm:$0x1]
    %v9921 = vmax.f32 %v9913, %v9915
    %v9922 = vmax.f32 %v9914, %v9916
    %v9923 = vmax.f32 %v9917, %v9919
    %v9924 = vmax.f32 %v9918, %v9920
    %v9925 = vmax.f32 %v9921, %v9923
    %v9926 = vmax.f32 %v9922, %v9924
    %v9927 = vmax.f32 %v9925, 0.0
    %v9928 = vmax.f32 %v9926, 0.0
    %v9929 = vld [vmem:[#allocation3 + $0x6] sm:$0x1]
    %v9930 = vld [vmem:[#allocation3 + $0x46] sm:$0x1]
    %v9931 = vld [vmem:[#allocation3 + $0x7] sm:$0x1]
    %v9932 = vld [vmem:[#allocation3 + $0x47] sm:$0x1]
    %v9933 = vld [vmem:[%s9884 + $0x6] sm:$0x1]
    %v9934 = vld [vmem:[%s9884 + $0x46] sm:$0x1]
    %v9935 = vld [vmem:[%s9884 + $0x7] sm:$0x1]
    %v9936 = vld [vmem:[%s9884 + $0x47] sm:$0x1]
    %v9937 = vmax.f32 %v9929, %v9931
    %v9938 = vmax.f32 %v9930, %v9932
    %v9939 = vmax.f32 %v9933, %v9935
    %v9940 = vmax.f32 %v9934, %v9936
    %v9941 = vmax.f32 %v9937, %v9939
    %v9942 = vmax.f32 %v9938, %v9940
    %v9943 = vmax.f32 %v9941, 0.0
    %v9944 = vmax.f32 %v9942, 0.0
    %s9945 = scalar_lea.vmem [#allocation3], 16
    %v9946 = vld [vmem:[%s9945] sm:$0x1]
    %v9947 = vld [vmem:[%s9945 + $0x40] sm:$0x1]
    %v9948 = vld [vmem:[%s9945 + $0x1] sm:$0x1]
    %v9949 = vld [vmem:[%s9945 + $0x41] sm:$0x1]
    %s9950 = scalar_lea.vmem [#allocation3], 24
    %v9951 = vld [vmem:[%s9950] sm:$0x1]
    %v9952 = vld [vmem:[%s9950 + $0x40] sm:$0x1]
    %v9953 = vld [vmem:[%s9950 + $0x1] sm:$0x1]
    %v9954 = vld [vmem:[%s9950 + $0x41] sm:$0x1]
    %v9955 = vmax.f32 %v9946, %v9948
    %v9956 = vmax.f32 %v9947, %v9949
    %v9957 = vmax.f32 %v9951, %v9953
    %v9958 = vmax.f32 %v9952, %v9954
    %v9959 = vmax.f32 %v9955, %v9957
    %v9960 = vmax.f32 %v9956, %v9958
    %v9961 = vmax.f32 %v9959, 0.0
    %v9962 = vmax.f32 %v9960, 0.0
    %v9963 = vld [vmem:[%s9945 + $0x2] sm:$0x1]
    %v9964 = vld [vmem:[%s9945 + $0x42] sm:$0x1]
    %v9965 = vld [vmem:[%s9945 + $0x3] sm:$0x1]
    %v9966 = vld [vmem:[%s9945 + $0x43] sm:$0x1]
    %v9967 = vld [vmem:[%s9950 + $0x2] sm:$0x1]
    %v9968 = vld [vmem:[%s9950 + $0x42] sm:$0x1]
    %v9969 = vld [vmem:[%s9950 + $0x3] sm:$0x1]
    %v9970 = vld [vmem:[%s9950 + $0x43] sm:$0x1]
    %v9971 = vmax.f32 %v9963, %v9965
    %v9972 = vmax.f32 %v9964, %v9966
    %v9973 = vmax.f32 %v9967, %v9969
    %v9974 = vmax.f32 %v9968, %v9970
    %v9975 = vmax.f32 %v9971, %v9973
    %v9976 = vmax.f32 %v9972, %v9974
    %v9977 = vmax.f32 %v9975, 0.0
    %v9978 = vmax.f32 %v9976, 0.0
    %v9979 = vld [vmem:[%s9945 + $0x4] sm:$0x1]
    %v9980 = vld [vmem:[%s9945 + $0x44] sm:$0x1]
    %v9981 = vld [vmem:[%s9945 + $0x5] sm:$0x1]
    %v9982 = vld [vmem:[%s9945 + $0x45] sm:$0x1]
    %v9983 = vld [vmem:[%s9950 + $0x4] sm:$0x1]
    %v9984 = vld [vmem:[%s9950 + $0x44] sm:$0x1]
    %v9985 = vld [vmem:[%s9950 + $0x5] sm:$0x1]
    %v9986 = vld [vmem:[%s9950 + $0x45] sm:$0x1]
    %v9987 = vmax.f32 %v9979, %v9981
    %v9988 = vmax.f32 %v9980, %v9982
    %v9989 = vmax.f32 %v9983, %v9985
    %v9990 = vmax.f32 %v9984, %v9986
    %v9991 = vmax.f32 %v9987, %v9989
    %v9992 = vmax.f32 %v9988, %v9990
    %v9993 = vmax.f32 %v9991, 0.0
    %v9994 = vmax.f32 %v9992, 0.0
    %v9995 = vld [vmem:[%s9945 + $0x6] sm:$0x1]
    %v9996 = vld [vmem:[%s9945 + $0x46] sm:$0x1]
    %v9997 = vld [vmem:[%s9945 + $0x7] sm:$0x1]
    %v9998 = vld [vmem:[%s9945 + $0x47] sm:$0x1]
    %v9999 = vld [vmem:[%s9950 + $0x6] sm:$0x1]
    %v10000 = vld [vmem:[%s9950 + $0x46] sm:$0x1]
    %v10001 = vld [vmem:[%s9950 + $0x7] sm:$0x1]
    %v10002 = vld [vmem:[%s9950 + $0x47] sm:$0x1]
    %v10003 = vmax.f32 %v9995, %v9997
    %v10004 = vmax.f32 %v9996, %v9998
    %v10005 = vmax.f32 %v9999, %v10001
    %v10006 = vmax.f32 %v10000, %v10002
    %v10007 = vmax.f32 %v10003, %v10005
    %v10008 = vmax.f32 %v10004, %v10006
    %v10009 = vmax.f32 %v10007, 0.0
    %v10010 = vmax.f32 %v10008, 0.0
    %s10011 = scalar_lea.vmem [#allocation3], 32
    %v10012 = vld [vmem:[%s10011] sm:$0x1]
    %v10013 = vld [vmem:[%s10011 + $0x40] sm:$0x1]
    %v10014 = vld [vmem:[%s10011 + $0x1] sm:$0x1]
    %v10015 = vld [vmem:[%s10011 + $0x41] sm:$0x1]
    %s10016 = scalar_lea.vmem [#allocation3], 40
    %v10017 = vld [vmem:[%s10016] sm:$0x1]
    %v10018 = vld [vmem:[%s10016 + $0x40] sm:$0x1]
    %v10019 = vld [vmem:[%s10016 + $0x1] sm:$0x1]
    %v10020 = vld [vmem:[%s10016 + $0x41] sm:$0x1]
    %v10021 = vmax.f32 %v10012, %v10014
    %v10022 = vmax.f32 %v10013, %v10015
    %v10023 = vmax.f32 %v10017, %v10019
    %v10024 = vmax.f32 %v10018, %v10020
    %v10025 = vmax.f32 %v10021, %v10023
    %v10026 = vmax.f32 %v10022, %v10024
    %v10027 = vmax.f32 %v10025, 0.0
    %v10028 = vmax.f32 %v10026, 0.0
    %v10029 = vld [vmem:[%s10011 + $0x2] sm:$0x1]
    %v10030 = vld [vmem:[%s10011 + $0x42] sm:$0x1]
    %v10031 = vld [vmem:[%s10011 + $0x3] sm:$0x1]
    %v10032 = vld [vmem:[%s10011 + $0x43] sm:$0x1]
    %v10033 = vld [vmem:[%s10016 + $0x2] sm:$0x1]
    %v10034 = vld [vmem:[%s10016 + $0x42] sm:$0x1]
    %v10035 = vld [vmem:[%s10016 + $0x3] sm:$0x1]
    %v10036 = vld [vmem:[%s10016 + $0x43] sm:$0x1]
    %v10037 = vmax.f32 %v10029, %v10031
    %v10038 = vmax.f32 %v10030, %v10032
    %v10039 = vmax.f32 %v10033, %v10035
    %v10040 = vmax.f32 %v10034, %v10036
    %v10041 = vmax.f32 %v10037, %v10039
    %v10042 = vmax.f32 %v10038, %v10040
    %v10043 = vmax.f32 %v10041, 0.0
    %v10044 = vmax.f32 %v10042, 0.0
    %v10045 = vld [vmem:[%s10011 + $0x4] sm:$0x1]
    %v10046 = vld [vmem:[%s10011 + $0x44] sm:$0x1]
    %v10047 = vld [vmem:[%s10011 + $0x5] sm:$0x1]
    %v10048 = vld [vmem:[%s10011 + $0x45] sm:$0x1]
    %v10049 = vld [vmem:[%s10016 + $0x4] sm:$0x1]
    %v10050 = vld [vmem:[%s10016 + $0x44] sm:$0x1]
    %v10051 = vld [vmem:[%s10016 + $0x5] sm:$0x1]
    %v10052 = vld [vmem:[%s10016 + $0x45] sm:$0x1]
    %v10053 = vmax.f32 %v10045, %v10047
    %v10054 = vmax.f32 %v10046, %v10048
    %v10055 = vmax.f32 %v10049, %v10051
    %v10056 = vmax.f32 %v10050, %v10052
    %v10057 = vmax.f32 %v10053, %v10055
    %v10058 = vmax.f32 %v10054, %v10056
    %v10059 = vmax.f32 %v10057, 0.0
    %v10060 = vmax.f32 %v10058, 0.0
    %v10061 = vld [vmem:[%s10011 + $0x6] sm:$0x1]
    %v10062 = vld [vmem:[%s10011 + $0x46] sm:$0x1]
    %v10063 = vld [vmem:[%s10011 + $0x7] sm:$0x1]
    %v10064 = vld [vmem:[%s10011 + $0x47] sm:$0x1]
    %v10065 = vld [vmem:[%s10016 + $0x6] sm:$0x1]
    %v10066 = vld [vmem:[%s10016 + $0x46] sm:$0x1]
    %v10067 = vld [vmem:[%s10016 + $0x7] sm:$0x1]
    %v10068 = vld [vmem:[%s10016 + $0x47] sm:$0x1]
    %v10069 = vmax.f32 %v10061, %v10063
    %v10070 = vmax.f32 %v10062, %v10064
    %v10071 = vmax.f32 %v10065, %v10067
    %v10072 = vmax.f32 %v10066, %v10068
    %v10073 = vmax.f32 %v10069, %v10071
    %v10074 = vmax.f32 %v10070, %v10072
    %v10075 = vmax.f32 %v10073, 0.0
    %v10076 = vmax.f32 %v10074, 0.0
    %s10077 = scalar_lea.vmem [#allocation3], 48
    %v10078 = vld [vmem:[%s10077] sm:$0x1]
    %v10079 = vld [vmem:[%s10077 + $0x40] sm:$0x1]
    %v10080 = vld [vmem:[%s10077 + $0x1] sm:$0x1]
    %v10081 = vld [vmem:[%s10077 + $0x41] sm:$0x1]
    %s10082 = scalar_lea.vmem [#allocation3], 56
    %v10083 = vld [vmem:[%s10082] sm:$0x1]
    %v10084 = vld [vmem:[%s10082 + $0x40] sm:$0x1]
    %v10085 = vld [vmem:[%s10082 + $0x1] sm:$0x1]
    %v10086 = vld [vmem:[%s10082 + $0x41] sm:$0x1]
    %v10087 = vmax.f32 %v10078, %v10080
    %v10088 = vmax.f32 %v10079, %v10081
    %v10089 = vmax.f32 %v10083, %v10085
    %v10090 = vmax.f32 %v10084, %v10086
    %v10091 = vmax.f32 %v10087, %v10089
    %v10092 = vmax.f32 %v10088, %v10090
    %v10093 = vmax.f32 %v10091, 0.0
    %v10094 = vmax.f32 %v10092, 0.0
    %v10095 = vld [vmem:[%s10077 + $0x2] sm:$0x1]
    %v10096 = vld [vmem:[%s10077 + $0x42] sm:$0x1]
    %v10097 = vld [vmem:[%s10077 + $0x3] sm:$0x1]
    %v10098 = vld [vmem:[%s10077 + $0x43] sm:$0x1]
    %v10099 = vld [vmem:[%s10082 + $0x2] sm:$0x1]
    %v10100 = vld [vmem:[%s10082 + $0x42] sm:$0x1]
    %v10101 = vld [vmem:[%s10082 + $0x3] sm:$0x1]
    %v10102 = vld [vmem:[%s10082 + $0x43] sm:$0x1]
    %v10103 = vmax.f32 %v10095, %v10097
    %v10104 = vmax.f32 %v10096, %v10098
    %v10105 = vmax.f32 %v10099, %v10101
    %v10106 = vmax.f32 %v10100, %v10102
    %v10107 = vmax.f32 %v10103, %v10105
    %v10108 = vmax.f32 %v10104, %v10106
    %v10109 = vmax.f32 %v10107, 0.0
    %v10110 = vmax.f32 %v10108, 0.0
    %v10111 = vld [vmem:[%s10077 + $0x4] sm:$0x1]
    %v10112 = vld [vmem:[%s10077 + $0x44] sm:$0x1]
    %v10113 = vld [vmem:[%s10077 + $0x5] sm:$0x1]
    %v10114 = vld [vmem:[%s10077 + $0x45] sm:$0x1]
    %v10115 = vld [vmem:[%s10082 + $0x4] sm:$0x1]
    %v10116 = vld [vmem:[%s10082 + $0x44] sm:$0x1]
    %v10117 = vld [vmem:[%s10082 + $0x5] sm:$0x1]
    %v10118 = vld [vmem:[%s10082 + $0x45] sm:$0x1]
    %v10119 = vmax.f32 %v10111, %v10113
    %v10120 = vmax.f32 %v10112, %v10114
    %v10121 = vmax.f32 %v10115, %v10117
    %v10122 = vmax.f32 %v10116, %v10118
    %v10123 = vmax.f32 %v10119, %v10121
    %v10124 = vmax.f32 %v10120, %v10122
    %v10125 = vmax.f32 %v10123, 0.0
    %v10126 = vmax.f32 %v10124, 0.0
    %v10127 = vld [vmem:[%s10077 + $0x6] sm:$0x1]
    %v10128 = vld [vmem:[%s10077 + $0x46] sm:$0x1]
    %v10129 = vld [vmem:[%s10077 + $0x7] sm:$0x1]
    %v10130 = vld [vmem:[%s10077 + $0x47] sm:$0x1]
    %v10131 = vld [vmem:[%s10082 + $0x6] sm:$0x1]
    %v10132 = vld [vmem:[%s10082 + $0x46] sm:$0x1]
    %v10133 = vld [vmem:[%s10082 + $0x7] sm:$0x1]
    %v10134 = vld [vmem:[%s10082 + $0x47] sm:$0x1]
    %v10135 = vmax.f32 %v10127, %v10129
    %v10136 = vmax.f32 %v10128, %v10130
    %v10137 = vmax.f32 %v10131, %v10133
    %v10138 = vmax.f32 %v10132, %v10134
    %v10139 = vmax.f32 %v10135, %v10137
    %v10140 = vmax.f32 %v10136, %v10138
    %v10141 = vmax.f32 %v10139, 0.0
    %v10142 = vmax.f32 %v10140, 0.0
    %v10145 = vrot.slane %v9896, 7
    %vm10146 = vcmask 1041409
    %v10147 = vsel %vm10146, %v10145, %v9895
    %v10151 = vrot.slane %v9912, 7
    %v10152 = vsel %vm10146, %v10151, %v9911
    %v10156 = vrot.slane %v9928, 7
    %v10157 = vsel %vm10146, %v10156, %v9927
    %v10161 = vrot.slane %v9944, 7
    %v10162 = vsel %vm10146, %v10161, %v9943
    %v10166 = vrot.slane %v9962, 7
    %v10167 = vsel %vm10146, %v10166, %v9961
    %v10171 = vrot.slane %v9978, 7
    %v10172 = vsel %vm10146, %v10171, %v9977
    %v10176 = vrot.slane %v9994, 7
    %v10177 = vsel %vm10146, %v10176, %v9993
    %v10181 = vrot.slane %v10010, 7
    %v10182 = vsel %vm10146, %v10181, %v10009
    %v10186 = vrot.slane %v10028, 7
    %v10187 = vsel %vm10146, %v10186, %v10027
    %v10191 = vrot.slane %v10044, 7
    %v10192 = vsel %vm10146, %v10191, %v10043
    %v10196 = vrot.slane %v10060, 7
    %v10197 = vsel %vm10146, %v10196, %v10059
    %v10201 = vrot.slane %v10076, 7
    %v10202 = vsel %vm10146, %v10201, %v10075
    %v10206 = vrot.slane %v10094, 7
    %v10207 = vsel %vm10146, %v10206, %v10093
    %v10211 = vrot.slane %v10110, 7
    %v10212 = vsel %vm10146, %v10211, %v10109
    %v10216 = vrot.slane %v10126, 7
    %v10217 = vsel %vm10146, %v10216, %v10125
    %v10221 = vrot.slane %v10142, 7
    %v10222 = vsel %vm10146, %v10221, %v10141
    %v10224 = vpack.c.bf16 %v10147, %v10147
    %v10225 = vpack.c.bf16 %v10152, %v10152
    %v10226 = vpack.c.bf16 %v10157, %v10157
    %v10227 = vpack.c.bf16 %v10162, %v10162
    %v10228 = vpack.c.bf16 %v10167, %v10167
    %v10229 = vpack.c.bf16 %v10172, %v10172
    %v10230 = vpack.c.bf16 %v10177, %v10177
    %v10231 = vpack.c.bf16 %v10182, %v10182
    %v10232 = vpack.c.bf16 %v10187, %v10187
    %v10233 = vpack.c.bf16 %v10192, %v10192
    %v10234 = vpack.c.bf16 %v10197, %v10197
    %v10235 = vpack.c.bf16 %v10202, %v10202
    %v10236 = vpack.c.bf16 %v10207, %v10207
    %v10237 = vpack.c.bf16 %v10212, %v10212
    %v10238 = vpack.c.bf16 %v10217, %v10217
    %v10239 = vpack.c.bf16 %v10222, %v10222
    %v10240 = vld [vmem:[#allocation9] sm:$0xf]
    %v10241 = vld [vmem:[#allocation9 + $0x4] sm:$0xf]
    %v10242 = vld [vmem:[#allocation9 + $0x8] sm:$0xf]
    %v10243 = vld [vmem:[#allocation9 + $0xc] sm:$0xf]
    %v10244 = vld [vmem:[#allocation9 + $0x10] sm:$0xf]
    %v10245 = vld [vmem:[#allocation9 + $0x14] sm:$0xf]
    %v10246 = vld [vmem:[#allocation9 + $0x18] sm:$0xf]
    %v10247 = vld [vmem:[#allocation9 + $0x1c] sm:$0xf]
    %v10248 = vld [vmem:[#allocation9 + $0x20] sm:$0xf]
    %v10249 = vld [vmem:[#allocation9 + $0x24] sm:$0xf]
    %v10250 = vld [vmem:[#allocation9 + $0x28] sm:$0xf]
    %v10251 = vld [vmem:[#allocation9 + $0x2c] sm:$0xf]
    %v10252 = vld [vmem:[#allocation9 + $0x30] sm:$0xf]
    %v10253 = vld [vmem:[#allocation9 + $0x34] sm:$0xf]
    %v10254 = vld [vmem:[#allocation9 + $0x38] sm:$0xf]
    %v10255 = vld [vmem:[#allocation9 + $0x3c] sm:$0xf]
    %v10256 = vld [vmem:[#allocation9 + $0x40] sm:$0xf]
    %v10257 = vld [vmem:[#allocation9 + $0x44] sm:$0xf]
    %v10258 = vld [vmem:[#allocation9 + $0x48] sm:$0xf]
    %v10259 = vld [vmem:[#allocation9 + $0x4c] sm:$0xf]
    %v10260 = vld [vmem:[#allocation9 + $0x50] sm:$0xf]
    %v10261 = vld [vmem:[#allocation9 + $0x54] sm:$0xf]
    %v10262 = vld [vmem:[#allocation9 + $0x58] sm:$0xf]
    %v10263 = vld [vmem:[#allocation9 + $0x5c] sm:$0xf]
    %v10264 = vld [vmem:[#allocation9 + $0x60] sm:$0xf]
    %v10265 = vld [vmem:[#allocation9 + $0x64] sm:$0xf]
    %v10266 = vld [vmem:[#allocation9 + $0x68] sm:$0xf]
    %v10267 = vld [vmem:[#allocation9 + $0x6c] sm:$0xf]
    %v10268 = vld [vmem:[#allocation9 + $0x70] sm:$0xf]
    %v10269 = vld [vmem:[#allocation9 + $0x74] sm:$0xf]
    %v10270 = vld [vmem:[#allocation9 + $0x78] sm:$0xf]
    %v10271 = vld [vmem:[#allocation9 + $0x7c] sm:$0xf]
    %v10272 = vld [vmem:[#allocation9 + $0x80] sm:$0xf]
    %v10273 = vld [vmem:[#allocation9 + $0x84] sm:$0xf]
    %v10274 = vld [vmem:[#allocation9 + $0x88] sm:$0xf]
    %v10275 = vld [vmem:[#allocation9 + $0x8c] sm:$0xf]
    %v10276 = vld [vmem:[#allocation9 + $0x90] sm:$0xf]
    %v10277 = vld [vmem:[#allocation9 + $0x94] sm:$0xf]
    %v10278 = vld [vmem:[#allocation9 + $0x98] sm:$0xf]
    %v10279 = vld [vmem:[#allocation9 + $0x9c] sm:$0xf]
    %v10280 = vld [vmem:[#allocation9 + $0xa0] sm:$0xf]
    %v10281 = vld [vmem:[#allocation9 + $0xa4] sm:$0xf]
    %v10282 = vld [vmem:[#allocation9 + $0xa8] sm:$0xf]
    %v10283 = vld [vmem:[#allocation9 + $0xac] sm:$0xf]
    %v10284 = vld [vmem:[#allocation9 + $0xb0] sm:$0xf]
    %v10285 = vld [vmem:[#allocation9 + $0xb4] sm:$0xf]
    %v10286 = vld [vmem:[#allocation9 + $0xb8] sm:$0xf]
    %v10287 = vld [vmem:[#allocation9 + $0xbc] sm:$0xf]
    %v10288 = vld [vmem:[#allocation9 + $0xc0] sm:$0xf]
    %v10289 = vld [vmem:[#allocation9 + $0xc4] sm:$0xf]
    %v10290 = vld [vmem:[#allocation9 + $0xc8] sm:$0xf]
    %v10291 = vld [vmem:[#allocation9 + $0xcc] sm:$0xf]
    %v10292 = vld [vmem:[#allocation9 + $0xd0] sm:$0xf]
    %v10293 = vld [vmem:[#allocation9 + $0xd4] sm:$0xf]
    %v10294 = vld [vmem:[#allocation9 + $0xd8] sm:$0xf]
    %v10295 = vld [vmem:[#allocation9 + $0xdc] sm:$0xf]
    %v10296 = vld [vmem:[#allocation9 + $0xe0] sm:$0xf]
    %v10297 = vld [vmem:[#allocation9 + $0xe4] sm:$0xf]
    %v10298 = vld [vmem:[#allocation9 + $0xe8] sm:$0xf]
    %v10299 = vld [vmem:[#allocation9 + $0xec] sm:$0xf]
    %v10300 = vld [vmem:[#allocation9 + $0xf0] sm:$0xf]
    %v10301 = vld [vmem:[#allocation9 + $0xf4] sm:$0xf]
    %v10302 = vld [vmem:[#allocation9 + $0xf8] sm:$0xf]
    %v10303 = vld [vmem:[#allocation9 + $0xfc] sm:$0xf]
    %v10304 = vld [vmem:[#allocation9 + $0x100] sm:$0xf]
    %v10305 = vld [vmem:[#allocation9 + $0x104] sm:$0xf]
    %v10306 = vld [vmem:[#allocation9 + $0x108] sm:$0xf]
    %v10307 = vld [vmem:[#allocation9 + $0x10c] sm:$0xf]
    %v10308 = vld [vmem:[#allocation9 + $0x110] sm:$0xf]
    %v10309 = vld [vmem:[#allocation9 + $0x114] sm:$0xf]
    %v10310 = vld [vmem:[#allocation9 + $0x118] sm:$0xf]
    %v10311 = vld [vmem:[#allocation9 + $0x11c] sm:$0xf]
    %v10312 = vld [vmem:[#allocation9 + $0x120] sm:$0xf]
    %v10313 = vld [vmem:[#allocation9 + $0x124] sm:$0xf]
    %v10314 = vld [vmem:[#allocation9 + $0x128] sm:$0xf]
    %v10315 = vld [vmem:[#allocation9 + $0x12c] sm:$0xf]
    %v10316 = vld [vmem:[#allocation9 + $0x130] sm:$0xf]
    %v10317 = vld [vmem:[#allocation9 + $0x134] sm:$0xf]
    %v10318 = vld [vmem:[#allocation9 + $0x138] sm:$0xf]
    %v10319 = vld [vmem:[#allocation9 + $0x13c] sm:$0xf]
    %v10320 = vld [vmem:[#allocation9 + $0x140] sm:$0xf]
    %v10321 = vld [vmem:[#allocation9 + $0x144] sm:$0xf]
    %v10322 = vld [vmem:[#allocation9 + $0x148] sm:$0xf]
    %v10323 = vld [vmem:[#allocation9 + $0x14c] sm:$0xf]
    %v10324 = vld [vmem:[#allocation9 + $0x150] sm:$0xf]
    %v10325 = vld [vmem:[#allocation9 + $0x154] sm:$0xf]
    %v10326 = vld [vmem:[#allocation9 + $0x158] sm:$0xf]
    %v10327 = vld [vmem:[#allocation9 + $0x15c] sm:$0xf]
    %v10328 = vld [vmem:[#allocation9 + $0x160] sm:$0xf]
    %v10329 = vld [vmem:[#allocation9 + $0x164] sm:$0xf]
    %v10330 = vld [vmem:[#allocation9 + $0x168] sm:$0xf]
    %v10331 = vld [vmem:[#allocation9 + $0x16c] sm:$0xf]
    %v10332 = vld [vmem:[#allocation9 + $0x170] sm:$0xf]
    %v10333 = vld [vmem:[#allocation9 + $0x174] sm:$0xf]
    %v10334 = vld [vmem:[#allocation9 + $0x178] sm:$0xf]
    %v10335 = vld [vmem:[#allocation9 + $0x17c] sm:$0xf]
    %v10336 = vld [vmem:[#allocation9 + $0x180] sm:$0xf]
    %v10337 = vld [vmem:[#allocation9 + $0x184] sm:$0xf]
    %v10338 = vld [vmem:[#allocation9 + $0x188] sm:$0xf]
    %v10339 = vld [vmem:[#allocation9 + $0x18c] sm:$0xf]
    %v10340 = vld [vmem:[#allocation9 + $0x190] sm:$0xf]
    %v10341 = vld [vmem:[#allocation9 + $0x194] sm:$0xf]
    %v10342 = vld [vmem:[#allocation9 + $0x198] sm:$0xf]
    %v10343 = vld [vmem:[#allocation9 + $0x19c] sm:$0xf]
    %v10344 = vld [vmem:[#allocation9 + $0x1a0] sm:$0xf]
    %v10345 = vld [vmem:[#allocation9 + $0x1a4] sm:$0xf]
    %v10346 = vld [vmem:[#allocation9 + $0x1a8] sm:$0xf]
    %v10347 = vld [vmem:[#allocation9 + $0x1ac] sm:$0xf]
    %v10348 = vld [vmem:[#allocation9 + $0x1b0] sm:$0xf]
    %v10349 = vld [vmem:[#allocation9 + $0x1b4] sm:$0xf]
    %v10350 = vld [vmem:[#allocation9 + $0x1b8] sm:$0xf]
    %v10351 = vld [vmem:[#allocation9 + $0x1bc] sm:$0xf]
    %v10352 = vld [vmem:[#allocation9 + $0x1c0] sm:$0xf]
    %v10353 = vld [vmem:[#allocation9 + $0x1c4] sm:$0xf]
    %v10354 = vld [vmem:[#allocation9 + $0x1c8] sm:$0xf]
    %v10355 = vld [vmem:[#allocation9 + $0x1cc] sm:$0xf]
    %v10356 = vld [vmem:[#allocation9 + $0x1d0] sm:$0xf]
    %v10357 = vld [vmem:[#allocation9 + $0x1d4] sm:$0xf]
    %v10358 = vld [vmem:[#allocation9 + $0x1d8] sm:$0xf]
    %v10359 = vld [vmem:[#allocation9 + $0x1dc] sm:$0xf]
    %v10360 = vld [vmem:[#allocation9 + $0x1e0] sm:$0xf]
    %v10361 = vld [vmem:[#allocation9 + $0x1e4] sm:$0xf]
    %v10362 = vld [vmem:[#allocation9 + $0x1e8] sm:$0xf]
    %v10363 = vld [vmem:[#allocation9 + $0x1ec] sm:$0xf]
    %v10364 = vld [vmem:[#allocation9 + $0x1f0] sm:$0xf]
    %v10365 = vld [vmem:[#allocation9 + $0x1f4] sm:$0xf]
    %v10366 = vld [vmem:[#allocation9 + $0x1f8] sm:$0xf]
    %v10367 = vld [vmem:[#allocation9 + $0x1fc] sm:$0xf]
    %v10368 = vld [vmem:[#allocation9 + $0x200] sm:$0xf]
    %v10369 = vld [vmem:[#allocation9 + $0x204] sm:$0xf]
    %v10370 = vld [vmem:[#allocation9 + $0x208] sm:$0xf]
    %v10371 = vld [vmem:[#allocation9 + $0x20c] sm:$0xf]
    %v10372 = vld [vmem:[#allocation9 + $0x210] sm:$0xf]
    %v10373 = vld [vmem:[#allocation9 + $0x214] sm:$0xf]
    %v10374 = vld [vmem:[#allocation9 + $0x218] sm:$0xf]
    %v10375 = vld [vmem:[#allocation9 + $0x21c] sm:$0xf]
    %v10376 = vld [vmem:[#allocation9 + $0x220] sm:$0xf]
    %v10377 = vld [vmem:[#allocation9 + $0x224] sm:$0xf]
    %v10378 = vld [vmem:[#allocation9 + $0x228] sm:$0xf]
    %v10379 = vld [vmem:[#allocation9 + $0x22c] sm:$0xf]
    %v10380 = vld [vmem:[#allocation9 + $0x230] sm:$0xf]
    %v10381 = vld [vmem:[#allocation9 + $0x234] sm:$0xf]
    %v10382 = vld [vmem:[#allocation9 + $0x238] sm:$0xf]
    %v10383 = vld [vmem:[#allocation9 + $0x23c] sm:$0xf]
    %v10384 = vld [vmem:[#allocation9 + $0x240] sm:$0xf]
    %v10385 = vld [vmem:[#allocation9 + $0x244] sm:$0xf]
    %v10386 = vld [vmem:[#allocation9 + $0x248] sm:$0xf]
    %v10387 = vld [vmem:[#allocation9 + $0x24c] sm:$0xf]
    %v10388 = vld [vmem:[#allocation9 + $0x250] sm:$0xf]
    %v10389 = vld [vmem:[#allocation9 + $0x254] sm:$0xf]
    %v10390 = vld [vmem:[#allocation9 + $0x258] sm:$0xf]
    %v10391 = vld [vmem:[#allocation9 + $0x25c] sm:$0xf]
    %v10392 = vld [vmem:[#allocation9 + $0x260] sm:$0xf]
    %v10393 = vld [vmem:[#allocation9 + $0x264] sm:$0xf]
    %v10394 = vld [vmem:[#allocation9 + $0x268] sm:$0xf]
    %v10395 = vld [vmem:[#allocation9 + $0x26c] sm:$0xf]
    %v10396 = vld [vmem:[#allocation9 + $0x270] sm:$0xf]
    %v10397 = vld [vmem:[#allocation9 + $0x274] sm:$0xf]
    %v10398 = vld [vmem:[#allocation9 + $0x278] sm:$0xf]
    %v10399 = vld [vmem:[#allocation9 + $0x27c] sm:$0xf]
    %v10400 = vld [vmem:[#allocation9 + $0x280] sm:$0xf]
    %v10401 = vld [vmem:[#allocation9 + $0x284] sm:$0xf]
    %v10402 = vld [vmem:[#allocation9 + $0x288] sm:$0xf]
    %v10403 = vld [vmem:[#allocation9 + $0x28c] sm:$0xf]
    %v10404 = vld [vmem:[#allocation9 + $0x290] sm:$0xf]
    %v10405 = vld [vmem:[#allocation9 + $0x294] sm:$0xf]
    %v10406 = vld [vmem:[#allocation9 + $0x298] sm:$0xf]
    %v10407 = vld [vmem:[#allocation9 + $0x29c] sm:$0xf]
    %v10408 = vld [vmem:[#allocation9 + $0x2a0] sm:$0xf]
    %v10409 = vld [vmem:[#allocation9 + $0x2a4] sm:$0xf]
    %v10410 = vld [vmem:[#allocation9 + $0x2a8] sm:$0xf]
    %v10411 = vld [vmem:[#allocation9 + $0x2ac] sm:$0xf]
    %v10412 = vld [vmem:[#allocation9 + $0x2b0] sm:$0xf]
    %v10413 = vld [vmem:[#allocation9 + $0x2b4] sm:$0xf]
    %v10414 = vld [vmem:[#allocation9 + $0x2b8] sm:$0xf]
    %v10415 = vld [vmem:[#allocation9 + $0x2bc] sm:$0xf]
    %v10416 = vld [vmem:[#allocation9 + $0x2c0] sm:$0xf]
    %v10417 = vld [vmem:[#allocation9 + $0x2c4] sm:$0xf]
    %v10418 = vld [vmem:[#allocation9 + $0x2c8] sm:$0xf]
    %v10419 = vld [vmem:[#allocation9 + $0x2cc] sm:$0xf]
    %v10420 = vld [vmem:[#allocation9 + $0x2d0] sm:$0xf]
    %v10421 = vld [vmem:[#allocation9 + $0x2d4] sm:$0xf]
    %v10422 = vld [vmem:[#allocation9 + $0x2d8] sm:$0xf]
    %v10423 = vld [vmem:[#allocation9 + $0x2dc] sm:$0xf]
    %v10424 = vld [vmem:[#allocation9 + $0x2e0] sm:$0xf]
    %v10425 = vld [vmem:[#allocation9 + $0x2e4] sm:$0xf]
    %v10426 = vld [vmem:[#allocation9 + $0x2e8] sm:$0xf]
    %v10427 = vld [vmem:[#allocation9 + $0x2ec] sm:$0xf]
    %v10428 = vld [vmem:[#allocation9 + $0x2f0] sm:$0xf]
    %v10429 = vld [vmem:[#allocation9 + $0x2f4] sm:$0xf]
    %v10430 = vld [vmem:[#allocation9 + $0x2f8] sm:$0xf]
    %v10431 = vld [vmem:[#allocation9 + $0x2fc] sm:$0xf]
    %v10432 = vld [vmem:[#allocation9 + $0x300] sm:$0xf]
    %v10433 = vld [vmem:[#allocation9 + $0x304] sm:$0xf]
    %v10434 = vld [vmem:[#allocation9 + $0x308] sm:$0xf]
    %v10435 = vld [vmem:[#allocation9 + $0x30c] sm:$0xf]
    %v10436 = vld [vmem:[#allocation9 + $0x310] sm:$0xf]
    %v10437 = vld [vmem:[#allocation9 + $0x314] sm:$0xf]
    %v10438 = vld [vmem:[#allocation9 + $0x318] sm:$0xf]
    %v10439 = vld [vmem:[#allocation9 + $0x31c] sm:$0xf]
    %v10440 = vld [vmem:[#allocation9 + $0x320] sm:$0xf]
    %v10441 = vld [vmem:[#allocation9 + $0x324] sm:$0xf]
    %v10442 = vld [vmem:[#allocation9 + $0x328] sm:$0xf]
    %v10443 = vld [vmem:[#allocation9 + $0x32c] sm:$0xf]
    %v10444 = vld [vmem:[#allocation9 + $0x330] sm:$0xf]
    %v10445 = vld [vmem:[#allocation9 + $0x334] sm:$0xf]
    %v10446 = vld [vmem:[#allocation9 + $0x338] sm:$0xf]
    %v10447 = vld [vmem:[#allocation9 + $0x33c] sm:$0xf]
    %v10448 = vld [vmem:[#allocation9 + $0x340] sm:$0xf]
    %v10449 = vld [vmem:[#allocation9 + $0x344] sm:$0xf]
    %v10450 = vld [vmem:[#allocation9 + $0x348] sm:$0xf]
    %v10451 = vld [vmem:[#allocation9 + $0x34c] sm:$0xf]
    %v10452 = vld [vmem:[#allocation9 + $0x350] sm:$0xf]
    %v10453 = vld [vmem:[#allocation9 + $0x354] sm:$0xf]
    %v10454 = vld [vmem:[#allocation9 + $0x358] sm:$0xf]
    %v10455 = vld [vmem:[#allocation9 + $0x35c] sm:$0xf]
    %v10456 = vld [vmem:[#allocation9 + $0x360] sm:$0xf]
    %v10457 = vld [vmem:[#allocation9 + $0x364] sm:$0xf]
    %v10458 = vld [vmem:[#allocation9 + $0x368] sm:$0xf]
    %v10459 = vld [vmem:[#allocation9 + $0x36c] sm:$0xf]
    %v10460 = vld [vmem:[#allocation9 + $0x370] sm:$0xf]
    %v10461 = vld [vmem:[#allocation9 + $0x374] sm:$0xf]
    %v10462 = vld [vmem:[#allocation9 + $0x378] sm:$0xf]
    %v10463 = vld [vmem:[#allocation9 + $0x37c] sm:$0xf]
    %v10464 = vld [vmem:[#allocation9 + $0x380] sm:$0xf]
    %v10465 = vld [vmem:[#allocation9 + $0x384] sm:$0xf]
    %v10466 = vld [vmem:[#allocation9 + $0x388] sm:$0xf]
    %v10467 = vld [vmem:[#allocation9 + $0x38c] sm:$0xf]
    %v10468 = vld [vmem:[#allocation9 + $0x390] sm:$0xf]
    %v10469 = vld [vmem:[#allocation9 + $0x394] sm:$0xf]
    %v10470 = vld [vmem:[#allocation9 + $0x398] sm:$0xf]
    %v10471 = vld [vmem:[#allocation9 + $0x39c] sm:$0xf]
    %v10472 = vld [vmem:[#allocation9 + $0x3a0] sm:$0xf]
    %v10473 = vld [vmem:[#allocation9 + $0x3a4] sm:$0xf]
    %v10474 = vld [vmem:[#allocation9 + $0x3a8] sm:$0xf]
    %v10475 = vld [vmem:[#allocation9 + $0x3ac] sm:$0xf]
    %v10476 = vld [vmem:[#allocation9 + $0x3b0] sm:$0xf]
    %v10477 = vld [vmem:[#allocation9 + $0x3b4] sm:$0xf]
    %v10478 = vld [vmem:[#allocation9 + $0x3b8] sm:$0xf]
    %v10479 = vld [vmem:[#allocation9 + $0x3bc] sm:$0xf]
    %v10480 = vld [vmem:[#allocation9 + $0x3c0] sm:$0xf]
    %v10481 = vld [vmem:[#allocation9 + $0x3c4] sm:$0xf]
    %v10482 = vld [vmem:[#allocation9 + $0x3c8] sm:$0xf]
    %v10483 = vld [vmem:[#allocation9 + $0x3cc] sm:$0xf]
    %v10484 = vld [vmem:[#allocation9 + $0x3d0] sm:$0xf]
    %v10485 = vld [vmem:[#allocation9 + $0x3d4] sm:$0xf]
    %v10486 = vld [vmem:[#allocation9 + $0x3d8] sm:$0xf]
    %v10487 = vld [vmem:[#allocation9 + $0x3dc] sm:$0xf]
    %v10488 = vld [vmem:[#allocation9 + $0x3e0] sm:$0xf]
    %v10489 = vld [vmem:[#allocation9 + $0x3e4] sm:$0xf]
    %v10490 = vld [vmem:[#allocation9 + $0x3e8] sm:$0xf]
    %v10491 = vld [vmem:[#allocation9 + $0x3ec] sm:$0xf]
    %v10492 = vld [vmem:[#allocation9 + $0x3f0] sm:$0xf]
    %v10493 = vld [vmem:[#allocation9 + $0x3f4] sm:$0xf]
    %v10494 = vld [vmem:[#allocation9 + $0x3f8] sm:$0xf]
    %v10495 = vld [vmem:[#allocation9 + $0x3fc] sm:$0xf]
    %v10496 = vld [vmem:[%s6] sm:$0x1]
    %v10498 = vperm.slane %v10496, 0
    %v10756 = vunpack.c.l.b16 %v10240
    %v10757 = vunpack.c.l.b16 %v10241
    %v10758 = vunpack.c.l.b16 %v10242
    %v10759 = vunpack.c.l.b16 %v10243
    %v10760 = vunpack.c.l.b16 %v10244
    %v10761 = vunpack.c.l.b16 %v10245
    %v10762 = vunpack.c.l.b16 %v10246
    %v10763 = vunpack.c.l.b16 %v10247
    %v10764 = vunpack.c.l.b16 %v10248
    %v10765 = vunpack.c.l.b16 %v10249
    %v10766 = vunpack.c.l.b16 %v10250
    %v10767 = vunpack.c.l.b16 %v10251
    %v10768 = vunpack.c.l.b16 %v10252
    %v10769 = vunpack.c.l.b16 %v10253
    %v10770 = vunpack.c.l.b16 %v10254
    %v10771 = vunpack.c.l.b16 %v10255
    %v10772 = vunpack.c.l.b16 %v10256
    %v10773 = vunpack.c.l.b16 %v10257
    %v10774 = vunpack.c.l.b16 %v10258
    %v10775 = vunpack.c.l.b16 %v10259
    %v10776 = vunpack.c.l.b16 %v10260
    %v10777 = vunpack.c.l.b16 %v10261
    %v10778 = vunpack.c.l.b16 %v10262
    %v10779 = vunpack.c.l.b16 %v10263
    %v10780 = vunpack.c.l.b16 %v10264
    %v10781 = vunpack.c.l.b16 %v10265
    %v10782 = vunpack.c.l.b16 %v10266
    %v10783 = vunpack.c.l.b16 %v10267
    %v10784 = vunpack.c.l.b16 %v10268
    %v10785 = vunpack.c.l.b16 %v10269
    %v10786 = vunpack.c.l.b16 %v10270
    %v10787 = vunpack.c.l.b16 %v10271
    %v10788 = vunpack.c.l.b16 %v10272
    %v10789 = vunpack.c.l.b16 %v10273
    %v10790 = vunpack.c.l.b16 %v10274
    %v10791 = vunpack.c.l.b16 %v10275
    %v10792 = vunpack.c.l.b16 %v10276
    %v10793 = vunpack.c.l.b16 %v10277
    %v10794 = vunpack.c.l.b16 %v10278
    %v10795 = vunpack.c.l.b16 %v10279
    %v10796 = vunpack.c.l.b16 %v10280
    %v10797 = vunpack.c.l.b16 %v10281
    %v10798 = vunpack.c.l.b16 %v10282
    %v10799 = vunpack.c.l.b16 %v10283
    %v10800 = vunpack.c.l.b16 %v10284
    %v10801 = vunpack.c.l.b16 %v10285
    %v10802 = vunpack.c.l.b16 %v10286
    %v10803 = vunpack.c.l.b16 %v10287
    %v10804 = vunpack.c.l.b16 %v10288
    %v10805 = vunpack.c.l.b16 %v10289
    %v10806 = vunpack.c.l.b16 %v10290
    %v10807 = vunpack.c.l.b16 %v10291
    %v10808 = vunpack.c.l.b16 %v10292
    %v10809 = vunpack.c.l.b16 %v10293
    %v10810 = vunpack.c.l.b16 %v10294
    %v10811 = vunpack.c.l.b16 %v10295
    %v10812 = vunpack.c.l.b16 %v10296
    %v10813 = vunpack.c.l.b16 %v10297
    %v10814 = vunpack.c.l.b16 %v10298
    %v10815 = vunpack.c.l.b16 %v10299
    %v10816 = vunpack.c.l.b16 %v10300
    %v10817 = vunpack.c.l.b16 %v10301
    %v10818 = vunpack.c.l.b16 %v10302
    %v10819 = vunpack.c.l.b16 %v10303
    %v10820 = vunpack.c.l.b16 %v10304
    %v10821 = vunpack.c.l.b16 %v10305
    %v10822 = vunpack.c.l.b16 %v10306
    %v10823 = vunpack.c.l.b16 %v10307
    %v10824 = vunpack.c.l.b16 %v10308
    %v10825 = vunpack.c.l.b16 %v10309
    %v10826 = vunpack.c.l.b16 %v10310
    %v10827 = vunpack.c.l.b16 %v10311
    %v10828 = vunpack.c.l.b16 %v10312
    %v10829 = vunpack.c.l.b16 %v10313
    %v10830 = vunpack.c.l.b16 %v10314
    %v10831 = vunpack.c.l.b16 %v10315
    %v10832 = vunpack.c.l.b16 %v10316
    %v10833 = vunpack.c.l.b16 %v10317
    %v10834 = vunpack.c.l.b16 %v10318
    %v10835 = vunpack.c.l.b16 %v10319
    %v10836 = vunpack.c.l.b16 %v10320
    %v10837 = vunpack.c.l.b16 %v10321
    %v10838 = vunpack.c.l.b16 %v10322
    %v10839 = vunpack.c.l.b16 %v10323
    %v10840 = vunpack.c.l.b16 %v10324
    %v10841 = vunpack.c.l.b16 %v10325
    %v10842 = vunpack.c.l.b16 %v10326
    %v10843 = vunpack.c.l.b16 %v10327
    %v10844 = vunpack.c.l.b16 %v10328
    %v10845 = vunpack.c.l.b16 %v10329
    %v10846 = vunpack.c.l.b16 %v10330
    %v10847 = vunpack.c.l.b16 %v10331
    %v10848 = vunpack.c.l.b16 %v10332
    %v10849 = vunpack.c.l.b16 %v10333
    %v10850 = vunpack.c.l.b16 %v10334
    %v10851 = vunpack.c.l.b16 %v10335
    %v10852 = vunpack.c.l.b16 %v10336
    %v10853 = vunpack.c.l.b16 %v10337
    %v10854 = vunpack.c.l.b16 %v10338
    %v10855 = vunpack.c.l.b16 %v10339
    %v10856 = vunpack.c.l.b16 %v10340
    %v10857 = vunpack.c.l.b16 %v10341
    %v10858 = vunpack.c.l.b16 %v10342
    %v10859 = vunpack.c.l.b16 %v10343
    %v10860 = vunpack.c.l.b16 %v10344
    %v10861 = vunpack.c.l.b16 %v10345
    %v10862 = vunpack.c.l.b16 %v10346
    %v10863 = vunpack.c.l.b16 %v10347
    %v10864 = vunpack.c.l.b16 %v10348
    %v10865 = vunpack.c.l.b16 %v10349
    %v10866 = vunpack.c.l.b16 %v10350
    %v10867 = vunpack.c.l.b16 %v10351
    %v10868 = vunpack.c.l.b16 %v10352
    %v10869 = vunpack.c.l.b16 %v10353
    %v10870 = vunpack.c.l.b16 %v10354
    %v10871 = vunpack.c.l.b16 %v10355
    %v10872 = vunpack.c.l.b16 %v10356
    %v10873 = vunpack.c.l.b16 %v10357
    %v10874 = vunpack.c.l.b16 %v10358
    %v10875 = vunpack.c.l.b16 %v10359
    %v10876 = vunpack.c.l.b16 %v10360
    %v10877 = vunpack.c.l.b16 %v10361
    %v10878 = vunpack.c.l.b16 %v10362
    %v10879 = vunpack.c.l.b16 %v10363
    %v10880 = vunpack.c.l.b16 %v10364
    %v10881 = vunpack.c.l.b16 %v10365
    %v10882 = vunpack.c.l.b16 %v10366
    %v10883 = vunpack.c.l.b16 %v10367
    %v10884 = vunpack.c.l.b16 %v10368
    %v10885 = vunpack.c.l.b16 %v10369
    %v10886 = vunpack.c.l.b16 %v10370
    %v10887 = vunpack.c.l.b16 %v10371
    %v10888 = vunpack.c.l.b16 %v10372
    %v10889 = vunpack.c.l.b16 %v10373
    %v10890 = vunpack.c.l.b16 %v10374
    %v10891 = vunpack.c.l.b16 %v10375
    %v10892 = vunpack.c.l.b16 %v10376
    %v10893 = vunpack.c.l.b16 %v10377
    %v10894 = vunpack.c.l.b16 %v10378
    %v10895 = vunpack.c.l.b16 %v10379
    %v10896 = vunpack.c.l.b16 %v10380
    %v10897 = vunpack.c.l.b16 %v10381
    %v10898 = vunpack.c.l.b16 %v10382
    %v10899 = vunpack.c.l.b16 %v10383
    %v10900 = vunpack.c.l.b16 %v10384
    %v10901 = vunpack.c.l.b16 %v10385
    %v10902 = vunpack.c.l.b16 %v10386
    %v10903 = vunpack.c.l.b16 %v10387
    %v10904 = vunpack.c.l.b16 %v10388
    %v10905 = vunpack.c.l.b16 %v10389
    %v10906 = vunpack.c.l.b16 %v10390
    %v10907 = vunpack.c.l.b16 %v10391
    %v10908 = vunpack.c.l.b16 %v10392
    %v10909 = vunpack.c.l.b16 %v10393
    %v10910 = vunpack.c.l.b16 %v10394
    %v10911 = vunpack.c.l.b16 %v10395
    %v10912 = vunpack.c.l.b16 %v10396
    %v10913 = vunpack.c.l.b16 %v10397
    %v10914 = vunpack.c.l.b16 %v10398
    %v10915 = vunpack.c.l.b16 %v10399
    %v10916 = vunpack.c.l.b16 %v10400
    %v10917 = vunpack.c.l.b16 %v10401
    %v10918 = vunpack.c.l.b16 %v10402
    %v10919 = vunpack.c.l.b16 %v10403
    %v10920 = vunpack.c.l.b16 %v10404
    %v10921 = vunpack.c.l.b16 %v10405
    %v10922 = vunpack.c.l.b16 %v10406
    %v10923 = vunpack.c.l.b16 %v10407
    %v10924 = vunpack.c.l.b16 %v10408
    %v10925 = vunpack.c.l.b16 %v10409
    %v10926 = vunpack.c.l.b16 %v10410
    %v10927 = vunpack.c.l.b16 %v10411
    %v10928 = vunpack.c.l.b16 %v10412
    %v10929 = vunpack.c.l.b16 %v10413
    %v10930 = vunpack.c.l.b16 %v10414
    %v10931 = vunpack.c.l.b16 %v10415
    %v10932 = vunpack.c.l.b16 %v10416
    %v10933 = vunpack.c.l.b16 %v10417
    %v10934 = vunpack.c.l.b16 %v10418
    %v10935 = vunpack.c.l.b16 %v10419
    %v10936 = vunpack.c.l.b16 %v10420
    %v10937 = vunpack.c.l.b16 %v10421
    %v10938 = vunpack.c.l.b16 %v10422
    %v10939 = vunpack.c.l.b16 %v10423
    %v10940 = vunpack.c.l.b16 %v10424
    %v10941 = vunpack.c.l.b16 %v10425
    %v10942 = vunpack.c.l.b16 %v10426
    %v10943 = vunpack.c.l.b16 %v10427
    %v10944 = vunpack.c.l.b16 %v10428
    %v10945 = vunpack.c.l.b16 %v10429
    %v10946 = vunpack.c.l.b16 %v10430
    %v10947 = vunpack.c.l.b16 %v10431
    %v10948 = vunpack.c.l.b16 %v10432
    %v10949 = vunpack.c.l.b16 %v10433
    %v10950 = vunpack.c.l.b16 %v10434
    %v10951 = vunpack.c.l.b16 %v10435
    %v10952 = vunpack.c.l.b16 %v10436
    %v10953 = vunpack.c.l.b16 %v10437
    %v10954 = vunpack.c.l.b16 %v10438
    %v10955 = vunpack.c.l.b16 %v10439
    %v10956 = vunpack.c.l.b16 %v10440
    %v10957 = vunpack.c.l.b16 %v10441
    %v10958 = vunpack.c.l.b16 %v10442
    %v10959 = vunpack.c.l.b16 %v10443
    %v10960 = vunpack.c.l.b16 %v10444
    %v10961 = vunpack.c.l.b16 %v10445
    %v10962 = vunpack.c.l.b16 %v10446
    %v10963 = vunpack.c.l.b16 %v10447
    %v10964 = vunpack.c.l.b16 %v10448
    %v10965 = vunpack.c.l.b16 %v10449
    %v10966 = vunpack.c.l.b16 %v10450
    %v10967 = vunpack.c.l.b16 %v10451
    %v10968 = vunpack.c.l.b16 %v10452
    %v10969 = vunpack.c.l.b16 %v10453
    %v10970 = vunpack.c.l.b16 %v10454
    %v10971 = vunpack.c.l.b16 %v10455
    %v10972 = vunpack.c.l.b16 %v10456
    %v10973 = vunpack.c.l.b16 %v10457
    %v10974 = vunpack.c.l.b16 %v10458
    %v10975 = vunpack.c.l.b16 %v10459
    %v10976 = vunpack.c.l.b16 %v10460
    %v10977 = vunpack.c.l.b16 %v10461
    %v10978 = vunpack.c.l.b16 %v10462
    %v10979 = vunpack.c.l.b16 %v10463
    %v10980 = vunpack.c.l.b16 %v10464
    %v10981 = vunpack.c.l.b16 %v10465
    %v10982 = vunpack.c.l.b16 %v10466
    %v10983 = vunpack.c.l.b16 %v10467
    %v10984 = vunpack.c.l.b16 %v10468
    %v10985 = vunpack.c.l.b16 %v10469
    %v10986 = vunpack.c.l.b16 %v10470
    %v10987 = vunpack.c.l.b16 %v10471
    %v10988 = vunpack.c.l.b16 %v10472
    %v10989 = vunpack.c.l.b16 %v10473
    %v10990 = vunpack.c.l.b16 %v10474
    %v10991 = vunpack.c.l.b16 %v10475
    %v10992 = vunpack.c.l.b16 %v10476
    %v10993 = vunpack.c.l.b16 %v10477
    %v10994 = vunpack.c.l.b16 %v10478
    %v10995 = vunpack.c.l.b16 %v10479
    %v10996 = vunpack.c.l.b16 %v10480
    %v10997 = vunpack.c.l.b16 %v10481
    %v10998 = vunpack.c.l.b16 %v10482
    %v10999 = vunpack.c.l.b16 %v10483
    %v11000 = vunpack.c.l.b16 %v10484
    %v11001 = vunpack.c.l.b16 %v10485
    %v11002 = vunpack.c.l.b16 %v10486
    %v11003 = vunpack.c.l.b16 %v10487
    %v11004 = vunpack.c.l.b16 %v10488
    %v11005 = vunpack.c.l.b16 %v10489
    %v11006 = vunpack.c.l.b16 %v10490
    %v11007 = vunpack.c.l.b16 %v10491
    %v11008 = vunpack.c.l.b16 %v10492
    %v11009 = vunpack.c.l.b16 %v10493
    %v11010 = vunpack.c.l.b16 %v10494
    %v11011 = vunpack.c.l.b16 %v10495
    %v11012 = vpack.c.b16 %v10757, %v10756
    %v11013 = vpack.c.b16 %v10759, %v10758
    %v11014 = vpack.c.b16 %v10761, %v10760
    %v11015 = vpack.c.b16 %v10763, %v10762
    %v11016 = vpack.c.b16 %v10765, %v10764
    %v11017 = vpack.c.b16 %v10767, %v10766
    %v11018 = vpack.c.b16 %v10769, %v10768
    %v11019 = vpack.c.b16 %v10771, %v10770
    %v11020 = vpack.c.b16 %v10773, %v10772
    %v11021 = vpack.c.b16 %v10775, %v10774
    %v11022 = vpack.c.b16 %v10777, %v10776
    %v11023 = vpack.c.b16 %v10779, %v10778
    %v11024 = vpack.c.b16 %v10781, %v10780
    %v11025 = vpack.c.b16 %v10783, %v10782
    %v11026 = vpack.c.b16 %v10785, %v10784
    %v11027 = vpack.c.b16 %v10787, %v10786
    %v11028 = vpack.c.b16 %v10789, %v10788
    %v11029 = vpack.c.b16 %v10791, %v10790
    %v11030 = vpack.c.b16 %v10793, %v10792
    %v11031 = vpack.c.b16 %v10795, %v10794
    %v11032 = vpack.c.b16 %v10797, %v10796
    %v11033 = vpack.c.b16 %v10799, %v10798
    %v11034 = vpack.c.b16 %v10801, %v10800
    %v11035 = vpack.c.b16 %v10803, %v10802
    %v11036 = vpack.c.b16 %v10805, %v10804
    %v11037 = vpack.c.b16 %v10807, %v10806
    %v11038 = vpack.c.b16 %v10809, %v10808
    %v11039 = vpack.c.b16 %v10811, %v10810
    %v11040 = vpack.c.b16 %v10813, %v10812
    %v11041 = vpack.c.b16 %v10815, %v10814
    %v11042 = vpack.c.b16 %v10817, %v10816
    %v11043 = vpack.c.b16 %v10819, %v10818
    %v11044 = vpack.c.b16 %v10821, %v10820
    %v11045 = vpack.c.b16 %v10823, %v10822
    %v11046 = vpack.c.b16 %v10825, %v10824
    %v11047 = vpack.c.b16 %v10827, %v10826
    %v11048 = vpack.c.b16 %v10829, %v10828
    %v11049 = vpack.c.b16 %v10831, %v10830
    %v11050 = vpack.c.b16 %v10833, %v10832
    %v11051 = vpack.c.b16 %v10835, %v10834
    %v11052 = vpack.c.b16 %v10837, %v10836
    %v11053 = vpack.c.b16 %v10839, %v10838
    %v11054 = vpack.c.b16 %v10841, %v10840
    %v11055 = vpack.c.b16 %v10843, %v10842
    %v11056 = vpack.c.b16 %v10845, %v10844
    %v11057 = vpack.c.b16 %v10847, %v10846
    %v11058 = vpack.c.b16 %v10849, %v10848
    %v11059 = vpack.c.b16 %v10851, %v10850
    %v11060 = vpack.c.b16 %v10853, %v10852
    %v11061 = vpack.c.b16 %v10855, %v10854
    %v11062 = vpack.c.b16 %v10857, %v10856
    %v11063 = vpack.c.b16 %v10859, %v10858
    %v11064 = vpack.c.b16 %v10861, %v10860
    %v11065 = vpack.c.b16 %v10863, %v10862
    %v11066 = vpack.c.b16 %v10865, %v10864
    %v11067 = vpack.c.b16 %v10867, %v10866
    %v11068 = vpack.c.b16 %v10869, %v10868
    %v11069 = vpack.c.b16 %v10871, %v10870
    %v11070 = vpack.c.b16 %v10873, %v10872
    %v11071 = vpack.c.b16 %v10875, %v10874
    %v11072 = vpack.c.b16 %v10877, %v10876
    %v11073 = vpack.c.b16 %v10879, %v10878
    %v11074 = vpack.c.b16 %v10881, %v10880
    %v11075 = vpack.c.b16 %v10883, %v10882
    %v11076 = vpack.c.b16 %v10885, %v10884
    %v11077 = vpack.c.b16 %v10887, %v10886
    %v11078 = vpack.c.b16 %v10889, %v10888
    %v11079 = vpack.c.b16 %v10891, %v10890
    %v11080 = vpack.c.b16 %v10893, %v10892
    %v11081 = vpack.c.b16 %v10895, %v10894
    %v11082 = vpack.c.b16 %v10897, %v10896
    %v11083 = vpack.c.b16 %v10899, %v10898
    %v11084 = vpack.c.b16 %v10901, %v10900
    %v11085 = vpack.c.b16 %v10903, %v10902
    %v11086 = vpack.c.b16 %v10905, %v10904
    %v11087 = vpack.c.b16 %v10907, %v10906
    %v11088 = vpack.c.b16 %v10909, %v10908
    %v11089 = vpack.c.b16 %v10911, %v10910
    %v11090 = vpack.c.b16 %v10913, %v10912
    %v11091 = vpack.c.b16 %v10915, %v10914
    %v11092 = vpack.c.b16 %v10917, %v10916
    %v11093 = vpack.c.b16 %v10919, %v10918
    %v11094 = vpack.c.b16 %v10921, %v10920
    %v11095 = vpack.c.b16 %v10923, %v10922
    %v11096 = vpack.c.b16 %v10925, %v10924
    %v11097 = vpack.c.b16 %v10927, %v10926
    %v11098 = vpack.c.b16 %v10929, %v10928
    %v11099 = vpack.c.b16 %v10931, %v10930
    %v11100 = vpack.c.b16 %v10933, %v10932
    %v11101 = vpack.c.b16 %v10935, %v10934
    %v11102 = vpack.c.b16 %v10937, %v10936
    %v11103 = vpack.c.b16 %v10939, %v10938
    %v11104 = vpack.c.b16 %v10941, %v10940
    %v11105 = vpack.c.b16 %v10943, %v10942
    %v11106 = vpack.c.b16 %v10945, %v10944
    %v11107 = vpack.c.b16 %v10947, %v10946
    %v11108 = vpack.c.b16 %v10949, %v10948
    %v11109 = vpack.c.b16 %v10951, %v10950
    %v11110 = vpack.c.b16 %v10953, %v10952
    %v11111 = vpack.c.b16 %v10955, %v10954
    %v11112 = vpack.c.b16 %v10957, %v10956
    %v11113 = vpack.c.b16 %v10959, %v10958
    %v11114 = vpack.c.b16 %v10961, %v10960
    %v11115 = vpack.c.b16 %v10963, %v10962
    %v11116 = vpack.c.b16 %v10965, %v10964
    %v11117 = vpack.c.b16 %v10967, %v10966
    %v11118 = vpack.c.b16 %v10969, %v10968
    %v11119 = vpack.c.b16 %v10971, %v10970
    %v11120 = vpack.c.b16 %v10973, %v10972
    %v11121 = vpack.c.b16 %v10975, %v10974
    %v11122 = vpack.c.b16 %v10977, %v10976
    %v11123 = vpack.c.b16 %v10979, %v10978
    %v11124 = vpack.c.b16 %v10981, %v10980
    %v11125 = vpack.c.b16 %v10983, %v10982
    %v11126 = vpack.c.b16 %v10985, %v10984
    %v11127 = vpack.c.b16 %v10987, %v10986
    %v11128 = vpack.c.b16 %v10989, %v10988
    %v11129 = vpack.c.b16 %v10991, %v10990
    %v11130 = vpack.c.b16 %v10993, %v10992
    %v11131 = vpack.c.b16 %v10995, %v10994
    %v11132 = vpack.c.b16 %v10997, %v10996
    %v11133 = vpack.c.b16 %v10999, %v10998
    %v11134 = vpack.c.b16 %v11001, %v11000
    %v11135 = vpack.c.b16 %v11003, %v11002
    %v11136 = vpack.c.b16 %v11005, %v11004
    %v11137 = vpack.c.b16 %v11007, %v11006
    %v11138 = vpack.c.b16 %v11009, %v11008
    %v11139 = vpack.c.b16 %v11011, %v11010
    %11268 = vmatpush.bf16.msra.mxu0 %v11019
    %11269 = vmatpush.bf16.msra.mxu0 %v11018
    %11270 = vmatpush.bf16.msra.mxu0 %v11017
    %11271 = vmatpush.bf16.msra.mxu0 %v11016
    %11272 = vmatpush.bf16.msra.mxu0 %v11015
    %11273 = vmatpush.bf16.msra.mxu0 %v11014
    %11274 = vmatpush.bf16.msra.mxu0 %v11013
    %11275 = vmatpush.bf16.msra.mxu0 %v11012
    %11276 = vmatmul.bf16.gmra.mxu0 %v10224
    %v11277 = vpop.f32.mrf.mxu0
    %v11278 = vadd.f32 %v10498, %v11277
    %v11279 = vpop.f32.mrf.mxu0
    %11280 = vdwg.mxu0
    %11281 = vmatpush.bf16.msra.mxu0 %v11027
    %11282 = vmatpush.bf16.msra.mxu0 %v11026
    %11283 = vmatpush.bf16.msra.mxu0 %v11025
    %11284 = vmatpush.bf16.msra.mxu0 %v11024
    %11285 = vmatpush.bf16.msra.mxu0 %v11023
    %11286 = vmatpush.bf16.msra.mxu0 %v11022
    %11287 = vmatpush.bf16.msra.mxu0 %v11021
    %11288 = vmatpush.bf16.msra.mxu0 %v11020
    %11289 = vmatmul.bf16.gmra.mxu0 %v10225
    %v11290 = vpop.f32.mrf.mxu0
    %v11291 = vadd.f32 %v11278, %v11290
    %v11292 = vpop.f32.mrf.mxu0
    %11293 = vdwg.mxu0
    %11294 = vmatpush.bf16.msra.mxu0 %v11035
    %11295 = vmatpush.bf16.msra.mxu0 %v11034
    %11296 = vmatpush.bf16.msra.mxu0 %v11033
    %11297 = vmatpush.bf16.msra.mxu0 %v11032
    %11298 = vmatpush.bf16.msra.mxu0 %v11031
    %11299 = vmatpush.bf16.msra.mxu0 %v11030
    %11300 = vmatpush.bf16.msra.mxu0 %v11029
    %11301 = vmatpush.bf16.msra.mxu0 %v11028
    %11302 = vmatmul.bf16.gmra.mxu0 %v10226
    %v11303 = vpop.f32.mrf.mxu0
    %v11304 = vadd.f32 %v11291, %v11303
    %v11305 = vpop.f32.mrf.mxu0
    %11306 = vdwg.mxu0
    %11307 = vmatpush.bf16.msra.mxu0 %v11043
    %11308 = vmatpush.bf16.msra.mxu0 %v11042
    %11309 = vmatpush.bf16.msra.mxu0 %v11041
    %11310 = vmatpush.bf16.msra.mxu0 %v11040
    %11311 = vmatpush.bf16.msra.mxu0 %v11039
    %11312 = vmatpush.bf16.msra.mxu0 %v11038
    %11313 = vmatpush.bf16.msra.mxu0 %v11037
    %11314 = vmatpush.bf16.msra.mxu0 %v11036
    %11315 = vmatmul.bf16.gmra.mxu0 %v10227
    %v11316 = vpop.f32.mrf.mxu0
    %v11317 = vadd.f32 %v11304, %v11316
    %v11318 = vpop.f32.mrf.mxu0
    %11319 = vdwg.mxu0
    %11320 = vmatpush.bf16.msra.mxu0 %v11051
    %11321 = vmatpush.bf16.msra.mxu0 %v11050
    %11322 = vmatpush.bf16.msra.mxu0 %v11049
    %11323 = vmatpush.bf16.msra.mxu0 %v11048
    %11324 = vmatpush.bf16.msra.mxu0 %v11047
    %11325 = vmatpush.bf16.msra.mxu0 %v11046
    %11326 = vmatpush.bf16.msra.mxu0 %v11045
    %11327 = vmatpush.bf16.msra.mxu0 %v11044
    %11328 = vmatmul.bf16.gmra.mxu0 %v10228
    %v11329 = vpop.f32.mrf.mxu0
    %v11330 = vadd.f32 %v11317, %v11329
    %v11331 = vpop.f32.mrf.mxu0
    %11332 = vdwg.mxu0
    %11333 = vmatpush.bf16.msra.mxu0 %v11059
    %11334 = vmatpush.bf16.msra.mxu0 %v11058
    %11335 = vmatpush.bf16.msra.mxu0 %v11057
    %11336 = vmatpush.bf16.msra.mxu0 %v11056
    %11337 = vmatpush.bf16.msra.mxu0 %v11055
    %11338 = vmatpush.bf16.msra.mxu0 %v11054
    %11339 = vmatpush.bf16.msra.mxu0 %v11053
    %11340 = vmatpush.bf16.msra.mxu0 %v11052
    %11341 = vmatmul.bf16.gmra.mxu0 %v10229
    %v11342 = vpop.f32.mrf.mxu0
    %v11343 = vadd.f32 %v11330, %v11342
    %v11344 = vpop.f32.mrf.mxu0
    %11345 = vdwg.mxu0
    %11346 = vmatpush.bf16.msra.mxu0 %v11067
    %11347 = vmatpush.bf16.msra.mxu0 %v11066
    %11348 = vmatpush.bf16.msra.mxu0 %v11065
    %11349 = vmatpush.bf16.msra.mxu0 %v11064
    %11350 = vmatpush.bf16.msra.mxu0 %v11063
    %11351 = vmatpush.bf16.msra.mxu0 %v11062
    %11352 = vmatpush.bf16.msra.mxu0 %v11061
    %11353 = vmatpush.bf16.msra.mxu0 %v11060
    %11354 = vmatmul.bf16.gmra.mxu0 %v10230
    %v11355 = vpop.f32.mrf.mxu0
    %v11356 = vadd.f32 %v11343, %v11355
    %v11357 = vpop.f32.mrf.mxu0
    %11358 = vdwg.mxu0
    %11359 = vmatpush.bf16.msra.mxu0 %v11075
    %11360 = vmatpush.bf16.msra.mxu0 %v11074
    %11361 = vmatpush.bf16.msra.mxu0 %v11073
    %11362 = vmatpush.bf16.msra.mxu0 %v11072
    %11363 = vmatpush.bf16.msra.mxu0 %v11071
    %11364 = vmatpush.bf16.msra.mxu0 %v11070
    %11365 = vmatpush.bf16.msra.mxu0 %v11069
    %11366 = vmatpush.bf16.msra.mxu0 %v11068
    %11367 = vmatmul.bf16.gmra.mxu0 %v10231
    %v11368 = vpop.f32.mrf.mxu0
    %v11369 = vadd.f32 %v11356, %v11368
    %v11370 = vpop.f32.mrf.mxu0
    %11371 = vdwg.mxu0
    %11372 = vmatpush.bf16.msra.mxu0 %v11083
    %11373 = vmatpush.bf16.msra.mxu0 %v11082
    %11374 = vmatpush.bf16.msra.mxu0 %v11081
    %11375 = vmatpush.bf16.msra.mxu0 %v11080
    %11376 = vmatpush.bf16.msra.mxu0 %v11079
    %11377 = vmatpush.bf16.msra.mxu0 %v11078
    %11378 = vmatpush.bf16.msra.mxu0 %v11077
    %11379 = vmatpush.bf16.msra.mxu0 %v11076
    %11380 = vmatmul.bf16.gmra.mxu0 %v10232
    %v11381 = vpop.f32.mrf.mxu0
    %v11382 = vadd.f32 %v11369, %v11381
    %v11383 = vpop.f32.mrf.mxu0
    %11384 = vdwg.mxu0
    %11385 = vmatpush.bf16.msra.mxu0 %v11091
    %11386 = vmatpush.bf16.msra.mxu0 %v11090
    %11387 = vmatpush.bf16.msra.mxu0 %v11089
    %11388 = vmatpush.bf16.msra.mxu0 %v11088
    %11389 = vmatpush.bf16.msra.mxu0 %v11087
    %11390 = vmatpush.bf16.msra.mxu0 %v11086
    %11391 = vmatpush.bf16.msra.mxu0 %v11085
    %11392 = vmatpush.bf16.msra.mxu0 %v11084
    %11393 = vmatmul.bf16.gmra.mxu0 %v10233
    %v11394 = vpop.f32.mrf.mxu0
    %v11395 = vadd.f32 %v11382, %v11394
    %v11396 = vpop.f32.mrf.mxu0
    %11397 = vdwg.mxu0
    %11398 = vmatpush.bf16.msra.mxu0 %v11099
    %11399 = vmatpush.bf16.msra.mxu0 %v11098
    %11400 = vmatpush.bf16.msra.mxu0 %v11097
    %11401 = vmatpush.bf16.msra.mxu0 %v11096
    %11402 = vmatpush.bf16.msra.mxu0 %v11095
    %11403 = vmatpush.bf16.msra.mxu0 %v11094
    %11404 = vmatpush.bf16.msra.mxu0 %v11093
    %11405 = vmatpush.bf16.msra.mxu0 %v11092
    %11406 = vmatmul.bf16.gmra.mxu0 %v10234
    %v11407 = vpop.f32.mrf.mxu0
    %v11408 = vadd.f32 %v11395, %v11407
    %v11409 = vpop.f32.mrf.mxu0
    %11410 = vdwg.mxu0
    %11411 = vmatpush.bf16.msra.mxu0 %v11107
    %11412 = vmatpush.bf16.msra.mxu0 %v11106
    %11413 = vmatpush.bf16.msra.mxu0 %v11105
    %11414 = vmatpush.bf16.msra.mxu0 %v11104
    %11415 = vmatpush.bf16.msra.mxu0 %v11103
    %11416 = vmatpush.bf16.msra.mxu0 %v11102
    %11417 = vmatpush.bf16.msra.mxu0 %v11101
    %11418 = vmatpush.bf16.msra.mxu0 %v11100
    %11419 = vmatmul.bf16.gmra.mxu0 %v10235
    %v11420 = vpop.f32.mrf.mxu0
    %v11421 = vadd.f32 %v11408, %v11420
    %v11422 = vpop.f32.mrf.mxu0
    %11423 = vdwg.mxu0
    %11424 = vmatpush.bf16.msra.mxu0 %v11115
    %11425 = vmatpush.bf16.msra.mxu0 %v11114
    %11426 = vmatpush.bf16.msra.mxu0 %v11113
    %11427 = vmatpush.bf16.msra.mxu0 %v11112
    %11428 = vmatpush.bf16.msra.mxu0 %v11111
    %11429 = vmatpush.bf16.msra.mxu0 %v11110
    %11430 = vmatpush.bf16.msra.mxu0 %v11109
    %11431 = vmatpush.bf16.msra.mxu0 %v11108
    %11432 = vmatmul.bf16.gmra.mxu0 %v10236
    %v11433 = vpop.f32.mrf.mxu0
    %v11434 = vadd.f32 %v11421, %v11433
    %v11435 = vpop.f32.mrf.mxu0
    %11436 = vdwg.mxu0
    %11437 = vmatpush.bf16.msra.mxu0 %v11123
    %11438 = vmatpush.bf16.msra.mxu0 %v11122
    %11439 = vmatpush.bf16.msra.mxu0 %v11121
    %11440 = vmatpush.bf16.msra.mxu0 %v11120
    %11441 = vmatpush.bf16.msra.mxu0 %v11119
    %11442 = vmatpush.bf16.msra.mxu0 %v11118
    %11443 = vmatpush.bf16.msra.mxu0 %v11117
    %11444 = vmatpush.bf16.msra.mxu0 %v11116
    %11445 = vmatmul.bf16.gmra.mxu0 %v10237
    %v11446 = vpop.f32.mrf.mxu0
    %v11447 = vadd.f32 %v11434, %v11446
    %v11448 = vpop.f32.mrf.mxu0
    %11449 = vdwg.mxu0
    %11450 = vmatpush.bf16.msra.mxu0 %v11131
    %11451 = vmatpush.bf16.msra.mxu0 %v11130
    %11452 = vmatpush.bf16.msra.mxu0 %v11129
    %11453 = vmatpush.bf16.msra.mxu0 %v11128
    %11454 = vmatpush.bf16.msra.mxu0 %v11127
    %11455 = vmatpush.bf16.msra.mxu0 %v11126
    %11456 = vmatpush.bf16.msra.mxu0 %v11125
    %11457 = vmatpush.bf16.msra.mxu0 %v11124
    %11458 = vmatmul.bf16.gmra.mxu0 %v10238
    %v11459 = vpop.f32.mrf.mxu0
    %v11460 = vadd.f32 %v11447, %v11459
    %v11461 = vpop.f32.mrf.mxu0
    %11462 = vdwg.mxu0
    %11463 = vmatpush.bf16.msra.mxu0 %v11139
    %11464 = vmatpush.bf16.msra.mxu0 %v11138
    %11465 = vmatpush.bf16.msra.mxu0 %v11137
    %11466 = vmatpush.bf16.msra.mxu0 %v11136
    %11467 = vmatpush.bf16.msra.mxu0 %v11135
    %11468 = vmatpush.bf16.msra.mxu0 %v11134
    %11469 = vmatpush.bf16.msra.mxu0 %v11133
    %11470 = vmatpush.bf16.msra.mxu0 %v11132
    %11471 = vmatmul.bf16.gmra.mxu0 %v10239
    %v11472 = vpop.f32.mrf.mxu0
    %v11473 = vadd.f32 %v11460, %v11472
    %v11474 = vpop.f32.mrf.mxu0
    %11475 = vdwg.mxu0
    %v11476 = vmax.f32 %v11473, 0.0
    %v11477 = vpack.c.bf16 %v11476, %v11476
    %v11478 = vld [vmem:[%s7] sm:$0xf]
    %v11479 = vld [vmem:[%s7 + $0x4] sm:$0xf]
    %v11480 = vld [vmem:[%s7 + $0x8] sm:$0xf]
    %v11481 = vld [vmem:[%s7 + $0xc] sm:$0xf]
    %v11482 = vld [vmem:[%s7 + $0x10] sm:$0xf]
    %v11483 = vld [vmem:[%s7 + $0x14] sm:$0xf]
    %v11484 = vld [vmem:[%s7 + $0x18] sm:$0xf]
    %v11485 = vld [vmem:[%s7 + $0x1c] sm:$0xf]
    %v11486 = vld [vmem:[%s7 + $0x20] sm:$0xf]
    %v11487 = vld [vmem:[%s7 + $0x24] sm:$0xf]
    %v11488 = vld [vmem:[%s7 + $0x28] sm:$0xf]
    %v11489 = vld [vmem:[%s7 + $0x2c] sm:$0xf]
    %v11490 = vld [vmem:[%s7 + $0x30] sm:$0xf]
    %v11491 = vld [vmem:[%s7 + $0x34] sm:$0xf]
    %v11492 = vld [vmem:[%s7 + $0x38] sm:$0xf]
    %v11493 = vld [vmem:[%s7 + $0x3c] sm:$0xf]
    %v11494 = vld [vmem:[%s8] sm:$0x1]
    %v11496 = vperm.slane %v11494, 0
    %v11514 = vunpack.c.l.b16 %v11478
    %v11515 = vunpack.c.l.b16 %v11479
    %v11516 = vunpack.c.l.b16 %v11480
    %v11517 = vunpack.c.l.b16 %v11481
    %v11518 = vunpack.c.l.b16 %v11482
    %v11519 = vunpack.c.l.b16 %v11483
    %v11520 = vunpack.c.l.b16 %v11484
    %v11521 = vunpack.c.l.b16 %v11485
    %v11522 = vunpack.c.l.b16 %v11486
    %v11523 = vunpack.c.l.b16 %v11487
    %v11524 = vunpack.c.l.b16 %v11488
    %v11525 = vunpack.c.l.b16 %v11489
    %v11526 = vunpack.c.l.b16 %v11490
    %v11527 = vunpack.c.l.b16 %v11491
    %v11528 = vunpack.c.l.b16 %v11492
    %v11529 = vunpack.c.l.b16 %v11493
    %v11530 = vpack.c.b16 %v11515, %v11514
    %v11531 = vpack.c.b16 %v11517, %v11516
    %v11532 = vpack.c.b16 %v11519, %v11518
    %v11533 = vpack.c.b16 %v11521, %v11520
    %v11534 = vpack.c.b16 %v11523, %v11522
    %v11535 = vpack.c.b16 %v11525, %v11524
    %v11536 = vpack.c.b16 %v11527, %v11526
    %v11537 = vpack.c.b16 %v11529, %v11528
    %11546 = vmatpush.bf16.msra.mxu0 %v11537
    %11547 = vmatpush.bf16.msra.mxu0 %v11536
    %11548 = vmatpush.bf16.msra.mxu0 %v11535
    %11549 = vmatpush.bf16.msra.mxu0 %v11534
    %11550 = vmatpush.bf16.msra.mxu0 %v11533
    %11551 = vmatpush.bf16.msra.mxu0 %v11532
    %11552 = vmatpush.bf16.msra.mxu0 %v11531
    %11553 = vmatpush.bf16.msra.mxu0 %v11530
    %11554 = vmatmul.bf16.gmra.mxu0 %v11477
    %v11555 = vpop.f32.mrf.mxu0
    %v11556 = vadd.f32 %v11496, %v11555
    %v11557 = vpop.f32.mrf.mxu0
    %11558 = vdwg.mxu0
    %vm11559 = vcmask 74752
    %v11560 = vsel %vm11559, %v11556, -inf
    %11561 = vmax.xlane.f32.xlu0 %v11560
    %v11562 = vpop.xlane.xlu0 %11561
    %v11563 = vsub.f32 %v11556, %v11562
    %v11564 = vmul.f32 %v11563, 1.442695
    %v11565 = vpow.pop %v11564
    %v11566 = vsel %vm11559, %v11565, 0.0
    %11567 = vadd.xlane.f32.xlu0 %v11566
    %v11568 = vpop.xlane.xlu0 %11567
    %v11569 = vlog2.pop %v11568
    %v11570 = vmul.f32 %v11569, 0.6931472
    %v11571 = vadd.f32 %v11570, %v11562
    %v11572 = vsub.f32 %v11556, %v11571
    %11573 = vst.msk [vmem:[#allocation10] sm:$0x3] %vm11559, %v11572
    // Predicated region
    $region50: #{tpu_custom_call.1} parent=1 // pred_check
      _
    $region51: #{tpu_custom_call.1} parent=1 // pred_check_branch
      %11575 = sbr.rel (0) target = $region53
    $region52: #{tpu_custom_call.1} parent=1 // pred_region
      %11577 = vsyncadd [#allocation6], 0
      %s11579 = sshll.u32 [#allocation10], 4
      %s11580 = int_to_ptr.vmem [resolvable:$true] %s11579
      %s11581 = sshll.u32 %s9, 4
      %s11582 = int_to_ptr.hbm [resolvable:$true] %s11581
      %11584 = dma.vmem_to_hbm [thread:$0]  %s11580, 32, %s11582, [#allocation6]
    $region53: #{tpu_custom_call.1} parent=1 // pred_fallthru
      _
    // Predicated region
    $region54: #{tpu_custom_call.1} parent=1 // pred_check
      _
    $region55: #{tpu_custom_call.1} parent=1 // pred_check_branch
      %11586 = sbr.rel (0) target = $region57
    $region56: #{tpu_custom_call.1} parent=1 // pred_region
      %11588 = dma.done [#allocation6], 32
    $region57: #{tpu_custom_call.1} parent=1 // pred_fallthru
      _
    %11589 = vsyncpa [#allocation5], 1
    %11590 = vsyncpa [#allocation8], 1
    %11591 = vsyncpa [#allocation6], 1

</llo_original>
